<compile_context>
chip_gen: v7x
topology: tpu7x:2x2x1
jax: 0.10.0
libtpu: 0.0.40
codegen_flags: <defaults>
</compile_context>

<pallas_src>
import functools

import jax
import jax.numpy as jnp
import numpy as np
from jax.experimental import pallas as pl
from jax.experimental.pallas import tpu as pltpu


def _round_up(v, m):
    return ((v + m - 1) // m) * m


def _pick_block(total, align, cap):
    """Block size along a 'parallel' grid axis.

    Splits the axis into >= 2 grid steps whenever alignment allows, so
    dimension_semantics=("parallel",) can shard across v7x's two TensorCores;
    otherwise returns the full extent (single step)."""
    if total <= align:
        return total
    return min(cap, _round_up(pl.cdiv(total, 2), align))


# ---------------------------------------------------------------------------
# Feature probe: single-buffered resident blocks via pipeline_mode=pl.Buffered(1).
# If unsupported on this JAX build, fall back to default (double) buffering.
# ---------------------------------------------------------------------------
def _probe_single_buffered():
    if not hasattr(pl, "Buffered"):
        return False

    def _copy(x_ref, o_ref):
        o_ref[...] = x_ref[...]

    try:
        fn = pl.pallas_call(
            _copy,
            out_shape=jax.ShapeDtypeStruct((8, 128), jnp.float32),
            grid=(2,),
            in_specs=[pl.BlockSpec((8, 128), lambda i: (0, 0),
                                   pipeline_mode=pl.Buffered(1))],
            out_specs=pl.BlockSpec((8, 128), lambda i: (0, 0)),
        )
        jax.block_until_ready(fn(jnp.ones((8, 128), jnp.float32)))
        return True
    except Exception:
        return False


_SINGLE_BUFFER_OK = _probe_single_buffered()


def _resident_spec(block_shape, index_map):
    """BlockSpec for a block whose index_map is constant across the grid."""
    if _SINGLE_BUFFER_OK:
        return pl.BlockSpec(block_shape, index_map, pipeline_mode=pl.Buffered(1))
    return pl.BlockSpec(block_shape, index_map)


# ---------------------------------------------------------------------------
# Kernel A: 1x1 conv (as matmul) + folded BN + ReLU on the pooled activation.
#   x_ref : [bm, C]   bf16  pooled pixels, channels-last (row = n*16 + h*4 + w)
#   w_ref : [C, 128]  bf16  (conv weight * BN scale)
#   b_ref : [1, 128]  f32   BN shift (beta - running_mean * scale)
#   o_ref : [bm, 128] bf16
# ---------------------------------------------------------------------------
def conv_bn_relu_kernel(x_ref, w_ref, b_ref, o_ref):
    y = jnp.dot(x_ref[...], w_ref[...], preferred_element_type=jnp.float32)
    y = y + b_ref[...]
    o_ref[...] = jnp.maximum(y, 0.0).astype(o_ref.dtype)


# ---------------------------------------------------------------------------
# Kernel B: fc1 + ReLU + (dropout == identity in eval) + fc2 (lane-padded out).
#   x_ref  : [bn, 2048]  bf16
#   w1_ref : [2048, 1024] bf16, b1_ref : [1, 1024] f32
#   w2_ref : [1024, Kp]   bf16, b2_ref : [1, Kp]   f32   (Kp = round_up(num_classes, 128))
#   o_ref  : [bn, Kp] f32
# ---------------------------------------------------------------------------
def mlp_kernel(x_ref, w1_ref, b1_ref, w2_ref, b2_ref, o_ref):
    h = jnp.dot(x_ref[...], w1_ref[...], preferred_element_type=jnp.float32) + b1_ref[...]
    h = jnp.maximum(h, 0.0).astype(w2_ref.dtype)
    out = jnp.dot(h, w2_ref[...], preferred_element_type=jnp.float32) + b2_ref[...]
    o_ref[...] = out.astype(o_ref.dtype)


def init_params(key, in_channels, num_classes):
    ks = jax.random.split(key, 8)
    return {
        # conv: nn.Conv2d(in_channels, 128, kernel_size=1, bias=False) -> [128, C]
        "wc": 0.05 * jax.random.normal(ks[0], (128, in_channels), jnp.float32),
        # BatchNorm2d(128, eps=0.001) running stats / affine params
        "gamma": 1.0 + 0.1 * jax.random.normal(ks[1], (128,), jnp.float32),
        "beta": 0.1 * jax.random.normal(ks[2], (128,), jnp.float32),
        "rmean": 0.1 * jax.random.normal(ks[3], (128,), jnp.float32),
        "rvar": jnp.abs(jax.random.normal(ks[4], (128,), jnp.float32)) + 0.5,
        # fc1: Linear(2048, 1024)
        "w1": 0.02 * jax.random.normal(ks[5], (1024, 2048), jnp.float32),
        "b1": 0.01 * jax.random.normal(ks[6], (1024,), jnp.float32),
        # fc2: Linear(1024, num_classes)
        "w2": 0.02 * jax.random.normal(ks[7], (num_classes, 1024), jnp.float32),
        "b2": jnp.zeros((num_classes,), jnp.float32),
    }


def prepare_params(params, eps=1e-3):
    """One-time weight preparation (run once, outside the per-call forward).

    - BN (eval mode) folded into conv weight (scale) and a [1,128] bias (shift).
    - fc1 rows permuted from PyTorch's channel-major flatten order (c, h, w) to the
      (h, w, c) order kernel A naturally produces -> no activation transpose per call.
    - fc2 weight/bias padded to a multiple of 128 output lanes (unmasked stores).
    - Weights cast to bf16 (MXU-native); biases kept f32 for the f32 accumulator.
    """
    scale = params["gamma"] / jnp.sqrt(params["rvar"] + eps)              # [128]
    shift = params["beta"] - params["rmean"] * scale                      # [128]
    wc = (params["wc"].T * scale[None, :]).astype(jnp.bfloat16)           # [C, 128]
    w1_t = params["w1"].T                                                 # [2048, 1024], rows (c,h,w)
    w1 = w1_t.reshape(128, 4, 4, 1024).transpose(1, 2, 0, 3).reshape(2048, 1024)
    ncls = params["w2"].shape[0]
    kp = _round_up(ncls, 128)
    w2 = jnp.zeros((1024, kp), jnp.bfloat16).at[:, :ncls].set(
        params["w2"].T.astype(jnp.bfloat16))                              # [1024, Kp]
    b2 = jnp.zeros((1, kp), jnp.float32).at[0, :ncls].set(params["b2"])
    return {
        "wc": wc,
        "bc": shift.reshape(1, 128).astype(jnp.float32),
        "w1": w1.astype(jnp.bfloat16),                                    # rows (h,w,c)
        "b1": params["b1"].reshape(1, -1).astype(jnp.float32),
        "w2": w2,
        "b2": b2,
    }


@functools.partial(jax.jit, static_argnames=("num_classes",))
def inception_aux_forward(x, prep, *, num_classes):
    """x: NCHW float32 [N, C, H, W], H % 4 == 0 and W % 4 == 0 (eval semantics)."""
    N, C, H, W = x.shape
    kh, kw = H // 4, W // 4

    # --- adaptive_avg_pool2d(x, (4,4)): read-once f32 reduction; only the tiny pooled
    #     tensor is transposed to channels-last and cast to bf16. ---
    xp = x.reshape(N, C, 4, kh, 4, kw).mean(axis=(3, 5))                  # [N, C, 4, 4] f32
    xp = xp.transpose(0, 2, 3, 1).reshape(N * 16, C).astype(jnp.bfloat16)  # [N*16, C]

    # --- Kernel A: 1x1 conv + BN + ReLU, tiled over M = N*16 (parallel axis) ---
    M = N * 16
    bm = _pick_block(M, 16, 512)
    conv_out = pl.pallas_call(
        conv_bn_relu_kernel,
        out_shape=jax.ShapeDtypeStruct((M, 128), jnp.bfloat16),
        grid=(pl.cdiv(M, bm),),
        in_specs=[
            pl.BlockSpec((bm, C), lambda i: (i, 0)),
            _resident_spec((C, 128), lambda i: (0, 0)),
            _resident_spec((1, 128), lambda i: (0, 0)),
        ],
        out_specs=pl.BlockSpec((bm, 128), lambda i: (i, 0)),
        compiler_params=pltpu.CompilerParams(dimension_semantics=("parallel",)),
    )(xp, prep["wc"], prep["bc"])

    # fc1 rows were pre-permuted to (h, w, c) order -> direct reshape, no transpose.
    flat = conv_out.reshape(N, 2048)

    # --- Kernel B: fc1 + ReLU + (dropout identity) + fc2, tiled over batch ---
    kp = prep["w2"].shape[1]                                              # padded classes
    bn = _pick_block(N, 8, 256)
    out = pl.pallas_call(
        mlp_kernel,
        out_shape=jax.ShapeDtypeStruct((N, kp), jnp.float32),
        grid=(pl.cdiv(N, bn),),
        in_specs=[
            pl.BlockSpec((bn, 2048), lambda i: (i, 0)),
            _resident_spec((2048, 1024), lambda i: (0, 0)),
            _resident_spec((1, 1024), lambda i: (0, 0)),
            _resident_spec((1024, kp), lambda i: (0, 0)),
            _resident_spec((1, kp), lambda i: (0, 0)),
        ],
        out_specs=pl.BlockSpec((bn, kp), lambda i: (i, 0)),
        compiler_params=pltpu.CompilerParams(dimension_semantics=("parallel",)),
    )(flat, prep["w1"], prep["b1"], prep["w2"], prep["b2"])

    return out[:, :num_classes]


def reference_forward(x, params):
    """Pure-JAX f32 reference replicating the PyTorch module (eval mode)."""
    N, C, H, W = x.shape
    kh, kw = H // 4, W // 4
    eps = 1e-3
    xp = x.reshape(N, C, 4, kh, 4, kw).mean(axis=(3, 5))                  # [N, C, 4, 4]
    y = jnp.einsum("nchw,oc->nohw", xp, params["wc"])                     # [N, 128, 4, 4]
    scale = params["gamma"] / jnp.sqrt(params["rvar"] + eps)
    shift = params["beta"] - params["rmean"] * scale
    y = y * scale[None, :, None, None] + shift[None, :, None, None]
    y = jnp.maximum(y, 0.0)
    f = y.reshape(N, 2048)                                                # channel-major flatten
    h = jnp.maximum(f @ params["w1"].T + params["b1"], 0.0)
    return h @ params["w2"].T + params["b2"]


if __name__ == "__main__":
    key = jax.random.PRNGKey(0)
    kx, kparam = jax.random.split(key)

    N, C, H, W = 2, 16, 8, 8        # small NCHW input; H, W divisible by 4
    num_classes = 10

    x = jax.random.normal(kx, (N, C, H, W), jnp.float32)
    params = init_params(kparam, C, num_classes)
    prep = prepare_params(params)   # one-time weight prep (outside the jitted forward)

    out = inception_aux_forward(x, prep, num_classes=num_classes)
    out = jax.block_until_ready(out)

    ref = reference_forward(x, params)
    # bf16 matmul operands (f32 accumulation) vs f32 reference -> loosened tolerance.
    np.testing.assert_allclose(np.asarray(out), np.asarray(ref), rtol=5e-2, atol=1e-2)

    assert out.shape == (N, num_classes)
    print("KERNEL_OK")
</pallas_src>

<mosaic_0001>
module attributes {stable_mosaic.version = 11 : i64} {
  func.func @_copy(%arg0: i32, %arg1: memref<8x128xf32, #tpu.memory_space<vmem>>, %arg2: memref<8x128xf32, #tpu.memory_space<vmem>>) attributes {dimension_semantics = [#tpu.dimension_semantics<arbitrary>], iteration_bounds = array<i64: 2>, scalar_prefetch = 0 : i64, scratch_operands = 0 : i64, tpu.core_type = #tpu.core_type<tc>, window_params = [{pipeline_mode = #tpu.pipeline_mode<synchronous>, transform_indices = @transform_0, window_bounds = array<i64: 8, 128>}, {pipeline_mode = #tpu.pipeline_mode<synchronous>, transform_indices = @transform_1, window_bounds = array<i64: 8, 128>}]} {
    %c0 = arith.constant 0 : index
    %c0_0 = arith.constant 0 : index
    %0 = vector.load %arg1[%c0, %c0_0] : memref<8x128xf32, #tpu.memory_space<vmem>>, vector<8x128xf32>
    %c0_1 = arith.constant 0 : index
    %c0_2 = arith.constant 0 : index
    %1 = vector.load %arg2[%c0_1, %c0_2] : memref<8x128xf32, #tpu.memory_space<vmem>>, vector<8x128xf32>
    tpu.vector_store %arg2[%c0_1, %c0_2], %0 {strides = array<i32>} : memref<8x128xf32, #tpu.memory_space<vmem>>, vector<8x128xf32>,
    return
  }
  func.func @transform_0(%arg0: i32) -> (i32, i32) {
    %c0_i32 = arith.constant 0 : i32
    %c0_i32_0 = arith.constant 0 : i32
    %c0_i32_1 = arith.constant 0 : i32
    return %c0_i32, %c0_i32_0 : i32, i32
  }
  func.func @transform_1(%arg0: i32) -> (i32, i32) {
    %c0_i32 = arith.constant 0 : i32
    %c0_i32_0 = arith.constant 0 : i32
    %c0_i32_1 = arith.constant 0 : i32
    return %c0_i32, %c0_i32_0 : i32, i32
  }
}

module attributes {stable_mosaic.version = 11 : i64} {
  func.func @conv_bn_relu_kernel(%arg0: i32, %arg1: memref<16x16xbf16, #tpu.memory_space<vmem>>, %arg2: memref<16x128xbf16, #tpu.memory_space<vmem>>, %arg3: memref<1x128xf32, #tpu.memory_space<vmem>>, %arg4: memref<16x128xbf16, #tpu.memory_space<vmem>>) attributes {dimension_semantics = [#tpu.dimension_semantics<parallel>], iteration_bounds = array<i64: 2>, scalar_prefetch = 0 : i64, scratch_operands = 0 : i64, tpu.core_type = #tpu.core_type<tc>, window_params = [{transform_indices = @transform_0, window_bounds = array<i64: 16, 16>}, {pipeline_mode = #tpu.pipeline_mode<synchronous>, transform_indices = @transform_1, window_bounds = array<i64: 16, 128>}, {pipeline_mode = #tpu.pipeline_mode<synchronous>, transform_indices = @transform_2, window_bounds = array<i64: 1, 128>}, {transform_indices = @transform_3, window_bounds = array<i64: 16, 128>}]} {
    %c0 = arith.constant 0 : index
    %c0_0 = arith.constant 0 : index
    %0 = vector.load %arg1[%c0, %c0_0] : memref<16x16xbf16, #tpu.memory_space<vmem>>, vector<16x16xbf16>
    %c0_1 = arith.constant 0 : index
    %c0_2 = arith.constant 0 : index
    %1 = vector.load %arg2[%c0_1, %c0_2] : memref<16x128xbf16, #tpu.memory_space<vmem>>, vector<16x128xbf16>
    %cst = arith.constant dense<0.000000e+00> : vector<16x128xf32>
    %2 = tpu.matmul %0, %1, %cst {dimension_numbers = #tpu.dot_dimension_numbers<[1], [0], [0], [1], [0, 0, 1, 1], [], []>} : vector<16x16xbf16>, vector<16x128xbf16>, vector<16x128xf32> -> vector<16x128xf32>
    %c0_3 = arith.constant 0 : index
    %c0_4 = arith.constant 0 : index
    %3 = vector.load %arg3[%c0_3, %c0_4] : memref<1x128xf32, #tpu.memory_space<vmem>>, vector<1x128xf32>
    %4 = vector.broadcast %3 : vector<1x128xf32> to vector<16x128xf32>
    %5 = arith.addf %2, %4 : vector<16x128xf32>
    %cst_5 = arith.constant 0.000000e+00 : f32
    %6 = vector.broadcast %cst_5 : f32 to vector<16x128xf32>
    %7 = arith.maximumf %5, %6 : vector<16x128xf32>
    %8 = arith.truncf %7 : vector<16x128xf32> to vector<16x128xbf16>
    %c0_6 = arith.constant 0 : index
    %c0_7 = arith.constant 0 : index
    %9 = vector.load %arg4[%c0_6, %c0_7] : memref<16x128xbf16, #tpu.memory_space<vmem>>, vector<16x128xbf16>
    tpu.vector_store %arg4[%c0_6, %c0_7], %8 {strides = array<i32>} : memref<16x128xbf16, #tpu.memory_space<vmem>>, vector<16x128xbf16>,
    return
  }
  func.func @transform_0(%arg0: i32) -> (i32, i32) {
    %c0_i32 = arith.constant 0 : i32
    %c0_i32_0 = arith.constant 0 : i32
    return %arg0, %c0_i32 : i32, i32
  }
  func.func @transform_1(%arg0: i32) -> (i32, i32) {
    %c0_i32 = arith.constant 0 : i32
    %c0_i32_0 = arith.constant 0 : i32
    %c0_i32_1 = arith.constant 0 : i32
    return %c0_i32, %c0_i32_0 : i32, i32
  }
  func.func @transform_2(%arg0: i32) -> (i32, i32) {
    %c0_i32 = arith.constant 0 : i32
    %c0_i32_0 = arith.constant 0 : i32
    %c0_i32_1 = arith.constant 0 : i32
    return %c0_i32, %c0_i32_0 : i32, i32
  }
  func.func @transform_3(%arg0: i32) -> (i32, i32) {
    %c0_i32 = arith.constant 0 : i32
    %c0_i32_0 = arith.constant 0 : i32
    return %arg0, %c0_i32 : i32, i32
  }
}

module attributes {stable_mosaic.version = 11 : i64} {
  func.func @mlp_kernel(%arg0: i32, %arg1: memref<2x2048xbf16, #tpu.memory_space<vmem>>, %arg2: memref<2048x1024xbf16, #tpu.memory_space<vmem>>, %arg3: memref<1x1024xf32, #tpu.memory_space<vmem>>, %arg4: memref<1024x128xbf16, #tpu.memory_space<vmem>>, %arg5: memref<1x128xf32, #tpu.memory_space<vmem>>, %arg6: memref<2x128xf32, #tpu.memory_space<vmem>>) attributes {dimension_semantics = [#tpu.dimension_semantics<parallel>], iteration_bounds = array<i64: 1>, scalar_prefetch = 0 : i64, scratch_operands = 0 : i64, tpu.core_type = #tpu.core_type<tc>, window_params = [{transform_indices = @transform_0, window_bounds = array<i64: 2, 2048>}, {pipeline_mode = #tpu.pipeline_mode<synchronous>, transform_indices = @transform_1, window_bounds = array<i64: 2048, 1024>}, {pipeline_mode = #tpu.pipeline_mode<synchronous>, transform_indices = @transform_2, window_bounds = array<i64: 1, 1024>}, {pipeline_mode = #tpu.pipeline_mode<synchronous>, transform_indices = @transform_3, window_bounds = array<i64: 1024, 128>}, {pipeline_mode = #tpu.pipeline_mode<synchronous>, transform_indices = @transform_4, window_bounds = array<i64: 1, 128>}, {transform_indices = @transform_5, window_bounds = array<i64: 2, 128>}]} {
    %c0 = arith.constant 0 : index
    %c0_0 = arith.constant 0 : index
    %0 = vector.load %arg1[%c0, %c0_0] : memref<2x2048xbf16, #tpu.memory_space<vmem>>, vector<2x2048xbf16>
    %c0_1 = arith.constant 0 : index
    %c0_2 = arith.constant 0 : index
    %1 = vector.load %arg2[%c0_1, %c0_2] : memref<2048x1024xbf16, #tpu.memory_space<vmem>>, vector<2048x1024xbf16>
    %cst = arith.constant dense<0.000000e+00> : vector<2x1024xf32>
    %2 = tpu.matmul %0, %1, %cst {dimension_numbers = #tpu.dot_dimension_numbers<[1], [0], [0], [1], [0, 0, 1, 1], [], []>} : vector<2x2048xbf16>, vector<2048x1024xbf16>, vector<2x1024xf32> -> vector<2x1024xf32>
    %c0_3 = arith.constant 0 : index
    %c0_4 = arith.constant 0 : index
    %3 = vector.load %arg3[%c0_3, %c0_4] : memref<1x1024xf32, #tpu.memory_space<vmem>>, vector<1x1024xf32>
    %4 = vector.broadcast %3 : vector<1x1024xf32> to vector<2x1024xf32>
    %5 = arith.addf %2, %4 : vector<2x1024xf32>
    %cst_5 = arith.constant 0.000000e+00 : f32
    %6 = vector.broadcast %cst_5 : f32 to vector<2x1024xf32>
    %7 = arith.maximumf %5, %6 : vector<2x1024xf32>
    %8 = arith.truncf %7 : vector<2x1024xf32> to vector<2x1024xbf16>
    %c0_6 = arith.constant 0 : index
    %c0_7 = arith.constant 0 : index
    %9 = vector.load %arg4[%c0_6, %c0_7] : memref<1024x128xbf16, #tpu.memory_space<vmem>>, vector<1024x128xbf16>
    %cst_8 = arith.constant dense<0.000000e+00> : vector<2x128xf32>
    %10 = tpu.matmul %8, %9, %cst_8 {dimension_numbers = #tpu.dot_dimension_numbers<[1], [0], [0], [1], [0, 0, 1, 1], [], []>} : vector<2x1024xbf16>, vector<1024x128xbf16>, vector<2x128xf32> -> vector<2x128xf32>
    %c0_9 = arith.constant 0 : index
    %c0_10 = arith.constant 0 : index
    %11 = vector.load %arg5[%c0_9, %c0_10] : memref<1x128xf32, #tpu.memory_space<vmem>>, vector<1x128xf32>
    %12 = vector.broadcast %11 : vector<1x128xf32> to vector<2x128xf32>
    %13 = arith.addf %10, %12 : vector<2x128xf32>
    %c0_11 = arith.constant 0 : index
    %c0_12 = arith.constant 0 : index
    %14 = vector.load %arg6[%c0_11, %c0_12] : memref<2x128xf32, #tpu.memory_space<vmem>>, vector<2x128xf32>
    tpu.vector_store %arg6[%c0_11, %c0_12], %13 {strides = array<i32>} : memref<2x128xf32, #tpu.memory_space<vmem>>, vector<2x128xf32>,
    return
  }
  func.func @transform_0(%arg0: i32) -> (i32, i32) {
    %c0_i32 = arith.constant 0 : i32
    %c0_i32_0 = arith.constant 0 : i32
    return %arg0, %c0_i32 : i32, i32
  }
  func.func @transform_1(%arg0: i32) -> (i32, i32) {
    %c0_i32 = arith.constant 0 : i32
    %c0_i32_0 = arith.constant 0 : i32
    %c0_i32_1 = arith.constant 0 : i32
    return %c0_i32, %c0_i32_0 : i32, i32
  }
  func.func @transform_2(%arg0: i32) -> (i32, i32) {
    %c0_i32 = arith.constant 0 : i32
    %c0_i32_0 = arith.constant 0 : i32
    %c0_i32_1 = arith.constant 0 : i32
    return %c0_i32, %c0_i32_0 : i32, i32
  }
  func.func @transform_3(%arg0: i32) -> (i32, i32) {
    %c0_i32 = arith.constant 0 : i32
    %c0_i32_0 = arith.constant 0 : i32
    %c0_i32_1 = arith.constant 0 : i32
    return %c0_i32, %c0_i32_0 : i32, i32
  }
  func.func @transform_4(%arg0: i32) -> (i32, i32) {
    %c0_i32 = arith.constant 0 : i32
    %c0_i32_0 = arith.constant 0 : i32
    %c0_i32_1 = arith.constant 0 : i32
    return %c0_i32, %c0_i32_0 : i32, i32
  }
  func.func @transform_5(%arg0: i32) -> (i32, i32) {
    %c0_i32 = arith.constant 0 : i32
    %c0_i32_0 = arith.constant 0 : i32
    return %arg0, %c0_i32 : i32, i32
  }
}

</mosaic_0001>

<llo_original>
// kernel: tpu_custom_call.1
$region0: #{tpu_custom_call.1}
  #allocation0 [shape = 'u32[]', space=smem, size = 0x4, offset = 0x4, fixed_abs, tag = 'smem constant byte address 0x4 - core index']
  #allocation1 [shape = 'u32[144,128]{1,0:T(1,128)}', space=vmem, size = 0x12000, scoped, tag = 'internal scratch']
  %s0 = inlined_call_operand.hbm [shape: f32[8,128], index: 0, kind: input, shape index: {}]
  %s1 = inlined_call_operand.hbm [shape: f32[8,128], index: 1, kind: output, shape index: {}]
  %s2 = sld [smem:[#allocation0]]
  $region41: #{tpu_custom_call.1} parent=0
    _
  %s4 = ssub.s32 1, %s2
  %s5 = scalar_select 0, %s4, %s2
  $region1: #{tpu_custom_call.1} parent=0
    #allocation2 [shape = 'u8[4096]{0}', space=vmem, size = 0x1000, scoped, tag = 'input window, operand 0, single buffered']
    #allocation3 [shape = 's32[2]{0}', space=sflag, size = 0x8, scoped, tag = 'scoped memory for tpu_custom_call.1']
    #allocation4 [shape = 's32[2]{0}', space=sflag, size = 0x8, scoped, tag = 'scoped memory for tpu_custom_call.1']
    #allocation5 [shape = 'u8[4096]{0}', space=vmem, size = 0x1000, scoped, tag = 'output window, operand 0, single buffered']
    %6 = vsyncpa [#allocation3], 0
    %7 = vsyncpa [#allocation4], 0
    loop: start=0, step=1, limit=4
    $region2: #{tpu_custom_call.1} parent=1 // loop_pre_header
      _
    $region3: #{tpu_custom_call.1} parent=1 // loop_header
      %s9 = sphi 0, %s13
      %p10 = scmp.ge.s32.totalorder %s9, 4
      %s17 = sphi 0, %s17
      %s19 = sphi 0, %s17
      %s20 = sphi 0, %s19
      %s34 = sphi 0, %s20
      %s38 = sphi 0, %s38
      %s40 = sphi 0, %s38
      %s41 = sphi 0, %s40
      %s55 = sphi 0, %s41
    $region4: #{tpu_custom_call.1} parent=1 // loop_header_branch
      %12 = sbr.rel (%p10) target = $region8
    $region5: #{tpu_custom_call.1} parent=1 // loop_body
      %s14 = ssub.s32 %s9, 1
      %s15 = ssub.s32 %s9, 2
      %s16 = sadd.s32 %s9, 1
      %s18 = sadd.s32 %s17, 1
      %p21 = scmp.eq.s32.totalorder %s9, 1
      %p22 = scmp.ne.s32.totalorder %s17, %s19
      %p23 = scmp.eq.s32.totalorder %s9, 0
      %p24 = por %p22, %p23
      %p25 = scmp.ne.s32.totalorder %s17, %s19
      %p26 = scmp.eq.s32.totalorder %s14, 1
      %p27 = por %p25, %p26
      %p28 = scmp.ne.s32.totalorder %s19, %s20
      %p29 = scmp.eq.s32.totalorder %s14, 0
      %p30 = por %p28, %p29
      %p31 = scmp.ne.s32.totalorder %s19, %s20
      %p32 = scmp.eq.s32.totalorder %s15, 1
      %p33 = por %p31, %p32
      %p35 = scmp.ne.s32.totalorder %s20, %s34
      %p36 = scmp.eq.s32.totalorder %s15, 0
      %p37 = por %p35, %p36
      %s39 = sadd.s32 %s38, 1
      %p42 = scmp.eq.s32.totalorder %s9, 1
      %p43 = scmp.ne.s32.totalorder %s38, %s40
      %p44 = scmp.eq.s32.totalorder %s9, 0
      %p45 = por %p43, %p44
      %p46 = scmp.ne.s32.totalorder %s38, %s40
      %p47 = scmp.eq.s32.totalorder %s14, 1
      %p48 = por %p46, %p47
      %p49 = scmp.ne.s32.totalorder %s40, %s41
      %p50 = scmp.eq.s32.totalorder %s14, 0
      %p51 = por %p49, %p50
      %p52 = scmp.ne.s32.totalorder %s40, %s41
      %p53 = scmp.eq.s32.totalorder %s15, 1
      %p54 = por %p52, %p53
      %p56 = scmp.ne.s32.totalorder %s41, %s55
      %p57 = scmp.eq.s32.totalorder %s15, 0
      %p58 = por %p56, %p57
      %p59 = scmp.le.s32.totalorder 1, %s9
      %p60 = scmp.lt.s32.totalorder %s9, 3
      %p61 = pnand %p59, %p60
      %p62 = pneg %p61
      // Predicated region
      $region9: #{tpu_custom_call.1} parent=5 // pred_check
        _
      $region10: #{tpu_custom_call.1} parent=5 // pred_check_branch
        %64 = sbr.rel (%p61) target = $region12
      $region11: #{tpu_custom_call.1} parent=5 // pred_region
        %s65 = ssub.s32 %s9, 1
        // Predicated region
        $region13: #{tpu_custom_call.1} parent=11 // pred_check
          %p66 = pneg %p30
        $region14: #{tpu_custom_call.1} parent=11 // pred_check_branch
          %68 = sbr.rel (%p66) target = $region16
        $region15: #{tpu_custom_call.1} parent=11 // pred_region
          %s70 = ssub.s32 128, 128
          %71 = vsyncadd [#allocation3], %s70
          %s73 = sshll.u32 [#allocation2], 4
          %s74 = int_to_ptr.vmem [resolvable:$true] %s73
          %76 = dma.hbm_to_vmem [thread:$0]  %s0, 128, %s74, [#allocation3]
        $region16: #{tpu_custom_call.1} parent=11 // pred_fallthru
          _
      $region12: #{tpu_custom_call.1} parent=5 // pred_fallthru
        _
      %p77 = scmp.lt.s32.totalorder %s9, 2
      // Predicated region
      $region17: #{tpu_custom_call.1} parent=5 // pred_check
        %p78 = pneg %p77
      $region18: #{tpu_custom_call.1} parent=5 // pred_check_branch
        %80 = sbr.rel (%p78) target = $region20
      $region19: #{tpu_custom_call.1} parent=5 // pred_region
        _
      $region20: #{tpu_custom_call.1} parent=5 // pred_fallthru
        _
      %p81 = scmp.le.s32.totalorder 1, %s9
      %p82 = scmp.lt.s32.totalorder %s9, 3
      %p83 = pnand %p81, %p82
      %p84 = pneg %p83
      // Predicated region
      $region21: #{tpu_custom_call.1} parent=5 // pred_check
        _
      $region22: #{tpu_custom_call.1} parent=5 // pred_check_branch
        %86 = sbr.rel (%p83) target = $region24
      $region23: #{tpu_custom_call.1} parent=5 // pred_region
        %s87 = ssub.s32 %s9, 1
        // Predicated region
        $region25: #{tpu_custom_call.1} parent=23 // pred_check
          %p88 = pneg %p30
        $region26: #{tpu_custom_call.1} parent=23 // pred_check_branch
          %90 = sbr.rel (%p88) target = $region28
        $region27: #{tpu_custom_call.1} parent=23 // pred_region
          %91 = dma.done [#allocation3], 128
        $region28: #{tpu_custom_call.1} parent=23 // pred_fallthru
          _
        %p92 = pneg %p30
        %p93 = pneg %p27
        %p94 = pneg %p51
        %p95 = pneg %p48
        %v96 = vld [vmem:[#allocation2] sm:$0xff]
        %97 = vst [vmem:[#allocation5] sm:$0xff] %v96
        // Predicated region
        $region29: #{tpu_custom_call.1} parent=23 // pred_check
          %p98 = pneg %p48
        $region30: #{tpu_custom_call.1} parent=23 // pred_check_branch
          %100 = sbr.rel (%p98) target = $region32
        $region31: #{tpu_custom_call.1} parent=23 // pred_region
          %s102 = ssub.s32 128, 128
          %103 = vsyncadd [#allocation4], %s102
          %s105 = sshll.u32 [#allocation5], 4
          %s106 = int_to_ptr.vmem [resolvable:$true] %s105
          %108 = dma.vmem_to_hbm [thread:$0]  %s106, 128, %s1, [#allocation4]
        $region32: #{tpu_custom_call.1} parent=23 // pred_fallthru
          _
        // Predicated region
        $region33: #{tpu_custom_call.1} parent=23 // pred_check
          %p109 = pneg %p48
        $region34: #{tpu_custom_call.1} parent=23 // pred_check_branch
          %111 = sbr.rel (%p109) target = $region36
        $region35: #{tpu_custom_call.1} parent=23 // pred_region
          %112 = dma.done [#allocation4], 128
        $region36: #{tpu_custom_call.1} parent=23 // pred_fallthru
          _
      $region24: #{tpu_custom_call.1} parent=5 // pred_fallthru
        _
      %p113 = scmp.le.s32.totalorder 2, %s9
      // Predicated region
      $region37: #{tpu_custom_call.1} parent=5 // pred_check
        %p114 = pneg %p113
      $region38: #{tpu_custom_call.1} parent=5 // pred_check_branch
        %116 = sbr.rel (%p114) target = $region40
      $region39: #{tpu_custom_call.1} parent=5 // pred_region
        %s117 = ssub.s32 %s9, 2
      $region40: #{tpu_custom_call.1} parent=5 // pred_fallthru
        _
    $region6: #{tpu_custom_call.1} parent=1 // loop_footer
      %s13 = sadd.s32 1, %s9
    $region7: #{tpu_custom_call.1} parent=1 // loop_footer_branch
      %8 = sbr.rel target = $region3
    $region8: #{tpu_custom_call.1} parent=1 // loop_exit
      _
    %118 = vsyncpa [#allocation3], 1
    %s119 = scalar_lea.sflag [#allocation3], 1
    %120 = vsyncpa %s119, 1
    %121 = vsyncpa [#allocation4], 1
    %s122 = scalar_lea.sflag [#allocation4], 1
    %123 = vsyncpa %s122, 1

// kernel: inception_aux_forward.2
$region0: #{inception_aux_forward.2}
  #allocation0 [shape = 'u32[]', space=smem, size = 0x4, offset = 0x4, fixed_abs, tag = 'smem constant byte address 0x4 - core index']
  #allocation1 [shape = 'u32[144,128]{1,0:T(1,128)}', space=vmem, size = 0x12000, scoped, tag = 'internal scratch']
  %s0 = inlined_call_operand.vmem [shape: bf16[32,16], index: 0, kind: input, shape index: {}]
  %s1 = inlined_call_operand.hbm [shape: bf16[16,128], index: 1, kind: input, shape index: {}]
  %s2 = inlined_call_operand.hbm [shape: f32[1,128], index: 2, kind: input, shape index: {}]
  %s3 = inlined_call_operand.vmem [shape: bf16[32,128], index: 3, kind: output, shape index: {}]
  %s4 = sld [smem:[#allocation0]]
  $region53: #{inception_aux_forward.2} parent=0
    _
  %s6 = ssub.s32 1, %s4
  %s7 = scalar_select 0, %s6, %s4
  $region1: #{inception_aux_forward.2} parent=0
    #allocation2 [shape = 'u8[4096]{0}', space=vmem, size = 0x1000, scoped, tag = 'input window, operand 1, single buffered']
    #allocation3 [shape = 's32[2]{0}', space=sflag, size = 0x8, scoped, tag = 'scoped memory for inception_aux_forward.2']
    #allocation4 [shape = 'u8[512]{0}', space=vmem, size = 0x400, scoped, tag = 'input window, operand 2, single buffered']
    #allocation5 [shape = 's32[1]{0}', space=sflag, size = 0x4, scoped, tag = 'scoped memory for inception_aux_forward.2']
    %8 = vsyncpa [#allocation3], 0
    %9 = vsyncpa [#allocation5], 0
    loop: start=0, step=1, limit=4
    $region2: #{inception_aux_forward.2} parent=1 // loop_pre_header
      _
    $region3: #{inception_aux_forward.2} parent=1 // loop_header
      %s11 = sphi 0, %s15
      %p12 = scmp.ge.s32.totalorder %s11, 4
      %s21 = sphi 0, %s23
      %s24 = sphi 0, %s21
      %s25 = sphi 0, %s24
      %s41 = sphi 0, %s25
      %s45 = sphi 0, %s45
      %s47 = sphi 0, %s45
      %s48 = sphi 0, %s47
      %s62 = sphi 0, %s48
      %s66 = sphi 0, %s66
      %s68 = sphi 0, %s66
      %s69 = sphi 0, %s68
      %s83 = sphi 0, %s69
      %s89 = sphi 0, %s91
      %s92 = sphi 0, %s89
      %s93 = sphi 0, %s92
      %s109 = sphi 0, %s93
    $region4: #{inception_aux_forward.2} parent=1 // loop_header_branch
      %14 = sbr.rel (%p12) target = $region8
    $region5: #{inception_aux_forward.2} parent=1 // loop_body
      %s16 = ssub.s32 %s11, 1
      %s17 = ssub.s32 %s11, 2
      %s18 = sadd.s32 %s11, 1
      %s19 = ssub.s32 %s11, %s18
      %p20 = scmp.eq.s32.totalorder %s19, 0
      %s22 = sadd.s32 %s21, 1
      %s23 = scalar_select %p20, %s21, %s22
      %p26 = pneg %p20
      %p27 = scmp.eq.s32.totalorder %s11, 1
      %p28 = por %p26, %p27
      %p29 = scmp.ne.s32.totalorder %s21, %s24
      %p30 = scmp.eq.s32.totalorder %s11, 0
      %p31 = por %p29, %p30
      %p32 = scmp.ne.s32.totalorder %s21, %s24
      %p33 = scmp.eq.s32.totalorder %s16, 1
      %p34 = por %p32, %p33
      %p35 = scmp.ne.s32.totalorder %s24, %s25
      %p36 = scmp.eq.s32.totalorder %s16, 0
      %p37 = por %p35, %p36
      %p38 = scmp.ne.s32.totalorder %s24, %s25
      %p39 = scmp.eq.s32.totalorder %s17, 1
      %p40 = por %p38, %p39
      %p42 = scmp.ne.s32.totalorder %s25, %s41
      %p43 = scmp.eq.s32.totalorder %s17, 0
      %p44 = por %p42, %p43
      %s46 = sadd.s32 %s45, 1
      %p49 = scmp.eq.s32.totalorder %s11, 1
      %p50 = scmp.ne.s32.totalorder %s45, %s47
      %p51 = scmp.eq.s32.totalorder %s11, 0
      %p52 = por %p50, %p51
      %p53 = scmp.ne.s32.totalorder %s45, %s47
      %p54 = scmp.eq.s32.totalorder %s16, 1
      %p55 = por %p53, %p54
      %p56 = scmp.ne.s32.totalorder %s47, %s48
      %p57 = scmp.eq.s32.totalorder %s16, 0
      %p58 = por %p56, %p57
      %p59 = scmp.ne.s32.totalorder %s47, %s48
      %p60 = scmp.eq.s32.totalorder %s17, 1
      %p61 = por %p59, %p60
      %p63 = scmp.ne.s32.totalorder %s48, %s62
      %p64 = scmp.eq.s32.totalorder %s17, 0
      %p65 = por %p63, %p64
      %s67 = sadd.s32 %s66, 1
      %p70 = scmp.eq.s32.totalorder %s11, 1
      %p71 = scmp.ne.s32.totalorder %s66, %s68
      %p72 = scmp.eq.s32.totalorder %s11, 0
      %p73 = por %p71, %p72
      %p74 = scmp.ne.s32.totalorder %s66, %s68
      %p75 = scmp.eq.s32.totalorder %s16, 1
      %p76 = por %p74, %p75
      %p77 = scmp.ne.s32.totalorder %s68, %s69
      %p78 = scmp.eq.s32.totalorder %s16, 0
      %p79 = por %p77, %p78
      %p80 = scmp.ne.s32.totalorder %s68, %s69
      %p81 = scmp.eq.s32.totalorder %s17, 1
      %p82 = por %p80, %p81
      %p84 = scmp.ne.s32.totalorder %s69, %s83
      %p85 = scmp.eq.s32.totalorder %s17, 0
      %p86 = por %p84, %p85
      %s87 = ssub.s32 %s11, %s18
      %p88 = scmp.eq.s32.totalorder %s87, 0
      %s90 = sadd.s32 %s89, 1
      %s91 = scalar_select %p88, %s89, %s90
      %p94 = pneg %p88
      %p95 = scmp.eq.s32.totalorder %s11, 1
      %p96 = por %p94, %p95
      %p97 = scmp.ne.s32.totalorder %s89, %s92
      %p98 = scmp.eq.s32.totalorder %s11, 0
      %p99 = por %p97, %p98
      %p100 = scmp.ne.s32.totalorder %s89, %s92
      %p101 = scmp.eq.s32.totalorder %s16, 1
      %p102 = por %p100, %p101
      %p103 = scmp.ne.s32.totalorder %s92, %s93
      %p104 = scmp.eq.s32.totalorder %s16, 0
      %p105 = por %p103, %p104
      %p106 = scmp.ne.s32.totalorder %s92, %s93
      %p107 = scmp.eq.s32.totalorder %s17, 1
      %p108 = por %p106, %p107
      %p110 = scmp.ne.s32.totalorder %s93, %s109
      %p111 = scmp.eq.s32.totalorder %s17, 0
      %p112 = por %p110, %p111
      %p113 = scmp.le.s32.totalorder 1, %s11
      %p114 = scmp.lt.s32.totalorder %s11, 3
      %p115 = pnand %p113, %p114
      %p116 = pneg %p115
      // Predicated region
      $region9: #{inception_aux_forward.2} parent=5 // pred_check
        _
      $region10: #{inception_aux_forward.2} parent=5 // pred_check_branch
        %118 = sbr.rel (%p115) target = $region12
      $region11: #{inception_aux_forward.2} parent=5 // pred_region
        %s119 = ssub.s32 %s11, 1
        // Predicated region
        $region13: #{inception_aux_forward.2} parent=11 // pred_check
          %p120 = pneg %p58
        $region14: #{inception_aux_forward.2} parent=11 // pred_check_branch
          %122 = sbr.rel (%p120) target = $region16
        $region15: #{inception_aux_forward.2} parent=11 // pred_region
          %s124 = ssub.s32 128, 128
          %125 = vsyncadd [#allocation3], %s124
          %s126 = sshll.u32 [#allocation2], 4
          %s127 = int_to_ptr.vmem [resolvable:$true] %s126
          %132 = dma.hbm_to_vmem [thread:$0]  %s1, 128, %s127, [#allocation3], 64, 64, 4
        $region16: #{inception_aux_forward.2} parent=11 // pred_fallthru
          _
        // Predicated region
        $region17: #{inception_aux_forward.2} parent=11 // pred_check
          %p133 = pneg %p79
        $region18: #{inception_aux_forward.2} parent=11 // pred_check_branch
          %135 = sbr.rel (%p133) target = $region20
        $region19: #{inception_aux_forward.2} parent=11 // pred_region
          %s137 = ssub.s32 16, 16
          %138 = vsyncadd [#allocation5], %s137
          %s140 = sshll.u32 [#allocation4], 4
          %s141 = int_to_ptr.vmem [resolvable:$true] %s140
          %143 = dma.hbm_to_vmem [thread:$0]  %s2, 16, %s141, [#allocation5]
        $region20: #{inception_aux_forward.2} parent=11 // pred_fallthru
          _
      $region12: #{inception_aux_forward.2} parent=5 // pred_fallthru
        _
      %p144 = scmp.lt.s32.totalorder %s11, 2
      // Predicated region
      $region21: #{inception_aux_forward.2} parent=5 // pred_check
        %p145 = pneg %p144
      $region22: #{inception_aux_forward.2} parent=5 // pred_check_branch
        %147 = sbr.rel (%p145) target = $region24
      $region23: #{inception_aux_forward.2} parent=5 // pred_region
        // Predicated region
        $region25: #{inception_aux_forward.2} parent=23 // pred_check
          %p148 = pneg %p31
        $region26: #{inception_aux_forward.2} parent=23 // pred_check_branch
          %150 = sbr.rel (%p148) target = $region28
        $region27: #{inception_aux_forward.2} parent=23 // pred_region
          %s151 = smul.u32 2, %s11
          %p152 = scmp.lt.s32.totalorder %s151, 3
          %s153 = scalar_select %p152, %s151, 3
          %s154 = smul.addr %s153, 4
          %s155 = scalar_lea.vmem %s0, %s154
          %s156 = smul.u32 2, %s11
        $region28: #{inception_aux_forward.2} parent=23 // pred_fallthru
          _
      $region24: #{inception_aux_forward.2} parent=5 // pred_fallthru
        _
      %p157 = scmp.le.s32.totalorder 1, %s11
      %p158 = scmp.lt.s32.totalorder %s11, 3
      %p159 = pnand %p157, %p158
      %p160 = pneg %p159
      // Predicated region
      $region29: #{inception_aux_forward.2} parent=5 // pred_check
        _
      $region30: #{inception_aux_forward.2} parent=5 // pred_check_branch
        %162 = sbr.rel (%p159) target = $region32
      $region31: #{inception_aux_forward.2} parent=5 // pred_region
        %s163 = ssub.s32 %s11, 1
        // Predicated region
        $region33: #{inception_aux_forward.2} parent=31 // pred_check
          %p164 = pneg %p58
        $region34: #{inception_aux_forward.2} parent=31 // pred_check_branch
          %166 = sbr.rel (%p164) target = $region36
        $region35: #{inception_aux_forward.2} parent=31 // pred_region
          %167 = dma.done [#allocation3], 128
        $region36: #{inception_aux_forward.2} parent=31 // pred_fallthru
          _
        // Predicated region
        $region37: #{inception_aux_forward.2} parent=31 // pred_check
          %p168 = pneg %p79
        $region38: #{inception_aux_forward.2} parent=31 // pred_check_branch
          %170 = sbr.rel (%p168) target = $region40
        $region39: #{inception_aux_forward.2} parent=31 // pred_region
          %171 = dma.done [#allocation5], 16
        $region40: #{inception_aux_forward.2} parent=31 // pred_fallthru
          _
        %s172 = smul.u32 2, %s16
        %p173 = scmp.lt.s32.totalorder %s172, 3
        %s174 = scalar_select %p173, %s172, 3
        %s175 = smul.addr %s174, 4
        %s176 = scalar_lea.vmem %s0, %s175
        %p177 = pneg %p37
        %p178 = pneg %p34
        %p179 = pneg %p58
        %p180 = pneg %p55
        %p181 = pneg %p79
        %p182 = pneg %p76
        %p183 = pneg %p105
        %p184 = pneg %p102
        %s185 = smul.u32 2, %s16
        %p186 = scmp.lt.s32.totalorder %s185, 3
        %s187 = scalar_select %p186, %s185, 3
        %s188 = smul.addr %s187, 4
        %s189 = scalar_lea.vmem %s3, %s188
        %s190 = smul.u32 2, %s16
        %p191 = scmp.lt.s32.totalorder %s190, 3
        %s192 = scalar_select %p191, %s190, 3
        %s193 = smul.addr %s192, 4
        %s194 = scalar_lea.vmem %s0, %s193
        %s195 = smul.u32 2, %s16
        %s196 = smul.u32 2, %s16
        %p197 = scmp.lt.s32.totalorder %s196, 3
        %s198 = scalar_select %p197, %s196, 3
        %s199 = smul.addr %s198, 4
        %s200 = scalar_lea.vmem %s3, %s199
        %s201 = smul.u32 2, %s16
        %v203 = vld [vmem:[%s194] sm:$0xf]
        %v204 = vld [vmem:[%s194 + $0x4] sm:$0xf]
        %v205 = vld [vmem:[#allocation2] sm:$0xf]
        %v206 = vld [vmem:[#allocation2 + $0x4] sm:$0xf]
        %v207 = vld [vmem:[#allocation4] sm:$0x1]
        %v209 = vlaneseq
        %v210 = vshrl.u32 %v209, 7
        %v211 = vsub.s32 0, %v210
        %v212 = vrot.slane %v207, %v211
        %v216 = vunpack.c.l.b16 %v203
        %v217 = vunpack.c.l.b16 %v204
        %v218 = vpack.c.b16 %v217, %v216
        %v221 = vunpack.c.l.b16 %v205
        %v222 = vunpack.c.l.b16 %v206
        %v223 = vpack.c.b16 %v222, %v221
        %vm225 = vcmask 130048
        %v227 = vsel %vm225, %v218, 0
        %229 = vmatprep.subr.bf16.mxu0 0
        %230 = vmatpush1.bf16.msra.mxu0 %v223
        %231 = vmatprep.subr.bf16.mxu0 0
        %232 = vmatpush1.bf16.msra.mxu0 0
        %233 = vmatprep.subr.bf16.mxu0 0
        %234 = vmatpush1.bf16.msra.mxu0 0
        %235 = vmatprep.subr.bf16.mxu0 0
        %236 = vmatpush1.bf16.msra.mxu0 0
        %237 = vmatprep.subr.bf16.mxu0 0
        %238 = vmatpush1.bf16.msra.mxu0 0
        %239 = vmatprep.subr.bf16.mxu0 0
        %240 = vmatpush1.bf16.msra.mxu0 0
        %241 = vmatprep.subr.bf16.mxu0 0
        %242 = vmatpush1.bf16.msra.mxu0 0
        %243 = vmatprep.subr.bf16.mxu0 0
        %244 = vmatpush1.bf16.msra.mxu0 0
        %245 = vmatprep.subr.bf16.mxu0 0
        %246 = vmatpush1.bf16.msra.mxu0 0
        %247 = vmatprep.subr.bf16.mxu0 0
        %248 = vmatpush1.bf16.msra.mxu0 0
        %249 = vmatprep.subr.bf16.mxu0 0
        %250 = vmatpush1.bf16.msra.mxu0 0
        %251 = vmatprep.subr.bf16.mxu0 0
        %252 = vmatpush1.bf16.msra.mxu0 0
        %253 = vmatprep.subr.bf16.mxu0 0
        %254 = vmatpush1.bf16.msra.mxu0 0
        %255 = vmatprep.subr.bf16.mxu0 0
        %256 = vmatpush1.bf16.msra.mxu0 0
        %257 = vmatprep.subr.bf16.mxu0 0
        %258 = vmatpush1.bf16.msra.mxu0 0
        %259 = vmatprep.subr.bf16.mxu0 0
        %260 = vmatpush1.bf16.msra.mxu0 0
        %261 = vmatprep.mubr.bf16.mxu0 0
        %262 = vmatmul.mubr.bf16.gmra.mrb[0].mxu0 %v227
        %v263 = vpop.f32.mrb[0].mxu0
        %v264 = vadd.f32 %v212, %v263
        %v265 = vpop.f32.mrb[0].mxu0
        %v266 = vpop.f32.mrb[0].mxu0
        %v267 = vadd.f32 %v212, %v266
        %v268 = vpop.f32.mrb[0].mxu0
        %269 = vdwg.mxu0
        %v270 = vmax.f32 %v264, 0.0
        %v271 = vmax.f32 %v267, 0.0
        %v272 = vpack.c.bf16 %v271, %v270
        %v274 = vunpack.c.l.b16 %v272
        %v275 = vunpack.c.h.b16 %v272
        %v276 = vpack.c.b16 %v274, %v274
        %v277 = vpack.c.b16 %v275, %v275
        %280 = vst [vmem:[%s200] sm:$0xf] %v276
        %281 = vst [vmem:[%s200 + $0x4] sm:$0xf] %v277
        %s282 = smul.u32 2, %s16
        %p283 = scmp.lt.s32.totalorder %s282, 3
        %s284 = scalar_select %p283, %s282, 3
        %s285 = smul.addr %s284, 4
        %s286 = scalar_lea.vmem %s3, %s285
        // Predicated region
        $region41: #{inception_aux_forward.2} parent=31 // pred_check
          %p287 = pneg %p102
        $region42: #{inception_aux_forward.2} parent=31 // pred_check_branch
          %289 = sbr.rel (%p287) target = $region44
        $region43: #{inception_aux_forward.2} parent=31 // pred_region
          %s290 = smul.u32 2, %s16
        $region44: #{inception_aux_forward.2} parent=31 // pred_fallthru
          _
      $region32: #{inception_aux_forward.2} parent=5 // pred_fallthru
        _
      %p291 = scmp.le.s32.totalorder 2, %s11
      // Predicated region
      $region45: #{inception_aux_forward.2} parent=5 // pred_check
        %p292 = pneg %p291
      $region46: #{inception_aux_forward.2} parent=5 // pred_check_branch
        %294 = sbr.rel (%p292) target = $region48
      $region47: #{inception_aux_forward.2} parent=5 // pred_region
        %s295 = ssub.s32 %s11, 2
        // Predicated region
        $region49: #{inception_aux_forward.2} parent=47 // pred_check
          %p296 = pneg %p108
        $region50: #{inception_aux_forward.2} parent=47 // pred_check_branch
          %298 = sbr.rel (%p296) target = $region52
        $region51: #{inception_aux_forward.2} parent=47 // pred_region
          %s299 = smul.u32 2, %s17
          %p300 = scmp.lt.s32.totalorder %s299, 3
          %s301 = scalar_select %p300, %s299, 3
          %s302 = smul.addr %s301, 4
          %s303 = scalar_lea.vmem %s3, %s302
        $region52: #{inception_aux_forward.2} parent=47 // pred_fallthru
          _
      $region48: #{inception_aux_forward.2} parent=5 // pred_fallthru
        _
    $region6: #{inception_aux_forward.2} parent=1 // loop_footer
      %s15 = sadd.s32 1, %s11
    $region7: #{inception_aux_forward.2} parent=1 // loop_footer_branch
      %10 = sbr.rel target = $region3
    $region8: #{inception_aux_forward.2} parent=1 // loop_exit
      _
    %304 = vsyncpa [#allocation3], 1
    %s305 = scalar_lea.sflag [#allocation3], 1
    %306 = vsyncpa %s305, 1
    %307 = vsyncpa [#allocation5], 1

// kernel: inception_aux_forward.3
$region0: #{inception_aux_forward.3}
  #allocation0 [shape = 'u32[]', space=smem, size = 0x4, offset = 0x4, fixed_abs, tag = 'smem constant byte address 0x4 - core index']
  #allocation1 [shape = 'u32[144,128]{1,0:T(1,128)}', space=vmem, size = 0x12000, scoped, tag = 'internal scratch']
  %s0 = inlined_call_operand.vmem [shape: bf16[2,2048], index: 0, kind: input, shape index: {}]
  %s1 = inlined_call_operand.hbm [shape: bf16[2048,1024], index: 1, kind: input, shape index: {}]
  %s2 = inlined_call_operand.hbm [shape: f32[1,1024], index: 2, kind: input, shape index: {}]
  %s3 = inlined_call_operand.hbm [shape: bf16[1024,128], index: 3, kind: input, shape index: {}]
  %s4 = inlined_call_operand.hbm [shape: f32[1,128], index: 4, kind: input, shape index: {}]
  %s5 = inlined_call_operand.hbm [shape: f32[2,128], index: 5, kind: output, shape index: {}]
  %s6 = sld [smem:[#allocation0]]
  $region46: #{inception_aux_forward.3} parent=0
    _
  %s8 = ssub.s32 1, %s6
  %s9 = scalar_select 0, %s8, %s6
  $region1: #{inception_aux_forward.3} parent=0
    #allocation2 [shape = 'u8[4194304]{0}', space=vmem, size = 0x400000, scoped, tag = 'input window, operand 1, single buffered']
    #allocation3 [shape = 's32[1]{0}', space=sflag, size = 0x4, scoped, tag = 'scoped memory for inception_aux_forward.3']
    #allocation4 [shape = 's32[1]{0}', space=sflag, size = 0x4, scoped, tag = 'scoped memory for inception_aux_forward.3']
    #allocation5 [shape = 'u8[4096]{0}', space=vmem, size = 0x1000, scoped, tag = 'input window, operand 2, single buffered']
    #allocation6 [shape = 's32[1]{0}', space=sflag, size = 0x4, scoped, tag = 'scoped memory for inception_aux_forward.3']
    #allocation7 [shape = 'u8[262144]{0}', space=vmem, size = 0x40000, scoped, tag = 'input window, operand 3, single buffered']
    #allocation8 [shape = 'u8[512]{0}', space=vmem, size = 0x400, scoped, tag = 'input window, operand 4, single buffered']
    #allocation9 [shape = 's32[1]{0}', space=sflag, size = 0x4, scoped, tag = 'scoped memory for inception_aux_forward.3']
    #allocation10 [shape = 'u8[1024]{0}', space=vmem, size = 0x400, scoped, tag = 'output window, operand 0, single buffered']
    %10 = vsyncpa [#allocation3], 0
    %11 = vsyncpa [#allocation6], 0
    %12 = vsyncpa [#allocation9], 0
    %13 = vsyncpa [#allocation4], 0
    // Predicated region
    $region2: #{inception_aux_forward.3} parent=1 // pred_check
      _
    $region3: #{inception_aux_forward.3} parent=1 // pred_check_branch
      %15 = sbr.rel (0) target = $region5
    $region4: #{inception_aux_forward.3} parent=1 // pred_region
      _
    $region5: #{inception_aux_forward.3} parent=1 // pred_fallthru
      _
    // Predicated region
    $region6: #{inception_aux_forward.3} parent=1 // pred_check
      _
    $region7: #{inception_aux_forward.3} parent=1 // pred_check_branch
      %17 = sbr.rel (0) target = $region9
    $region8: #{inception_aux_forward.3} parent=1 // pred_region
      %s19 = ssub.s32 131072, 131072
      %20 = vsyncadd [#allocation3], %s19
      %s21 = sshll.u32 [#allocation2], 4
      %s22 = int_to_ptr.vmem [resolvable:$true] %s21
      %27 = dma.hbm_to_vmem [thread:$0]  %s1, 131072, %s22, [#allocation3], 512, 512, 32
    $region9: #{inception_aux_forward.3} parent=1 // pred_fallthru
      _
    // Predicated region
    $region10: #{inception_aux_forward.3} parent=1 // pred_check
      _
    $region11: #{inception_aux_forward.3} parent=1 // pred_check_branch
      %29 = sbr.rel (0) target = $region13
    $region12: #{inception_aux_forward.3} parent=1 // pred_region
      %s31 = ssub.s32 128, 128
      %32 = vsyncadd [#allocation6], %s31
      %s34 = sshll.u32 [#allocation5], 4
      %s35 = int_to_ptr.vmem [resolvable:$true] %s34
      %37 = dma.hbm_to_vmem [thread:$0]  %s2, 128, %s35, [#allocation6]
    $region13: #{inception_aux_forward.3} parent=1 // pred_fallthru
      _
    // Predicated region
    $region14: #{inception_aux_forward.3} parent=1 // pred_check
      _
    $region15: #{inception_aux_forward.3} parent=1 // pred_check_branch
      %39 = sbr.rel (0) target = $region17
    $region16: #{inception_aux_forward.3} parent=1 // pred_region
      %s41 = ssub.s32 8192, 8192
      %42 = vsyncadd [#allocation6], %s41
      %s43 = sshll.u32 [#allocation7], 4
      %s44 = int_to_ptr.vmem [resolvable:$true] %s43
      %49 = dma.hbm_to_vmem [thread:$0]  %s3, 8192, %s44, [#allocation6], 64, 64, 4
    $region17: #{inception_aux_forward.3} parent=1 // pred_fallthru
      _
    // Predicated region
    $region18: #{inception_aux_forward.3} parent=1 // pred_check
      _
    $region19: #{inception_aux_forward.3} parent=1 // pred_check_branch
      %51 = sbr.rel (0) target = $region21
    $region20: #{inception_aux_forward.3} parent=1 // pred_region
      %s53 = ssub.s32 16, 16
      %54 = vsyncadd [#allocation9], %s53
      %s56 = sshll.u32 [#allocation8], 4
      %s57 = int_to_ptr.vmem [resolvable:$true] %s56
      %59 = dma.hbm_to_vmem [thread:$0]  %s4, 16, %s57, [#allocation9]
    $region21: #{inception_aux_forward.3} parent=1 // pred_fallthru
      _
    // Predicated region
    $region22: #{inception_aux_forward.3} parent=1 // pred_check
      _
    $region23: #{inception_aux_forward.3} parent=1 // pred_check_branch
      %61 = sbr.rel (0) target = $region25
    $region24: #{inception_aux_forward.3} parent=1 // pred_region
      %62 = dma.done [#allocation3], 131072
    $region25: #{inception_aux_forward.3} parent=1 // pred_fallthru
      _
    // Predicated region
    $region26: #{inception_aux_forward.3} parent=1 // pred_check
      _
    $region27: #{inception_aux_forward.3} parent=1 // pred_check_branch
      %64 = sbr.rel (0) target = $region29
    $region28: #{inception_aux_forward.3} parent=1 // pred_region
      %65 = dma.done [#allocation6], 128
    $region29: #{inception_aux_forward.3} parent=1 // pred_fallthru
      _
    // Predicated region
    $region30: #{inception_aux_forward.3} parent=1 // pred_check
      _
    $region31: #{inception_aux_forward.3} parent=1 // pred_check_branch
      %67 = sbr.rel (0) target = $region33
    $region32: #{inception_aux_forward.3} parent=1 // pred_region
      %68 = dma.done [#allocation6], 8192
    $region33: #{inception_aux_forward.3} parent=1 // pred_fallthru
      _
    // Predicated region
    $region34: #{inception_aux_forward.3} parent=1 // pred_check
      _
    $region35: #{inception_aux_forward.3} parent=1 // pred_check_branch
      %70 = sbr.rel (0) target = $region37
    $region36: #{inception_aux_forward.3} parent=1 // pred_region
      %71 = dma.done [#allocation9], 16
    $region37: #{inception_aux_forward.3} parent=1 // pred_fallthru
      _
    %v73 = vld [vmem:[%s0] sm:$0xff]
    %v74 = vld [vmem:[%s0 + $0x8] sm:$0xff]
    %v75 = vld [vmem:[#allocation2] sm:$0xff]
    %v76 = vld [vmem:[#allocation2 + $0x8] sm:$0xff]
    %v77 = vld [vmem:[#allocation2 + $0x10] sm:$0xff]
    %v78 = vld [vmem:[#allocation2 + $0x18] sm:$0xff]
    %v79 = vld [vmem:[#allocation2 + $0x20] sm:$0xff]
    %v80 = vld [vmem:[#allocation2 + $0x28] sm:$0xff]
    %v81 = vld [vmem:[#allocation2 + $0x30] sm:$0xff]
    %v82 = vld [vmem:[#allocation2 + $0x38] sm:$0xff]
    %v83 = vld [vmem:[#allocation2 + $0x40] sm:$0xff]
    %v84 = vld [vmem:[#allocation2 + $0x48] sm:$0xff]
    %v85 = vld [vmem:[#allocation2 + $0x50] sm:$0xff]
    %v86 = vld [vmem:[#allocation2 + $0x58] sm:$0xff]
    %v87 = vld [vmem:[#allocation2 + $0x60] sm:$0xff]
    %v88 = vld [vmem:[#allocation2 + $0x68] sm:$0xff]
    %v89 = vld [vmem:[#allocation2 + $0x70] sm:$0xff]
    %v90 = vld [vmem:[#allocation2 + $0x78] sm:$0xff]
    %v91 = vld [vmem:[#allocation2 + $0x80] sm:$0xff]
    %v92 = vld [vmem:[#allocation2 + $0x88] sm:$0xff]
    %v93 = vld [vmem:[#allocation2 + $0x90] sm:$0xff]
    %v94 = vld [vmem:[#allocation2 + $0x98] sm:$0xff]
    %v95 = vld [vmem:[#allocation2 + $0xa0] sm:$0xff]
    %v96 = vld [vmem:[#allocation2 + $0xa8] sm:$0xff]
    %v97 = vld [vmem:[#allocation2 + $0xb0] sm:$0xff]
    %v98 = vld [vmem:[#allocation2 + $0xb8] sm:$0xff]
    %v99 = vld [vmem:[#allocation2 + $0xc0] sm:$0xff]
    %v100 = vld [vmem:[#allocation2 + $0xc8] sm:$0xff]
    %v101 = vld [vmem:[#allocation2 + $0xd0] sm:$0xff]
    %v102 = vld [vmem:[#allocation2 + $0xd8] sm:$0xff]
    %v103 = vld [vmem:[#allocation2 + $0xe0] sm:$0xff]
    %v104 = vld [vmem:[#allocation2 + $0xe8] sm:$0xff]
    %v105 = vld [vmem:[#allocation2 + $0xf0] sm:$0xff]
    %v106 = vld [vmem:[#allocation2 + $0xf8] sm:$0xff]
    %v107 = vld [vmem:[#allocation2 + $0x100] sm:$0xff]
    %v108 = vld [vmem:[#allocation2 + $0x108] sm:$0xff]
    %v109 = vld [vmem:[#allocation2 + $0x110] sm:$0xff]
    %v110 = vld [vmem:[#allocation2 + $0x118] sm:$0xff]
    %v111 = vld [vmem:[#allocation2 + $0x120] sm:$0xff]
    %v112 = vld [vmem:[#allocation2 + $0x128] sm:$0xff]
    %v113 = vld [vmem:[#allocation2 + $0x130] sm:$0xff]
    %v114 = vld [vmem:[#allocation2 + $0x138] sm:$0xff]
    %v115 = vld [vmem:[#allocation2 + $0x140] sm:$0xff]
    %v116 = vld [vmem:[#allocation2 + $0x148] sm:$0xff]
    %v117 = vld [vmem:[#allocation2 + $0x150] sm:$0xff]
    %v118 = vld [vmem:[#allocation2 + $0x158] sm:$0xff]
    %v119 = vld [vmem:[#allocation2 + $0x160] sm:$0xff]
    %v120 = vld [vmem:[#allocation2 + $0x168] sm:$0xff]
    %v121 = vld [vmem:[#allocation2 + $0x170] sm:$0xff]
    %v122 = vld [vmem:[#allocation2 + $0x178] sm:$0xff]
    %v123 = vld [vmem:[#allocation2 + $0x180] sm:$0xff]
    %v124 = vld [vmem:[#allocation2 + $0x188] sm:$0xff]
    %v125 = vld [vmem:[#allocation2 + $0x190] sm:$0xff]
    %v126 = vld [vmem:[#allocation2 + $0x198] sm:$0xff]
    %v127 = vld [vmem:[#allocation2 + $0x1a0] sm:$0xff]
    %v128 = vld [vmem:[#allocation2 + $0x1a8] sm:$0xff]
    %v129 = vld [vmem:[#allocation2 + $0x1b0] sm:$0xff]
    %v130 = vld [vmem:[#allocation2 + $0x1b8] sm:$0xff]
    %v131 = vld [vmem:[#allocation2 + $0x1c0] sm:$0xff]
    %v132 = vld [vmem:[#allocation2 + $0x1c8] sm:$0xff]
    %v133 = vld [vmem:[#allocation2 + $0x1d0] sm:$0xff]
    %v134 = vld [vmem:[#allocation2 + $0x1d8] sm:$0xff]
    %v135 = vld [vmem:[#allocation2 + $0x1e0] sm:$0xff]
    %v136 = vld [vmem:[#allocation2 + $0x1e8] sm:$0xff]
    %v137 = vld [vmem:[#allocation2 + $0x1f0] sm:$0xff]
    %v138 = vld [vmem:[#allocation2 + $0x1f8] sm:$0xff]
    %v139 = vld [vmem:[#allocation2 + $0x200] sm:$0xff]
    %v140 = vld [vmem:[#allocation2 + $0x208] sm:$0xff]
    %v141 = vld [vmem:[#allocation2 + $0x210] sm:$0xff]
    %v142 = vld [vmem:[#allocation2 + $0x218] sm:$0xff]
    %v143 = vld [vmem:[#allocation2 + $0x220] sm:$0xff]
    %v144 = vld [vmem:[#allocation2 + $0x228] sm:$0xff]
    %v145 = vld [vmem:[#allocation2 + $0x230] sm:$0xff]
    %v146 = vld [vmem:[#allocation2 + $0x238] sm:$0xff]
    %v147 = vld [vmem:[#allocation2 + $0x240] sm:$0xff]
    %v148 = vld [vmem:[#allocation2 + $0x248] sm:$0xff]
    %v149 = vld [vmem:[#allocation2 + $0x250] sm:$0xff]
    %v150 = vld [vmem:[#allocation2 + $0x258] sm:$0xff]
    %v151 = vld [vmem:[#allocation2 + $0x260] sm:$0xff]
    %v152 = vld [vmem:[#allocation2 + $0x268] sm:$0xff]
    %v153 = vld [vmem:[#allocation2 + $0x270] sm:$0xff]
    %v154 = vld [vmem:[#allocation2 + $0x278] sm:$0xff]
    %v155 = vld [vmem:[#allocation2 + $0x280] sm:$0xff]
    %v156 = vld [vmem:[#allocation2 + $0x288] sm:$0xff]
    %v157 = vld [vmem:[#allocation2 + $0x290] sm:$0xff]
    %v158 = vld [vmem:[#allocation2 + $0x298] sm:$0xff]
    %v159 = vld [vmem:[#allocation2 + $0x2a0] sm:$0xff]
    %v160 = vld [vmem:[#allocation2 + $0x2a8] sm:$0xff]
    %v161 = vld [vmem:[#allocation2 + $0x2b0] sm:$0xff]
    %v162 = vld [vmem:[#allocation2 + $0x2b8] sm:$0xff]
    %v163 = vld [vmem:[#allocation2 + $0x2c0] sm:$0xff]
    %v164 = vld [vmem:[#allocation2 + $0x2c8] sm:$0xff]
    %v165 = vld [vmem:[#allocation2 + $0x2d0] sm:$0xff]
    %v166 = vld [vmem:[#allocation2 + $0x2d8] sm:$0xff]
    %v167 = vld [vmem:[#allocation2 + $0x2e0] sm:$0xff]
    %v168 = vld [vmem:[#allocation2 + $0x2e8] sm:$0xff]
    %v169 = vld [vmem:[#allocation2 + $0x2f0] sm:$0xff]
    %v170 = vld [vmem:[#allocation2 + $0x2f8] sm:$0xff]
    %v171 = vld [vmem:[#allocation2 + $0x300] sm:$0xff]
    %v172 = vld [vmem:[#allocation2 + $0x308] sm:$0xff]
    %v173 = vld [vmem:[#allocation2 + $0x310] sm:$0xff]
    %v174 = vld [vmem:[#allocation2 + $0x318] sm:$0xff]
    %v175 = vld [vmem:[#allocation2 + $0x320] sm:$0xff]
    %v176 = vld [vmem:[#allocation2 + $0x328] sm:$0xff]
    %v177 = vld [vmem:[#allocation2 + $0x330] sm:$0xff]
    %v178 = vld [vmem:[#allocation2 + $0x338] sm:$0xff]
    %v179 = vld [vmem:[#allocation2 + $0x340] sm:$0xff]
    %v180 = vld [vmem:[#allocation2 + $0x348] sm:$0xff]
    %v181 = vld [vmem:[#allocation2 + $0x350] sm:$0xff]
    %v182 = vld [vmem:[#allocation2 + $0x358] sm:$0xff]
    %v183 = vld [vmem:[#allocation2 + $0x360] sm:$0xff]
    %v184 = vld [vmem:[#allocation2 + $0x368] sm:$0xff]
    %v185 = vld [vmem:[#allocation2 + $0x370] sm:$0xff]
    %v186 = vld [vmem:[#allocation2 + $0x378] sm:$0xff]
    %v187 = vld [vmem:[#allocation2 + $0x380] sm:$0xff]
    %v188 = vld [vmem:[#allocation2 + $0x388] sm:$0xff]
    %v189 = vld [vmem:[#allocation2 + $0x390] sm:$0xff]
    %v190 = vld [vmem:[#allocation2 + $0x398] sm:$0xff]
    %v191 = vld [vmem:[#allocation2 + $0x3a0] sm:$0xff]
    %v192 = vld [vmem:[#allocation2 + $0x3a8] sm:$0xff]
    %v193 = vld [vmem:[#allocation2 + $0x3b0] sm:$0xff]
    %v194 = vld [vmem:[#allocation2 + $0x3b8] sm:$0xff]
    %v195 = vld [vmem:[#allocation2 + $0x3c0] sm:$0xff]
    %v196 = vld [vmem:[#allocation2 + $0x3c8] sm:$0xff]
    %v197 = vld [vmem:[#allocation2 + $0x3d0] sm:$0xff]
    %v198 = vld [vmem:[#allocation2 + $0x3d8] sm:$0xff]
    %v199 = vld [vmem:[#allocation2 + $0x3e0] sm:$0xff]
    %v200 = vld [vmem:[#allocation2 + $0x3e8] sm:$0xff]
    %v201 = vld [vmem:[#allocation2 + $0x3f0] sm:$0xff]
    %v202 = vld [vmem:[#allocation2 + $0x3f8] sm:$0xff]
    %v203 = vld [vmem:[#allocation2 + $0x400] sm:$0xff]
    %v204 = vld [vmem:[#allocation2 + $0x408] sm:$0xff]
    %v205 = vld [vmem:[#allocation2 + $0x410] sm:$0xff]
    %v206 = vld [vmem:[#allocation2 + $0x418] sm:$0xff]
    %v207 = vld [vmem:[#allocation2 + $0x420] sm:$0xff]
    %v208 = vld [vmem:[#allocation2 + $0x428] sm:$0xff]
    %v209 = vld [vmem:[#allocation2 + $0x430] sm:$0xff]
    %v210 = vld [vmem:[#allocation2 + $0x438] sm:$0xff]
    %v211 = vld [vmem:[#allocation2 + $0x440] sm:$0xff]
    %v212 = vld [vmem:[#allocation2 + $0x448] sm:$0xff]
    %v213 = vld [vmem:[#allocation2 + $0x450] sm:$0xff]
    %v214 = vld [vmem:[#allocation2 + $0x458] sm:$0xff]
    %v215 = vld [vmem:[#allocation2 + $0x460] sm:$0xff]
    %v216 = vld [vmem:[#allocation2 + $0x468] sm:$0xff]
    %v217 = vld [vmem:[#allocation2 + $0x470] sm:$0xff]
    %v218 = vld [vmem:[#allocation2 + $0x478] sm:$0xff]
    %v219 = vld [vmem:[#allocation2 + $0x480] sm:$0xff]
    %v220 = vld [vmem:[#allocation2 + $0x488] sm:$0xff]
    %v221 = vld [vmem:[#allocation2 + $0x490] sm:$0xff]
    %v222 = vld [vmem:[#allocation2 + $0x498] sm:$0xff]
    %v223 = vld [vmem:[#allocation2 + $0x4a0] sm:$0xff]
    %v224 = vld [vmem:[#allocation2 + $0x4a8] sm:$0xff]
    %v225 = vld [vmem:[#allocation2 + $0x4b0] sm:$0xff]
    %v226 = vld [vmem:[#allocation2 + $0x4b8] sm:$0xff]
    %v227 = vld [vmem:[#allocation2 + $0x4c0] sm:$0xff]
    %v228 = vld [vmem:[#allocation2 + $0x4c8] sm:$0xff]
    %v229 = vld [vmem:[#allocation2 + $0x4d0] sm:$0xff]
    %v230 = vld [vmem:[#allocation2 + $0x4d8] sm:$0xff]
    %v231 = vld [vmem:[#allocation2 + $0x4e0] sm:$0xff]
    %v232 = vld [vmem:[#allocation2 + $0x4e8] sm:$0xff]
    %v233 = vld [vmem:[#allocation2 + $0x4f0] sm:$0xff]
    %v234 = vld [vmem:[#allocation2 + $0x4f8] sm:$0xff]
    %v235 = vld [vmem:[#allocation2 + $0x500] sm:$0xff]
    %v236 = vld [vmem:[#allocation2 + $0x508] sm:$0xff]
    %v237 = vld [vmem:[#allocation2 + $0x510] sm:$0xff]
    %v238 = vld [vmem:[#allocation2 + $0x518] sm:$0xff]
    %v239 = vld [vmem:[#allocation2 + $0x520] sm:$0xff]
    %v240 = vld [vmem:[#allocation2 + $0x528] sm:$0xff]
    %v241 = vld [vmem:[#allocation2 + $0x530] sm:$0xff]
    %v242 = vld [vmem:[#allocation2 + $0x538] sm:$0xff]
    %v243 = vld [vmem:[#allocation2 + $0x540] sm:$0xff]
    %v244 = vld [vmem:[#allocation2 + $0x548] sm:$0xff]
    %v245 = vld [vmem:[#allocation2 + $0x550] sm:$0xff]
    %v246 = vld [vmem:[#allocation2 + $0x558] sm:$0xff]
    %v247 = vld [vmem:[#allocation2 + $0x560] sm:$0xff]
    %v248 = vld [vmem:[#allocation2 + $0x568] sm:$0xff]
    %v249 = vld [vmem:[#allocation2 + $0x570] sm:$0xff]
    %v250 = vld [vmem:[#allocation2 + $0x578] sm:$0xff]
    %v251 = vld [vmem:[#allocation2 + $0x580] sm:$0xff]
    %v252 = vld [vmem:[#allocation2 + $0x588] sm:$0xff]
    %v253 = vld [vmem:[#allocation2 + $0x590] sm:$0xff]
    %v254 = vld [vmem:[#allocation2 + $0x598] sm:$0xff]
    %v255 = vld [vmem:[#allocation2 + $0x5a0] sm:$0xff]
    %v256 = vld [vmem:[#allocation2 + $0x5a8] sm:$0xff]
    %v257 = vld [vmem:[#allocation2 + $0x5b0] sm:$0xff]
    %v258 = vld [vmem:[#allocation2 + $0x5b8] sm:$0xff]
    %v259 = vld [vmem:[#allocation2 + $0x5c0] sm:$0xff]
    %v260 = vld [vmem:[#allocation2 + $0x5c8] sm:$0xff]
    %v261 = vld [vmem:[#allocation2 + $0x5d0] sm:$0xff]
    %v262 = vld [vmem:[#allocation2 + $0x5d8] sm:$0xff]
    %v263 = vld [vmem:[#allocation2 + $0x5e0] sm:$0xff]
    %v264 = vld [vmem:[#allocation2 + $0x5e8] sm:$0xff]
    %v265 = vld [vmem:[#allocation2 + $0x5f0] sm:$0xff]
    %v266 = vld [vmem:[#allocation2 + $0x5f8] sm:$0xff]
    %v267 = vld [vmem:[#allocation2 + $0x600] sm:$0xff]
    %v268 = vld [vmem:[#allocation2 + $0x608] sm:$0xff]
    %v269 = vld [vmem:[#allocation2 + $0x610] sm:$0xff]
    %v270 = vld [vmem:[#allocation2 + $0x618] sm:$0xff]
    %v271 = vld [vmem:[#allocation2 + $0x620] sm:$0xff]
    %v272 = vld [vmem:[#allocation2 + $0x628] sm:$0xff]
    %v273 = vld [vmem:[#allocation2 + $0x630] sm:$0xff]
    %v274 = vld [vmem:[#allocation2 + $0x638] sm:$0xff]
    %v275 = vld [vmem:[#allocation2 + $0x640] sm:$0xff]
    %v276 = vld [vmem:[#allocation2 + $0x648] sm:$0xff]
    %v277 = vld [vmem:[#allocation2 + $0x650] sm:$0xff]
    %v278 = vld [vmem:[#allocation2 + $0x658] sm:$0xff]
    %v279 = vld [vmem:[#allocation2 + $0x660] sm:$0xff]
    %v280 = vld [vmem:[#allocation2 + $0x668] sm:$0xff]
    %v281 = vld [vmem:[#allocation2 + $0x670] sm:$0xff]
    %v282 = vld [vmem:[#allocation2 + $0x678] sm:$0xff]
    %v283 = vld [vmem:[#allocation2 + $0x680] sm:$0xff]
    %v284 = vld [vmem:[#allocation2 + $0x688] sm:$0xff]
    %v285 = vld [vmem:[#allocation2 + $0x690] sm:$0xff]
    %v286 = vld [vmem:[#allocation2 + $0x698] sm:$0xff]
    %v287 = vld [vmem:[#allocation2 + $0x6a0] sm:$0xff]
    %v288 = vld [vmem:[#allocation2 + $0x6a8] sm:$0xff]
    %v289 = vld [vmem:[#allocation2 + $0x6b0] sm:$0xff]
    %v290 = vld [vmem:[#allocation2 + $0x6b8] sm:$0xff]
    %v291 = vld [vmem:[#allocation2 + $0x6c0] sm:$0xff]
    %v292 = vld [vmem:[#allocation2 + $0x6c8] sm:$0xff]
    %v293 = vld [vmem:[#allocation2 + $0x6d0] sm:$0xff]
    %v294 = vld [vmem:[#allocation2 + $0x6d8] sm:$0xff]
    %v295 = vld [vmem:[#allocation2 + $0x6e0] sm:$0xff]
    %v296 = vld [vmem:[#allocation2 + $0x6e8] sm:$0xff]
    %v297 = vld [vmem:[#allocation2 + $0x6f0] sm:$0xff]
    %v298 = vld [vmem:[#allocation2 + $0x6f8] sm:$0xff]
    %v299 = vld [vmem:[#allocation2 + $0x700] sm:$0xff]
    %v300 = vld [vmem:[#allocation2 + $0x708] sm:$0xff]
    %v301 = vld [vmem:[#allocation2 + $0x710] sm:$0xff]
    %v302 = vld [vmem:[#allocation2 + $0x718] sm:$0xff]
    %v303 = vld [vmem:[#allocation2 + $0x720] sm:$0xff]
    %v304 = vld [vmem:[#allocation2 + $0x728] sm:$0xff]
    %v305 = vld [vmem:[#allocation2 + $0x730] sm:$0xff]
    %v306 = vld [vmem:[#allocation2 + $0x738] sm:$0xff]
    %v307 = vld [vmem:[#allocation2 + $0x740] sm:$0xff]
    %v308 = vld [vmem:[#allocation2 + $0x748] sm:$0xff]
    %v309 = vld [vmem:[#allocation2 + $0x750] sm:$0xff]
    %v310 = vld [vmem:[#allocation2 + $0x758] sm:$0xff]
    %v311 = vld [vmem:[#allocation2 + $0x760] sm:$0xff]
    %v312 = vld [vmem:[#allocation2 + $0x768] sm:$0xff]
    %v313 = vld [vmem:[#allocation2 + $0x770] sm:$0xff]
    %v314 = vld [vmem:[#allocation2 + $0x778] sm:$0xff]
    %v315 = vld [vmem:[#allocation2 + $0x780] sm:$0xff]
    %v316 = vld [vmem:[#allocation2 + $0x788] sm:$0xff]
    %v317 = vld [vmem:[#allocation2 + $0x790] sm:$0xff]
    %v318 = vld [vmem:[#allocation2 + $0x798] sm:$0xff]
    %v319 = vld [vmem:[#allocation2 + $0x7a0] sm:$0xff]
    %v320 = vld [vmem:[#allocation2 + $0x7a8] sm:$0xff]
    %v321 = vld [vmem:[#allocation2 + $0x7b0] sm:$0xff]
    %v322 = vld [vmem:[#allocation2 + $0x7b8] sm:$0xff]
    %v323 = vld [vmem:[#allocation2 + $0x7c0] sm:$0xff]
    %v324 = vld [vmem:[#allocation2 + $0x7c8] sm:$0xff]
    %v325 = vld [vmem:[#allocation2 + $0x7d0] sm:$0xff]
    %v326 = vld [vmem:[#allocation2 + $0x7d8] sm:$0xff]
    %v327 = vld [vmem:[#allocation2 + $0x7e0] sm:$0xff]
    %v328 = vld [vmem:[#allocation2 + $0x7e8] sm:$0xff]
    %v329 = vld [vmem:[#allocation2 + $0x7f0] sm:$0xff]
    %v330 = vld [vmem:[#allocation2 + $0x7f8] sm:$0xff]
    %v331 = vld [vmem:[#allocation2 + $0x800] sm:$0xff]
    %v332 = vld [vmem:[#allocation2 + $0x808] sm:$0xff]
    %v333 = vld [vmem:[#allocation2 + $0x810] sm:$0xff]
    %v334 = vld [vmem:[#allocation2 + $0x818] sm:$0xff]
    %v335 = vld [vmem:[#allocation2 + $0x820] sm:$0xff]
    %v336 = vld [vmem:[#allocation2 + $0x828] sm:$0xff]
    %v337 = vld [vmem:[#allocation2 + $0x830] sm:$0xff]
    %v338 = vld [vmem:[#allocation2 + $0x838] sm:$0xff]
    %v339 = vld [vmem:[#allocation2 + $0x840] sm:$0xff]
    %v340 = vld [vmem:[#allocation2 + $0x848] sm:$0xff]
    %v341 = vld [vmem:[#allocation2 + $0x850] sm:$0xff]
    %v342 = vld [vmem:[#allocation2 + $0x858] sm:$0xff]
    %v343 = vld [vmem:[#allocation2 + $0x860] sm:$0xff]
    %v344 = vld [vmem:[#allocation2 + $0x868] sm:$0xff]
    %v345 = vld [vmem:[#allocation2 + $0x870] sm:$0xff]
    %v346 = vld [vmem:[#allocation2 + $0x878] sm:$0xff]
    %v347 = vld [vmem:[#allocation2 + $0x880] sm:$0xff]
    %v348 = vld [vmem:[#allocation2 + $0x888] sm:$0xff]
    %v349 = vld [vmem:[#allocation2 + $0x890] sm:$0xff]
    %v350 = vld [vmem:[#allocation2 + $0x898] sm:$0xff]
    %v351 = vld [vmem:[#allocation2 + $0x8a0] sm:$0xff]
    %v352 = vld [vmem:[#allocation2 + $0x8a8] sm:$0xff]
    %v353 = vld [vmem:[#allocation2 + $0x8b0] sm:$0xff]
    %v354 = vld [vmem:[#allocation2 + $0x8b8] sm:$0xff]
    %v355 = vld [vmem:[#allocation2 + $0x8c0] sm:$0xff]
    %v356 = vld [vmem:[#allocation2 + $0x8c8] sm:$0xff]
    %v357 = vld [vmem:[#allocation2 + $0x8d0] sm:$0xff]
    %v358 = vld [vmem:[#allocation2 + $0x8d8] sm:$0xff]
    %v359 = vld [vmem:[#allocation2 + $0x8e0] sm:$0xff]
    %v360 = vld [vmem:[#allocation2 + $0x8e8] sm:$0xff]
    %v361 = vld [vmem:[#allocation2 + $0x8f0] sm:$0xff]
    %v362 = vld [vmem:[#allocation2 + $0x8f8] sm:$0xff]
    %v363 = vld [vmem:[#allocation2 + $0x900] sm:$0xff]
    %v364 = vld [vmem:[#allocation2 + $0x908] sm:$0xff]
    %v365 = vld [vmem:[#allocation2 + $0x910] sm:$0xff]
    %v366 = vld [vmem:[#allocation2 + $0x918] sm:$0xff]
    %v367 = vld [vmem:[#allocation2 + $0x920] sm:$0xff]
    %v368 = vld [vmem:[#allocation2 + $0x928] sm:$0xff]
    %v369 = vld [vmem:[#allocation2 + $0x930] sm:$0xff]
    %v370 = vld [vmem:[#allocation2 + $0x938] sm:$0xff]
    %v371 = vld [vmem:[#allocation2 + $0x940] sm:$0xff]
    %v372 = vld [vmem:[#allocation2 + $0x948] sm:$0xff]
    %v373 = vld [vmem:[#allocation2 + $0x950] sm:$0xff]
    %v374 = vld [vmem:[#allocation2 + $0x958] sm:$0xff]
    %v375 = vld [vmem:[#allocation2 + $0x960] sm:$0xff]
    %v376 = vld [vmem:[#allocation2 + $0x968] sm:$0xff]
    %v377 = vld [vmem:[#allocation2 + $0x970] sm:$0xff]
    %v378 = vld [vmem:[#allocation2 + $0x978] sm:$0xff]
    %v379 = vld [vmem:[#allocation2 + $0x980] sm:$0xff]
    %v380 = vld [vmem:[#allocation2 + $0x988] sm:$0xff]
    %v381 = vld [vmem:[#allocation2 + $0x990] sm:$0xff]
    %v382 = vld [vmem:[#allocation2 + $0x998] sm:$0xff]
    %v383 = vld [vmem:[#allocation2 + $0x9a0] sm:$0xff]
    %v384 = vld [vmem:[#allocation2 + $0x9a8] sm:$0xff]
    %v385 = vld [vmem:[#allocation2 + $0x9b0] sm:$0xff]
    %v386 = vld [vmem:[#allocation2 + $0x9b8] sm:$0xff]
    %v387 = vld [vmem:[#allocation2 + $0x9c0] sm:$0xff]
    %v388 = vld [vmem:[#allocation2 + $0x9c8] sm:$0xff]
    %v389 = vld [vmem:[#allocation2 + $0x9d0] sm:$0xff]
    %v390 = vld [vmem:[#allocation2 + $0x9d8] sm:$0xff]
    %v391 = vld [vmem:[#allocation2 + $0x9e0] sm:$0xff]
    %v392 = vld [vmem:[#allocation2 + $0x9e8] sm:$0xff]
    %v393 = vld [vmem:[#allocation2 + $0x9f0] sm:$0xff]
    %v394 = vld [vmem:[#allocation2 + $0x9f8] sm:$0xff]
    %v395 = vld [vmem:[#allocation2 + $0xa00] sm:$0xff]
    %v396 = vld [vmem:[#allocation2 + $0xa08] sm:$0xff]
    %v397 = vld [vmem:[#allocation2 + $0xa10] sm:$0xff]
    %v398 = vld [vmem:[#allocation2 + $0xa18] sm:$0xff]
    %v399 = vld [vmem:[#allocation2 + $0xa20] sm:$0xff]
    %v400 = vld [vmem:[#allocation2 + $0xa28] sm:$0xff]
    %v401 = vld [vmem:[#allocation2 + $0xa30] sm:$0xff]
    %v402 = vld [vmem:[#allocation2 + $0xa38] sm:$0xff]
    %v403 = vld [vmem:[#allocation2 + $0xa40] sm:$0xff]
    %v404 = vld [vmem:[#allocation2 + $0xa48] sm:$0xff]
    %v405 = vld [vmem:[#allocation2 + $0xa50] sm:$0xff]
    %v406 = vld [vmem:[#allocation2 + $0xa58] sm:$0xff]
    %v407 = vld [vmem:[#allocation2 + $0xa60] sm:$0xff]
    %v408 = vld [vmem:[#allocation2 + $0xa68] sm:$0xff]
    %v409 = vld [vmem:[#allocation2 + $0xa70] sm:$0xff]
    %v410 = vld [vmem:[#allocation2 + $0xa78] sm:$0xff]
    %v411 = vld [vmem:[#allocation2 + $0xa80] sm:$0xff]
    %v412 = vld [vmem:[#allocation2 + $0xa88] sm:$0xff]
    %v413 = vld [vmem:[#allocation2 + $0xa90] sm:$0xff]
    %v414 = vld [vmem:[#allocation2 + $0xa98] sm:$0xff]
    %v415 = vld [vmem:[#allocation2 + $0xaa0] sm:$0xff]
    %v416 = vld [vmem:[#allocation2 + $0xaa8] sm:$0xff]
    %v417 = vld [vmem:[#allocation2 + $0xab0] sm:$0xff]
    %v418 = vld [vmem:[#allocation2 + $0xab8] sm:$0xff]
    %v419 = vld [vmem:[#allocation2 + $0xac0] sm:$0xff]
    %v420 = vld [vmem:[#allocation2 + $0xac8] sm:$0xff]
    %v421 = vld [vmem:[#allocation2 + $0xad0] sm:$0xff]
    %v422 = vld [vmem:[#allocation2 + $0xad8] sm:$0xff]
    %v423 = vld [vmem:[#allocation2 + $0xae0] sm:$0xff]
    %v424 = vld [vmem:[#allocation2 + $0xae8] sm:$0xff]
    %v425 = vld [vmem:[#allocation2 + $0xaf0] sm:$0xff]
    %v426 = vld [vmem:[#allocation2 + $0xaf8] sm:$0xff]
    %v427 = vld [vmem:[#allocation2 + $0xb00] sm:$0xff]
    %v428 = vld [vmem:[#allocation2 + $0xb08] sm:$0xff]
    %v429 = vld [vmem:[#allocation2 + $0xb10] sm:$0xff]
    %v430 = vld [vmem:[#allocation2 + $0xb18] sm:$0xff]
    %v431 = vld [vmem:[#allocation2 + $0xb20] sm:$0xff]
    %v432 = vld [vmem:[#allocation2 + $0xb28] sm:$0xff]
    %v433 = vld [vmem:[#allocation2 + $0xb30] sm:$0xff]
    %v434 = vld [vmem:[#allocation2 + $0xb38] sm:$0xff]
    %v435 = vld [vmem:[#allocation2 + $0xb40] sm:$0xff]
    %v436 = vld [vmem:[#allocation2 + $0xb48] sm:$0xff]
    %v437 = vld [vmem:[#allocation2 + $0xb50] sm:$0xff]
    %v438 = vld [vmem:[#allocation2 + $0xb58] sm:$0xff]
    %v439 = vld [vmem:[#allocation2 + $0xb60] sm:$0xff]
    %v440 = vld [vmem:[#allocation2 + $0xb68] sm:$0xff]
    %v441 = vld [vmem:[#allocation2 + $0xb70] sm:$0xff]
    %v442 = vld [vmem:[#allocation2 + $0xb78] sm:$0xff]
    %v443 = vld [vmem:[#allocation2 + $0xb80] sm:$0xff]
    %v444 = vld [vmem:[#allocation2 + $0xb88] sm:$0xff]
    %v445 = vld [vmem:[#allocation2 + $0xb90] sm:$0xff]
    %v446 = vld [vmem:[#allocation2 + $0xb98] sm:$0xff]
    %v447 = vld [vmem:[#allocation2 + $0xba0] sm:$0xff]
    %v448 = vld [vmem:[#allocation2 + $0xba8] sm:$0xff]
    %v449 = vld [vmem:[#allocation2 + $0xbb0] sm:$0xff]
    %v450 = vld [vmem:[#allocation2 + $0xbb8] sm:$0xff]
    %v451 = vld [vmem:[#allocation2 + $0xbc0] sm:$0xff]
    %v452 = vld [vmem:[#allocation2 + $0xbc8] sm:$0xff]
    %v453 = vld [vmem:[#allocation2 + $0xbd0] sm:$0xff]
    %v454 = vld [vmem:[#allocation2 + $0xbd8] sm:$0xff]
    %v455 = vld [vmem:[#allocation2 + $0xbe0] sm:$0xff]
    %v456 = vld [vmem:[#allocation2 + $0xbe8] sm:$0xff]
    %v457 = vld [vmem:[#allocation2 + $0xbf0] sm:$0xff]
    %v458 = vld [vmem:[#allocation2 + $0xbf8] sm:$0xff]
    %v459 = vld [vmem:[#allocation2 + $0xc00] sm:$0xff]
    %v460 = vld [vmem:[#allocation2 + $0xc08] sm:$0xff]
    %v461 = vld [vmem:[#allocation2 + $0xc10] sm:$0xff]
    %v462 = vld [vmem:[#allocation2 + $0xc18] sm:$0xff]
    %v463 = vld [vmem:[#allocation2 + $0xc20] sm:$0xff]
    %v464 = vld [vmem:[#allocation2 + $0xc28] sm:$0xff]
    %v465 = vld [vmem:[#allocation2 + $0xc30] sm:$0xff]
    %v466 = vld [vmem:[#allocation2 + $0xc38] sm:$0xff]
    %v467 = vld [vmem:[#allocation2 + $0xc40] sm:$0xff]
    %v468 = vld [vmem:[#allocation2 + $0xc48] sm:$0xff]
    %v469 = vld [vmem:[#allocation2 + $0xc50] sm:$0xff]
    %v470 = vld [vmem:[#allocation2 + $0xc58] sm:$0xff]
    %v471 = vld [vmem:[#allocation2 + $0xc60] sm:$0xff]
    %v472 = vld [vmem:[#allocation2 + $0xc68] sm:$0xff]
    %v473 = vld [vmem:[#allocation2 + $0xc70] sm:$0xff]
    %v474 = vld [vmem:[#allocation2 + $0xc78] sm:$0xff]
    %v475 = vld [vmem:[#allocation2 + $0xc80] sm:$0xff]
    %v476 = vld [vmem:[#allocation2 + $0xc88] sm:$0xff]
    %v477 = vld [vmem:[#allocation2 + $0xc90] sm:$0xff]
    %v478 = vld [vmem:[#allocation2 + $0xc98] sm:$0xff]
    %v479 = vld [vmem:[#allocation2 + $0xca0] sm:$0xff]
    %v480 = vld [vmem:[#allocation2 + $0xca8] sm:$0xff]
    %v481 = vld [vmem:[#allocation2 + $0xcb0] sm:$0xff]
    %v482 = vld [vmem:[#allocation2 + $0xcb8] sm:$0xff]
    %v483 = vld [vmem:[#allocation2 + $0xcc0] sm:$0xff]
    %v484 = vld [vmem:[#allocation2 + $0xcc8] sm:$0xff]
    %v485 = vld [vmem:[#allocation2 + $0xcd0] sm:$0xff]
    %v486 = vld [vmem:[#allocation2 + $0xcd8] sm:$0xff]
    %v487 = vld [vmem:[#allocation2 + $0xce0] sm:$0xff]
    %v488 = vld [vmem:[#allocation2 + $0xce8] sm:$0xff]
    %v489 = vld [vmem:[#allocation2 + $0xcf0] sm:$0xff]
    %v490 = vld [vmem:[#allocation2 + $0xcf8] sm:$0xff]
    %v491 = vld [vmem:[#allocation2 + $0xd00] sm:$0xff]
    %v492 = vld [vmem:[#allocation2 + $0xd08] sm:$0xff]
    %v493 = vld [vmem:[#allocation2 + $0xd10] sm:$0xff]
    %v494 = vld [vmem:[#allocation2 + $0xd18] sm:$0xff]
    %v495 = vld [vmem:[#allocation2 + $0xd20] sm:$0xff]
    %v496 = vld [vmem:[#allocation2 + $0xd28] sm:$0xff]
    %v497 = vld [vmem:[#allocation2 + $0xd30] sm:$0xff]
    %v498 = vld [vmem:[#allocation2 + $0xd38] sm:$0xff]
    %v499 = vld [vmem:[#allocation2 + $0xd40] sm:$0xff]
    %v500 = vld [vmem:[#allocation2 + $0xd48] sm:$0xff]
    %v501 = vld [vmem:[#allocation2 + $0xd50] sm:$0xff]
    %v502 = vld [vmem:[#allocation2 + $0xd58] sm:$0xff]
    %v503 = vld [vmem:[#allocation2 + $0xd60] sm:$0xff]
    %v504 = vld [vmem:[#allocation2 + $0xd68] sm:$0xff]
    %v505 = vld [vmem:[#allocation2 + $0xd70] sm:$0xff]
    %v506 = vld [vmem:[#allocation2 + $0xd78] sm:$0xff]
    %v507 = vld [vmem:[#allocation2 + $0xd80] sm:$0xff]
    %v508 = vld [vmem:[#allocation2 + $0xd88] sm:$0xff]
    %v509 = vld [vmem:[#allocation2 + $0xd90] sm:$0xff]
    %v510 = vld [vmem:[#allocation2 + $0xd98] sm:$0xff]
    %v511 = vld [vmem:[#allocation2 + $0xda0] sm:$0xff]
    %v512 = vld [vmem:[#allocation2 + $0xda8] sm:$0xff]
    %v513 = vld [vmem:[#allocation2 + $0xdb0] sm:$0xff]
    %v514 = vld [vmem:[#allocation2 + $0xdb8] sm:$0xff]
    %v515 = vld [vmem:[#allocation2 + $0xdc0] sm:$0xff]
    %v516 = vld [vmem:[#allocation2 + $0xdc8] sm:$0xff]
    %v517 = vld [vmem:[#allocation2 + $0xdd0] sm:$0xff]
    %v518 = vld [vmem:[#allocation2 + $0xdd8] sm:$0xff]
    %v519 = vld [vmem:[#allocation2 + $0xde0] sm:$0xff]
    %v520 = vld [vmem:[#allocation2 + $0xde8] sm:$0xff]
    %v521 = vld [vmem:[#allocation2 + $0xdf0] sm:$0xff]
    %v522 = vld [vmem:[#allocation2 + $0xdf8] sm:$0xff]
    %v523 = vld [vmem:[#allocation2 + $0xe00] sm:$0xff]
    %v524 = vld [vmem:[#allocation2 + $0xe08] sm:$0xff]
    %v525 = vld [vmem:[#allocation2 + $0xe10] sm:$0xff]
    %v526 = vld [vmem:[#allocation2 + $0xe18] sm:$0xff]
    %v527 = vld [vmem:[#allocation2 + $0xe20] sm:$0xff]
    %v528 = vld [vmem:[#allocation2 + $0xe28] sm:$0xff]
    %v529 = vld [vmem:[#allocation2 + $0xe30] sm:$0xff]
    %v530 = vld [vmem:[#allocation2 + $0xe38] sm:$0xff]
    %v531 = vld [vmem:[#allocation2 + $0xe40] sm:$0xff]
    %v532 = vld [vmem:[#allocation2 + $0xe48] sm:$0xff]
    %v533 = vld [vmem:[#allocation2 + $0xe50] sm:$0xff]
    %v534 = vld [vmem:[#allocation2 + $0xe58] sm:$0xff]
    %v535 = vld [vmem:[#allocation2 + $0xe60] sm:$0xff]
    %v536 = vld [vmem:[#allocation2 + $0xe68] sm:$0xff]
    %v537 = vld [vmem:[#allocation2 + $0xe70] sm:$0xff]
    %v538 = vld [vmem:[#allocation2 + $0xe78] sm:$0xff]
    %v539 = vld [vmem:[#allocation2 + $0xe80] sm:$0xff]
    %v540 = vld [vmem:[#allocation2 + $0xe88] sm:$0xff]
    %v541 = vld [vmem:[#allocation2 + $0xe90] sm:$0xff]
    %v542 = vld [vmem:[#allocation2 + $0xe98] sm:$0xff]
    %v543 = vld [vmem:[#allocation2 + $0xea0] sm:$0xff]
    %v544 = vld [vmem:[#allocation2 + $0xea8] sm:$0xff]
    %v545 = vld [vmem:[#allocation2 + $0xeb0] sm:$0xff]
    %v546 = vld [vmem:[#allocation2 + $0xeb8] sm:$0xff]
    %v547 = vld [vmem:[#allocation2 + $0xec0] sm:$0xff]
    %v548 = vld [vmem:[#allocation2 + $0xec8] sm:$0xff]
    %v549 = vld [vmem:[#allocation2 + $0xed0] sm:$0xff]
    %v550 = vld [vmem:[#allocation2 + $0xed8] sm:$0xff]
    %v551 = vld [vmem:[#allocation2 + $0xee0] sm:$0xff]
    %v552 = vld [vmem:[#allocation2 + $0xee8] sm:$0xff]
    %v553 = vld [vmem:[#allocation2 + $0xef0] sm:$0xff]
    %v554 = vld [vmem:[#allocation2 + $0xef8] sm:$0xff]
    %v555 = vld [vmem:[#allocation2 + $0xf00] sm:$0xff]
    %v556 = vld [vmem:[#allocation2 + $0xf08] sm:$0xff]
    %v557 = vld [vmem:[#allocation2 + $0xf10] sm:$0xff]
    %v558 = vld [vmem:[#allocation2 + $0xf18] sm:$0xff]
    %v559 = vld [vmem:[#allocation2 + $0xf20] sm:$0xff]
    %v560 = vld [vmem:[#allocation2 + $0xf28] sm:$0xff]
    %v561 = vld [vmem:[#allocation2 + $0xf30] sm:$0xff]
    %v562 = vld [vmem:[#allocation2 + $0xf38] sm:$0xff]
    %v563 = vld [vmem:[#allocation2 + $0xf40] sm:$0xff]
    %v564 = vld [vmem:[#allocation2 + $0xf48] sm:$0xff]
    %v565 = vld [vmem:[#allocation2 + $0xf50] sm:$0xff]
    %v566 = vld [vmem:[#allocation2 + $0xf58] sm:$0xff]
    %v567 = vld [vmem:[#allocation2 + $0xf60] sm:$0xff]
    %v568 = vld [vmem:[#allocation2 + $0xf68] sm:$0xff]
    %v569 = vld [vmem:[#allocation2 + $0xf70] sm:$0xff]
    %v570 = vld [vmem:[#allocation2 + $0xf78] sm:$0xff]
    %v571 = vld [vmem:[#allocation2 + $0xf80] sm:$0xff]
    %v572 = vld [vmem:[#allocation2 + $0xf88] sm:$0xff]
    %v573 = vld [vmem:[#allocation2 + $0xf90] sm:$0xff]
    %v574 = vld [vmem:[#allocation2 + $0xf98] sm:$0xff]
    %v575 = vld [vmem:[#allocation2 + $0xfa0] sm:$0xff]
    %v576 = vld [vmem:[#allocation2 + $0xfa8] sm:$0xff]
    %v577 = vld [vmem:[#allocation2 + $0xfb0] sm:$0xff]
    %v578 = vld [vmem:[#allocation2 + $0xfb8] sm:$0xff]
    %v579 = vld [vmem:[#allocation2 + $0xfc0] sm:$0xff]
    %v580 = vld [vmem:[#allocation2 + $0xfc8] sm:$0xff]
    %v581 = vld [vmem:[#allocation2 + $0xfd0] sm:$0xff]
    %v582 = vld [vmem:[#allocation2 + $0xfd8] sm:$0xff]
    %v583 = vld [vmem:[#allocation2 + $0xfe0] sm:$0xff]
    %v584 = vld [vmem:[#allocation2 + $0xfe8] sm:$0xff]
    %v585 = vld [vmem:[#allocation2 + $0xff0] sm:$0xff]
    %v586 = vld [vmem:[#allocation2 + $0xff8] sm:$0xff]
    %v587 = vld [vmem:[#allocation2 + $0x1000] sm:$0xff]
    %v588 = vld [vmem:[#allocation2 + $0x1008] sm:$0xff]
    %v589 = vld [vmem:[#allocation2 + $0x1010] sm:$0xff]
    %v590 = vld [vmem:[#allocation2 + $0x1018] sm:$0xff]
    %v591 = vld [vmem:[#allocation2 + $0x1020] sm:$0xff]
    %v592 = vld [vmem:[#allocation2 + $0x1028] sm:$0xff]
    %v593 = vld [vmem:[#allocation2 + $0x1030] sm:$0xff]
    %v594 = vld [vmem:[#allocation2 + $0x1038] sm:$0xff]
    %v595 = vld [vmem:[#allocation2 + $0x1040] sm:$0xff]
    %v596 = vld [vmem:[#allocation2 + $0x1048] sm:$0xff]
    %v597 = vld [vmem:[#allocation2 + $0x1050] sm:$0xff]
    %v598 = vld [vmem:[#allocation2 + $0x1058] sm:$0xff]
    %v599 = vld [vmem:[#allocation2 + $0x1060] sm:$0xff]
    %v600 = vld [vmem:[#allocation2 + $0x1068] sm:$0xff]
    %v601 = vld [vmem:[#allocation2 + $0x1070] sm:$0xff]
    %v602 = vld [vmem:[#allocation2 + $0x1078] sm:$0xff]
    %v603 = vld [vmem:[#allocation2 + $0x1080] sm:$0xff]
    %v604 = vld [vmem:[#allocation2 + $0x1088] sm:$0xff]
    %v605 = vld [vmem:[#allocation2 + $0x1090] sm:$0xff]
    %v606 = vld [vmem:[#allocation2 + $0x1098] sm:$0xff]
    %v607 = vld [vmem:[#allocation2 + $0x10a0] sm:$0xff]
    %v608 = vld [vmem:[#allocation2 + $0x10a8] sm:$0xff]
    %v609 = vld [vmem:[#allocation2 + $0x10b0] sm:$0xff]
    %v610 = vld [vmem:[#allocation2 + $0x10b8] sm:$0xff]
    %v611 = vld [vmem:[#allocation2 + $0x10c0] sm:$0xff]
    %v612 = vld [vmem:[#allocation2 + $0x10c8] sm:$0xff]
    %v613 = vld [vmem:[#allocation2 + $0x10d0] sm:$0xff]
    %v614 = vld [vmem:[#allocation2 + $0x10d8] sm:$0xff]
    %v615 = vld [vmem:[#allocation2 + $0x10e0] sm:$0xff]
    %v616 = vld [vmem:[#allocation2 + $0x10e8] sm:$0xff]
    %v617 = vld [vmem:[#allocation2 + $0x10f0] sm:$0xff]
    %v618 = vld [vmem:[#allocation2 + $0x10f8] sm:$0xff]
    %v619 = vld [vmem:[#allocation2 + $0x1100] sm:$0xff]
    %v620 = vld [vmem:[#allocation2 + $0x1108] sm:$0xff]
    %v621 = vld [vmem:[#allocation2 + $0x1110] sm:$0xff]
    %v622 = vld [vmem:[#allocation2 + $0x1118] sm:$0xff]
    %v623 = vld [vmem:[#allocation2 + $0x1120] sm:$0xff]
    %v624 = vld [vmem:[#allocation2 + $0x1128] sm:$0xff]
    %v625 = vld [vmem:[#allocation2 + $0x1130] sm:$0xff]
    %v626 = vld [vmem:[#allocation2 + $0x1138] sm:$0xff]
    %v627 = vld [vmem:[#allocation2 + $0x1140] sm:$0xff]
    %v628 = vld [vmem:[#allocation2 + $0x1148] sm:$0xff]
    %v629 = vld [vmem:[#allocation2 + $0x1150] sm:$0xff]
    %v630 = vld [vmem:[#allocation2 + $0x1158] sm:$0xff]
    %v631 = vld [vmem:[#allocation2 + $0x1160] sm:$0xff]
    %v632 = vld [vmem:[#allocation2 + $0x1168] sm:$0xff]
    %v633 = vld [vmem:[#allocation2 + $0x1170] sm:$0xff]
    %v634 = vld [vmem:[#allocation2 + $0x1178] sm:$0xff]
    %v635 = vld [vmem:[#allocation2 + $0x1180] sm:$0xff]
    %v636 = vld [vmem:[#allocation2 + $0x1188] sm:$0xff]
    %v637 = vld [vmem:[#allocation2 + $0x1190] sm:$0xff]
    %v638 = vld [vmem:[#allocation2 + $0x1198] sm:$0xff]
    %v639 = vld [vmem:[#allocation2 + $0x11a0] sm:$0xff]
    %v640 = vld [vmem:[#allocation2 + $0x11a8] sm:$0xff]
    %v641 = vld [vmem:[#allocation2 + $0x11b0] sm:$0xff]
    %v642 = vld [vmem:[#allocation2 + $0x11b8] sm:$0xff]
    %v643 = vld [vmem:[#allocation2 + $0x11c0] sm:$0xff]
    %v644 = vld [vmem:[#allocation2 + $0x11c8] sm:$0xff]
    %v645 = vld [vmem:[#allocation2 + $0x11d0] sm:$0xff]
    %v646 = vld [vmem:[#allocation2 + $0x11d8] sm:$0xff]
    %v647 = vld [vmem:[#allocation2 + $0x11e0] sm:$0xff]
    %v648 = vld [vmem:[#allocation2 + $0x11e8] sm:$0xff]
    %v649 = vld [vmem:[#allocation2 + $0x11f0] sm:$0xff]
    %v650 = vld [vmem:[#allocation2 + $0x11f8] sm:$0xff]
    %v651 = vld [vmem:[#allocation2 + $0x1200] sm:$0xff]
    %v652 = vld [vmem:[#allocation2 + $0x1208] sm:$0xff]
    %v653 = vld [vmem:[#allocation2 + $0x1210] sm:$0xff]
    %v654 = vld [vmem:[#allocation2 + $0x1218] sm:$0xff]
    %v655 = vld [vmem:[#allocation2 + $0x1220] sm:$0xff]
    %v656 = vld [vmem:[#allocation2 + $0x1228] sm:$0xff]
    %v657 = vld [vmem:[#allocation2 + $0x1230] sm:$0xff]
    %v658 = vld [vmem:[#allocation2 + $0x1238] sm:$0xff]
    %v659 = vld [vmem:[#allocation2 + $0x1240] sm:$0xff]
    %v660 = vld [vmem:[#allocation2 + $0x1248] sm:$0xff]
    %v661 = vld [vmem:[#allocation2 + $0x1250] sm:$0xff]
    %v662 = vld [vmem:[#allocation2 + $0x1258] sm:$0xff]
    %v663 = vld [vmem:[#allocation2 + $0x1260] sm:$0xff]
    %v664 = vld [vmem:[#allocation2 + $0x1268] sm:$0xff]
    %v665 = vld [vmem:[#allocation2 + $0x1270] sm:$0xff]
    %v666 = vld [vmem:[#allocation2 + $0x1278] sm:$0xff]
    %v667 = vld [vmem:[#allocation2 + $0x1280] sm:$0xff]
    %v668 = vld [vmem:[#allocation2 + $0x1288] sm:$0xff]
    %v669 = vld [vmem:[#allocation2 + $0x1290] sm:$0xff]
    %v670 = vld [vmem:[#allocation2 + $0x1298] sm:$0xff]
    %v671 = vld [vmem:[#allocation2 + $0x12a0] sm:$0xff]
    %v672 = vld [vmem:[#allocation2 + $0x12a8] sm:$0xff]
    %v673 = vld [vmem:[#allocation2 + $0x12b0] sm:$0xff]
    %v674 = vld [vmem:[#allocation2 + $0x12b8] sm:$0xff]
    %v675 = vld [vmem:[#allocation2 + $0x12c0] sm:$0xff]
    %v676 = vld [vmem:[#allocation2 + $0x12c8] sm:$0xff]
    %v677 = vld [vmem:[#allocation2 + $0x12d0] sm:$0xff]
    %v678 = vld [vmem:[#allocation2 + $0x12d8] sm:$0xff]
    %v679 = vld [vmem:[#allocation2 + $0x12e0] sm:$0xff]
    %v680 = vld [vmem:[#allocation2 + $0x12e8] sm:$0xff]
    %v681 = vld [vmem:[#allocation2 + $0x12f0] sm:$0xff]
    %v682 = vld [vmem:[#allocation2 + $0x12f8] sm:$0xff]
    %v683 = vld [vmem:[#allocation2 + $0x1300] sm:$0xff]
    %v684 = vld [vmem:[#allocation2 + $0x1308] sm:$0xff]
    %v685 = vld [vmem:[#allocation2 + $0x1310] sm:$0xff]
    %v686 = vld [vmem:[#allocation2 + $0x1318] sm:$0xff]
    %v687 = vld [vmem:[#allocation2 + $0x1320] sm:$0xff]
    %v688 = vld [vmem:[#allocation2 + $0x1328] sm:$0xff]
    %v689 = vld [vmem:[#allocation2 + $0x1330] sm:$0xff]
    %v690 = vld [vmem:[#allocation2 + $0x1338] sm:$0xff]
    %v691 = vld [vmem:[#allocation2 + $0x1340] sm:$0xff]
    %v692 = vld [vmem:[#allocation2 + $0x1348] sm:$0xff]
    %v693 = vld [vmem:[#allocation2 + $0x1350] sm:$0xff]
    %v694 = vld [vmem:[#allocation2 + $0x1358] sm:$0xff]
    %v695 = vld [vmem:[#allocation2 + $0x1360] sm:$0xff]
    %v696 = vld [vmem:[#allocation2 + $0x1368] sm:$0xff]
    %v697 = vld [vmem:[#allocation2 + $0x1370] sm:$0xff]
    %v698 = vld [vmem:[#allocation2 + $0x1378] sm:$0xff]
    %v699 = vld [vmem:[#allocation2 + $0x1380] sm:$0xff]
    %v700 = vld [vmem:[#allocation2 + $0x1388] sm:$0xff]
    %v701 = vld [vmem:[#allocation2 + $0x1390] sm:$0xff]
    %v702 = vld [vmem:[#allocation2 + $0x1398] sm:$0xff]
    %v703 = vld [vmem:[#allocation2 + $0x13a0] sm:$0xff]
    %v704 = vld [vmem:[#allocation2 + $0x13a8] sm:$0xff]
    %v705 = vld [vmem:[#allocation2 + $0x13b0] sm:$0xff]
    %v706 = vld [vmem:[#allocation2 + $0x13b8] sm:$0xff]
    %v707 = vld [vmem:[#allocation2 + $0x13c0] sm:$0xff]
    %v708 = vld [vmem:[#allocation2 + $0x13c8] sm:$0xff]
    %v709 = vld [vmem:[#allocation2 + $0x13d0] sm:$0xff]
    %v710 = vld [vmem:[#allocation2 + $0x13d8] sm:$0xff]
    %v711 = vld [vmem:[#allocation2 + $0x13e0] sm:$0xff]
    %v712 = vld [vmem:[#allocation2 + $0x13e8] sm:$0xff]
    %v713 = vld [vmem:[#allocation2 + $0x13f0] sm:$0xff]
    %v714 = vld [vmem:[#allocation2 + $0x13f8] sm:$0xff]
    %v715 = vld [vmem:[#allocation2 + $0x1400] sm:$0xff]
    %v716 = vld [vmem:[#allocation2 + $0x1408] sm:$0xff]
    %v717 = vld [vmem:[#allocation2 + $0x1410] sm:$0xff]
    %v718 = vld [vmem:[#allocation2 + $0x1418] sm:$0xff]
    %v719 = vld [vmem:[#allocation2 + $0x1420] sm:$0xff]
    %v720 = vld [vmem:[#allocation2 + $0x1428] sm:$0xff]
    %v721 = vld [vmem:[#allocation2 + $0x1430] sm:$0xff]
    %v722 = vld [vmem:[#allocation2 + $0x1438] sm:$0xff]
    %v723 = vld [vmem:[#allocation2 + $0x1440] sm:$0xff]
    %v724 = vld [vmem:[#allocation2 + $0x1448] sm:$0xff]
    %v725 = vld [vmem:[#allocation2 + $0x1450] sm:$0xff]
    %v726 = vld [vmem:[#allocation2 + $0x1458] sm:$0xff]
    %v727 = vld [vmem:[#allocation2 + $0x1460] sm:$0xff]
    %v728 = vld [vmem:[#allocation2 + $0x1468] sm:$0xff]
    %v729 = vld [vmem:[#allocation2 + $0x1470] sm:$0xff]
    %v730 = vld [vmem:[#allocation2 + $0x1478] sm:$0xff]
    %v731 = vld [vmem:[#allocation2 + $0x1480] sm:$0xff]
    %v732 = vld [vmem:[#allocation2 + $0x1488] sm:$0xff]
    %v733 = vld [vmem:[#allocation2 + $0x1490] sm:$0xff]
    %v734 = vld [vmem:[#allocation2 + $0x1498] sm:$0xff]
    %v735 = vld [vmem:[#allocation2 + $0x14a0] sm:$0xff]
    %v736 = vld [vmem:[#allocation2 + $0x14a8] sm:$0xff]
    %v737 = vld [vmem:[#allocation2 + $0x14b0] sm:$0xff]
    %v738 = vld [vmem:[#allocation2 + $0x14b8] sm:$0xff]
    %v739 = vld [vmem:[#allocation2 + $0x14c0] sm:$0xff]
    %v740 = vld [vmem:[#allocation2 + $0x14c8] sm:$0xff]
    %v741 = vld [vmem:[#allocation2 + $0x14d0] sm:$0xff]
    %v742 = vld [vmem:[#allocation2 + $0x14d8] sm:$0xff]
    %v743 = vld [vmem:[#allocation2 + $0x14e0] sm:$0xff]
    %v744 = vld [vmem:[#allocation2 + $0x14e8] sm:$0xff]
    %v745 = vld [vmem:[#allocation2 + $0x14f0] sm:$0xff]
    %v746 = vld [vmem:[#allocation2 + $0x14f8] sm:$0xff]
    %v747 = vld [vmem:[#allocation2 + $0x1500] sm:$0xff]
    %v748 = vld [vmem:[#allocation2 + $0x1508] sm:$0xff]
    %v749 = vld [vmem:[#allocation2 + $0x1510] sm:$0xff]
    %v750 = vld [vmem:[#allocation2 + $0x1518] sm:$0xff]
    %v751 = vld [vmem:[#allocation2 + $0x1520] sm:$0xff]
    %v752 = vld [vmem:[#allocation2 + $0x1528] sm:$0xff]
    %v753 = vld [vmem:[#allocation2 + $0x1530] sm:$0xff]
    %v754 = vld [vmem:[#allocation2 + $0x1538] sm:$0xff]
    %v755 = vld [vmem:[#allocation2 + $0x1540] sm:$0xff]
    %v756 = vld [vmem:[#allocation2 + $0x1548] sm:$0xff]
    %v757 = vld [vmem:[#allocation2 + $0x1550] sm:$0xff]
    %v758 = vld [vmem:[#allocation2 + $0x1558] sm:$0xff]
    %v759 = vld [vmem:[#allocation2 + $0x1560] sm:$0xff]
    %v760 = vld [vmem:[#allocation2 + $0x1568] sm:$0xff]
    %v761 = vld [vmem:[#allocation2 + $0x1570] sm:$0xff]
    %v762 = vld [vmem:[#allocation2 + $0x1578] sm:$0xff]
    %v763 = vld [vmem:[#allocation2 + $0x1580] sm:$0xff]
    %v764 = vld [vmem:[#allocation2 + $0x1588] sm:$0xff]
    %v765 = vld [vmem:[#allocation2 + $0x1590] sm:$0xff]
    %v766 = vld [vmem:[#allocation2 + $0x1598] sm:$0xff]
    %v767 = vld [vmem:[#allocation2 + $0x15a0] sm:$0xff]
    %v768 = vld [vmem:[#allocation2 + $0x15a8] sm:$0xff]
    %v769 = vld [vmem:[#allocation2 + $0x15b0] sm:$0xff]
    %v770 = vld [vmem:[#allocation2 + $0x15b8] sm:$0xff]
    %v771 = vld [vmem:[#allocation2 + $0x15c0] sm:$0xff]
    %v772 = vld [vmem:[#allocation2 + $0x15c8] sm:$0xff]
    %v773 = vld [vmem:[#allocation2 + $0x15d0] sm:$0xff]
    %v774 = vld [vmem:[#allocation2 + $0x15d8] sm:$0xff]
    %v775 = vld [vmem:[#allocation2 + $0x15e0] sm:$0xff]
    %v776 = vld [vmem:[#allocation2 + $0x15e8] sm:$0xff]
    %v777 = vld [vmem:[#allocation2 + $0x15f0] sm:$0xff]
    %v778 = vld [vmem:[#allocation2 + $0x15f8] sm:$0xff]
    %v779 = vld [vmem:[#allocation2 + $0x1600] sm:$0xff]
    %v780 = vld [vmem:[#allocation2 + $0x1608] sm:$0xff]
    %v781 = vld [vmem:[#allocation2 + $0x1610] sm:$0xff]
    %v782 = vld [vmem:[#allocation2 + $0x1618] sm:$0xff]
    %v783 = vld [vmem:[#allocation2 + $0x1620] sm:$0xff]
    %v784 = vld [vmem:[#allocation2 + $0x1628] sm:$0xff]
    %v785 = vld [vmem:[#allocation2 + $0x1630] sm:$0xff]
    %v786 = vld [vmem:[#allocation2 + $0x1638] sm:$0xff]
    %v787 = vld [vmem:[#allocation2 + $0x1640] sm:$0xff]
    %v788 = vld [vmem:[#allocation2 + $0x1648] sm:$0xff]
    %v789 = vld [vmem:[#allocation2 + $0x1650] sm:$0xff]
    %v790 = vld [vmem:[#allocation2 + $0x1658] sm:$0xff]
    %v791 = vld [vmem:[#allocation2 + $0x1660] sm:$0xff]
    %v792 = vld [vmem:[#allocation2 + $0x1668] sm:$0xff]
    %v793 = vld [vmem:[#allocation2 + $0x1670] sm:$0xff]
    %v794 = vld [vmem:[#allocation2 + $0x1678] sm:$0xff]
    %v795 = vld [vmem:[#allocation2 + $0x1680] sm:$0xff]
    %v796 = vld [vmem:[#allocation2 + $0x1688] sm:$0xff]
    %v797 = vld [vmem:[#allocation2 + $0x1690] sm:$0xff]
    %v798 = vld [vmem:[#allocation2 + $0x1698] sm:$0xff]
    %v799 = vld [vmem:[#allocation2 + $0x16a0] sm:$0xff]
    %v800 = vld [vmem:[#allocation2 + $0x16a8] sm:$0xff]
    %v801 = vld [vmem:[#allocation2 + $0x16b0] sm:$0xff]
    %v802 = vld [vmem:[#allocation2 + $0x16b8] sm:$0xff]
    %v803 = vld [vmem:[#allocation2 + $0x16c0] sm:$0xff]
    %v804 = vld [vmem:[#allocation2 + $0x16c8] sm:$0xff]
    %v805 = vld [vmem:[#allocation2 + $0x16d0] sm:$0xff]
    %v806 = vld [vmem:[#allocation2 + $0x16d8] sm:$0xff]
    %v807 = vld [vmem:[#allocation2 + $0x16e0] sm:$0xff]
    %v808 = vld [vmem:[#allocation2 + $0x16e8] sm:$0xff]
    %v809 = vld [vmem:[#allocation2 + $0x16f0] sm:$0xff]
    %v810 = vld [vmem:[#allocation2 + $0x16f8] sm:$0xff]
    %v811 = vld [vmem:[#allocation2 + $0x1700] sm:$0xff]
    %v812 = vld [vmem:[#allocation2 + $0x1708] sm:$0xff]
    %v813 = vld [vmem:[#allocation2 + $0x1710] sm:$0xff]
    %v814 = vld [vmem:[#allocation2 + $0x1718] sm:$0xff]
    %v815 = vld [vmem:[#allocation2 + $0x1720] sm:$0xff]
    %v816 = vld [vmem:[#allocation2 + $0x1728] sm:$0xff]
    %v817 = vld [vmem:[#allocation2 + $0x1730] sm:$0xff]
    %v818 = vld [vmem:[#allocation2 + $0x1738] sm:$0xff]
    %v819 = vld [vmem:[#allocation2 + $0x1740] sm:$0xff]
    %v820 = vld [vmem:[#allocation2 + $0x1748] sm:$0xff]
    %v821 = vld [vmem:[#allocation2 + $0x1750] sm:$0xff]
    %v822 = vld [vmem:[#allocation2 + $0x1758] sm:$0xff]
    %v823 = vld [vmem:[#allocation2 + $0x1760] sm:$0xff]
    %v824 = vld [vmem:[#allocation2 + $0x1768] sm:$0xff]
    %v825 = vld [vmem:[#allocation2 + $0x1770] sm:$0xff]
    %v826 = vld [vmem:[#allocation2 + $0x1778] sm:$0xff]
    %v827 = vld [vmem:[#allocation2 + $0x1780] sm:$0xff]
    %v828 = vld [vmem:[#allocation2 + $0x1788] sm:$0xff]
    %v829 = vld [vmem:[#allocation2 + $0x1790] sm:$0xff]
    %v830 = vld [vmem:[#allocation2 + $0x1798] sm:$0xff]
    %v831 = vld [vmem:[#allocation2 + $0x17a0] sm:$0xff]
    %v832 = vld [vmem:[#allocation2 + $0x17a8] sm:$0xff]
    %v833 = vld [vmem:[#allocation2 + $0x17b0] sm:$0xff]
    %v834 = vld [vmem:[#allocation2 + $0x17b8] sm:$0xff]
    %v835 = vld [vmem:[#allocation2 + $0x17c0] sm:$0xff]
    %v836 = vld [vmem:[#allocation2 + $0x17c8] sm:$0xff]
    %v837 = vld [vmem:[#allocation2 + $0x17d0] sm:$0xff]
    %v838 = vld [vmem:[#allocation2 + $0x17d8] sm:$0xff]
    %v839 = vld [vmem:[#allocation2 + $0x17e0] sm:$0xff]
    %v840 = vld [vmem:[#allocation2 + $0x17e8] sm:$0xff]
    %v841 = vld [vmem:[#allocation2 + $0x17f0] sm:$0xff]
    %v842 = vld [vmem:[#allocation2 + $0x17f8] sm:$0xff]
    %v843 = vld [vmem:[#allocation2 + $0x1800] sm:$0xff]
    %v844 = vld [vmem:[#allocation2 + $0x1808] sm:$0xff]
    %v845 = vld [vmem:[#allocation2 + $0x1810] sm:$0xff]
    %v846 = vld [vmem:[#allocation2 + $0x1818] sm:$0xff]
    %v847 = vld [vmem:[#allocation2 + $0x1820] sm:$0xff]
    %v848 = vld [vmem:[#allocation2 + $0x1828] sm:$0xff]
    %v849 = vld [vmem:[#allocation2 + $0x1830] sm:$0xff]
    %v850 = vld [vmem:[#allocation2 + $0x1838] sm:$0xff]
    %v851 = vld [vmem:[#allocation2 + $0x1840] sm:$0xff]
    %v852 = vld [vmem:[#allocation2 + $0x1848] sm:$0xff]
    %v853 = vld [vmem:[#allocation2 + $0x1850] sm:$0xff]
    %v854 = vld [vmem:[#allocation2 + $0x1858] sm:$0xff]
    %v855 = vld [vmem:[#allocation2 + $0x1860] sm:$0xff]
    %v856 = vld [vmem:[#allocation2 + $0x1868] sm:$0xff]
    %v857 = vld [vmem:[#allocation2 + $0x1870] sm:$0xff]
    %v858 = vld [vmem:[#allocation2 + $0x1878] sm:$0xff]
    %v859 = vld [vmem:[#allocation2 + $0x1880] sm:$0xff]
    %v860 = vld [vmem:[#allocation2 + $0x1888] sm:$0xff]
    %v861 = vld [vmem:[#allocation2 + $0x1890] sm:$0xff]
    %v862 = vld [vmem:[#allocation2 + $0x1898] sm:$0xff]
    %v863 = vld [vmem:[#allocation2 + $0x18a0] sm:$0xff]
    %v864 = vld [vmem:[#allocation2 + $0x18a8] sm:$0xff]
    %v865 = vld [vmem:[#allocation2 + $0x18b0] sm:$0xff]
    %v866 = vld [vmem:[#allocation2 + $0x18b8] sm:$0xff]
    %v867 = vld [vmem:[#allocation2 + $0x18c0] sm:$0xff]
    %v868 = vld [vmem:[#allocation2 + $0x18c8] sm:$0xff]
    %v869 = vld [vmem:[#allocation2 + $0x18d0] sm:$0xff]
    %v870 = vld [vmem:[#allocation2 + $0x18d8] sm:$0xff]
    %v871 = vld [vmem:[#allocation2 + $0x18e0] sm:$0xff]
    %v872 = vld [vmem:[#allocation2 + $0x18e8] sm:$0xff]
    %v873 = vld [vmem:[#allocation2 + $0x18f0] sm:$0xff]
    %v874 = vld [vmem:[#allocation2 + $0x18f8] sm:$0xff]
    %v875 = vld [vmem:[#allocation2 + $0x1900] sm:$0xff]
    %v876 = vld [vmem:[#allocation2 + $0x1908] sm:$0xff]
    %v877 = vld [vmem:[#allocation2 + $0x1910] sm:$0xff]
    %v878 = vld [vmem:[#allocation2 + $0x1918] sm:$0xff]
    %v879 = vld [vmem:[#allocation2 + $0x1920] sm:$0xff]
    %v880 = vld [vmem:[#allocation2 + $0x1928] sm:$0xff]
    %v881 = vld [vmem:[#allocation2 + $0x1930] sm:$0xff]
    %v882 = vld [vmem:[#allocation2 + $0x1938] sm:$0xff]
    %v883 = vld [vmem:[#allocation2 + $0x1940] sm:$0xff]
    %v884 = vld [vmem:[#allocation2 + $0x1948] sm:$0xff]
    %v885 = vld [vmem:[#allocation2 + $0x1950] sm:$0xff]
    %v886 = vld [vmem:[#allocation2 + $0x1958] sm:$0xff]
    %v887 = vld [vmem:[#allocation2 + $0x1960] sm:$0xff]
    %v888 = vld [vmem:[#allocation2 + $0x1968] sm:$0xff]
    %v889 = vld [vmem:[#allocation2 + $0x1970] sm:$0xff]
    %v890 = vld [vmem:[#allocation2 + $0x1978] sm:$0xff]
    %v891 = vld [vmem:[#allocation2 + $0x1980] sm:$0xff]
    %v892 = vld [vmem:[#allocation2 + $0x1988] sm:$0xff]
    %v893 = vld [vmem:[#allocation2 + $0x1990] sm:$0xff]
    %v894 = vld [vmem:[#allocation2 + $0x1998] sm:$0xff]
    %v895 = vld [vmem:[#allocation2 + $0x19a0] sm:$0xff]
    %v896 = vld [vmem:[#allocation2 + $0x19a8] sm:$0xff]
    %v897 = vld [vmem:[#allocation2 + $0x19b0] sm:$0xff]
    %v898 = vld [vmem:[#allocation2 + $0x19b8] sm:$0xff]
    %v899 = vld [vmem:[#allocation2 + $0x19c0] sm:$0xff]
    %v900 = vld [vmem:[#allocation2 + $0x19c8] sm:$0xff]
    %v901 = vld [vmem:[#allocation2 + $0x19d0] sm:$0xff]
    %v902 = vld [vmem:[#allocation2 + $0x19d8] sm:$0xff]
    %v903 = vld [vmem:[#allocation2 + $0x19e0] sm:$0xff]
    %v904 = vld [vmem:[#allocation2 + $0x19e8] sm:$0xff]
    %v905 = vld [vmem:[#allocation2 + $0x19f0] sm:$0xff]
    %v906 = vld [vmem:[#allocation2 + $0x19f8] sm:$0xff]
    %v907 = vld [vmem:[#allocation2 + $0x1a00] sm:$0xff]
    %v908 = vld [vmem:[#allocation2 + $0x1a08] sm:$0xff]
    %v909 = vld [vmem:[#allocation2 + $0x1a10] sm:$0xff]
    %v910 = vld [vmem:[#allocation2 + $0x1a18] sm:$0xff]
    %v911 = vld [vmem:[#allocation2 + $0x1a20] sm:$0xff]
    %v912 = vld [vmem:[#allocation2 + $0x1a28] sm:$0xff]
    %v913 = vld [vmem:[#allocation2 + $0x1a30] sm:$0xff]
    %v914 = vld [vmem:[#allocation2 + $0x1a38] sm:$0xff]
    %v915 = vld [vmem:[#allocation2 + $0x1a40] sm:$0xff]
    %v916 = vld [vmem:[#allocation2 + $0x1a48] sm:$0xff]
    %v917 = vld [vmem:[#allocation2 + $0x1a50] sm:$0xff]
    %v918 = vld [vmem:[#allocation2 + $0x1a58] sm:$0xff]
    %v919 = vld [vmem:[#allocation2 + $0x1a60] sm:$0xff]
    %v920 = vld [vmem:[#allocation2 + $0x1a68] sm:$0xff]
    %v921 = vld [vmem:[#allocation2 + $0x1a70] sm:$0xff]
    %v922 = vld [vmem:[#allocation2 + $0x1a78] sm:$0xff]
    %v923 = vld [vmem:[#allocation2 + $0x1a80] sm:$0xff]
    %v924 = vld [vmem:[#allocation2 + $0x1a88] sm:$0xff]
    %v925 = vld [vmem:[#allocation2 + $0x1a90] sm:$0xff]
    %v926 = vld [vmem:[#allocation2 + $0x1a98] sm:$0xff]
    %v927 = vld [vmem:[#allocation2 + $0x1aa0] sm:$0xff]
    %v928 = vld [vmem:[#allocation2 + $0x1aa8] sm:$0xff]
    %v929 = vld [vmem:[#allocation2 + $0x1ab0] sm:$0xff]
    %v930 = vld [vmem:[#allocation2 + $0x1ab8] sm:$0xff]
    %v931 = vld [vmem:[#allocation2 + $0x1ac0] sm:$0xff]
    %v932 = vld [vmem:[#allocation2 + $0x1ac8] sm:$0xff]
    %v933 = vld [vmem:[#allocation2 + $0x1ad0] sm:$0xff]
    %v934 = vld [vmem:[#allocation2 + $0x1ad8] sm:$0xff]
    %v935 = vld [vmem:[#allocation2 + $0x1ae0] sm:$0xff]
    %v936 = vld [vmem:[#allocation2 + $0x1ae8] sm:$0xff]
    %v937 = vld [vmem:[#allocation2 + $0x1af0] sm:$0xff]
    %v938 = vld [vmem:[#allocation2 + $0x1af8] sm:$0xff]
    %v939 = vld [vmem:[#allocation2 + $0x1b00] sm:$0xff]
    %v940 = vld [vmem:[#allocation2 + $0x1b08] sm:$0xff]
    %v941 = vld [vmem:[#allocation2 + $0x1b10] sm:$0xff]
    %v942 = vld [vmem:[#allocation2 + $0x1b18] sm:$0xff]
    %v943 = vld [vmem:[#allocation2 + $0x1b20] sm:$0xff]
    %v944 = vld [vmem:[#allocation2 + $0x1b28] sm:$0xff]
    %v945 = vld [vmem:[#allocation2 + $0x1b30] sm:$0xff]
    %v946 = vld [vmem:[#allocation2 + $0x1b38] sm:$0xff]
    %v947 = vld [vmem:[#allocation2 + $0x1b40] sm:$0xff]
    %v948 = vld [vmem:[#allocation2 + $0x1b48] sm:$0xff]
    %v949 = vld [vmem:[#allocation2 + $0x1b50] sm:$0xff]
    %v950 = vld [vmem:[#allocation2 + $0x1b58] sm:$0xff]
    %v951 = vld [vmem:[#allocation2 + $0x1b60] sm:$0xff]
    %v952 = vld [vmem:[#allocation2 + $0x1b68] sm:$0xff]
    %v953 = vld [vmem:[#allocation2 + $0x1b70] sm:$0xff]
    %v954 = vld [vmem:[#allocation2 + $0x1b78] sm:$0xff]
    %v955 = vld [vmem:[#allocation2 + $0x1b80] sm:$0xff]
    %v956 = vld [vmem:[#allocation2 + $0x1b88] sm:$0xff]
    %v957 = vld [vmem:[#allocation2 + $0x1b90] sm:$0xff]
    %v958 = vld [vmem:[#allocation2 + $0x1b98] sm:$0xff]
    %v959 = vld [vmem:[#allocation2 + $0x1ba0] sm:$0xff]
    %v960 = vld [vmem:[#allocation2 + $0x1ba8] sm:$0xff]
    %v961 = vld [vmem:[#allocation2 + $0x1bb0] sm:$0xff]
    %v962 = vld [vmem:[#allocation2 + $0x1bb8] sm:$0xff]
    %v963 = vld [vmem:[#allocation2 + $0x1bc0] sm:$0xff]
    %v964 = vld [vmem:[#allocation2 + $0x1bc8] sm:$0xff]
    %v965 = vld [vmem:[#allocation2 + $0x1bd0] sm:$0xff]
    %v966 = vld [vmem:[#allocation2 + $0x1bd8] sm:$0xff]
    %v967 = vld [vmem:[#allocation2 + $0x1be0] sm:$0xff]
    %v968 = vld [vmem:[#allocation2 + $0x1be8] sm:$0xff]
    %v969 = vld [vmem:[#allocation2 + $0x1bf0] sm:$0xff]
    %v970 = vld [vmem:[#allocation2 + $0x1bf8] sm:$0xff]
    %v971 = vld [vmem:[#allocation2 + $0x1c00] sm:$0xff]
    %v972 = vld [vmem:[#allocation2 + $0x1c08] sm:$0xff]
    %v973 = vld [vmem:[#allocation2 + $0x1c10] sm:$0xff]
    %v974 = vld [vmem:[#allocation2 + $0x1c18] sm:$0xff]
    %v975 = vld [vmem:[#allocation2 + $0x1c20] sm:$0xff]
    %v976 = vld [vmem:[#allocation2 + $0x1c28] sm:$0xff]
    %v977 = vld [vmem:[#allocation2 + $0x1c30] sm:$0xff]
    %v978 = vld [vmem:[#allocation2 + $0x1c38] sm:$0xff]
    %v979 = vld [vmem:[#allocation2 + $0x1c40] sm:$0xff]
    %v980 = vld [vmem:[#allocation2 + $0x1c48] sm:$0xff]
    %v981 = vld [vmem:[#allocation2 + $0x1c50] sm:$0xff]
    %v982 = vld [vmem:[#allocation2 + $0x1c58] sm:$0xff]
    %v983 = vld [vmem:[#allocation2 + $0x1c60] sm:$0xff]
    %v984 = vld [vmem:[#allocation2 + $0x1c68] sm:$0xff]
    %v985 = vld [vmem:[#allocation2 + $0x1c70] sm:$0xff]
    %v986 = vld [vmem:[#allocation2 + $0x1c78] sm:$0xff]
    %v987 = vld [vmem:[#allocation2 + $0x1c80] sm:$0xff]
    %v988 = vld [vmem:[#allocation2 + $0x1c88] sm:$0xff]
    %v989 = vld [vmem:[#allocation2 + $0x1c90] sm:$0xff]
    %v990 = vld [vmem:[#allocation2 + $0x1c98] sm:$0xff]
    %v991 = vld [vmem:[#allocation2 + $0x1ca0] sm:$0xff]
    %v992 = vld [vmem:[#allocation2 + $0x1ca8] sm:$0xff]
    %v993 = vld [vmem:[#allocation2 + $0x1cb0] sm:$0xff]
    %v994 = vld [vmem:[#allocation2 + $0x1cb8] sm:$0xff]
    %v995 = vld [vmem:[#allocation2 + $0x1cc0] sm:$0xff]
    %v996 = vld [vmem:[#allocation2 + $0x1cc8] sm:$0xff]
    %v997 = vld [vmem:[#allocation2 + $0x1cd0] sm:$0xff]
    %v998 = vld [vmem:[#allocation2 + $0x1cd8] sm:$0xff]
    %v999 = vld [vmem:[#allocation2 + $0x1ce0] sm:$0xff]
    %v1000 = vld [vmem:[#allocation2 + $0x1ce8] sm:$0xff]
    %v1001 = vld [vmem:[#allocation2 + $0x1cf0] sm:$0xff]
    %v1002 = vld [vmem:[#allocation2 + $0x1cf8] sm:$0xff]
    %v1003 = vld [vmem:[#allocation2 + $0x1d00] sm:$0xff]
    %v1004 = vld [vmem:[#allocation2 + $0x1d08] sm:$0xff]
    %v1005 = vld [vmem:[#allocation2 + $0x1d10] sm:$0xff]
    %v1006 = vld [vmem:[#allocation2 + $0x1d18] sm:$0xff]
    %v1007 = vld [vmem:[#allocation2 + $0x1d20] sm:$0xff]
    %v1008 = vld [vmem:[#allocation2 + $0x1d28] sm:$0xff]
    %v1009 = vld [vmem:[#allocation2 + $0x1d30] sm:$0xff]
    %v1010 = vld [vmem:[#allocation2 + $0x1d38] sm:$0xff]
    %v1011 = vld [vmem:[#allocation2 + $0x1d40] sm:$0xff]
    %v1012 = vld [vmem:[#allocation2 + $0x1d48] sm:$0xff]
    %v1013 = vld [vmem:[#allocation2 + $0x1d50] sm:$0xff]
    %v1014 = vld [vmem:[#allocation2 + $0x1d58] sm:$0xff]
    %v1015 = vld [vmem:[#allocation2 + $0x1d60] sm:$0xff]
    %v1016 = vld [vmem:[#allocation2 + $0x1d68] sm:$0xff]
    %v1017 = vld [vmem:[#allocation2 + $0x1d70] sm:$0xff]
    %v1018 = vld [vmem:[#allocation2 + $0x1d78] sm:$0xff]
    %v1019 = vld [vmem:[#allocation2 + $0x1d80] sm:$0xff]
    %v1020 = vld [vmem:[#allocation2 + $0x1d88] sm:$0xff]
    %v1021 = vld [vmem:[#allocation2 + $0x1d90] sm:$0xff]
    %v1022 = vld [vmem:[#allocation2 + $0x1d98] sm:$0xff]
    %v1023 = vld [vmem:[#allocation2 + $0x1da0] sm:$0xff]
    %v1024 = vld [vmem:[#allocation2 + $0x1da8] sm:$0xff]
    %v1025 = vld [vmem:[#allocation2 + $0x1db0] sm:$0xff]
    %v1026 = vld [vmem:[#allocation2 + $0x1db8] sm:$0xff]
    %v1027 = vld [vmem:[#allocation2 + $0x1dc0] sm:$0xff]
    %v1028 = vld [vmem:[#allocation2 + $0x1dc8] sm:$0xff]
    %v1029 = vld [vmem:[#allocation2 + $0x1dd0] sm:$0xff]
    %v1030 = vld [vmem:[#allocation2 + $0x1dd8] sm:$0xff]
    %v1031 = vld [vmem:[#allocation2 + $0x1de0] sm:$0xff]
    %v1032 = vld [vmem:[#allocation2 + $0x1de8] sm:$0xff]
    %v1033 = vld [vmem:[#allocation2 + $0x1df0] sm:$0xff]
    %v1034 = vld [vmem:[#allocation2 + $0x1df8] sm:$0xff]
    %v1035 = vld [vmem:[#allocation2 + $0x1e00] sm:$0xff]
    %v1036 = vld [vmem:[#allocation2 + $0x1e08] sm:$0xff]
    %v1037 = vld [vmem:[#allocation2 + $0x1e10] sm:$0xff]
    %v1038 = vld [vmem:[#allocation2 + $0x1e18] sm:$0xff]
    %v1039 = vld [vmem:[#allocation2 + $0x1e20] sm:$0xff]
    %v1040 = vld [vmem:[#allocation2 + $0x1e28] sm:$0xff]
    %v1041 = vld [vmem:[#allocation2 + $0x1e30] sm:$0xff]
    %v1042 = vld [vmem:[#allocation2 + $0x1e38] sm:$0xff]
    %v1043 = vld [vmem:[#allocation2 + $0x1e40] sm:$0xff]
    %v1044 = vld [vmem:[#allocation2 + $0x1e48] sm:$0xff]
    %v1045 = vld [vmem:[#allocation2 + $0x1e50] sm:$0xff]
    %v1046 = vld [vmem:[#allocation2 + $0x1e58] sm:$0xff]
    %v1047 = vld [vmem:[#allocation2 + $0x1e60] sm:$0xff]
    %v1048 = vld [vmem:[#allocation2 + $0x1e68] sm:$0xff]
    %v1049 = vld [vmem:[#allocation2 + $0x1e70] sm:$0xff]
    %v1050 = vld [vmem:[#allocation2 + $0x1e78] sm:$0xff]
    %v1051 = vld [vmem:[#allocation2 + $0x1e80] sm:$0xff]
    %v1052 = vld [vmem:[#allocation2 + $0x1e88] sm:$0xff]
    %v1053 = vld [vmem:[#allocation2 + $0x1e90] sm:$0xff]
    %v1054 = vld [vmem:[#allocation2 + $0x1e98] sm:$0xff]
    %v1055 = vld [vmem:[#allocation2 + $0x1ea0] sm:$0xff]
    %v1056 = vld [vmem:[#allocation2 + $0x1ea8] sm:$0xff]
    %v1057 = vld [vmem:[#allocation2 + $0x1eb0] sm:$0xff]
    %v1058 = vld [vmem:[#allocation2 + $0x1eb8] sm:$0xff]
    %v1059 = vld [vmem:[#allocation2 + $0x1ec0] sm:$0xff]
    %v1060 = vld [vmem:[#allocation2 + $0x1ec8] sm:$0xff]
    %v1061 = vld [vmem:[#allocation2 + $0x1ed0] sm:$0xff]
    %v1062 = vld [vmem:[#allocation2 + $0x1ed8] sm:$0xff]
    %v1063 = vld [vmem:[#allocation2 + $0x1ee0] sm:$0xff]
    %v1064 = vld [vmem:[#allocation2 + $0x1ee8] sm:$0xff]
    %v1065 = vld [vmem:[#allocation2 + $0x1ef0] sm:$0xff]
    %v1066 = vld [vmem:[#allocation2 + $0x1ef8] sm:$0xff]
    %v1067 = vld [vmem:[#allocation2 + $0x1f00] sm:$0xff]
    %v1068 = vld [vmem:[#allocation2 + $0x1f08] sm:$0xff]
    %v1069 = vld [vmem:[#allocation2 + $0x1f10] sm:$0xff]
    %v1070 = vld [vmem:[#allocation2 + $0x1f18] sm:$0xff]
    %v1071 = vld [vmem:[#allocation2 + $0x1f20] sm:$0xff]
    %v1072 = vld [vmem:[#allocation2 + $0x1f28] sm:$0xff]
    %v1073 = vld [vmem:[#allocation2 + $0x1f30] sm:$0xff]
    %v1074 = vld [vmem:[#allocation2 + $0x1f38] sm:$0xff]
    %v1075 = vld [vmem:[#allocation2 + $0x1f40] sm:$0xff]
    %v1076 = vld [vmem:[#allocation2 + $0x1f48] sm:$0xff]
    %v1077 = vld [vmem:[#allocation2 + $0x1f50] sm:$0xff]
    %v1078 = vld [vmem:[#allocation2 + $0x1f58] sm:$0xff]
    %v1079 = vld [vmem:[#allocation2 + $0x1f60] sm:$0xff]
    %v1080 = vld [vmem:[#allocation2 + $0x1f68] sm:$0xff]
    %v1081 = vld [vmem:[#allocation2 + $0x1f70] sm:$0xff]
    %v1082 = vld [vmem:[#allocation2 + $0x1f78] sm:$0xff]
    %v1083 = vld [vmem:[#allocation2 + $0x1f80] sm:$0xff]
    %v1084 = vld [vmem:[#allocation2 + $0x1f88] sm:$0xff]
    %v1085 = vld [vmem:[#allocation2 + $0x1f90] sm:$0xff]
    %v1086 = vld [vmem:[#allocation2 + $0x1f98] sm:$0xff]
    %v1087 = vld [vmem:[#allocation2 + $0x1fa0] sm:$0xff]
    %v1088 = vld [vmem:[#allocation2 + $0x1fa8] sm:$0xff]
    %v1089 = vld [vmem:[#allocation2 + $0x1fb0] sm:$0xff]
    %v1090 = vld [vmem:[#allocation2 + $0x1fb8] sm:$0xff]
    %v1091 = vld [vmem:[#allocation2 + $0x1fc0] sm:$0xff]
    %v1092 = vld [vmem:[#allocation2 + $0x1fc8] sm:$0xff]
    %v1093 = vld [vmem:[#allocation2 + $0x1fd0] sm:$0xff]
    %v1094 = vld [vmem:[#allocation2 + $0x1fd8] sm:$0xff]
    %v1095 = vld [vmem:[#allocation2 + $0x1fe0] sm:$0xff]
    %v1096 = vld [vmem:[#allocation2 + $0x1fe8] sm:$0xff]
    %v1097 = vld [vmem:[#allocation2 + $0x1ff0] sm:$0xff]
    %v1098 = vld [vmem:[#allocation2 + $0x1ff8] sm:$0xff]
    %v1099 = vld [vmem:[#allocation5] sm:$0xff]
    %v1101 = vlaneseq
    %v1102 = vshrl.u32 %v1101, 7
    %v1103 = vsub.s32 0, %v1102
    %v1104 = vrot.slane %v1099, %v1103
    %v1105 = vlaneseq
    %v1106 = vshrl.u32 %v1105, 7
    %v1107 = vsub.s32 1, %v1106
    %v1108 = vrot.slane %v1099, %v1107
    %v1109 = vlaneseq
    %v1110 = vshrl.u32 %v1109, 7
    %v1111 = vsub.s32 2, %v1110
    %v1112 = vrot.slane %v1099, %v1111
    %v1113 = vlaneseq
    %v1114 = vshrl.u32 %v1113, 7
    %v1115 = vsub.s32 3, %v1114
    %v1116 = vrot.slane %v1099, %v1115
    %v1117 = vlaneseq
    %v1118 = vshrl.u32 %v1117, 7
    %v1119 = vsub.s32 4, %v1118
    %v1120 = vrot.slane %v1099, %v1119
    %v1121 = vlaneseq
    %v1122 = vshrl.u32 %v1121, 7
    %v1123 = vsub.s32 5, %v1122
    %v1124 = vrot.slane %v1099, %v1123
    %v1125 = vlaneseq
    %v1126 = vshrl.u32 %v1125, 7
    %v1127 = vsub.s32 6, %v1126
    %v1128 = vrot.slane %v1099, %v1127
    %v1129 = vlaneseq
    %v1130 = vshrl.u32 %v1129, 7
    %v1131 = vsub.s32 7, %v1130
    %v1132 = vrot.slane %v1099, %v1131
    %v1143 = vcombine.high %v73, %v73
    %v1145 = vunpack.c.l.s4 1966171168
    %v1146 = vunpack.c.0.s8 %v1145
    %v1147 = vlaneseq
    %v1148 = vshrl.u32 %v1147, 7
    %v1149 = vsub.s32 %v1146, %v1148
    %v1150 = vrot.slane %v73, %v1149
    %v1152 = vunpack.c.l.s4 1966171168
    %v1153 = vunpack.c.0.s8 %v1152
    %v1154 = vlaneseq
    %v1155 = vshrl.u32 %v1154, 7
    %v1156 = vsub.s32 %v1153, %v1155
    %v1157 = vrot.slane %v1143, %v1156
    %v1158 = vcombine.high %v1150, %v1150
    %v1159 = vcombine.high %v1157, %v1157
    %v1161 = vunpack.c.l.s4 1966171168
    %v1162 = vunpack.c.0.s8 %v1161
    %v1163 = vlaneseq
    %v1164 = vshrl.u32 %v1163, 7
    %v1165 = vsub.s32 %v1162, %v1164
    %v1166 = vrot.slane %v1150, %v1165
    %v1168 = vunpack.c.l.s4 1966171168
    %v1169 = vunpack.c.0.s8 %v1168
    %v1170 = vlaneseq
    %v1171 = vshrl.u32 %v1170, 7
    %v1172 = vsub.s32 %v1169, %v1171
    %v1173 = vrot.slane %v1157, %v1172
    %v1175 = vunpack.c.l.s4 1966171168
    %v1176 = vunpack.c.0.s8 %v1175
    %v1177 = vlaneseq
    %v1178 = vshrl.u32 %v1177, 7
    %v1179 = vsub.s32 %v1176, %v1178
    %v1180 = vrot.slane %v1158, %v1179
    %v1182 = vunpack.c.l.s4 1966171168
    %v1183 = vunpack.c.0.s8 %v1182
    %v1184 = vlaneseq
    %v1185 = vshrl.u32 %v1184, 7
    %v1186 = vsub.s32 %v1183, %v1185
    %v1187 = vrot.slane %v1159, %v1186
    %v1188 = vcombine.high %v1166, %v1166
    %v1189 = vcombine.high %v1173, %v1173
    %v1190 = vcombine.high %v1180, %v1180
    %v1191 = vcombine.high %v1187, %v1187
    %v1192 = vcombine.high %v74, %v74
    %v1194 = vunpack.c.l.s4 1966171168
    %v1195 = vunpack.c.0.s8 %v1194
    %v1196 = vlaneseq
    %v1197 = vshrl.u32 %v1196, 7
    %v1198 = vsub.s32 %v1195, %v1197
    %v1199 = vrot.slane %v74, %v1198
    %v1201 = vunpack.c.l.s4 1966171168
    %v1202 = vunpack.c.0.s8 %v1201
    %v1203 = vlaneseq
    %v1204 = vshrl.u32 %v1203, 7
    %v1205 = vsub.s32 %v1202, %v1204
    %v1206 = vrot.slane %v1192, %v1205
    %v1207 = vcombine.high %v1199, %v1199
    %v1208 = vcombine.high %v1206, %v1206
    %v1210 = vunpack.c.l.s4 1966171168
    %v1211 = vunpack.c.0.s8 %v1210
    %v1212 = vlaneseq
    %v1213 = vshrl.u32 %v1212, 7
    %v1214 = vsub.s32 %v1211, %v1213
    %v1215 = vrot.slane %v1199, %v1214
    %v1217 = vunpack.c.l.s4 1966171168
    %v1218 = vunpack.c.0.s8 %v1217
    %v1219 = vlaneseq
    %v1220 = vshrl.u32 %v1219, 7
    %v1221 = vsub.s32 %v1218, %v1220
    %v1222 = vrot.slane %v1206, %v1221
    %v1224 = vunpack.c.l.s4 1966171168
    %v1225 = vunpack.c.0.s8 %v1224
    %v1226 = vlaneseq
    %v1227 = vshrl.u32 %v1226, 7
    %v1228 = vsub.s32 %v1225, %v1227
    %v1229 = vrot.slane %v1207, %v1228
    %v1231 = vunpack.c.l.s4 1966171168
    %v1232 = vunpack.c.0.s8 %v1231
    %v1233 = vlaneseq
    %v1234 = vshrl.u32 %v1233, 7
    %v1235 = vsub.s32 %v1232, %v1234
    %v1236 = vrot.slane %v1208, %v1235
    %v1237 = vcombine.high %v1215, %v1215
    %v1238 = vcombine.high %v1222, %v1222
    %v1239 = vcombine.high %v1229, %v1229
    %v1240 = vcombine.high %v1236, %v1236
    %v2281 = vunpack.c.l.b16 %v75
    %v2282 = vunpack.c.h.b16 %v75
    %v2283 = vunpack.c.l.b16 %v76
    %v2284 = vunpack.c.h.b16 %v76
    %v2285 = vunpack.c.l.b16 %v77
    %v2286 = vunpack.c.h.b16 %v77
    %v2287 = vunpack.c.l.b16 %v78
    %v2288 = vunpack.c.h.b16 %v78
    %v2289 = vunpack.c.l.b16 %v79
    %v2290 = vunpack.c.h.b16 %v79
    %v2291 = vunpack.c.l.b16 %v80
    %v2292 = vunpack.c.h.b16 %v80
    %v2293 = vunpack.c.l.b16 %v81
    %v2294 = vunpack.c.h.b16 %v81
    %v2295 = vunpack.c.l.b16 %v82
    %v2296 = vunpack.c.h.b16 %v82
    %v2297 = vunpack.c.l.b16 %v83
    %v2298 = vunpack.c.h.b16 %v83
    %v2299 = vunpack.c.l.b16 %v84
    %v2300 = vunpack.c.h.b16 %v84
    %v2301 = vunpack.c.l.b16 %v85
    %v2302 = vunpack.c.h.b16 %v85
    %v2303 = vunpack.c.l.b16 %v86
    %v2304 = vunpack.c.h.b16 %v86
    %v2305 = vunpack.c.l.b16 %v87
    %v2306 = vunpack.c.h.b16 %v87
    %v2307 = vunpack.c.l.b16 %v88
    %v2308 = vunpack.c.h.b16 %v88
    %v2309 = vunpack.c.l.b16 %v89
    %v2310 = vunpack.c.h.b16 %v89
    %v2311 = vunpack.c.l.b16 %v90
    %v2312 = vunpack.c.h.b16 %v90
    %v2313 = vunpack.c.l.b16 %v91
    %v2314 = vunpack.c.h.b16 %v91
    %v2315 = vunpack.c.l.b16 %v92
    %v2316 = vunpack.c.h.b16 %v92
    %v2317 = vunpack.c.l.b16 %v93
    %v2318 = vunpack.c.h.b16 %v93
    %v2319 = vunpack.c.l.b16 %v94
    %v2320 = vunpack.c.h.b16 %v94
    %v2321 = vunpack.c.l.b16 %v95
    %v2322 = vunpack.c.h.b16 %v95
    %v2323 = vunpack.c.l.b16 %v96
    %v2324 = vunpack.c.h.b16 %v96
    %v2325 = vunpack.c.l.b16 %v97
    %v2326 = vunpack.c.h.b16 %v97
    %v2327 = vunpack.c.l.b16 %v98
    %v2328 = vunpack.c.h.b16 %v98
    %v2329 = vunpack.c.l.b16 %v99
    %v2330 = vunpack.c.h.b16 %v99
    %v2331 = vunpack.c.l.b16 %v100
    %v2332 = vunpack.c.h.b16 %v100
    %v2333 = vunpack.c.l.b16 %v101
    %v2334 = vunpack.c.h.b16 %v101
    %v2335 = vunpack.c.l.b16 %v102
    %v2336 = vunpack.c.h.b16 %v102
    %v2337 = vunpack.c.l.b16 %v103
    %v2338 = vunpack.c.h.b16 %v103
    %v2339 = vunpack.c.l.b16 %v104
    %v2340 = vunpack.c.h.b16 %v104
    %v2341 = vunpack.c.l.b16 %v105
    %v2342 = vunpack.c.h.b16 %v105
    %v2343 = vunpack.c.l.b16 %v106
    %v2344 = vunpack.c.h.b16 %v106
    %v2345 = vunpack.c.l.b16 %v107
    %v2346 = vunpack.c.h.b16 %v107
    %v2347 = vunpack.c.l.b16 %v108
    %v2348 = vunpack.c.h.b16 %v108
    %v2349 = vunpack.c.l.b16 %v109
    %v2350 = vunpack.c.h.b16 %v109
    %v2351 = vunpack.c.l.b16 %v110
    %v2352 = vunpack.c.h.b16 %v110
    %v2353 = vunpack.c.l.b16 %v111
    %v2354 = vunpack.c.h.b16 %v111
    %v2355 = vunpack.c.l.b16 %v112
    %v2356 = vunpack.c.h.b16 %v112
    %v2357 = vunpack.c.l.b16 %v113
    %v2358 = vunpack.c.h.b16 %v113
    %v2359 = vunpack.c.l.b16 %v114
    %v2360 = vunpack.c.h.b16 %v114
    %v2361 = vunpack.c.l.b16 %v115
    %v2362 = vunpack.c.h.b16 %v115
    %v2363 = vunpack.c.l.b16 %v116
    %v2364 = vunpack.c.h.b16 %v116
    %v2365 = vunpack.c.l.b16 %v117
    %v2366 = vunpack.c.h.b16 %v117
    %v2367 = vunpack.c.l.b16 %v118
    %v2368 = vunpack.c.h.b16 %v118
    %v2369 = vunpack.c.l.b16 %v119
    %v2370 = vunpack.c.h.b16 %v119
    %v2371 = vunpack.c.l.b16 %v120
    %v2372 = vunpack.c.h.b16 %v120
    %v2373 = vunpack.c.l.b16 %v121
    %v2374 = vunpack.c.h.b16 %v121
    %v2375 = vunpack.c.l.b16 %v122
    %v2376 = vunpack.c.h.b16 %v122
    %v2377 = vunpack.c.l.b16 %v123
    %v2378 = vunpack.c.h.b16 %v123
    %v2379 = vunpack.c.l.b16 %v124
    %v2380 = vunpack.c.h.b16 %v124
    %v2381 = vunpack.c.l.b16 %v125
    %v2382 = vunpack.c.h.b16 %v125
    %v2383 = vunpack.c.l.b16 %v126
    %v2384 = vunpack.c.h.b16 %v126
    %v2385 = vunpack.c.l.b16 %v127
    %v2386 = vunpack.c.h.b16 %v127
    %v2387 = vunpack.c.l.b16 %v128
    %v2388 = vunpack.c.h.b16 %v128
    %v2389 = vunpack.c.l.b16 %v129
    %v2390 = vunpack.c.h.b16 %v129
    %v2391 = vunpack.c.l.b16 %v130
    %v2392 = vunpack.c.h.b16 %v130
    %v2393 = vunpack.c.l.b16 %v131
    %v2394 = vunpack.c.h.b16 %v131
    %v2395 = vunpack.c.l.b16 %v132
    %v2396 = vunpack.c.h.b16 %v132
    %v2397 = vunpack.c.l.b16 %v133
    %v2398 = vunpack.c.h.b16 %v133
    %v2399 = vunpack.c.l.b16 %v134
    %v2400 = vunpack.c.h.b16 %v134
    %v2401 = vunpack.c.l.b16 %v135
    %v2402 = vunpack.c.h.b16 %v135
    %v2403 = vunpack.c.l.b16 %v136
    %v2404 = vunpack.c.h.b16 %v136
    %v2405 = vunpack.c.l.b16 %v137
    %v2406 = vunpack.c.h.b16 %v137
    %v2407 = vunpack.c.l.b16 %v138
    %v2408 = vunpack.c.h.b16 %v138
    %v2409 = vunpack.c.l.b16 %v139
    %v2410 = vunpack.c.h.b16 %v139
    %v2411 = vunpack.c.l.b16 %v140
    %v2412 = vunpack.c.h.b16 %v140
    %v2413 = vunpack.c.l.b16 %v141
    %v2414 = vunpack.c.h.b16 %v141
    %v2415 = vunpack.c.l.b16 %v142
    %v2416 = vunpack.c.h.b16 %v142
    %v2417 = vunpack.c.l.b16 %v143
    %v2418 = vunpack.c.h.b16 %v143
    %v2419 = vunpack.c.l.b16 %v144
    %v2420 = vunpack.c.h.b16 %v144
    %v2421 = vunpack.c.l.b16 %v145
    %v2422 = vunpack.c.h.b16 %v145
    %v2423 = vunpack.c.l.b16 %v146
    %v2424 = vunpack.c.h.b16 %v146
    %v2425 = vunpack.c.l.b16 %v147
    %v2426 = vunpack.c.h.b16 %v147
    %v2427 = vunpack.c.l.b16 %v148
    %v2428 = vunpack.c.h.b16 %v148
    %v2429 = vunpack.c.l.b16 %v149
    %v2430 = vunpack.c.h.b16 %v149
    %v2431 = vunpack.c.l.b16 %v150
    %v2432 = vunpack.c.h.b16 %v150
    %v2433 = vunpack.c.l.b16 %v151
    %v2434 = vunpack.c.h.b16 %v151
    %v2435 = vunpack.c.l.b16 %v152
    %v2436 = vunpack.c.h.b16 %v152
    %v2437 = vunpack.c.l.b16 %v153
    %v2438 = vunpack.c.h.b16 %v153
    %v2439 = vunpack.c.l.b16 %v154
    %v2440 = vunpack.c.h.b16 %v154
    %v2441 = vunpack.c.l.b16 %v155
    %v2442 = vunpack.c.h.b16 %v155
    %v2443 = vunpack.c.l.b16 %v156
    %v2444 = vunpack.c.h.b16 %v156
    %v2445 = vunpack.c.l.b16 %v157
    %v2446 = vunpack.c.h.b16 %v157
    %v2447 = vunpack.c.l.b16 %v158
    %v2448 = vunpack.c.h.b16 %v158
    %v2449 = vunpack.c.l.b16 %v159
    %v2450 = vunpack.c.h.b16 %v159
    %v2451 = vunpack.c.l.b16 %v160
    %v2452 = vunpack.c.h.b16 %v160
    %v2453 = vunpack.c.l.b16 %v161
    %v2454 = vunpack.c.h.b16 %v161
    %v2455 = vunpack.c.l.b16 %v162
    %v2456 = vunpack.c.h.b16 %v162
    %v2457 = vunpack.c.l.b16 %v163
    %v2458 = vunpack.c.h.b16 %v163
    %v2459 = vunpack.c.l.b16 %v164
    %v2460 = vunpack.c.h.b16 %v164
    %v2461 = vunpack.c.l.b16 %v165
    %v2462 = vunpack.c.h.b16 %v165
    %v2463 = vunpack.c.l.b16 %v166
    %v2464 = vunpack.c.h.b16 %v166
    %v2465 = vunpack.c.l.b16 %v167
    %v2466 = vunpack.c.h.b16 %v167
    %v2467 = vunpack.c.l.b16 %v168
    %v2468 = vunpack.c.h.b16 %v168
    %v2469 = vunpack.c.l.b16 %v169
    %v2470 = vunpack.c.h.b16 %v169
    %v2471 = vunpack.c.l.b16 %v170
    %v2472 = vunpack.c.h.b16 %v170
    %v2473 = vunpack.c.l.b16 %v171
    %v2474 = vunpack.c.h.b16 %v171
    %v2475 = vunpack.c.l.b16 %v172
    %v2476 = vunpack.c.h.b16 %v172
    %v2477 = vunpack.c.l.b16 %v173
    %v2478 = vunpack.c.h.b16 %v173
    %v2479 = vunpack.c.l.b16 %v174
    %v2480 = vunpack.c.h.b16 %v174
    %v2481 = vunpack.c.l.b16 %v175
    %v2482 = vunpack.c.h.b16 %v175
    %v2483 = vunpack.c.l.b16 %v176
    %v2484 = vunpack.c.h.b16 %v176
    %v2485 = vunpack.c.l.b16 %v177
    %v2486 = vunpack.c.h.b16 %v177
    %v2487 = vunpack.c.l.b16 %v178
    %v2488 = vunpack.c.h.b16 %v178
    %v2489 = vunpack.c.l.b16 %v179
    %v2490 = vunpack.c.h.b16 %v179
    %v2491 = vunpack.c.l.b16 %v180
    %v2492 = vunpack.c.h.b16 %v180
    %v2493 = vunpack.c.l.b16 %v181
    %v2494 = vunpack.c.h.b16 %v181
    %v2495 = vunpack.c.l.b16 %v182
    %v2496 = vunpack.c.h.b16 %v182
    %v2497 = vunpack.c.l.b16 %v183
    %v2498 = vunpack.c.h.b16 %v183
    %v2499 = vunpack.c.l.b16 %v184
    %v2500 = vunpack.c.h.b16 %v184
    %v2501 = vunpack.c.l.b16 %v185
    %v2502 = vunpack.c.h.b16 %v185
    %v2503 = vunpack.c.l.b16 %v186
    %v2504 = vunpack.c.h.b16 %v186
    %v2505 = vunpack.c.l.b16 %v187
    %v2506 = vunpack.c.h.b16 %v187
    %v2507 = vunpack.c.l.b16 %v188
    %v2508 = vunpack.c.h.b16 %v188
    %v2509 = vunpack.c.l.b16 %v189
    %v2510 = vunpack.c.h.b16 %v189
    %v2511 = vunpack.c.l.b16 %v190
    %v2512 = vunpack.c.h.b16 %v190
    %v2513 = vunpack.c.l.b16 %v191
    %v2514 = vunpack.c.h.b16 %v191
    %v2515 = vunpack.c.l.b16 %v192
    %v2516 = vunpack.c.h.b16 %v192
    %v2517 = vunpack.c.l.b16 %v193
    %v2518 = vunpack.c.h.b16 %v193
    %v2519 = vunpack.c.l.b16 %v194
    %v2520 = vunpack.c.h.b16 %v194
    %v2521 = vunpack.c.l.b16 %v195
    %v2522 = vunpack.c.h.b16 %v195
    %v2523 = vunpack.c.l.b16 %v196
    %v2524 = vunpack.c.h.b16 %v196
    %v2525 = vunpack.c.l.b16 %v197
    %v2526 = vunpack.c.h.b16 %v197
    %v2527 = vunpack.c.l.b16 %v198
    %v2528 = vunpack.c.h.b16 %v198
    %v2529 = vunpack.c.l.b16 %v199
    %v2530 = vunpack.c.h.b16 %v199
    %v2531 = vunpack.c.l.b16 %v200
    %v2532 = vunpack.c.h.b16 %v200
    %v2533 = vunpack.c.l.b16 %v201
    %v2534 = vunpack.c.h.b16 %v201
    %v2535 = vunpack.c.l.b16 %v202
    %v2536 = vunpack.c.h.b16 %v202
    %v2537 = vunpack.c.l.b16 %v203
    %v2538 = vunpack.c.h.b16 %v203
    %v2539 = vunpack.c.l.b16 %v204
    %v2540 = vunpack.c.h.b16 %v204
    %v2541 = vunpack.c.l.b16 %v205
    %v2542 = vunpack.c.h.b16 %v205
    %v2543 = vunpack.c.l.b16 %v206
    %v2544 = vunpack.c.h.b16 %v206
    %v2545 = vunpack.c.l.b16 %v207
    %v2546 = vunpack.c.h.b16 %v207
    %v2547 = vunpack.c.l.b16 %v208
    %v2548 = vunpack.c.h.b16 %v208
    %v2549 = vunpack.c.l.b16 %v209
    %v2550 = vunpack.c.h.b16 %v209
    %v2551 = vunpack.c.l.b16 %v210
    %v2552 = vunpack.c.h.b16 %v210
    %v2553 = vunpack.c.l.b16 %v211
    %v2554 = vunpack.c.h.b16 %v211
    %v2555 = vunpack.c.l.b16 %v212
    %v2556 = vunpack.c.h.b16 %v212
    %v2557 = vunpack.c.l.b16 %v213
    %v2558 = vunpack.c.h.b16 %v213
    %v2559 = vunpack.c.l.b16 %v214
    %v2560 = vunpack.c.h.b16 %v214
    %v2561 = vunpack.c.l.b16 %v215
    %v2562 = vunpack.c.h.b16 %v215
    %v2563 = vunpack.c.l.b16 %v216
    %v2564 = vunpack.c.h.b16 %v216
    %v2565 = vunpack.c.l.b16 %v217
    %v2566 = vunpack.c.h.b16 %v217
    %v2567 = vunpack.c.l.b16 %v218
    %v2568 = vunpack.c.h.b16 %v218
    %v2569 = vunpack.c.l.b16 %v219
    %v2570 = vunpack.c.h.b16 %v219
    %v2571 = vunpack.c.l.b16 %v220
    %v2572 = vunpack.c.h.b16 %v220
    %v2573 = vunpack.c.l.b16 %v221
    %v2574 = vunpack.c.h.b16 %v221
    %v2575 = vunpack.c.l.b16 %v222
    %v2576 = vunpack.c.h.b16 %v222
    %v2577 = vunpack.c.l.b16 %v223
    %v2578 = vunpack.c.h.b16 %v223
    %v2579 = vunpack.c.l.b16 %v224
    %v2580 = vunpack.c.h.b16 %v224
    %v2581 = vunpack.c.l.b16 %v225
    %v2582 = vunpack.c.h.b16 %v225
    %v2583 = vunpack.c.l.b16 %v226
    %v2584 = vunpack.c.h.b16 %v226
    %v2585 = vunpack.c.l.b16 %v227
    %v2586 = vunpack.c.h.b16 %v227
    %v2587 = vunpack.c.l.b16 %v228
    %v2588 = vunpack.c.h.b16 %v228
    %v2589 = vunpack.c.l.b16 %v229
    %v2590 = vunpack.c.h.b16 %v229
    %v2591 = vunpack.c.l.b16 %v230
    %v2592 = vunpack.c.h.b16 %v230
    %v2593 = vunpack.c.l.b16 %v231
    %v2594 = vunpack.c.h.b16 %v231
    %v2595 = vunpack.c.l.b16 %v232
    %v2596 = vunpack.c.h.b16 %v232
    %v2597 = vunpack.c.l.b16 %v233
    %v2598 = vunpack.c.h.b16 %v233
    %v2599 = vunpack.c.l.b16 %v234
    %v2600 = vunpack.c.h.b16 %v234
    %v2601 = vunpack.c.l.b16 %v235
    %v2602 = vunpack.c.h.b16 %v235
    %v2603 = vunpack.c.l.b16 %v236
    %v2604 = vunpack.c.h.b16 %v236
    %v2605 = vunpack.c.l.b16 %v237
    %v2606 = vunpack.c.h.b16 %v237
    %v2607 = vunpack.c.l.b16 %v238
    %v2608 = vunpack.c.h.b16 %v238
    %v2609 = vunpack.c.l.b16 %v239
    %v2610 = vunpack.c.h.b16 %v239
    %v2611 = vunpack.c.l.b16 %v240
    %v2612 = vunpack.c.h.b16 %v240
    %v2613 = vunpack.c.l.b16 %v241
    %v2614 = vunpack.c.h.b16 %v241
    %v2615 = vunpack.c.l.b16 %v242
    %v2616 = vunpack.c.h.b16 %v242
    %v2617 = vunpack.c.l.b16 %v243
    %v2618 = vunpack.c.h.b16 %v243
    %v2619 = vunpack.c.l.b16 %v244
    %v2620 = vunpack.c.h.b16 %v244
    %v2621 = vunpack.c.l.b16 %v245
    %v2622 = vunpack.c.h.b16 %v245
    %v2623 = vunpack.c.l.b16 %v246
    %v2624 = vunpack.c.h.b16 %v246
    %v2625 = vunpack.c.l.b16 %v247
    %v2626 = vunpack.c.h.b16 %v247
    %v2627 = vunpack.c.l.b16 %v248
    %v2628 = vunpack.c.h.b16 %v248
    %v2629 = vunpack.c.l.b16 %v249
    %v2630 = vunpack.c.h.b16 %v249
    %v2631 = vunpack.c.l.b16 %v250
    %v2632 = vunpack.c.h.b16 %v250
    %v2633 = vunpack.c.l.b16 %v251
    %v2634 = vunpack.c.h.b16 %v251
    %v2635 = vunpack.c.l.b16 %v252
    %v2636 = vunpack.c.h.b16 %v252
    %v2637 = vunpack.c.l.b16 %v253
    %v2638 = vunpack.c.h.b16 %v253
    %v2639 = vunpack.c.l.b16 %v254
    %v2640 = vunpack.c.h.b16 %v254
    %v2641 = vunpack.c.l.b16 %v255
    %v2642 = vunpack.c.h.b16 %v255
    %v2643 = vunpack.c.l.b16 %v256
    %v2644 = vunpack.c.h.b16 %v256
    %v2645 = vunpack.c.l.b16 %v257
    %v2646 = vunpack.c.h.b16 %v257
    %v2647 = vunpack.c.l.b16 %v258
    %v2648 = vunpack.c.h.b16 %v258
    %v2649 = vunpack.c.l.b16 %v259
    %v2650 = vunpack.c.h.b16 %v259
    %v2651 = vunpack.c.l.b16 %v260
    %v2652 = vunpack.c.h.b16 %v260
    %v2653 = vunpack.c.l.b16 %v261
    %v2654 = vunpack.c.h.b16 %v261
    %v2655 = vunpack.c.l.b16 %v262
    %v2656 = vunpack.c.h.b16 %v262
    %v2657 = vunpack.c.l.b16 %v263
    %v2658 = vunpack.c.h.b16 %v263
    %v2659 = vunpack.c.l.b16 %v264
    %v2660 = vunpack.c.h.b16 %v264
    %v2661 = vunpack.c.l.b16 %v265
    %v2662 = vunpack.c.h.b16 %v265
    %v2663 = vunpack.c.l.b16 %v266
    %v2664 = vunpack.c.h.b16 %v266
    %v2665 = vunpack.c.l.b16 %v267
    %v2666 = vunpack.c.h.b16 %v267
    %v2667 = vunpack.c.l.b16 %v268
    %v2668 = vunpack.c.h.b16 %v268
    %v2669 = vunpack.c.l.b16 %v269
    %v2670 = vunpack.c.h.b16 %v269
    %v2671 = vunpack.c.l.b16 %v270
    %v2672 = vunpack.c.h.b16 %v270
    %v2673 = vunpack.c.l.b16 %v271
    %v2674 = vunpack.c.h.b16 %v271
    %v2675 = vunpack.c.l.b16 %v272
    %v2676 = vunpack.c.h.b16 %v272
    %v2677 = vunpack.c.l.b16 %v273
    %v2678 = vunpack.c.h.b16 %v273
    %v2679 = vunpack.c.l.b16 %v274
    %v2680 = vunpack.c.h.b16 %v274
    %v2681 = vunpack.c.l.b16 %v275
    %v2682 = vunpack.c.h.b16 %v275
    %v2683 = vunpack.c.l.b16 %v276
    %v2684 = vunpack.c.h.b16 %v276
    %v2685 = vunpack.c.l.b16 %v277
    %v2686 = vunpack.c.h.b16 %v277
    %v2687 = vunpack.c.l.b16 %v278
    %v2688 = vunpack.c.h.b16 %v278
    %v2689 = vunpack.c.l.b16 %v279
    %v2690 = vunpack.c.h.b16 %v279
    %v2691 = vunpack.c.l.b16 %v280
    %v2692 = vunpack.c.h.b16 %v280
    %v2693 = vunpack.c.l.b16 %v281
    %v2694 = vunpack.c.h.b16 %v281
    %v2695 = vunpack.c.l.b16 %v282
    %v2696 = vunpack.c.h.b16 %v282
    %v2697 = vunpack.c.l.b16 %v283
    %v2698 = vunpack.c.h.b16 %v283
    %v2699 = vunpack.c.l.b16 %v284
    %v2700 = vunpack.c.h.b16 %v284
    %v2701 = vunpack.c.l.b16 %v285
    %v2702 = vunpack.c.h.b16 %v285
    %v2703 = vunpack.c.l.b16 %v286
    %v2704 = vunpack.c.h.b16 %v286
    %v2705 = vunpack.c.l.b16 %v287
    %v2706 = vunpack.c.h.b16 %v287
    %v2707 = vunpack.c.l.b16 %v288
    %v2708 = vunpack.c.h.b16 %v288
    %v2709 = vunpack.c.l.b16 %v289
    %v2710 = vunpack.c.h.b16 %v289
    %v2711 = vunpack.c.l.b16 %v290
    %v2712 = vunpack.c.h.b16 %v290
    %v2713 = vunpack.c.l.b16 %v291
    %v2714 = vunpack.c.h.b16 %v291
    %v2715 = vunpack.c.l.b16 %v292
    %v2716 = vunpack.c.h.b16 %v292
    %v2717 = vunpack.c.l.b16 %v293
    %v2718 = vunpack.c.h.b16 %v293
    %v2719 = vunpack.c.l.b16 %v294
    %v2720 = vunpack.c.h.b16 %v294
    %v2721 = vunpack.c.l.b16 %v295
    %v2722 = vunpack.c.h.b16 %v295
    %v2723 = vunpack.c.l.b16 %v296
    %v2724 = vunpack.c.h.b16 %v296
    %v2725 = vunpack.c.l.b16 %v297
    %v2726 = vunpack.c.h.b16 %v297
    %v2727 = vunpack.c.l.b16 %v298
    %v2728 = vunpack.c.h.b16 %v298
    %v2729 = vunpack.c.l.b16 %v299
    %v2730 = vunpack.c.h.b16 %v299
    %v2731 = vunpack.c.l.b16 %v300
    %v2732 = vunpack.c.h.b16 %v300
    %v2733 = vunpack.c.l.b16 %v301
    %v2734 = vunpack.c.h.b16 %v301
    %v2735 = vunpack.c.l.b16 %v302
    %v2736 = vunpack.c.h.b16 %v302
    %v2737 = vunpack.c.l.b16 %v303
    %v2738 = vunpack.c.h.b16 %v303
    %v2739 = vunpack.c.l.b16 %v304
    %v2740 = vunpack.c.h.b16 %v304
    %v2741 = vunpack.c.l.b16 %v305
    %v2742 = vunpack.c.h.b16 %v305
    %v2743 = vunpack.c.l.b16 %v306
    %v2744 = vunpack.c.h.b16 %v306
    %v2745 = vunpack.c.l.b16 %v307
    %v2746 = vunpack.c.h.b16 %v307
    %v2747 = vunpack.c.l.b16 %v308
    %v2748 = vunpack.c.h.b16 %v308
    %v2749 = vunpack.c.l.b16 %v309
    %v2750 = vunpack.c.h.b16 %v309
    %v2751 = vunpack.c.l.b16 %v310
    %v2752 = vunpack.c.h.b16 %v310
    %v2753 = vunpack.c.l.b16 %v311
    %v2754 = vunpack.c.h.b16 %v311
    %v2755 = vunpack.c.l.b16 %v312
    %v2756 = vunpack.c.h.b16 %v312
    %v2757 = vunpack.c.l.b16 %v313
    %v2758 = vunpack.c.h.b16 %v313
    %v2759 = vunpack.c.l.b16 %v314
    %v2760 = vunpack.c.h.b16 %v314
    %v2761 = vunpack.c.l.b16 %v315
    %v2762 = vunpack.c.h.b16 %v315
    %v2763 = vunpack.c.l.b16 %v316
    %v2764 = vunpack.c.h.b16 %v316
    %v2765 = vunpack.c.l.b16 %v317
    %v2766 = vunpack.c.h.b16 %v317
    %v2767 = vunpack.c.l.b16 %v318
    %v2768 = vunpack.c.h.b16 %v318
    %v2769 = vunpack.c.l.b16 %v319
    %v2770 = vunpack.c.h.b16 %v319
    %v2771 = vunpack.c.l.b16 %v320
    %v2772 = vunpack.c.h.b16 %v320
    %v2773 = vunpack.c.l.b16 %v321
    %v2774 = vunpack.c.h.b16 %v321
    %v2775 = vunpack.c.l.b16 %v322
    %v2776 = vunpack.c.h.b16 %v322
    %v2777 = vunpack.c.l.b16 %v323
    %v2778 = vunpack.c.h.b16 %v323
    %v2779 = vunpack.c.l.b16 %v324
    %v2780 = vunpack.c.h.b16 %v324
    %v2781 = vunpack.c.l.b16 %v325
    %v2782 = vunpack.c.h.b16 %v325
    %v2783 = vunpack.c.l.b16 %v326
    %v2784 = vunpack.c.h.b16 %v326
    %v2785 = vunpack.c.l.b16 %v327
    %v2786 = vunpack.c.h.b16 %v327
    %v2787 = vunpack.c.l.b16 %v328
    %v2788 = vunpack.c.h.b16 %v328
    %v2789 = vunpack.c.l.b16 %v329
    %v2790 = vunpack.c.h.b16 %v329
    %v2791 = vunpack.c.l.b16 %v330
    %v2792 = vunpack.c.h.b16 %v330
    %v2793 = vunpack.c.l.b16 %v331
    %v2794 = vunpack.c.h.b16 %v331
    %v2795 = vunpack.c.l.b16 %v332
    %v2796 = vunpack.c.h.b16 %v332
    %v2797 = vunpack.c.l.b16 %v333
    %v2798 = vunpack.c.h.b16 %v333
    %v2799 = vunpack.c.l.b16 %v334
    %v2800 = vunpack.c.h.b16 %v334
    %v2801 = vunpack.c.l.b16 %v335
    %v2802 = vunpack.c.h.b16 %v335
    %v2803 = vunpack.c.l.b16 %v336
    %v2804 = vunpack.c.h.b16 %v336
    %v2805 = vunpack.c.l.b16 %v337
    %v2806 = vunpack.c.h.b16 %v337
    %v2807 = vunpack.c.l.b16 %v338
    %v2808 = vunpack.c.h.b16 %v338
    %v2809 = vunpack.c.l.b16 %v339
    %v2810 = vunpack.c.h.b16 %v339
    %v2811 = vunpack.c.l.b16 %v340
    %v2812 = vunpack.c.h.b16 %v340
    %v2813 = vunpack.c.l.b16 %v341
    %v2814 = vunpack.c.h.b16 %v341
    %v2815 = vunpack.c.l.b16 %v342
    %v2816 = vunpack.c.h.b16 %v342
    %v2817 = vunpack.c.l.b16 %v343
    %v2818 = vunpack.c.h.b16 %v343
    %v2819 = vunpack.c.l.b16 %v344
    %v2820 = vunpack.c.h.b16 %v344
    %v2821 = vunpack.c.l.b16 %v345
    %v2822 = vunpack.c.h.b16 %v345
    %v2823 = vunpack.c.l.b16 %v346
    %v2824 = vunpack.c.h.b16 %v346
    %v2825 = vunpack.c.l.b16 %v347
    %v2826 = vunpack.c.h.b16 %v347
    %v2827 = vunpack.c.l.b16 %v348
    %v2828 = vunpack.c.h.b16 %v348
    %v2829 = vunpack.c.l.b16 %v349
    %v2830 = vunpack.c.h.b16 %v349
    %v2831 = vunpack.c.l.b16 %v350
    %v2832 = vunpack.c.h.b16 %v350
    %v2833 = vunpack.c.l.b16 %v351
    %v2834 = vunpack.c.h.b16 %v351
    %v2835 = vunpack.c.l.b16 %v352
    %v2836 = vunpack.c.h.b16 %v352
    %v2837 = vunpack.c.l.b16 %v353
    %v2838 = vunpack.c.h.b16 %v353
    %v2839 = vunpack.c.l.b16 %v354
    %v2840 = vunpack.c.h.b16 %v354
    %v2841 = vunpack.c.l.b16 %v355
    %v2842 = vunpack.c.h.b16 %v355
    %v2843 = vunpack.c.l.b16 %v356
    %v2844 = vunpack.c.h.b16 %v356
    %v2845 = vunpack.c.l.b16 %v357
    %v2846 = vunpack.c.h.b16 %v357
    %v2847 = vunpack.c.l.b16 %v358
    %v2848 = vunpack.c.h.b16 %v358
    %v2849 = vunpack.c.l.b16 %v359
    %v2850 = vunpack.c.h.b16 %v359
    %v2851 = vunpack.c.l.b16 %v360
    %v2852 = vunpack.c.h.b16 %v360
    %v2853 = vunpack.c.l.b16 %v361
    %v2854 = vunpack.c.h.b16 %v361
    %v2855 = vunpack.c.l.b16 %v362
    %v2856 = vunpack.c.h.b16 %v362
    %v2857 = vunpack.c.l.b16 %v363
    %v2858 = vunpack.c.h.b16 %v363
    %v2859 = vunpack.c.l.b16 %v364
    %v2860 = vunpack.c.h.b16 %v364
    %v2861 = vunpack.c.l.b16 %v365
    %v2862 = vunpack.c.h.b16 %v365
    %v2863 = vunpack.c.l.b16 %v366
    %v2864 = vunpack.c.h.b16 %v366
    %v2865 = vunpack.c.l.b16 %v367
    %v2866 = vunpack.c.h.b16 %v367
    %v2867 = vunpack.c.l.b16 %v368
    %v2868 = vunpack.c.h.b16 %v368
    %v2869 = vunpack.c.l.b16 %v369
    %v2870 = vunpack.c.h.b16 %v369
    %v2871 = vunpack.c.l.b16 %v370
    %v2872 = vunpack.c.h.b16 %v370
    %v2873 = vunpack.c.l.b16 %v371
    %v2874 = vunpack.c.h.b16 %v371
    %v2875 = vunpack.c.l.b16 %v372
    %v2876 = vunpack.c.h.b16 %v372
    %v2877 = vunpack.c.l.b16 %v373
    %v2878 = vunpack.c.h.b16 %v373
    %v2879 = vunpack.c.l.b16 %v374
    %v2880 = vunpack.c.h.b16 %v374
    %v2881 = vunpack.c.l.b16 %v375
    %v2882 = vunpack.c.h.b16 %v375
    %v2883 = vunpack.c.l.b16 %v376
    %v2884 = vunpack.c.h.b16 %v376
    %v2885 = vunpack.c.l.b16 %v377
    %v2886 = vunpack.c.h.b16 %v377
    %v2887 = vunpack.c.l.b16 %v378
    %v2888 = vunpack.c.h.b16 %v378
    %v2889 = vunpack.c.l.b16 %v379
    %v2890 = vunpack.c.h.b16 %v379
    %v2891 = vunpack.c.l.b16 %v380
    %v2892 = vunpack.c.h.b16 %v380
    %v2893 = vunpack.c.l.b16 %v381
    %v2894 = vunpack.c.h.b16 %v381
    %v2895 = vunpack.c.l.b16 %v382
    %v2896 = vunpack.c.h.b16 %v382
    %v2897 = vunpack.c.l.b16 %v383
    %v2898 = vunpack.c.h.b16 %v383
    %v2899 = vunpack.c.l.b16 %v384
    %v2900 = vunpack.c.h.b16 %v384
    %v2901 = vunpack.c.l.b16 %v385
    %v2902 = vunpack.c.h.b16 %v385
    %v2903 = vunpack.c.l.b16 %v386
    %v2904 = vunpack.c.h.b16 %v386
    %v2905 = vunpack.c.l.b16 %v387
    %v2906 = vunpack.c.h.b16 %v387
    %v2907 = vunpack.c.l.b16 %v388
    %v2908 = vunpack.c.h.b16 %v388
    %v2909 = vunpack.c.l.b16 %v389
    %v2910 = vunpack.c.h.b16 %v389
    %v2911 = vunpack.c.l.b16 %v390
    %v2912 = vunpack.c.h.b16 %v390
    %v2913 = vunpack.c.l.b16 %v391
    %v2914 = vunpack.c.h.b16 %v391
    %v2915 = vunpack.c.l.b16 %v392
    %v2916 = vunpack.c.h.b16 %v392
    %v2917 = vunpack.c.l.b16 %v393
    %v2918 = vunpack.c.h.b16 %v393
    %v2919 = vunpack.c.l.b16 %v394
    %v2920 = vunpack.c.h.b16 %v394
    %v2921 = vunpack.c.l.b16 %v395
    %v2922 = vunpack.c.h.b16 %v395
    %v2923 = vunpack.c.l.b16 %v396
    %v2924 = vunpack.c.h.b16 %v396
    %v2925 = vunpack.c.l.b16 %v397
    %v2926 = vunpack.c.h.b16 %v397
    %v2927 = vunpack.c.l.b16 %v398
    %v2928 = vunpack.c.h.b16 %v398
    %v2929 = vunpack.c.l.b16 %v399
    %v2930 = vunpack.c.h.b16 %v399
    %v2931 = vunpack.c.l.b16 %v400
    %v2932 = vunpack.c.h.b16 %v400
    %v2933 = vunpack.c.l.b16 %v401
    %v2934 = vunpack.c.h.b16 %v401
    %v2935 = vunpack.c.l.b16 %v402
    %v2936 = vunpack.c.h.b16 %v402
    %v2937 = vunpack.c.l.b16 %v403
    %v2938 = vunpack.c.h.b16 %v403
    %v2939 = vunpack.c.l.b16 %v404
    %v2940 = vunpack.c.h.b16 %v404
    %v2941 = vunpack.c.l.b16 %v405
    %v2942 = vunpack.c.h.b16 %v405
    %v2943 = vunpack.c.l.b16 %v406
    %v2944 = vunpack.c.h.b16 %v406
    %v2945 = vunpack.c.l.b16 %v407
    %v2946 = vunpack.c.h.b16 %v407
    %v2947 = vunpack.c.l.b16 %v408
    %v2948 = vunpack.c.h.b16 %v408
    %v2949 = vunpack.c.l.b16 %v409
    %v2950 = vunpack.c.h.b16 %v409
    %v2951 = vunpack.c.l.b16 %v410
    %v2952 = vunpack.c.h.b16 %v410
    %v2953 = vunpack.c.l.b16 %v411
    %v2954 = vunpack.c.h.b16 %v411
    %v2955 = vunpack.c.l.b16 %v412
    %v2956 = vunpack.c.h.b16 %v412
    %v2957 = vunpack.c.l.b16 %v413
    %v2958 = vunpack.c.h.b16 %v413
    %v2959 = vunpack.c.l.b16 %v414
    %v2960 = vunpack.c.h.b16 %v414
    %v2961 = vunpack.c.l.b16 %v415
    %v2962 = vunpack.c.h.b16 %v415
    %v2963 = vunpack.c.l.b16 %v416
    %v2964 = vunpack.c.h.b16 %v416
    %v2965 = vunpack.c.l.b16 %v417
    %v2966 = vunpack.c.h.b16 %v417
    %v2967 = vunpack.c.l.b16 %v418
    %v2968 = vunpack.c.h.b16 %v418
    %v2969 = vunpack.c.l.b16 %v419
    %v2970 = vunpack.c.h.b16 %v419
    %v2971 = vunpack.c.l.b16 %v420
    %v2972 = vunpack.c.h.b16 %v420
    %v2973 = vunpack.c.l.b16 %v421
    %v2974 = vunpack.c.h.b16 %v421
    %v2975 = vunpack.c.l.b16 %v422
    %v2976 = vunpack.c.h.b16 %v422
    %v2977 = vunpack.c.l.b16 %v423
    %v2978 = vunpack.c.h.b16 %v423
    %v2979 = vunpack.c.l.b16 %v424
    %v2980 = vunpack.c.h.b16 %v424
    %v2981 = vunpack.c.l.b16 %v425
    %v2982 = vunpack.c.h.b16 %v425
    %v2983 = vunpack.c.l.b16 %v426
    %v2984 = vunpack.c.h.b16 %v426
    %v2985 = vunpack.c.l.b16 %v427
    %v2986 = vunpack.c.h.b16 %v427
    %v2987 = vunpack.c.l.b16 %v428
    %v2988 = vunpack.c.h.b16 %v428
    %v2989 = vunpack.c.l.b16 %v429
    %v2990 = vunpack.c.h.b16 %v429
    %v2991 = vunpack.c.l.b16 %v430
    %v2992 = vunpack.c.h.b16 %v430
    %v2993 = vunpack.c.l.b16 %v431
    %v2994 = vunpack.c.h.b16 %v431
    %v2995 = vunpack.c.l.b16 %v432
    %v2996 = vunpack.c.h.b16 %v432
    %v2997 = vunpack.c.l.b16 %v433
    %v2998 = vunpack.c.h.b16 %v433
    %v2999 = vunpack.c.l.b16 %v434
    %v3000 = vunpack.c.h.b16 %v434
    %v3001 = vunpack.c.l.b16 %v435
    %v3002 = vunpack.c.h.b16 %v435
    %v3003 = vunpack.c.l.b16 %v436
    %v3004 = vunpack.c.h.b16 %v436
    %v3005 = vunpack.c.l.b16 %v437
    %v3006 = vunpack.c.h.b16 %v437
    %v3007 = vunpack.c.l.b16 %v438
    %v3008 = vunpack.c.h.b16 %v438
    %v3009 = vunpack.c.l.b16 %v439
    %v3010 = vunpack.c.h.b16 %v439
    %v3011 = vunpack.c.l.b16 %v440
    %v3012 = vunpack.c.h.b16 %v440
    %v3013 = vunpack.c.l.b16 %v441
    %v3014 = vunpack.c.h.b16 %v441
    %v3015 = vunpack.c.l.b16 %v442
    %v3016 = vunpack.c.h.b16 %v442
    %v3017 = vunpack.c.l.b16 %v443
    %v3018 = vunpack.c.h.b16 %v443
    %v3019 = vunpack.c.l.b16 %v444
    %v3020 = vunpack.c.h.b16 %v444
    %v3021 = vunpack.c.l.b16 %v445
    %v3022 = vunpack.c.h.b16 %v445
    %v3023 = vunpack.c.l.b16 %v446
    %v3024 = vunpack.c.h.b16 %v446
    %v3025 = vunpack.c.l.b16 %v447
    %v3026 = vunpack.c.h.b16 %v447
    %v3027 = vunpack.c.l.b16 %v448
    %v3028 = vunpack.c.h.b16 %v448
    %v3029 = vunpack.c.l.b16 %v449
    %v3030 = vunpack.c.h.b16 %v449
    %v3031 = vunpack.c.l.b16 %v450
    %v3032 = vunpack.c.h.b16 %v450
    %v3033 = vunpack.c.l.b16 %v451
    %v3034 = vunpack.c.h.b16 %v451
    %v3035 = vunpack.c.l.b16 %v452
    %v3036 = vunpack.c.h.b16 %v452
    %v3037 = vunpack.c.l.b16 %v453
    %v3038 = vunpack.c.h.b16 %v453
    %v3039 = vunpack.c.l.b16 %v454
    %v3040 = vunpack.c.h.b16 %v454
    %v3041 = vunpack.c.l.b16 %v455
    %v3042 = vunpack.c.h.b16 %v455
    %v3043 = vunpack.c.l.b16 %v456
    %v3044 = vunpack.c.h.b16 %v456
    %v3045 = vunpack.c.l.b16 %v457
    %v3046 = vunpack.c.h.b16 %v457
    %v3047 = vunpack.c.l.b16 %v458
    %v3048 = vunpack.c.h.b16 %v458
    %v3049 = vunpack.c.l.b16 %v459
    %v3050 = vunpack.c.h.b16 %v459
    %v3051 = vunpack.c.l.b16 %v460
    %v3052 = vunpack.c.h.b16 %v460
    %v3053 = vunpack.c.l.b16 %v461
    %v3054 = vunpack.c.h.b16 %v461
    %v3055 = vunpack.c.l.b16 %v462
    %v3056 = vunpack.c.h.b16 %v462
    %v3057 = vunpack.c.l.b16 %v463
    %v3058 = vunpack.c.h.b16 %v463
    %v3059 = vunpack.c.l.b16 %v464
    %v3060 = vunpack.c.h.b16 %v464
    %v3061 = vunpack.c.l.b16 %v465
    %v3062 = vunpack.c.h.b16 %v465
    %v3063 = vunpack.c.l.b16 %v466
    %v3064 = vunpack.c.h.b16 %v466
    %v3065 = vunpack.c.l.b16 %v467
    %v3066 = vunpack.c.h.b16 %v467
    %v3067 = vunpack.c.l.b16 %v468
    %v3068 = vunpack.c.h.b16 %v468
    %v3069 = vunpack.c.l.b16 %v469
    %v3070 = vunpack.c.h.b16 %v469
    %v3071 = vunpack.c.l.b16 %v470
    %v3072 = vunpack.c.h.b16 %v470
    %v3073 = vunpack.c.l.b16 %v471
    %v3074 = vunpack.c.h.b16 %v471
    %v3075 = vunpack.c.l.b16 %v472
    %v3076 = vunpack.c.h.b16 %v472
    %v3077 = vunpack.c.l.b16 %v473
    %v3078 = vunpack.c.h.b16 %v473
    %v3079 = vunpack.c.l.b16 %v474
    %v3080 = vunpack.c.h.b16 %v474
    %v3081 = vunpack.c.l.b16 %v475
    %v3082 = vunpack.c.h.b16 %v475
    %v3083 = vunpack.c.l.b16 %v476
    %v3084 = vunpack.c.h.b16 %v476
    %v3085 = vunpack.c.l.b16 %v477
    %v3086 = vunpack.c.h.b16 %v477
    %v3087 = vunpack.c.l.b16 %v478
    %v3088 = vunpack.c.h.b16 %v478
    %v3089 = vunpack.c.l.b16 %v479
    %v3090 = vunpack.c.h.b16 %v479
    %v3091 = vunpack.c.l.b16 %v480
    %v3092 = vunpack.c.h.b16 %v480
    %v3093 = vunpack.c.l.b16 %v481
    %v3094 = vunpack.c.h.b16 %v481
    %v3095 = vunpack.c.l.b16 %v482
    %v3096 = vunpack.c.h.b16 %v482
    %v3097 = vunpack.c.l.b16 %v483
    %v3098 = vunpack.c.h.b16 %v483
    %v3099 = vunpack.c.l.b16 %v484
    %v3100 = vunpack.c.h.b16 %v484
    %v3101 = vunpack.c.l.b16 %v485
    %v3102 = vunpack.c.h.b16 %v485
    %v3103 = vunpack.c.l.b16 %v486
    %v3104 = vunpack.c.h.b16 %v486
    %v3105 = vunpack.c.l.b16 %v487
    %v3106 = vunpack.c.h.b16 %v487
    %v3107 = vunpack.c.l.b16 %v488
    %v3108 = vunpack.c.h.b16 %v488
    %v3109 = vunpack.c.l.b16 %v489
    %v3110 = vunpack.c.h.b16 %v489
    %v3111 = vunpack.c.l.b16 %v490
    %v3112 = vunpack.c.h.b16 %v490
    %v3113 = vunpack.c.l.b16 %v491
    %v3114 = vunpack.c.h.b16 %v491
    %v3115 = vunpack.c.l.b16 %v492
    %v3116 = vunpack.c.h.b16 %v492
    %v3117 = vunpack.c.l.b16 %v493
    %v3118 = vunpack.c.h.b16 %v493
    %v3119 = vunpack.c.l.b16 %v494
    %v3120 = vunpack.c.h.b16 %v494
    %v3121 = vunpack.c.l.b16 %v495
    %v3122 = vunpack.c.h.b16 %v495
    %v3123 = vunpack.c.l.b16 %v496
    %v3124 = vunpack.c.h.b16 %v496
    %v3125 = vunpack.c.l.b16 %v497
    %v3126 = vunpack.c.h.b16 %v497
    %v3127 = vunpack.c.l.b16 %v498
    %v3128 = vunpack.c.h.b16 %v498
    %v3129 = vunpack.c.l.b16 %v499
    %v3130 = vunpack.c.h.b16 %v499
    %v3131 = vunpack.c.l.b16 %v500
    %v3132 = vunpack.c.h.b16 %v500
    %v3133 = vunpack.c.l.b16 %v501
    %v3134 = vunpack.c.h.b16 %v501
    %v3135 = vunpack.c.l.b16 %v502
    %v3136 = vunpack.c.h.b16 %v502
    %v3137 = vunpack.c.l.b16 %v503
    %v3138 = vunpack.c.h.b16 %v503
    %v3139 = vunpack.c.l.b16 %v504
    %v3140 = vunpack.c.h.b16 %v504
    %v3141 = vunpack.c.l.b16 %v505
    %v3142 = vunpack.c.h.b16 %v505
    %v3143 = vunpack.c.l.b16 %v506
    %v3144 = vunpack.c.h.b16 %v506
    %v3145 = vunpack.c.l.b16 %v507
    %v3146 = vunpack.c.h.b16 %v507
    %v3147 = vunpack.c.l.b16 %v508
    %v3148 = vunpack.c.h.b16 %v508
    %v3149 = vunpack.c.l.b16 %v509
    %v3150 = vunpack.c.h.b16 %v509
    %v3151 = vunpack.c.l.b16 %v510
    %v3152 = vunpack.c.h.b16 %v510
    %v3153 = vunpack.c.l.b16 %v511
    %v3154 = vunpack.c.h.b16 %v511
    %v3155 = vunpack.c.l.b16 %v512
    %v3156 = vunpack.c.h.b16 %v512
    %v3157 = vunpack.c.l.b16 %v513
    %v3158 = vunpack.c.h.b16 %v513
    %v3159 = vunpack.c.l.b16 %v514
    %v3160 = vunpack.c.h.b16 %v514
    %v3161 = vunpack.c.l.b16 %v515
    %v3162 = vunpack.c.h.b16 %v515
    %v3163 = vunpack.c.l.b16 %v516
    %v3164 = vunpack.c.h.b16 %v516
    %v3165 = vunpack.c.l.b16 %v517
    %v3166 = vunpack.c.h.b16 %v517
    %v3167 = vunpack.c.l.b16 %v518
    %v3168 = vunpack.c.h.b16 %v518
    %v3169 = vunpack.c.l.b16 %v519
    %v3170 = vunpack.c.h.b16 %v519
    %v3171 = vunpack.c.l.b16 %v520
    %v3172 = vunpack.c.h.b16 %v520
    %v3173 = vunpack.c.l.b16 %v521
    %v3174 = vunpack.c.h.b16 %v521
    %v3175 = vunpack.c.l.b16 %v522
    %v3176 = vunpack.c.h.b16 %v522
    %v3177 = vunpack.c.l.b16 %v523
    %v3178 = vunpack.c.h.b16 %v523
    %v3179 = vunpack.c.l.b16 %v524
    %v3180 = vunpack.c.h.b16 %v524
    %v3181 = vunpack.c.l.b16 %v525
    %v3182 = vunpack.c.h.b16 %v525
    %v3183 = vunpack.c.l.b16 %v526
    %v3184 = vunpack.c.h.b16 %v526
    %v3185 = vunpack.c.l.b16 %v527
    %v3186 = vunpack.c.h.b16 %v527
    %v3187 = vunpack.c.l.b16 %v528
    %v3188 = vunpack.c.h.b16 %v528
    %v3189 = vunpack.c.l.b16 %v529
    %v3190 = vunpack.c.h.b16 %v529
    %v3191 = vunpack.c.l.b16 %v530
    %v3192 = vunpack.c.h.b16 %v530
    %v3193 = vunpack.c.l.b16 %v531
    %v3194 = vunpack.c.h.b16 %v531
    %v3195 = vunpack.c.l.b16 %v532
    %v3196 = vunpack.c.h.b16 %v532
    %v3197 = vunpack.c.l.b16 %v533
    %v3198 = vunpack.c.h.b16 %v533
    %v3199 = vunpack.c.l.b16 %v534
    %v3200 = vunpack.c.h.b16 %v534
    %v3201 = vunpack.c.l.b16 %v535
    %v3202 = vunpack.c.h.b16 %v535
    %v3203 = vunpack.c.l.b16 %v536
    %v3204 = vunpack.c.h.b16 %v536
    %v3205 = vunpack.c.l.b16 %v537
    %v3206 = vunpack.c.h.b16 %v537
    %v3207 = vunpack.c.l.b16 %v538
    %v3208 = vunpack.c.h.b16 %v538
    %v3209 = vunpack.c.l.b16 %v539
    %v3210 = vunpack.c.h.b16 %v539
    %v3211 = vunpack.c.l.b16 %v540
    %v3212 = vunpack.c.h.b16 %v540
    %v3213 = vunpack.c.l.b16 %v541
    %v3214 = vunpack.c.h.b16 %v541
    %v3215 = vunpack.c.l.b16 %v542
    %v3216 = vunpack.c.h.b16 %v542
    %v3217 = vunpack.c.l.b16 %v543
    %v3218 = vunpack.c.h.b16 %v543
    %v3219 = vunpack.c.l.b16 %v544
    %v3220 = vunpack.c.h.b16 %v544
    %v3221 = vunpack.c.l.b16 %v545
    %v3222 = vunpack.c.h.b16 %v545
    %v3223 = vunpack.c.l.b16 %v546
    %v3224 = vunpack.c.h.b16 %v546
    %v3225 = vunpack.c.l.b16 %v547
    %v3226 = vunpack.c.h.b16 %v547
    %v3227 = vunpack.c.l.b16 %v548
    %v3228 = vunpack.c.h.b16 %v548
    %v3229 = vunpack.c.l.b16 %v549
    %v3230 = vunpack.c.h.b16 %v549
    %v3231 = vunpack.c.l.b16 %v550
    %v3232 = vunpack.c.h.b16 %v550
    %v3233 = vunpack.c.l.b16 %v551
    %v3234 = vunpack.c.h.b16 %v551
    %v3235 = vunpack.c.l.b16 %v552
    %v3236 = vunpack.c.h.b16 %v552
    %v3237 = vunpack.c.l.b16 %v553
    %v3238 = vunpack.c.h.b16 %v553
    %v3239 = vunpack.c.l.b16 %v554
    %v3240 = vunpack.c.h.b16 %v554
    %v3241 = vunpack.c.l.b16 %v555
    %v3242 = vunpack.c.h.b16 %v555
    %v3243 = vunpack.c.l.b16 %v556
    %v3244 = vunpack.c.h.b16 %v556
    %v3245 = vunpack.c.l.b16 %v557
    %v3246 = vunpack.c.h.b16 %v557
    %v3247 = vunpack.c.l.b16 %v558
    %v3248 = vunpack.c.h.b16 %v558
    %v3249 = vunpack.c.l.b16 %v559
    %v3250 = vunpack.c.h.b16 %v559
    %v3251 = vunpack.c.l.b16 %v560
    %v3252 = vunpack.c.h.b16 %v560
    %v3253 = vunpack.c.l.b16 %v561
    %v3254 = vunpack.c.h.b16 %v561
    %v3255 = vunpack.c.l.b16 %v562
    %v3256 = vunpack.c.h.b16 %v562
    %v3257 = vunpack.c.l.b16 %v563
    %v3258 = vunpack.c.h.b16 %v563
    %v3259 = vunpack.c.l.b16 %v564
    %v3260 = vunpack.c.h.b16 %v564
    %v3261 = vunpack.c.l.b16 %v565
    %v3262 = vunpack.c.h.b16 %v565
    %v3263 = vunpack.c.l.b16 %v566
    %v3264 = vunpack.c.h.b16 %v566
    %v3265 = vunpack.c.l.b16 %v567
    %v3266 = vunpack.c.h.b16 %v567
    %v3267 = vunpack.c.l.b16 %v568
    %v3268 = vunpack.c.h.b16 %v568
    %v3269 = vunpack.c.l.b16 %v569
    %v3270 = vunpack.c.h.b16 %v569
    %v3271 = vunpack.c.l.b16 %v570
    %v3272 = vunpack.c.h.b16 %v570
    %v3273 = vunpack.c.l.b16 %v571
    %v3274 = vunpack.c.h.b16 %v571
    %v3275 = vunpack.c.l.b16 %v572
    %v3276 = vunpack.c.h.b16 %v572
    %v3277 = vunpack.c.l.b16 %v573
    %v3278 = vunpack.c.h.b16 %v573
    %v3279 = vunpack.c.l.b16 %v574
    %v3280 = vunpack.c.h.b16 %v574
    %v3281 = vunpack.c.l.b16 %v575
    %v3282 = vunpack.c.h.b16 %v575
    %v3283 = vunpack.c.l.b16 %v576
    %v3284 = vunpack.c.h.b16 %v576
    %v3285 = vunpack.c.l.b16 %v577
    %v3286 = vunpack.c.h.b16 %v577
    %v3287 = vunpack.c.l.b16 %v578
    %v3288 = vunpack.c.h.b16 %v578
    %v3289 = vunpack.c.l.b16 %v579
    %v3290 = vunpack.c.h.b16 %v579
    %v3291 = vunpack.c.l.b16 %v580
    %v3292 = vunpack.c.h.b16 %v580
    %v3293 = vunpack.c.l.b16 %v581
    %v3294 = vunpack.c.h.b16 %v581
    %v3295 = vunpack.c.l.b16 %v582
    %v3296 = vunpack.c.h.b16 %v582
    %v3297 = vunpack.c.l.b16 %v583
    %v3298 = vunpack.c.h.b16 %v583
    %v3299 = vunpack.c.l.b16 %v584
    %v3300 = vunpack.c.h.b16 %v584
    %v3301 = vunpack.c.l.b16 %v585
    %v3302 = vunpack.c.h.b16 %v585
    %v3303 = vunpack.c.l.b16 %v586
    %v3304 = vunpack.c.h.b16 %v586
    %v3305 = vunpack.c.l.b16 %v587
    %v3306 = vunpack.c.h.b16 %v587
    %v3307 = vunpack.c.l.b16 %v588
    %v3308 = vunpack.c.h.b16 %v588
    %v3309 = vunpack.c.l.b16 %v589
    %v3310 = vunpack.c.h.b16 %v589
    %v3311 = vunpack.c.l.b16 %v590
    %v3312 = vunpack.c.h.b16 %v590
    %v3313 = vunpack.c.l.b16 %v591
    %v3314 = vunpack.c.h.b16 %v591
    %v3315 = vunpack.c.l.b16 %v592
    %v3316 = vunpack.c.h.b16 %v592
    %v3317 = vunpack.c.l.b16 %v593
    %v3318 = vunpack.c.h.b16 %v593
    %v3319 = vunpack.c.l.b16 %v594
    %v3320 = vunpack.c.h.b16 %v594
    %v3321 = vunpack.c.l.b16 %v595
    %v3322 = vunpack.c.h.b16 %v595
    %v3323 = vunpack.c.l.b16 %v596
    %v3324 = vunpack.c.h.b16 %v596
    %v3325 = vunpack.c.l.b16 %v597
    %v3326 = vunpack.c.h.b16 %v597
    %v3327 = vunpack.c.l.b16 %v598
    %v3328 = vunpack.c.h.b16 %v598
    %v3329 = vunpack.c.l.b16 %v599
    %v3330 = vunpack.c.h.b16 %v599
    %v3331 = vunpack.c.l.b16 %v600
    %v3332 = vunpack.c.h.b16 %v600
    %v3333 = vunpack.c.l.b16 %v601
    %v3334 = vunpack.c.h.b16 %v601
    %v3335 = vunpack.c.l.b16 %v602
    %v3336 = vunpack.c.h.b16 %v602
    %v3337 = vunpack.c.l.b16 %v603
    %v3338 = vunpack.c.h.b16 %v603
    %v3339 = vunpack.c.l.b16 %v604
    %v3340 = vunpack.c.h.b16 %v604
    %v3341 = vunpack.c.l.b16 %v605
    %v3342 = vunpack.c.h.b16 %v605
    %v3343 = vunpack.c.l.b16 %v606
    %v3344 = vunpack.c.h.b16 %v606
    %v3345 = vunpack.c.l.b16 %v607
    %v3346 = vunpack.c.h.b16 %v607
    %v3347 = vunpack.c.l.b16 %v608
    %v3348 = vunpack.c.h.b16 %v608
    %v3349 = vunpack.c.l.b16 %v609
    %v3350 = vunpack.c.h.b16 %v609
    %v3351 = vunpack.c.l.b16 %v610
    %v3352 = vunpack.c.h.b16 %v610
    %v3353 = vunpack.c.l.b16 %v611
    %v3354 = vunpack.c.h.b16 %v611
    %v3355 = vunpack.c.l.b16 %v612
    %v3356 = vunpack.c.h.b16 %v612
    %v3357 = vunpack.c.l.b16 %v613
    %v3358 = vunpack.c.h.b16 %v613
    %v3359 = vunpack.c.l.b16 %v614
    %v3360 = vunpack.c.h.b16 %v614
    %v3361 = vunpack.c.l.b16 %v615
    %v3362 = vunpack.c.h.b16 %v615
    %v3363 = vunpack.c.l.b16 %v616
    %v3364 = vunpack.c.h.b16 %v616
    %v3365 = vunpack.c.l.b16 %v617
    %v3366 = vunpack.c.h.b16 %v617
    %v3367 = vunpack.c.l.b16 %v618
    %v3368 = vunpack.c.h.b16 %v618
    %v3369 = vunpack.c.l.b16 %v619
    %v3370 = vunpack.c.h.b16 %v619
    %v3371 = vunpack.c.l.b16 %v620
    %v3372 = vunpack.c.h.b16 %v620
    %v3373 = vunpack.c.l.b16 %v621
    %v3374 = vunpack.c.h.b16 %v621
    %v3375 = vunpack.c.l.b16 %v622
    %v3376 = vunpack.c.h.b16 %v622
    %v3377 = vunpack.c.l.b16 %v623
    %v3378 = vunpack.c.h.b16 %v623
    %v3379 = vunpack.c.l.b16 %v624
    %v3380 = vunpack.c.h.b16 %v624
    %v3381 = vunpack.c.l.b16 %v625
    %v3382 = vunpack.c.h.b16 %v625
    %v3383 = vunpack.c.l.b16 %v626
    %v3384 = vunpack.c.h.b16 %v626
    %v3385 = vunpack.c.l.b16 %v627
    %v3386 = vunpack.c.h.b16 %v627
    %v3387 = vunpack.c.l.b16 %v628
    %v3388 = vunpack.c.h.b16 %v628
    %v3389 = vunpack.c.l.b16 %v629
    %v3390 = vunpack.c.h.b16 %v629
    %v3391 = vunpack.c.l.b16 %v630
    %v3392 = vunpack.c.h.b16 %v630
    %v3393 = vunpack.c.l.b16 %v631
    %v3394 = vunpack.c.h.b16 %v631
    %v3395 = vunpack.c.l.b16 %v632
    %v3396 = vunpack.c.h.b16 %v632
    %v3397 = vunpack.c.l.b16 %v633
    %v3398 = vunpack.c.h.b16 %v633
    %v3399 = vunpack.c.l.b16 %v634
    %v3400 = vunpack.c.h.b16 %v634
    %v3401 = vunpack.c.l.b16 %v635
    %v3402 = vunpack.c.h.b16 %v635
    %v3403 = vunpack.c.l.b16 %v636
    %v3404 = vunpack.c.h.b16 %v636
    %v3405 = vunpack.c.l.b16 %v637
    %v3406 = vunpack.c.h.b16 %v637
    %v3407 = vunpack.c.l.b16 %v638
    %v3408 = vunpack.c.h.b16 %v638
    %v3409 = vunpack.c.l.b16 %v639
    %v3410 = vunpack.c.h.b16 %v639
    %v3411 = vunpack.c.l.b16 %v640
    %v3412 = vunpack.c.h.b16 %v640
    %v3413 = vunpack.c.l.b16 %v641
    %v3414 = vunpack.c.h.b16 %v641
    %v3415 = vunpack.c.l.b16 %v642
    %v3416 = vunpack.c.h.b16 %v642
    %v3417 = vunpack.c.l.b16 %v643
    %v3418 = vunpack.c.h.b16 %v643
    %v3419 = vunpack.c.l.b16 %v644
    %v3420 = vunpack.c.h.b16 %v644
    %v3421 = vunpack.c.l.b16 %v645
    %v3422 = vunpack.c.h.b16 %v645
    %v3423 = vunpack.c.l.b16 %v646
    %v3424 = vunpack.c.h.b16 %v646
    %v3425 = vunpack.c.l.b16 %v647
    %v3426 = vunpack.c.h.b16 %v647
    %v3427 = vunpack.c.l.b16 %v648
    %v3428 = vunpack.c.h.b16 %v648
    %v3429 = vunpack.c.l.b16 %v649
    %v3430 = vunpack.c.h.b16 %v649
    %v3431 = vunpack.c.l.b16 %v650
    %v3432 = vunpack.c.h.b16 %v650
    %v3433 = vunpack.c.l.b16 %v651
    %v3434 = vunpack.c.h.b16 %v651
    %v3435 = vunpack.c.l.b16 %v652
    %v3436 = vunpack.c.h.b16 %v652
    %v3437 = vunpack.c.l.b16 %v653
    %v3438 = vunpack.c.h.b16 %v653
    %v3439 = vunpack.c.l.b16 %v654
    %v3440 = vunpack.c.h.b16 %v654
    %v3441 = vunpack.c.l.b16 %v655
    %v3442 = vunpack.c.h.b16 %v655
    %v3443 = vunpack.c.l.b16 %v656
    %v3444 = vunpack.c.h.b16 %v656
    %v3445 = vunpack.c.l.b16 %v657
    %v3446 = vunpack.c.h.b16 %v657
    %v3447 = vunpack.c.l.b16 %v658
    %v3448 = vunpack.c.h.b16 %v658
    %v3449 = vunpack.c.l.b16 %v659
    %v3450 = vunpack.c.h.b16 %v659
    %v3451 = vunpack.c.l.b16 %v660
    %v3452 = vunpack.c.h.b16 %v660
    %v3453 = vunpack.c.l.b16 %v661
    %v3454 = vunpack.c.h.b16 %v661
    %v3455 = vunpack.c.l.b16 %v662
    %v3456 = vunpack.c.h.b16 %v662
    %v3457 = vunpack.c.l.b16 %v663
    %v3458 = vunpack.c.h.b16 %v663
    %v3459 = vunpack.c.l.b16 %v664
    %v3460 = vunpack.c.h.b16 %v664
    %v3461 = vunpack.c.l.b16 %v665
    %v3462 = vunpack.c.h.b16 %v665
    %v3463 = vunpack.c.l.b16 %v666
    %v3464 = vunpack.c.h.b16 %v666
    %v3465 = vunpack.c.l.b16 %v667
    %v3466 = vunpack.c.h.b16 %v667
    %v3467 = vunpack.c.l.b16 %v668
    %v3468 = vunpack.c.h.b16 %v668
    %v3469 = vunpack.c.l.b16 %v669
    %v3470 = vunpack.c.h.b16 %v669
    %v3471 = vunpack.c.l.b16 %v670
    %v3472 = vunpack.c.h.b16 %v670
    %v3473 = vunpack.c.l.b16 %v671
    %v3474 = vunpack.c.h.b16 %v671
    %v3475 = vunpack.c.l.b16 %v672
    %v3476 = vunpack.c.h.b16 %v672
    %v3477 = vunpack.c.l.b16 %v673
    %v3478 = vunpack.c.h.b16 %v673
    %v3479 = vunpack.c.l.b16 %v674
    %v3480 = vunpack.c.h.b16 %v674
    %v3481 = vunpack.c.l.b16 %v675
    %v3482 = vunpack.c.h.b16 %v675
    %v3483 = vunpack.c.l.b16 %v676
    %v3484 = vunpack.c.h.b16 %v676
    %v3485 = vunpack.c.l.b16 %v677
    %v3486 = vunpack.c.h.b16 %v677
    %v3487 = vunpack.c.l.b16 %v678
    %v3488 = vunpack.c.h.b16 %v678
    %v3489 = vunpack.c.l.b16 %v679
    %v3490 = vunpack.c.h.b16 %v679
    %v3491 = vunpack.c.l.b16 %v680
    %v3492 = vunpack.c.h.b16 %v680
    %v3493 = vunpack.c.l.b16 %v681
    %v3494 = vunpack.c.h.b16 %v681
    %v3495 = vunpack.c.l.b16 %v682
    %v3496 = vunpack.c.h.b16 %v682
    %v3497 = vunpack.c.l.b16 %v683
    %v3498 = vunpack.c.h.b16 %v683
    %v3499 = vunpack.c.l.b16 %v684
    %v3500 = vunpack.c.h.b16 %v684
    %v3501 = vunpack.c.l.b16 %v685
    %v3502 = vunpack.c.h.b16 %v685
    %v3503 = vunpack.c.l.b16 %v686
    %v3504 = vunpack.c.h.b16 %v686
    %v3505 = vunpack.c.l.b16 %v687
    %v3506 = vunpack.c.h.b16 %v687
    %v3507 = vunpack.c.l.b16 %v688
    %v3508 = vunpack.c.h.b16 %v688
    %v3509 = vunpack.c.l.b16 %v689
    %v3510 = vunpack.c.h.b16 %v689
    %v3511 = vunpack.c.l.b16 %v690
    %v3512 = vunpack.c.h.b16 %v690
    %v3513 = vunpack.c.l.b16 %v691
    %v3514 = vunpack.c.h.b16 %v691
    %v3515 = vunpack.c.l.b16 %v692
    %v3516 = vunpack.c.h.b16 %v692
    %v3517 = vunpack.c.l.b16 %v693
    %v3518 = vunpack.c.h.b16 %v693
    %v3519 = vunpack.c.l.b16 %v694
    %v3520 = vunpack.c.h.b16 %v694
    %v3521 = vunpack.c.l.b16 %v695
    %v3522 = vunpack.c.h.b16 %v695
    %v3523 = vunpack.c.l.b16 %v696
    %v3524 = vunpack.c.h.b16 %v696
    %v3525 = vunpack.c.l.b16 %v697
    %v3526 = vunpack.c.h.b16 %v697
    %v3527 = vunpack.c.l.b16 %v698
    %v3528 = vunpack.c.h.b16 %v698
    %v3529 = vunpack.c.l.b16 %v699
    %v3530 = vunpack.c.h.b16 %v699
    %v3531 = vunpack.c.l.b16 %v700
    %v3532 = vunpack.c.h.b16 %v700
    %v3533 = vunpack.c.l.b16 %v701
    %v3534 = vunpack.c.h.b16 %v701
    %v3535 = vunpack.c.l.b16 %v702
    %v3536 = vunpack.c.h.b16 %v702
    %v3537 = vunpack.c.l.b16 %v703
    %v3538 = vunpack.c.h.b16 %v703
    %v3539 = vunpack.c.l.b16 %v704
    %v3540 = vunpack.c.h.b16 %v704
    %v3541 = vunpack.c.l.b16 %v705
    %v3542 = vunpack.c.h.b16 %v705
    %v3543 = vunpack.c.l.b16 %v706
    %v3544 = vunpack.c.h.b16 %v706
    %v3545 = vunpack.c.l.b16 %v707
    %v3546 = vunpack.c.h.b16 %v707
    %v3547 = vunpack.c.l.b16 %v708
    %v3548 = vunpack.c.h.b16 %v708
    %v3549 = vunpack.c.l.b16 %v709
    %v3550 = vunpack.c.h.b16 %v709
    %v3551 = vunpack.c.l.b16 %v710
    %v3552 = vunpack.c.h.b16 %v710
    %v3553 = vunpack.c.l.b16 %v711
    %v3554 = vunpack.c.h.b16 %v711
    %v3555 = vunpack.c.l.b16 %v712
    %v3556 = vunpack.c.h.b16 %v712
    %v3557 = vunpack.c.l.b16 %v713
    %v3558 = vunpack.c.h.b16 %v713
    %v3559 = vunpack.c.l.b16 %v714
    %v3560 = vunpack.c.h.b16 %v714
    %v3561 = vunpack.c.l.b16 %v715
    %v3562 = vunpack.c.h.b16 %v715
    %v3563 = vunpack.c.l.b16 %v716
    %v3564 = vunpack.c.h.b16 %v716
    %v3565 = vunpack.c.l.b16 %v717
    %v3566 = vunpack.c.h.b16 %v717
    %v3567 = vunpack.c.l.b16 %v718
    %v3568 = vunpack.c.h.b16 %v718
    %v3569 = vunpack.c.l.b16 %v719
    %v3570 = vunpack.c.h.b16 %v719
    %v3571 = vunpack.c.l.b16 %v720
    %v3572 = vunpack.c.h.b16 %v720
    %v3573 = vunpack.c.l.b16 %v721
    %v3574 = vunpack.c.h.b16 %v721
    %v3575 = vunpack.c.l.b16 %v722
    %v3576 = vunpack.c.h.b16 %v722
    %v3577 = vunpack.c.l.b16 %v723
    %v3578 = vunpack.c.h.b16 %v723
    %v3579 = vunpack.c.l.b16 %v724
    %v3580 = vunpack.c.h.b16 %v724
    %v3581 = vunpack.c.l.b16 %v725
    %v3582 = vunpack.c.h.b16 %v725
    %v3583 = vunpack.c.l.b16 %v726
    %v3584 = vunpack.c.h.b16 %v726
    %v3585 = vunpack.c.l.b16 %v727
    %v3586 = vunpack.c.h.b16 %v727
    %v3587 = vunpack.c.l.b16 %v728
    %v3588 = vunpack.c.h.b16 %v728
    %v3589 = vunpack.c.l.b16 %v729
    %v3590 = vunpack.c.h.b16 %v729
    %v3591 = vunpack.c.l.b16 %v730
    %v3592 = vunpack.c.h.b16 %v730
    %v3593 = vunpack.c.l.b16 %v731
    %v3594 = vunpack.c.h.b16 %v731
    %v3595 = vunpack.c.l.b16 %v732
    %v3596 = vunpack.c.h.b16 %v732
    %v3597 = vunpack.c.l.b16 %v733
    %v3598 = vunpack.c.h.b16 %v733
    %v3599 = vunpack.c.l.b16 %v734
    %v3600 = vunpack.c.h.b16 %v734
    %v3601 = vunpack.c.l.b16 %v735
    %v3602 = vunpack.c.h.b16 %v735
    %v3603 = vunpack.c.l.b16 %v736
    %v3604 = vunpack.c.h.b16 %v736
    %v3605 = vunpack.c.l.b16 %v737
    %v3606 = vunpack.c.h.b16 %v737
    %v3607 = vunpack.c.l.b16 %v738
    %v3608 = vunpack.c.h.b16 %v738
    %v3609 = vunpack.c.l.b16 %v739
    %v3610 = vunpack.c.h.b16 %v739
    %v3611 = vunpack.c.l.b16 %v740
    %v3612 = vunpack.c.h.b16 %v740
    %v3613 = vunpack.c.l.b16 %v741
    %v3614 = vunpack.c.h.b16 %v741
    %v3615 = vunpack.c.l.b16 %v742
    %v3616 = vunpack.c.h.b16 %v742
    %v3617 = vunpack.c.l.b16 %v743
    %v3618 = vunpack.c.h.b16 %v743
    %v3619 = vunpack.c.l.b16 %v744
    %v3620 = vunpack.c.h.b16 %v744
    %v3621 = vunpack.c.l.b16 %v745
    %v3622 = vunpack.c.h.b16 %v745
    %v3623 = vunpack.c.l.b16 %v746
    %v3624 = vunpack.c.h.b16 %v746
    %v3625 = vunpack.c.l.b16 %v747
    %v3626 = vunpack.c.h.b16 %v747
    %v3627 = vunpack.c.l.b16 %v748
    %v3628 = vunpack.c.h.b16 %v748
    %v3629 = vunpack.c.l.b16 %v749
    %v3630 = vunpack.c.h.b16 %v749
    %v3631 = vunpack.c.l.b16 %v750
    %v3632 = vunpack.c.h.b16 %v750
    %v3633 = vunpack.c.l.b16 %v751
    %v3634 = vunpack.c.h.b16 %v751
    %v3635 = vunpack.c.l.b16 %v752
    %v3636 = vunpack.c.h.b16 %v752
    %v3637 = vunpack.c.l.b16 %v753
    %v3638 = vunpack.c.h.b16 %v753
    %v3639 = vunpack.c.l.b16 %v754
    %v3640 = vunpack.c.h.b16 %v754
    %v3641 = vunpack.c.l.b16 %v755
    %v3642 = vunpack.c.h.b16 %v755
    %v3643 = vunpack.c.l.b16 %v756
    %v3644 = vunpack.c.h.b16 %v756
    %v3645 = vunpack.c.l.b16 %v757
    %v3646 = vunpack.c.h.b16 %v757
    %v3647 = vunpack.c.l.b16 %v758
    %v3648 = vunpack.c.h.b16 %v758
    %v3649 = vunpack.c.l.b16 %v759
    %v3650 = vunpack.c.h.b16 %v759
    %v3651 = vunpack.c.l.b16 %v760
    %v3652 = vunpack.c.h.b16 %v760
    %v3653 = vunpack.c.l.b16 %v761
    %v3654 = vunpack.c.h.b16 %v761
    %v3655 = vunpack.c.l.b16 %v762
    %v3656 = vunpack.c.h.b16 %v762
    %v3657 = vunpack.c.l.b16 %v763
    %v3658 = vunpack.c.h.b16 %v763
    %v3659 = vunpack.c.l.b16 %v764
    %v3660 = vunpack.c.h.b16 %v764
    %v3661 = vunpack.c.l.b16 %v765
    %v3662 = vunpack.c.h.b16 %v765
    %v3663 = vunpack.c.l.b16 %v766
    %v3664 = vunpack.c.h.b16 %v766
    %v3665 = vunpack.c.l.b16 %v767
    %v3666 = vunpack.c.h.b16 %v767
    %v3667 = vunpack.c.l.b16 %v768
    %v3668 = vunpack.c.h.b16 %v768
    %v3669 = vunpack.c.l.b16 %v769
    %v3670 = vunpack.c.h.b16 %v769
    %v3671 = vunpack.c.l.b16 %v770
    %v3672 = vunpack.c.h.b16 %v770
    %v3673 = vunpack.c.l.b16 %v771
    %v3674 = vunpack.c.h.b16 %v771
    %v3675 = vunpack.c.l.b16 %v772
    %v3676 = vunpack.c.h.b16 %v772
    %v3677 = vunpack.c.l.b16 %v773
    %v3678 = vunpack.c.h.b16 %v773
    %v3679 = vunpack.c.l.b16 %v774
    %v3680 = vunpack.c.h.b16 %v774
    %v3681 = vunpack.c.l.b16 %v775
    %v3682 = vunpack.c.h.b16 %v775
    %v3683 = vunpack.c.l.b16 %v776
    %v3684 = vunpack.c.h.b16 %v776
    %v3685 = vunpack.c.l.b16 %v777
    %v3686 = vunpack.c.h.b16 %v777
    %v3687 = vunpack.c.l.b16 %v778
    %v3688 = vunpack.c.h.b16 %v778
    %v3689 = vunpack.c.l.b16 %v779
    %v3690 = vunpack.c.h.b16 %v779
    %v3691 = vunpack.c.l.b16 %v780
    %v3692 = vunpack.c.h.b16 %v780
    %v3693 = vunpack.c.l.b16 %v781
    %v3694 = vunpack.c.h.b16 %v781
    %v3695 = vunpack.c.l.b16 %v782
    %v3696 = vunpack.c.h.b16 %v782
    %v3697 = vunpack.c.l.b16 %v783
    %v3698 = vunpack.c.h.b16 %v783
    %v3699 = vunpack.c.l.b16 %v784
    %v3700 = vunpack.c.h.b16 %v784
    %v3701 = vunpack.c.l.b16 %v785
    %v3702 = vunpack.c.h.b16 %v785
    %v3703 = vunpack.c.l.b16 %v786
    %v3704 = vunpack.c.h.b16 %v786
    %v3705 = vunpack.c.l.b16 %v787
    %v3706 = vunpack.c.h.b16 %v787
    %v3707 = vunpack.c.l.b16 %v788
    %v3708 = vunpack.c.h.b16 %v788
    %v3709 = vunpack.c.l.b16 %v789
    %v3710 = vunpack.c.h.b16 %v789
    %v3711 = vunpack.c.l.b16 %v790
    %v3712 = vunpack.c.h.b16 %v790
    %v3713 = vunpack.c.l.b16 %v791
    %v3714 = vunpack.c.h.b16 %v791
    %v3715 = vunpack.c.l.b16 %v792
    %v3716 = vunpack.c.h.b16 %v792
    %v3717 = vunpack.c.l.b16 %v793
    %v3718 = vunpack.c.h.b16 %v793
    %v3719 = vunpack.c.l.b16 %v794
    %v3720 = vunpack.c.h.b16 %v794
    %v3721 = vunpack.c.l.b16 %v795
    %v3722 = vunpack.c.h.b16 %v795
    %v3723 = vunpack.c.l.b16 %v796
    %v3724 = vunpack.c.h.b16 %v796
    %v3725 = vunpack.c.l.b16 %v797
    %v3726 = vunpack.c.h.b16 %v797
    %v3727 = vunpack.c.l.b16 %v798
    %v3728 = vunpack.c.h.b16 %v798
    %v3729 = vunpack.c.l.b16 %v799
    %v3730 = vunpack.c.h.b16 %v799
    %v3731 = vunpack.c.l.b16 %v800
    %v3732 = vunpack.c.h.b16 %v800
    %v3733 = vunpack.c.l.b16 %v801
    %v3734 = vunpack.c.h.b16 %v801
    %v3735 = vunpack.c.l.b16 %v802
    %v3736 = vunpack.c.h.b16 %v802
    %v3737 = vunpack.c.l.b16 %v803
    %v3738 = vunpack.c.h.b16 %v803
    %v3739 = vunpack.c.l.b16 %v804
    %v3740 = vunpack.c.h.b16 %v804
    %v3741 = vunpack.c.l.b16 %v805
    %v3742 = vunpack.c.h.b16 %v805
    %v3743 = vunpack.c.l.b16 %v806
    %v3744 = vunpack.c.h.b16 %v806
    %v3745 = vunpack.c.l.b16 %v807
    %v3746 = vunpack.c.h.b16 %v807
    %v3747 = vunpack.c.l.b16 %v808
    %v3748 = vunpack.c.h.b16 %v808
    %v3749 = vunpack.c.l.b16 %v809
    %v3750 = vunpack.c.h.b16 %v809
    %v3751 = vunpack.c.l.b16 %v810
    %v3752 = vunpack.c.h.b16 %v810
    %v3753 = vunpack.c.l.b16 %v811
    %v3754 = vunpack.c.h.b16 %v811
    %v3755 = vunpack.c.l.b16 %v812
    %v3756 = vunpack.c.h.b16 %v812
    %v3757 = vunpack.c.l.b16 %v813
    %v3758 = vunpack.c.h.b16 %v813
    %v3759 = vunpack.c.l.b16 %v814
    %v3760 = vunpack.c.h.b16 %v814
    %v3761 = vunpack.c.l.b16 %v815
    %v3762 = vunpack.c.h.b16 %v815
    %v3763 = vunpack.c.l.b16 %v816
    %v3764 = vunpack.c.h.b16 %v816
    %v3765 = vunpack.c.l.b16 %v817
    %v3766 = vunpack.c.h.b16 %v817
    %v3767 = vunpack.c.l.b16 %v818
    %v3768 = vunpack.c.h.b16 %v818
    %v3769 = vunpack.c.l.b16 %v819
    %v3770 = vunpack.c.h.b16 %v819
    %v3771 = vunpack.c.l.b16 %v820
    %v3772 = vunpack.c.h.b16 %v820
    %v3773 = vunpack.c.l.b16 %v821
    %v3774 = vunpack.c.h.b16 %v821
    %v3775 = vunpack.c.l.b16 %v822
    %v3776 = vunpack.c.h.b16 %v822
    %v3777 = vunpack.c.l.b16 %v823
    %v3778 = vunpack.c.h.b16 %v823
    %v3779 = vunpack.c.l.b16 %v824
    %v3780 = vunpack.c.h.b16 %v824
    %v3781 = vunpack.c.l.b16 %v825
    %v3782 = vunpack.c.h.b16 %v825
    %v3783 = vunpack.c.l.b16 %v826
    %v3784 = vunpack.c.h.b16 %v826
    %v3785 = vunpack.c.l.b16 %v827
    %v3786 = vunpack.c.h.b16 %v827
    %v3787 = vunpack.c.l.b16 %v828
    %v3788 = vunpack.c.h.b16 %v828
    %v3789 = vunpack.c.l.b16 %v829
    %v3790 = vunpack.c.h.b16 %v829
    %v3791 = vunpack.c.l.b16 %v830
    %v3792 = vunpack.c.h.b16 %v830
    %v3793 = vunpack.c.l.b16 %v831
    %v3794 = vunpack.c.h.b16 %v831
    %v3795 = vunpack.c.l.b16 %v832
    %v3796 = vunpack.c.h.b16 %v832
    %v3797 = vunpack.c.l.b16 %v833
    %v3798 = vunpack.c.h.b16 %v833
    %v3799 = vunpack.c.l.b16 %v834
    %v3800 = vunpack.c.h.b16 %v834
    %v3801 = vunpack.c.l.b16 %v835
    %v3802 = vunpack.c.h.b16 %v835
    %v3803 = vunpack.c.l.b16 %v836
    %v3804 = vunpack.c.h.b16 %v836
    %v3805 = vunpack.c.l.b16 %v837
    %v3806 = vunpack.c.h.b16 %v837
    %v3807 = vunpack.c.l.b16 %v838
    %v3808 = vunpack.c.h.b16 %v838
    %v3809 = vunpack.c.l.b16 %v839
    %v3810 = vunpack.c.h.b16 %v839
    %v3811 = vunpack.c.l.b16 %v840
    %v3812 = vunpack.c.h.b16 %v840
    %v3813 = vunpack.c.l.b16 %v841
    %v3814 = vunpack.c.h.b16 %v841
    %v3815 = vunpack.c.l.b16 %v842
    %v3816 = vunpack.c.h.b16 %v842
    %v3817 = vunpack.c.l.b16 %v843
    %v3818 = vunpack.c.h.b16 %v843
    %v3819 = vunpack.c.l.b16 %v844
    %v3820 = vunpack.c.h.b16 %v844
    %v3821 = vunpack.c.l.b16 %v845
    %v3822 = vunpack.c.h.b16 %v845
    %v3823 = vunpack.c.l.b16 %v846
    %v3824 = vunpack.c.h.b16 %v846
    %v3825 = vunpack.c.l.b16 %v847
    %v3826 = vunpack.c.h.b16 %v847
    %v3827 = vunpack.c.l.b16 %v848
    %v3828 = vunpack.c.h.b16 %v848
    %v3829 = vunpack.c.l.b16 %v849
    %v3830 = vunpack.c.h.b16 %v849
    %v3831 = vunpack.c.l.b16 %v850
    %v3832 = vunpack.c.h.b16 %v850
    %v3833 = vunpack.c.l.b16 %v851
    %v3834 = vunpack.c.h.b16 %v851
    %v3835 = vunpack.c.l.b16 %v852
    %v3836 = vunpack.c.h.b16 %v852
    %v3837 = vunpack.c.l.b16 %v853
    %v3838 = vunpack.c.h.b16 %v853
    %v3839 = vunpack.c.l.b16 %v854
    %v3840 = vunpack.c.h.b16 %v854
    %v3841 = vunpack.c.l.b16 %v855
    %v3842 = vunpack.c.h.b16 %v855
    %v3843 = vunpack.c.l.b16 %v856
    %v3844 = vunpack.c.h.b16 %v856
    %v3845 = vunpack.c.l.b16 %v857
    %v3846 = vunpack.c.h.b16 %v857
    %v3847 = vunpack.c.l.b16 %v858
    %v3848 = vunpack.c.h.b16 %v858
    %v3849 = vunpack.c.l.b16 %v859
    %v3850 = vunpack.c.h.b16 %v859
    %v3851 = vunpack.c.l.b16 %v860
    %v3852 = vunpack.c.h.b16 %v860
    %v3853 = vunpack.c.l.b16 %v861
    %v3854 = vunpack.c.h.b16 %v861
    %v3855 = vunpack.c.l.b16 %v862
    %v3856 = vunpack.c.h.b16 %v862
    %v3857 = vunpack.c.l.b16 %v863
    %v3858 = vunpack.c.h.b16 %v863
    %v3859 = vunpack.c.l.b16 %v864
    %v3860 = vunpack.c.h.b16 %v864
    %v3861 = vunpack.c.l.b16 %v865
    %v3862 = vunpack.c.h.b16 %v865
    %v3863 = vunpack.c.l.b16 %v866
    %v3864 = vunpack.c.h.b16 %v866
    %v3865 = vunpack.c.l.b16 %v867
    %v3866 = vunpack.c.h.b16 %v867
    %v3867 = vunpack.c.l.b16 %v868
    %v3868 = vunpack.c.h.b16 %v868
    %v3869 = vunpack.c.l.b16 %v869
    %v3870 = vunpack.c.h.b16 %v869
    %v3871 = vunpack.c.l.b16 %v870
    %v3872 = vunpack.c.h.b16 %v870
    %v3873 = vunpack.c.l.b16 %v871
    %v3874 = vunpack.c.h.b16 %v871
    %v3875 = vunpack.c.l.b16 %v872
    %v3876 = vunpack.c.h.b16 %v872
    %v3877 = vunpack.c.l.b16 %v873
    %v3878 = vunpack.c.h.b16 %v873
    %v3879 = vunpack.c.l.b16 %v874
    %v3880 = vunpack.c.h.b16 %v874
    %v3881 = vunpack.c.l.b16 %v875
    %v3882 = vunpack.c.h.b16 %v875
    %v3883 = vunpack.c.l.b16 %v876
    %v3884 = vunpack.c.h.b16 %v876
    %v3885 = vunpack.c.l.b16 %v877
    %v3886 = vunpack.c.h.b16 %v877
    %v3887 = vunpack.c.l.b16 %v878
    %v3888 = vunpack.c.h.b16 %v878
    %v3889 = vunpack.c.l.b16 %v879
    %v3890 = vunpack.c.h.b16 %v879
    %v3891 = vunpack.c.l.b16 %v880
    %v3892 = vunpack.c.h.b16 %v880
    %v3893 = vunpack.c.l.b16 %v881
    %v3894 = vunpack.c.h.b16 %v881
    %v3895 = vunpack.c.l.b16 %v882
    %v3896 = vunpack.c.h.b16 %v882
    %v3897 = vunpack.c.l.b16 %v883
    %v3898 = vunpack.c.h.b16 %v883
    %v3899 = vunpack.c.l.b16 %v884
    %v3900 = vunpack.c.h.b16 %v884
    %v3901 = vunpack.c.l.b16 %v885
    %v3902 = vunpack.c.h.b16 %v885
    %v3903 = vunpack.c.l.b16 %v886
    %v3904 = vunpack.c.h.b16 %v886
    %v3905 = vunpack.c.l.b16 %v887
    %v3906 = vunpack.c.h.b16 %v887
    %v3907 = vunpack.c.l.b16 %v888
    %v3908 = vunpack.c.h.b16 %v888
    %v3909 = vunpack.c.l.b16 %v889
    %v3910 = vunpack.c.h.b16 %v889
    %v3911 = vunpack.c.l.b16 %v890
    %v3912 = vunpack.c.h.b16 %v890
    %v3913 = vunpack.c.l.b16 %v891
    %v3914 = vunpack.c.h.b16 %v891
    %v3915 = vunpack.c.l.b16 %v892
    %v3916 = vunpack.c.h.b16 %v892
    %v3917 = vunpack.c.l.b16 %v893
    %v3918 = vunpack.c.h.b16 %v893
    %v3919 = vunpack.c.l.b16 %v894
    %v3920 = vunpack.c.h.b16 %v894
    %v3921 = vunpack.c.l.b16 %v895
    %v3922 = vunpack.c.h.b16 %v895
    %v3923 = vunpack.c.l.b16 %v896
    %v3924 = vunpack.c.h.b16 %v896
    %v3925 = vunpack.c.l.b16 %v897
    %v3926 = vunpack.c.h.b16 %v897
    %v3927 = vunpack.c.l.b16 %v898
    %v3928 = vunpack.c.h.b16 %v898
    %v3929 = vunpack.c.l.b16 %v899
    %v3930 = vunpack.c.h.b16 %v899
    %v3931 = vunpack.c.l.b16 %v900
    %v3932 = vunpack.c.h.b16 %v900
    %v3933 = vunpack.c.l.b16 %v901
    %v3934 = vunpack.c.h.b16 %v901
    %v3935 = vunpack.c.l.b16 %v902
    %v3936 = vunpack.c.h.b16 %v902
    %v3937 = vunpack.c.l.b16 %v903
    %v3938 = vunpack.c.h.b16 %v903
    %v3939 = vunpack.c.l.b16 %v904
    %v3940 = vunpack.c.h.b16 %v904
    %v3941 = vunpack.c.l.b16 %v905
    %v3942 = vunpack.c.h.b16 %v905
    %v3943 = vunpack.c.l.b16 %v906
    %v3944 = vunpack.c.h.b16 %v906
    %v3945 = vunpack.c.l.b16 %v907
    %v3946 = vunpack.c.h.b16 %v907
    %v3947 = vunpack.c.l.b16 %v908
    %v3948 = vunpack.c.h.b16 %v908
    %v3949 = vunpack.c.l.b16 %v909
    %v3950 = vunpack.c.h.b16 %v909
    %v3951 = vunpack.c.l.b16 %v910
    %v3952 = vunpack.c.h.b16 %v910
    %v3953 = vunpack.c.l.b16 %v911
    %v3954 = vunpack.c.h.b16 %v911
    %v3955 = vunpack.c.l.b16 %v912
    %v3956 = vunpack.c.h.b16 %v912
    %v3957 = vunpack.c.l.b16 %v913
    %v3958 = vunpack.c.h.b16 %v913
    %v3959 = vunpack.c.l.b16 %v914
    %v3960 = vunpack.c.h.b16 %v914
    %v3961 = vunpack.c.l.b16 %v915
    %v3962 = vunpack.c.h.b16 %v915
    %v3963 = vunpack.c.l.b16 %v916
    %v3964 = vunpack.c.h.b16 %v916
    %v3965 = vunpack.c.l.b16 %v917
    %v3966 = vunpack.c.h.b16 %v917
    %v3967 = vunpack.c.l.b16 %v918
    %v3968 = vunpack.c.h.b16 %v918
    %v3969 = vunpack.c.l.b16 %v919
    %v3970 = vunpack.c.h.b16 %v919
    %v3971 = vunpack.c.l.b16 %v920
    %v3972 = vunpack.c.h.b16 %v920
    %v3973 = vunpack.c.l.b16 %v921
    %v3974 = vunpack.c.h.b16 %v921
    %v3975 = vunpack.c.l.b16 %v922
    %v3976 = vunpack.c.h.b16 %v922
    %v3977 = vunpack.c.l.b16 %v923
    %v3978 = vunpack.c.h.b16 %v923
    %v3979 = vunpack.c.l.b16 %v924
    %v3980 = vunpack.c.h.b16 %v924
    %v3981 = vunpack.c.l.b16 %v925
    %v3982 = vunpack.c.h.b16 %v925
    %v3983 = vunpack.c.l.b16 %v926
    %v3984 = vunpack.c.h.b16 %v926
    %v3985 = vunpack.c.l.b16 %v927
    %v3986 = vunpack.c.h.b16 %v927
    %v3987 = vunpack.c.l.b16 %v928
    %v3988 = vunpack.c.h.b16 %v928
    %v3989 = vunpack.c.l.b16 %v929
    %v3990 = vunpack.c.h.b16 %v929
    %v3991 = vunpack.c.l.b16 %v930
    %v3992 = vunpack.c.h.b16 %v930
    %v3993 = vunpack.c.l.b16 %v931
    %v3994 = vunpack.c.h.b16 %v931
    %v3995 = vunpack.c.l.b16 %v932
    %v3996 = vunpack.c.h.b16 %v932
    %v3997 = vunpack.c.l.b16 %v933
    %v3998 = vunpack.c.h.b16 %v933
    %v3999 = vunpack.c.l.b16 %v934
    %v4000 = vunpack.c.h.b16 %v934
    %v4001 = vunpack.c.l.b16 %v935
    %v4002 = vunpack.c.h.b16 %v935
    %v4003 = vunpack.c.l.b16 %v936
    %v4004 = vunpack.c.h.b16 %v936
    %v4005 = vunpack.c.l.b16 %v937
    %v4006 = vunpack.c.h.b16 %v937
    %v4007 = vunpack.c.l.b16 %v938
    %v4008 = vunpack.c.h.b16 %v938
    %v4009 = vunpack.c.l.b16 %v939
    %v4010 = vunpack.c.h.b16 %v939
    %v4011 = vunpack.c.l.b16 %v940
    %v4012 = vunpack.c.h.b16 %v940
    %v4013 = vunpack.c.l.b16 %v941
    %v4014 = vunpack.c.h.b16 %v941
    %v4015 = vunpack.c.l.b16 %v942
    %v4016 = vunpack.c.h.b16 %v942
    %v4017 = vunpack.c.l.b16 %v943
    %v4018 = vunpack.c.h.b16 %v943
    %v4019 = vunpack.c.l.b16 %v944
    %v4020 = vunpack.c.h.b16 %v944
    %v4021 = vunpack.c.l.b16 %v945
    %v4022 = vunpack.c.h.b16 %v945
    %v4023 = vunpack.c.l.b16 %v946
    %v4024 = vunpack.c.h.b16 %v946
    %v4025 = vunpack.c.l.b16 %v947
    %v4026 = vunpack.c.h.b16 %v947
    %v4027 = vunpack.c.l.b16 %v948
    %v4028 = vunpack.c.h.b16 %v948
    %v4029 = vunpack.c.l.b16 %v949
    %v4030 = vunpack.c.h.b16 %v949
    %v4031 = vunpack.c.l.b16 %v950
    %v4032 = vunpack.c.h.b16 %v950
    %v4033 = vunpack.c.l.b16 %v951
    %v4034 = vunpack.c.h.b16 %v951
    %v4035 = vunpack.c.l.b16 %v952
    %v4036 = vunpack.c.h.b16 %v952
    %v4037 = vunpack.c.l.b16 %v953
    %v4038 = vunpack.c.h.b16 %v953
    %v4039 = vunpack.c.l.b16 %v954
    %v4040 = vunpack.c.h.b16 %v954
    %v4041 = vunpack.c.l.b16 %v955
    %v4042 = vunpack.c.h.b16 %v955
    %v4043 = vunpack.c.l.b16 %v956
    %v4044 = vunpack.c.h.b16 %v956
    %v4045 = vunpack.c.l.b16 %v957
    %v4046 = vunpack.c.h.b16 %v957
    %v4047 = vunpack.c.l.b16 %v958
    %v4048 = vunpack.c.h.b16 %v958
    %v4049 = vunpack.c.l.b16 %v959
    %v4050 = vunpack.c.h.b16 %v959
    %v4051 = vunpack.c.l.b16 %v960
    %v4052 = vunpack.c.h.b16 %v960
    %v4053 = vunpack.c.l.b16 %v961
    %v4054 = vunpack.c.h.b16 %v961
    %v4055 = vunpack.c.l.b16 %v962
    %v4056 = vunpack.c.h.b16 %v962
    %v4057 = vunpack.c.l.b16 %v963
    %v4058 = vunpack.c.h.b16 %v963
    %v4059 = vunpack.c.l.b16 %v964
    %v4060 = vunpack.c.h.b16 %v964
    %v4061 = vunpack.c.l.b16 %v965
    %v4062 = vunpack.c.h.b16 %v965
    %v4063 = vunpack.c.l.b16 %v966
    %v4064 = vunpack.c.h.b16 %v966
    %v4065 = vunpack.c.l.b16 %v967
    %v4066 = vunpack.c.h.b16 %v967
    %v4067 = vunpack.c.l.b16 %v968
    %v4068 = vunpack.c.h.b16 %v968
    %v4069 = vunpack.c.l.b16 %v969
    %v4070 = vunpack.c.h.b16 %v969
    %v4071 = vunpack.c.l.b16 %v970
    %v4072 = vunpack.c.h.b16 %v970
    %v4073 = vunpack.c.l.b16 %v971
    %v4074 = vunpack.c.h.b16 %v971
    %v4075 = vunpack.c.l.b16 %v972
    %v4076 = vunpack.c.h.b16 %v972
    %v4077 = vunpack.c.l.b16 %v973
    %v4078 = vunpack.c.h.b16 %v973
    %v4079 = vunpack.c.l.b16 %v974
    %v4080 = vunpack.c.h.b16 %v974
    %v4081 = vunpack.c.l.b16 %v975
    %v4082 = vunpack.c.h.b16 %v975
    %v4083 = vunpack.c.l.b16 %v976
    %v4084 = vunpack.c.h.b16 %v976
    %v4085 = vunpack.c.l.b16 %v977
    %v4086 = vunpack.c.h.b16 %v977
    %v4087 = vunpack.c.l.b16 %v978
    %v4088 = vunpack.c.h.b16 %v978
    %v4089 = vunpack.c.l.b16 %v979
    %v4090 = vunpack.c.h.b16 %v979
    %v4091 = vunpack.c.l.b16 %v980
    %v4092 = vunpack.c.h.b16 %v980
    %v4093 = vunpack.c.l.b16 %v981
    %v4094 = vunpack.c.h.b16 %v981
    %v4095 = vunpack.c.l.b16 %v982
    %v4096 = vunpack.c.h.b16 %v982
    %v4097 = vunpack.c.l.b16 %v983
    %v4098 = vunpack.c.h.b16 %v983
    %v4099 = vunpack.c.l.b16 %v984
    %v4100 = vunpack.c.h.b16 %v984
    %v4101 = vunpack.c.l.b16 %v985
    %v4102 = vunpack.c.h.b16 %v985
    %v4103 = vunpack.c.l.b16 %v986
    %v4104 = vunpack.c.h.b16 %v986
    %v4105 = vunpack.c.l.b16 %v987
    %v4106 = vunpack.c.h.b16 %v987
    %v4107 = vunpack.c.l.b16 %v988
    %v4108 = vunpack.c.h.b16 %v988
    %v4109 = vunpack.c.l.b16 %v989
    %v4110 = vunpack.c.h.b16 %v989
    %v4111 = vunpack.c.l.b16 %v990
    %v4112 = vunpack.c.h.b16 %v990
    %v4113 = vunpack.c.l.b16 %v991
    %v4114 = vunpack.c.h.b16 %v991
    %v4115 = vunpack.c.l.b16 %v992
    %v4116 = vunpack.c.h.b16 %v992
    %v4117 = vunpack.c.l.b16 %v993
    %v4118 = vunpack.c.h.b16 %v993
    %v4119 = vunpack.c.l.b16 %v994
    %v4120 = vunpack.c.h.b16 %v994
    %v4121 = vunpack.c.l.b16 %v995
    %v4122 = vunpack.c.h.b16 %v995
    %v4123 = vunpack.c.l.b16 %v996
    %v4124 = vunpack.c.h.b16 %v996
    %v4125 = vunpack.c.l.b16 %v997
    %v4126 = vunpack.c.h.b16 %v997
    %v4127 = vunpack.c.l.b16 %v998
    %v4128 = vunpack.c.h.b16 %v998
    %v4129 = vunpack.c.l.b16 %v999
    %v4130 = vunpack.c.h.b16 %v999
    %v4131 = vunpack.c.l.b16 %v1000
    %v4132 = vunpack.c.h.b16 %v1000
    %v4133 = vunpack.c.l.b16 %v1001
    %v4134 = vunpack.c.h.b16 %v1001
    %v4135 = vunpack.c.l.b16 %v1002
    %v4136 = vunpack.c.h.b16 %v1002
    %v4137 = vunpack.c.l.b16 %v1003
    %v4138 = vunpack.c.h.b16 %v1003
    %v4139 = vunpack.c.l.b16 %v1004
    %v4140 = vunpack.c.h.b16 %v1004
    %v4141 = vunpack.c.l.b16 %v1005
    %v4142 = vunpack.c.h.b16 %v1005
    %v4143 = vunpack.c.l.b16 %v1006
    %v4144 = vunpack.c.h.b16 %v1006
    %v4145 = vunpack.c.l.b16 %v1007
    %v4146 = vunpack.c.h.b16 %v1007
    %v4147 = vunpack.c.l.b16 %v1008
    %v4148 = vunpack.c.h.b16 %v1008
    %v4149 = vunpack.c.l.b16 %v1009
    %v4150 = vunpack.c.h.b16 %v1009
    %v4151 = vunpack.c.l.b16 %v1010
    %v4152 = vunpack.c.h.b16 %v1010
    %v4153 = vunpack.c.l.b16 %v1011
    %v4154 = vunpack.c.h.b16 %v1011
    %v4155 = vunpack.c.l.b16 %v1012
    %v4156 = vunpack.c.h.b16 %v1012
    %v4157 = vunpack.c.l.b16 %v1013
    %v4158 = vunpack.c.h.b16 %v1013
    %v4159 = vunpack.c.l.b16 %v1014
    %v4160 = vunpack.c.h.b16 %v1014
    %v4161 = vunpack.c.l.b16 %v1015
    %v4162 = vunpack.c.h.b16 %v1015
    %v4163 = vunpack.c.l.b16 %v1016
    %v4164 = vunpack.c.h.b16 %v1016
    %v4165 = vunpack.c.l.b16 %v1017
    %v4166 = vunpack.c.h.b16 %v1017
    %v4167 = vunpack.c.l.b16 %v1018
    %v4168 = vunpack.c.h.b16 %v1018
    %v4169 = vunpack.c.l.b16 %v1019
    %v4170 = vunpack.c.h.b16 %v1019
    %v4171 = vunpack.c.l.b16 %v1020
    %v4172 = vunpack.c.h.b16 %v1020
    %v4173 = vunpack.c.l.b16 %v1021
    %v4174 = vunpack.c.h.b16 %v1021
    %v4175 = vunpack.c.l.b16 %v1022
    %v4176 = vunpack.c.h.b16 %v1022
    %v4177 = vunpack.c.l.b16 %v1023
    %v4178 = vunpack.c.h.b16 %v1023
    %v4179 = vunpack.c.l.b16 %v1024
    %v4180 = vunpack.c.h.b16 %v1024
    %v4181 = vunpack.c.l.b16 %v1025
    %v4182 = vunpack.c.h.b16 %v1025
    %v4183 = vunpack.c.l.b16 %v1026
    %v4184 = vunpack.c.h.b16 %v1026
    %v4185 = vunpack.c.l.b16 %v1027
    %v4186 = vunpack.c.h.b16 %v1027
    %v4187 = vunpack.c.l.b16 %v1028
    %v4188 = vunpack.c.h.b16 %v1028
    %v4189 = vunpack.c.l.b16 %v1029
    %v4190 = vunpack.c.h.b16 %v1029
    %v4191 = vunpack.c.l.b16 %v1030
    %v4192 = vunpack.c.h.b16 %v1030
    %v4193 = vunpack.c.l.b16 %v1031
    %v4194 = vunpack.c.h.b16 %v1031
    %v4195 = vunpack.c.l.b16 %v1032
    %v4196 = vunpack.c.h.b16 %v1032
    %v4197 = vunpack.c.l.b16 %v1033
    %v4198 = vunpack.c.h.b16 %v1033
    %v4199 = vunpack.c.l.b16 %v1034
    %v4200 = vunpack.c.h.b16 %v1034
    %v4201 = vunpack.c.l.b16 %v1035
    %v4202 = vunpack.c.h.b16 %v1035
    %v4203 = vunpack.c.l.b16 %v1036
    %v4204 = vunpack.c.h.b16 %v1036
    %v4205 = vunpack.c.l.b16 %v1037
    %v4206 = vunpack.c.h.b16 %v1037
    %v4207 = vunpack.c.l.b16 %v1038
    %v4208 = vunpack.c.h.b16 %v1038
    %v4209 = vunpack.c.l.b16 %v1039
    %v4210 = vunpack.c.h.b16 %v1039
    %v4211 = vunpack.c.l.b16 %v1040
    %v4212 = vunpack.c.h.b16 %v1040
    %v4213 = vunpack.c.l.b16 %v1041
    %v4214 = vunpack.c.h.b16 %v1041
    %v4215 = vunpack.c.l.b16 %v1042
    %v4216 = vunpack.c.h.b16 %v1042
    %v4217 = vunpack.c.l.b16 %v1043
    %v4218 = vunpack.c.h.b16 %v1043
    %v4219 = vunpack.c.l.b16 %v1044
    %v4220 = vunpack.c.h.b16 %v1044
    %v4221 = vunpack.c.l.b16 %v1045
    %v4222 = vunpack.c.h.b16 %v1045
    %v4223 = vunpack.c.l.b16 %v1046
    %v4224 = vunpack.c.h.b16 %v1046
    %v4225 = vunpack.c.l.b16 %v1047
    %v4226 = vunpack.c.h.b16 %v1047
    %v4227 = vunpack.c.l.b16 %v1048
    %v4228 = vunpack.c.h.b16 %v1048
    %v4229 = vunpack.c.l.b16 %v1049
    %v4230 = vunpack.c.h.b16 %v1049
    %v4231 = vunpack.c.l.b16 %v1050
    %v4232 = vunpack.c.h.b16 %v1050
    %v4233 = vunpack.c.l.b16 %v1051
    %v4234 = vunpack.c.h.b16 %v1051
    %v4235 = vunpack.c.l.b16 %v1052
    %v4236 = vunpack.c.h.b16 %v1052
    %v4237 = vunpack.c.l.b16 %v1053
    %v4238 = vunpack.c.h.b16 %v1053
    %v4239 = vunpack.c.l.b16 %v1054
    %v4240 = vunpack.c.h.b16 %v1054
    %v4241 = vunpack.c.l.b16 %v1055
    %v4242 = vunpack.c.h.b16 %v1055
    %v4243 = vunpack.c.l.b16 %v1056
    %v4244 = vunpack.c.h.b16 %v1056
    %v4245 = vunpack.c.l.b16 %v1057
    %v4246 = vunpack.c.h.b16 %v1057
    %v4247 = vunpack.c.l.b16 %v1058
    %v4248 = vunpack.c.h.b16 %v1058
    %v4249 = vunpack.c.l.b16 %v1059
    %v4250 = vunpack.c.h.b16 %v1059
    %v4251 = vunpack.c.l.b16 %v1060
    %v4252 = vunpack.c.h.b16 %v1060
    %v4253 = vunpack.c.l.b16 %v1061
    %v4254 = vunpack.c.h.b16 %v1061
    %v4255 = vunpack.c.l.b16 %v1062
    %v4256 = vunpack.c.h.b16 %v1062
    %v4257 = vunpack.c.l.b16 %v1063
    %v4258 = vunpack.c.h.b16 %v1063
    %v4259 = vunpack.c.l.b16 %v1064
    %v4260 = vunpack.c.h.b16 %v1064
    %v4261 = vunpack.c.l.b16 %v1065
    %v4262 = vunpack.c.h.b16 %v1065
    %v4263 = vunpack.c.l.b16 %v1066
    %v4264 = vunpack.c.h.b16 %v1066
    %v4265 = vunpack.c.l.b16 %v1067
    %v4266 = vunpack.c.h.b16 %v1067
    %v4267 = vunpack.c.l.b16 %v1068
    %v4268 = vunpack.c.h.b16 %v1068
    %v4269 = vunpack.c.l.b16 %v1069
    %v4270 = vunpack.c.h.b16 %v1069
    %v4271 = vunpack.c.l.b16 %v1070
    %v4272 = vunpack.c.h.b16 %v1070
    %v4273 = vunpack.c.l.b16 %v1071
    %v4274 = vunpack.c.h.b16 %v1071
    %v4275 = vunpack.c.l.b16 %v1072
    %v4276 = vunpack.c.h.b16 %v1072
    %v4277 = vunpack.c.l.b16 %v1073
    %v4278 = vunpack.c.h.b16 %v1073
    %v4279 = vunpack.c.l.b16 %v1074
    %v4280 = vunpack.c.h.b16 %v1074
    %v4281 = vunpack.c.l.b16 %v1075
    %v4282 = vunpack.c.h.b16 %v1075
    %v4283 = vunpack.c.l.b16 %v1076
    %v4284 = vunpack.c.h.b16 %v1076
    %v4285 = vunpack.c.l.b16 %v1077
    %v4286 = vunpack.c.h.b16 %v1077
    %v4287 = vunpack.c.l.b16 %v1078
    %v4288 = vunpack.c.h.b16 %v1078
    %v4289 = vunpack.c.l.b16 %v1079
    %v4290 = vunpack.c.h.b16 %v1079
    %v4291 = vunpack.c.l.b16 %v1080
    %v4292 = vunpack.c.h.b16 %v1080
    %v4293 = vunpack.c.l.b16 %v1081
    %v4294 = vunpack.c.h.b16 %v1081
    %v4295 = vunpack.c.l.b16 %v1082
    %v4296 = vunpack.c.h.b16 %v1082
    %v4297 = vunpack.c.l.b16 %v1083
    %v4298 = vunpack.c.h.b16 %v1083
    %v4299 = vunpack.c.l.b16 %v1084
    %v4300 = vunpack.c.h.b16 %v1084
    %v4301 = vunpack.c.l.b16 %v1085
    %v4302 = vunpack.c.h.b16 %v1085
    %v4303 = vunpack.c.l.b16 %v1086
    %v4304 = vunpack.c.h.b16 %v1086
    %v4305 = vunpack.c.l.b16 %v1087
    %v4306 = vunpack.c.h.b16 %v1087
    %v4307 = vunpack.c.l.b16 %v1088
    %v4308 = vunpack.c.h.b16 %v1088
    %v4309 = vunpack.c.l.b16 %v1089
    %v4310 = vunpack.c.h.b16 %v1089
    %v4311 = vunpack.c.l.b16 %v1090
    %v4312 = vunpack.c.h.b16 %v1090
    %v4313 = vunpack.c.l.b16 %v1091
    %v4314 = vunpack.c.h.b16 %v1091
    %v4315 = vunpack.c.l.b16 %v1092
    %v4316 = vunpack.c.h.b16 %v1092
    %v4317 = vunpack.c.l.b16 %v1093
    %v4318 = vunpack.c.h.b16 %v1093
    %v4319 = vunpack.c.l.b16 %v1094
    %v4320 = vunpack.c.h.b16 %v1094
    %v4321 = vunpack.c.l.b16 %v1095
    %v4322 = vunpack.c.h.b16 %v1095
    %v4323 = vunpack.c.l.b16 %v1096
    %v4324 = vunpack.c.h.b16 %v1096
    %v4325 = vunpack.c.l.b16 %v1097
    %v4326 = vunpack.c.h.b16 %v1097
    %v4327 = vunpack.c.l.b16 %v1098
    %v4328 = vunpack.c.h.b16 %v1098
    %v4329 = vpack.c.b16 %v2289, %v2281
    %v4330 = vpack.c.b16 %v2290, %v2282
    %v4331 = vpack.c.b16 %v2291, %v2283
    %v4332 = vpack.c.b16 %v2292, %v2284
    %v4333 = vpack.c.b16 %v2293, %v2285
    %v4334 = vpack.c.b16 %v2294, %v2286
    %v4335 = vpack.c.b16 %v2295, %v2287
    %v4336 = vpack.c.b16 %v2296, %v2288
    %v4337 = vpack.c.b16 %v2305, %v2297
    %v4338 = vpack.c.b16 %v2306, %v2298
    %v4339 = vpack.c.b16 %v2307, %v2299
    %v4340 = vpack.c.b16 %v2308, %v2300
    %v4341 = vpack.c.b16 %v2309, %v2301
    %v4342 = vpack.c.b16 %v2310, %v2302
    %v4343 = vpack.c.b16 %v2311, %v2303
    %v4344 = vpack.c.b16 %v2312, %v2304
    %v4345 = vpack.c.b16 %v2321, %v2313
    %v4346 = vpack.c.b16 %v2322, %v2314
    %v4347 = vpack.c.b16 %v2323, %v2315
    %v4348 = vpack.c.b16 %v2324, %v2316
    %v4349 = vpack.c.b16 %v2325, %v2317
    %v4350 = vpack.c.b16 %v2326, %v2318
    %v4351 = vpack.c.b16 %v2327, %v2319
    %v4352 = vpack.c.b16 %v2328, %v2320
    %v4353 = vpack.c.b16 %v2337, %v2329
    %v4354 = vpack.c.b16 %v2338, %v2330
    %v4355 = vpack.c.b16 %v2339, %v2331
    %v4356 = vpack.c.b16 %v2340, %v2332
    %v4357 = vpack.c.b16 %v2341, %v2333
    %v4358 = vpack.c.b16 %v2342, %v2334
    %v4359 = vpack.c.b16 %v2343, %v2335
    %v4360 = vpack.c.b16 %v2344, %v2336
    %v4361 = vpack.c.b16 %v2353, %v2345
    %v4362 = vpack.c.b16 %v2354, %v2346
    %v4363 = vpack.c.b16 %v2355, %v2347
    %v4364 = vpack.c.b16 %v2356, %v2348
    %v4365 = vpack.c.b16 %v2357, %v2349
    %v4366 = vpack.c.b16 %v2358, %v2350
    %v4367 = vpack.c.b16 %v2359, %v2351
    %v4368 = vpack.c.b16 %v2360, %v2352
    %v4369 = vpack.c.b16 %v2369, %v2361
    %v4370 = vpack.c.b16 %v2370, %v2362
    %v4371 = vpack.c.b16 %v2371, %v2363
    %v4372 = vpack.c.b16 %v2372, %v2364
    %v4373 = vpack.c.b16 %v2373, %v2365
    %v4374 = vpack.c.b16 %v2374, %v2366
    %v4375 = vpack.c.b16 %v2375, %v2367
    %v4376 = vpack.c.b16 %v2376, %v2368
    %v4377 = vpack.c.b16 %v2385, %v2377
    %v4378 = vpack.c.b16 %v2386, %v2378
    %v4379 = vpack.c.b16 %v2387, %v2379
    %v4380 = vpack.c.b16 %v2388, %v2380
    %v4381 = vpack.c.b16 %v2389, %v2381
    %v4382 = vpack.c.b16 %v2390, %v2382
    %v4383 = vpack.c.b16 %v2391, %v2383
    %v4384 = vpack.c.b16 %v2392, %v2384
    %v4385 = vpack.c.b16 %v2401, %v2393
    %v4386 = vpack.c.b16 %v2402, %v2394
    %v4387 = vpack.c.b16 %v2403, %v2395
    %v4388 = vpack.c.b16 %v2404, %v2396
    %v4389 = vpack.c.b16 %v2405, %v2397
    %v4390 = vpack.c.b16 %v2406, %v2398
    %v4391 = vpack.c.b16 %v2407, %v2399
    %v4392 = vpack.c.b16 %v2408, %v2400
    %v4393 = vpack.c.b16 %v2417, %v2409
    %v4394 = vpack.c.b16 %v2418, %v2410
    %v4395 = vpack.c.b16 %v2419, %v2411
    %v4396 = vpack.c.b16 %v2420, %v2412
    %v4397 = vpack.c.b16 %v2421, %v2413
    %v4398 = vpack.c.b16 %v2422, %v2414
    %v4399 = vpack.c.b16 %v2423, %v2415
    %v4400 = vpack.c.b16 %v2424, %v2416
    %v4401 = vpack.c.b16 %v2433, %v2425
    %v4402 = vpack.c.b16 %v2434, %v2426
    %v4403 = vpack.c.b16 %v2435, %v2427
    %v4404 = vpack.c.b16 %v2436, %v2428
    %v4405 = vpack.c.b16 %v2437, %v2429
    %v4406 = vpack.c.b16 %v2438, %v2430
    %v4407 = vpack.c.b16 %v2439, %v2431
    %v4408 = vpack.c.b16 %v2440, %v2432
    %v4409 = vpack.c.b16 %v2449, %v2441
    %v4410 = vpack.c.b16 %v2450, %v2442
    %v4411 = vpack.c.b16 %v2451, %v2443
    %v4412 = vpack.c.b16 %v2452, %v2444
    %v4413 = vpack.c.b16 %v2453, %v2445
    %v4414 = vpack.c.b16 %v2454, %v2446
    %v4415 = vpack.c.b16 %v2455, %v2447
    %v4416 = vpack.c.b16 %v2456, %v2448
    %v4417 = vpack.c.b16 %v2465, %v2457
    %v4418 = vpack.c.b16 %v2466, %v2458
    %v4419 = vpack.c.b16 %v2467, %v2459
    %v4420 = vpack.c.b16 %v2468, %v2460
    %v4421 = vpack.c.b16 %v2469, %v2461
    %v4422 = vpack.c.b16 %v2470, %v2462
    %v4423 = vpack.c.b16 %v2471, %v2463
    %v4424 = vpack.c.b16 %v2472, %v2464
    %v4425 = vpack.c.b16 %v2481, %v2473
    %v4426 = vpack.c.b16 %v2482, %v2474
    %v4427 = vpack.c.b16 %v2483, %v2475
    %v4428 = vpack.c.b16 %v2484, %v2476
    %v4429 = vpack.c.b16 %v2485, %v2477
    %v4430 = vpack.c.b16 %v2486, %v2478
    %v4431 = vpack.c.b16 %v2487, %v2479
    %v4432 = vpack.c.b16 %v2488, %v2480
    %v4433 = vpack.c.b16 %v2497, %v2489
    %v4434 = vpack.c.b16 %v2498, %v2490
    %v4435 = vpack.c.b16 %v2499, %v2491
    %v4436 = vpack.c.b16 %v2500, %v2492
    %v4437 = vpack.c.b16 %v2501, %v2493
    %v4438 = vpack.c.b16 %v2502, %v2494
    %v4439 = vpack.c.b16 %v2503, %v2495
    %v4440 = vpack.c.b16 %v2504, %v2496
    %v4441 = vpack.c.b16 %v2513, %v2505
    %v4442 = vpack.c.b16 %v2514, %v2506
    %v4443 = vpack.c.b16 %v2515, %v2507
    %v4444 = vpack.c.b16 %v2516, %v2508
    %v4445 = vpack.c.b16 %v2517, %v2509
    %v4446 = vpack.c.b16 %v2518, %v2510
    %v4447 = vpack.c.b16 %v2519, %v2511
    %v4448 = vpack.c.b16 %v2520, %v2512
    %v4449 = vpack.c.b16 %v2529, %v2521
    %v4450 = vpack.c.b16 %v2530, %v2522
    %v4451 = vpack.c.b16 %v2531, %v2523
    %v4452 = vpack.c.b16 %v2532, %v2524
    %v4453 = vpack.c.b16 %v2533, %v2525
    %v4454 = vpack.c.b16 %v2534, %v2526
    %v4455 = vpack.c.b16 %v2535, %v2527
    %v4456 = vpack.c.b16 %v2536, %v2528
    %v4457 = vpack.c.b16 %v2545, %v2537
    %v4458 = vpack.c.b16 %v2546, %v2538
    %v4459 = vpack.c.b16 %v2547, %v2539
    %v4460 = vpack.c.b16 %v2548, %v2540
    %v4461 = vpack.c.b16 %v2549, %v2541
    %v4462 = vpack.c.b16 %v2550, %v2542
    %v4463 = vpack.c.b16 %v2551, %v2543
    %v4464 = vpack.c.b16 %v2552, %v2544
    %v4465 = vpack.c.b16 %v2561, %v2553
    %v4466 = vpack.c.b16 %v2562, %v2554
    %v4467 = vpack.c.b16 %v2563, %v2555
    %v4468 = vpack.c.b16 %v2564, %v2556
    %v4469 = vpack.c.b16 %v2565, %v2557
    %v4470 = vpack.c.b16 %v2566, %v2558
    %v4471 = vpack.c.b16 %v2567, %v2559
    %v4472 = vpack.c.b16 %v2568, %v2560
    %v4473 = vpack.c.b16 %v2577, %v2569
    %v4474 = vpack.c.b16 %v2578, %v2570
    %v4475 = vpack.c.b16 %v2579, %v2571
    %v4476 = vpack.c.b16 %v2580, %v2572
    %v4477 = vpack.c.b16 %v2581, %v2573
    %v4478 = vpack.c.b16 %v2582, %v2574
    %v4479 = vpack.c.b16 %v2583, %v2575
    %v4480 = vpack.c.b16 %v2584, %v2576
    %v4481 = vpack.c.b16 %v2593, %v2585
    %v4482 = vpack.c.b16 %v2594, %v2586
    %v4483 = vpack.c.b16 %v2595, %v2587
    %v4484 = vpack.c.b16 %v2596, %v2588
    %v4485 = vpack.c.b16 %v2597, %v2589
    %v4486 = vpack.c.b16 %v2598, %v2590
    %v4487 = vpack.c.b16 %v2599, %v2591
    %v4488 = vpack.c.b16 %v2600, %v2592
    %v4489 = vpack.c.b16 %v2609, %v2601
    %v4490 = vpack.c.b16 %v2610, %v2602
    %v4491 = vpack.c.b16 %v2611, %v2603
    %v4492 = vpack.c.b16 %v2612, %v2604
    %v4493 = vpack.c.b16 %v2613, %v2605
    %v4494 = vpack.c.b16 %v2614, %v2606
    %v4495 = vpack.c.b16 %v2615, %v2607
    %v4496 = vpack.c.b16 %v2616, %v2608
    %v4497 = vpack.c.b16 %v2625, %v2617
    %v4498 = vpack.c.b16 %v2626, %v2618
    %v4499 = vpack.c.b16 %v2627, %v2619
    %v4500 = vpack.c.b16 %v2628, %v2620
    %v4501 = vpack.c.b16 %v2629, %v2621
    %v4502 = vpack.c.b16 %v2630, %v2622
    %v4503 = vpack.c.b16 %v2631, %v2623
    %v4504 = vpack.c.b16 %v2632, %v2624
    %v4505 = vpack.c.b16 %v2641, %v2633
    %v4506 = vpack.c.b16 %v2642, %v2634
    %v4507 = vpack.c.b16 %v2643, %v2635
    %v4508 = vpack.c.b16 %v2644, %v2636
    %v4509 = vpack.c.b16 %v2645, %v2637
    %v4510 = vpack.c.b16 %v2646, %v2638
    %v4511 = vpack.c.b16 %v2647, %v2639
    %v4512 = vpack.c.b16 %v2648, %v2640
    %v4513 = vpack.c.b16 %v2657, %v2649
    %v4514 = vpack.c.b16 %v2658, %v2650
    %v4515 = vpack.c.b16 %v2659, %v2651
    %v4516 = vpack.c.b16 %v2660, %v2652
    %v4517 = vpack.c.b16 %v2661, %v2653
    %v4518 = vpack.c.b16 %v2662, %v2654
    %v4519 = vpack.c.b16 %v2663, %v2655
    %v4520 = vpack.c.b16 %v2664, %v2656
    %v4521 = vpack.c.b16 %v2673, %v2665
    %v4522 = vpack.c.b16 %v2674, %v2666
    %v4523 = vpack.c.b16 %v2675, %v2667
    %v4524 = vpack.c.b16 %v2676, %v2668
    %v4525 = vpack.c.b16 %v2677, %v2669
    %v4526 = vpack.c.b16 %v2678, %v2670
    %v4527 = vpack.c.b16 %v2679, %v2671
    %v4528 = vpack.c.b16 %v2680, %v2672
    %v4529 = vpack.c.b16 %v2689, %v2681
    %v4530 = vpack.c.b16 %v2690, %v2682
    %v4531 = vpack.c.b16 %v2691, %v2683
    %v4532 = vpack.c.b16 %v2692, %v2684
    %v4533 = vpack.c.b16 %v2693, %v2685
    %v4534 = vpack.c.b16 %v2694, %v2686
    %v4535 = vpack.c.b16 %v2695, %v2687
    %v4536 = vpack.c.b16 %v2696, %v2688
    %v4537 = vpack.c.b16 %v2705, %v2697
    %v4538 = vpack.c.b16 %v2706, %v2698
    %v4539 = vpack.c.b16 %v2707, %v2699
    %v4540 = vpack.c.b16 %v2708, %v2700
    %v4541 = vpack.c.b16 %v2709, %v2701
    %v4542 = vpack.c.b16 %v2710, %v2702
    %v4543 = vpack.c.b16 %v2711, %v2703
    %v4544 = vpack.c.b16 %v2712, %v2704
    %v4545 = vpack.c.b16 %v2721, %v2713
    %v4546 = vpack.c.b16 %v2722, %v2714
    %v4547 = vpack.c.b16 %v2723, %v2715
    %v4548 = vpack.c.b16 %v2724, %v2716
    %v4549 = vpack.c.b16 %v2725, %v2717
    %v4550 = vpack.c.b16 %v2726, %v2718
    %v4551 = vpack.c.b16 %v2727, %v2719
    %v4552 = vpack.c.b16 %v2728, %v2720
    %v4553 = vpack.c.b16 %v2737, %v2729
    %v4554 = vpack.c.b16 %v2738, %v2730
    %v4555 = vpack.c.b16 %v2739, %v2731
    %v4556 = vpack.c.b16 %v2740, %v2732
    %v4557 = vpack.c.b16 %v2741, %v2733
    %v4558 = vpack.c.b16 %v2742, %v2734
    %v4559 = vpack.c.b16 %v2743, %v2735
    %v4560 = vpack.c.b16 %v2744, %v2736
    %v4561 = vpack.c.b16 %v2753, %v2745
    %v4562 = vpack.c.b16 %v2754, %v2746
    %v4563 = vpack.c.b16 %v2755, %v2747
    %v4564 = vpack.c.b16 %v2756, %v2748
    %v4565 = vpack.c.b16 %v2757, %v2749
    %v4566 = vpack.c.b16 %v2758, %v2750
    %v4567 = vpack.c.b16 %v2759, %v2751
    %v4568 = vpack.c.b16 %v2760, %v2752
    %v4569 = vpack.c.b16 %v2769, %v2761
    %v4570 = vpack.c.b16 %v2770, %v2762
    %v4571 = vpack.c.b16 %v2771, %v2763
    %v4572 = vpack.c.b16 %v2772, %v2764
    %v4573 = vpack.c.b16 %v2773, %v2765
    %v4574 = vpack.c.b16 %v2774, %v2766
    %v4575 = vpack.c.b16 %v2775, %v2767
    %v4576 = vpack.c.b16 %v2776, %v2768
    %v4577 = vpack.c.b16 %v2785, %v2777
    %v4578 = vpack.c.b16 %v2786, %v2778
    %v4579 = vpack.c.b16 %v2787, %v2779
    %v4580 = vpack.c.b16 %v2788, %v2780
    %v4581 = vpack.c.b16 %v2789, %v2781
    %v4582 = vpack.c.b16 %v2790, %v2782
    %v4583 = vpack.c.b16 %v2791, %v2783
    %v4584 = vpack.c.b16 %v2792, %v2784
    %v4585 = vpack.c.b16 %v2801, %v2793
    %v4586 = vpack.c.b16 %v2802, %v2794
    %v4587 = vpack.c.b16 %v2803, %v2795
    %v4588 = vpack.c.b16 %v2804, %v2796
    %v4589 = vpack.c.b16 %v2805, %v2797
    %v4590 = vpack.c.b16 %v2806, %v2798
    %v4591 = vpack.c.b16 %v2807, %v2799
    %v4592 = vpack.c.b16 %v2808, %v2800
    %v4593 = vpack.c.b16 %v2817, %v2809
    %v4594 = vpack.c.b16 %v2818, %v2810
    %v4595 = vpack.c.b16 %v2819, %v2811
    %v4596 = vpack.c.b16 %v2820, %v2812
    %v4597 = vpack.c.b16 %v2821, %v2813
    %v4598 = vpack.c.b16 %v2822, %v2814
    %v4599 = vpack.c.b16 %v2823, %v2815
    %v4600 = vpack.c.b16 %v2824, %v2816
    %v4601 = vpack.c.b16 %v2833, %v2825
    %v4602 = vpack.c.b16 %v2834, %v2826
    %v4603 = vpack.c.b16 %v2835, %v2827
    %v4604 = vpack.c.b16 %v2836, %v2828
    %v4605 = vpack.c.b16 %v2837, %v2829
    %v4606 = vpack.c.b16 %v2838, %v2830
    %v4607 = vpack.c.b16 %v2839, %v2831
    %v4608 = vpack.c.b16 %v2840, %v2832
    %v4609 = vpack.c.b16 %v2849, %v2841
    %v4610 = vpack.c.b16 %v2850, %v2842
    %v4611 = vpack.c.b16 %v2851, %v2843
    %v4612 = vpack.c.b16 %v2852, %v2844
    %v4613 = vpack.c.b16 %v2853, %v2845
    %v4614 = vpack.c.b16 %v2854, %v2846
    %v4615 = vpack.c.b16 %v2855, %v2847
    %v4616 = vpack.c.b16 %v2856, %v2848
    %v4617 = vpack.c.b16 %v2865, %v2857
    %v4618 = vpack.c.b16 %v2866, %v2858
    %v4619 = vpack.c.b16 %v2867, %v2859
    %v4620 = vpack.c.b16 %v2868, %v2860
    %v4621 = vpack.c.b16 %v2869, %v2861
    %v4622 = vpack.c.b16 %v2870, %v2862
    %v4623 = vpack.c.b16 %v2871, %v2863
    %v4624 = vpack.c.b16 %v2872, %v2864
    %v4625 = vpack.c.b16 %v2881, %v2873
    %v4626 = vpack.c.b16 %v2882, %v2874
    %v4627 = vpack.c.b16 %v2883, %v2875
    %v4628 = vpack.c.b16 %v2884, %v2876
    %v4629 = vpack.c.b16 %v2885, %v2877
    %v4630 = vpack.c.b16 %v2886, %v2878
    %v4631 = vpack.c.b16 %v2887, %v2879
    %v4632 = vpack.c.b16 %v2888, %v2880
    %v4633 = vpack.c.b16 %v2897, %v2889
    %v4634 = vpack.c.b16 %v2898, %v2890
    %v4635 = vpack.c.b16 %v2899, %v2891
    %v4636 = vpack.c.b16 %v2900, %v2892
    %v4637 = vpack.c.b16 %v2901, %v2893
    %v4638 = vpack.c.b16 %v2902, %v2894
    %v4639 = vpack.c.b16 %v2903, %v2895
    %v4640 = vpack.c.b16 %v2904, %v2896
    %v4641 = vpack.c.b16 %v2913, %v2905
    %v4642 = vpack.c.b16 %v2914, %v2906
    %v4643 = vpack.c.b16 %v2915, %v2907
    %v4644 = vpack.c.b16 %v2916, %v2908
    %v4645 = vpack.c.b16 %v2917, %v2909
    %v4646 = vpack.c.b16 %v2918, %v2910
    %v4647 = vpack.c.b16 %v2919, %v2911
    %v4648 = vpack.c.b16 %v2920, %v2912
    %v4649 = vpack.c.b16 %v2929, %v2921
    %v4650 = vpack.c.b16 %v2930, %v2922
    %v4651 = vpack.c.b16 %v2931, %v2923
    %v4652 = vpack.c.b16 %v2932, %v2924
    %v4653 = vpack.c.b16 %v2933, %v2925
    %v4654 = vpack.c.b16 %v2934, %v2926
    %v4655 = vpack.c.b16 %v2935, %v2927
    %v4656 = vpack.c.b16 %v2936, %v2928
    %v4657 = vpack.c.b16 %v2945, %v2937
    %v4658 = vpack.c.b16 %v2946, %v2938
    %v4659 = vpack.c.b16 %v2947, %v2939
    %v4660 = vpack.c.b16 %v2948, %v2940
    %v4661 = vpack.c.b16 %v2949, %v2941
    %v4662 = vpack.c.b16 %v2950, %v2942
    %v4663 = vpack.c.b16 %v2951, %v2943
    %v4664 = vpack.c.b16 %v2952, %v2944
    %v4665 = vpack.c.b16 %v2961, %v2953
    %v4666 = vpack.c.b16 %v2962, %v2954
    %v4667 = vpack.c.b16 %v2963, %v2955
    %v4668 = vpack.c.b16 %v2964, %v2956
    %v4669 = vpack.c.b16 %v2965, %v2957
    %v4670 = vpack.c.b16 %v2966, %v2958
    %v4671 = vpack.c.b16 %v2967, %v2959
    %v4672 = vpack.c.b16 %v2968, %v2960
    %v4673 = vpack.c.b16 %v2977, %v2969
    %v4674 = vpack.c.b16 %v2978, %v2970
    %v4675 = vpack.c.b16 %v2979, %v2971
    %v4676 = vpack.c.b16 %v2980, %v2972
    %v4677 = vpack.c.b16 %v2981, %v2973
    %v4678 = vpack.c.b16 %v2982, %v2974
    %v4679 = vpack.c.b16 %v2983, %v2975
    %v4680 = vpack.c.b16 %v2984, %v2976
    %v4681 = vpack.c.b16 %v2993, %v2985
    %v4682 = vpack.c.b16 %v2994, %v2986
    %v4683 = vpack.c.b16 %v2995, %v2987
    %v4684 = vpack.c.b16 %v2996, %v2988
    %v4685 = vpack.c.b16 %v2997, %v2989
    %v4686 = vpack.c.b16 %v2998, %v2990
    %v4687 = vpack.c.b16 %v2999, %v2991
    %v4688 = vpack.c.b16 %v3000, %v2992
    %v4689 = vpack.c.b16 %v3009, %v3001
    %v4690 = vpack.c.b16 %v3010, %v3002
    %v4691 = vpack.c.b16 %v3011, %v3003
    %v4692 = vpack.c.b16 %v3012, %v3004
    %v4693 = vpack.c.b16 %v3013, %v3005
    %v4694 = vpack.c.b16 %v3014, %v3006
    %v4695 = vpack.c.b16 %v3015, %v3007
    %v4696 = vpack.c.b16 %v3016, %v3008
    %v4697 = vpack.c.b16 %v3025, %v3017
    %v4698 = vpack.c.b16 %v3026, %v3018
    %v4699 = vpack.c.b16 %v3027, %v3019
    %v4700 = vpack.c.b16 %v3028, %v3020
    %v4701 = vpack.c.b16 %v3029, %v3021
    %v4702 = vpack.c.b16 %v3030, %v3022
    %v4703 = vpack.c.b16 %v3031, %v3023
    %v4704 = vpack.c.b16 %v3032, %v3024
    %v4705 = vpack.c.b16 %v3041, %v3033
    %v4706 = vpack.c.b16 %v3042, %v3034
    %v4707 = vpack.c.b16 %v3043, %v3035
    %v4708 = vpack.c.b16 %v3044, %v3036
    %v4709 = vpack.c.b16 %v3045, %v3037
    %v4710 = vpack.c.b16 %v3046, %v3038
    %v4711 = vpack.c.b16 %v3047, %v3039
    %v4712 = vpack.c.b16 %v3048, %v3040
    %v4713 = vpack.c.b16 %v3057, %v3049
    %v4714 = vpack.c.b16 %v3058, %v3050
    %v4715 = vpack.c.b16 %v3059, %v3051
    %v4716 = vpack.c.b16 %v3060, %v3052
    %v4717 = vpack.c.b16 %v3061, %v3053
    %v4718 = vpack.c.b16 %v3062, %v3054
    %v4719 = vpack.c.b16 %v3063, %v3055
    %v4720 = vpack.c.b16 %v3064, %v3056
    %v4721 = vpack.c.b16 %v3073, %v3065
    %v4722 = vpack.c.b16 %v3074, %v3066
    %v4723 = vpack.c.b16 %v3075, %v3067
    %v4724 = vpack.c.b16 %v3076, %v3068
    %v4725 = vpack.c.b16 %v3077, %v3069
    %v4726 = vpack.c.b16 %v3078, %v3070
    %v4727 = vpack.c.b16 %v3079, %v3071
    %v4728 = vpack.c.b16 %v3080, %v3072
    %v4729 = vpack.c.b16 %v3089, %v3081
    %v4730 = vpack.c.b16 %v3090, %v3082
    %v4731 = vpack.c.b16 %v3091, %v3083
    %v4732 = vpack.c.b16 %v3092, %v3084
    %v4733 = vpack.c.b16 %v3093, %v3085
    %v4734 = vpack.c.b16 %v3094, %v3086
    %v4735 = vpack.c.b16 %v3095, %v3087
    %v4736 = vpack.c.b16 %v3096, %v3088
    %v4737 = vpack.c.b16 %v3105, %v3097
    %v4738 = vpack.c.b16 %v3106, %v3098
    %v4739 = vpack.c.b16 %v3107, %v3099
    %v4740 = vpack.c.b16 %v3108, %v3100
    %v4741 = vpack.c.b16 %v3109, %v3101
    %v4742 = vpack.c.b16 %v3110, %v3102
    %v4743 = vpack.c.b16 %v3111, %v3103
    %v4744 = vpack.c.b16 %v3112, %v3104
    %v4745 = vpack.c.b16 %v3121, %v3113
    %v4746 = vpack.c.b16 %v3122, %v3114
    %v4747 = vpack.c.b16 %v3123, %v3115
    %v4748 = vpack.c.b16 %v3124, %v3116
    %v4749 = vpack.c.b16 %v3125, %v3117
    %v4750 = vpack.c.b16 %v3126, %v3118
    %v4751 = vpack.c.b16 %v3127, %v3119
    %v4752 = vpack.c.b16 %v3128, %v3120
    %v4753 = vpack.c.b16 %v3137, %v3129
    %v4754 = vpack.c.b16 %v3138, %v3130
    %v4755 = vpack.c.b16 %v3139, %v3131
    %v4756 = vpack.c.b16 %v3140, %v3132
    %v4757 = vpack.c.b16 %v3141, %v3133
    %v4758 = vpack.c.b16 %v3142, %v3134
    %v4759 = vpack.c.b16 %v3143, %v3135
    %v4760 = vpack.c.b16 %v3144, %v3136
    %v4761 = vpack.c.b16 %v3153, %v3145
    %v4762 = vpack.c.b16 %v3154, %v3146
    %v4763 = vpack.c.b16 %v3155, %v3147
    %v4764 = vpack.c.b16 %v3156, %v3148
    %v4765 = vpack.c.b16 %v3157, %v3149
    %v4766 = vpack.c.b16 %v3158, %v3150
    %v4767 = vpack.c.b16 %v3159, %v3151
    %v4768 = vpack.c.b16 %v3160, %v3152
    %v4769 = vpack.c.b16 %v3169, %v3161
    %v4770 = vpack.c.b16 %v3170, %v3162
    %v4771 = vpack.c.b16 %v3171, %v3163
    %v4772 = vpack.c.b16 %v3172, %v3164
    %v4773 = vpack.c.b16 %v3173, %v3165
    %v4774 = vpack.c.b16 %v3174, %v3166
    %v4775 = vpack.c.b16 %v3175, %v3167
    %v4776 = vpack.c.b16 %v3176, %v3168
    %v4777 = vpack.c.b16 %v3185, %v3177
    %v4778 = vpack.c.b16 %v3186, %v3178
    %v4779 = vpack.c.b16 %v3187, %v3179
    %v4780 = vpack.c.b16 %v3188, %v3180
    %v4781 = vpack.c.b16 %v3189, %v3181
    %v4782 = vpack.c.b16 %v3190, %v3182
    %v4783 = vpack.c.b16 %v3191, %v3183
    %v4784 = vpack.c.b16 %v3192, %v3184
    %v4785 = vpack.c.b16 %v3201, %v3193
    %v4786 = vpack.c.b16 %v3202, %v3194
    %v4787 = vpack.c.b16 %v3203, %v3195
    %v4788 = vpack.c.b16 %v3204, %v3196
    %v4789 = vpack.c.b16 %v3205, %v3197
    %v4790 = vpack.c.b16 %v3206, %v3198
    %v4791 = vpack.c.b16 %v3207, %v3199
    %v4792 = vpack.c.b16 %v3208, %v3200
    %v4793 = vpack.c.b16 %v3217, %v3209
    %v4794 = vpack.c.b16 %v3218, %v3210
    %v4795 = vpack.c.b16 %v3219, %v3211
    %v4796 = vpack.c.b16 %v3220, %v3212
    %v4797 = vpack.c.b16 %v3221, %v3213
    %v4798 = vpack.c.b16 %v3222, %v3214
    %v4799 = vpack.c.b16 %v3223, %v3215
    %v4800 = vpack.c.b16 %v3224, %v3216
    %v4801 = vpack.c.b16 %v3233, %v3225
    %v4802 = vpack.c.b16 %v3234, %v3226
    %v4803 = vpack.c.b16 %v3235, %v3227
    %v4804 = vpack.c.b16 %v3236, %v3228
    %v4805 = vpack.c.b16 %v3237, %v3229
    %v4806 = vpack.c.b16 %v3238, %v3230
    %v4807 = vpack.c.b16 %v3239, %v3231
    %v4808 = vpack.c.b16 %v3240, %v3232
    %v4809 = vpack.c.b16 %v3249, %v3241
    %v4810 = vpack.c.b16 %v3250, %v3242
    %v4811 = vpack.c.b16 %v3251, %v3243
    %v4812 = vpack.c.b16 %v3252, %v3244
    %v4813 = vpack.c.b16 %v3253, %v3245
    %v4814 = vpack.c.b16 %v3254, %v3246
    %v4815 = vpack.c.b16 %v3255, %v3247
    %v4816 = vpack.c.b16 %v3256, %v3248
    %v4817 = vpack.c.b16 %v3265, %v3257
    %v4818 = vpack.c.b16 %v3266, %v3258
    %v4819 = vpack.c.b16 %v3267, %v3259
    %v4820 = vpack.c.b16 %v3268, %v3260
    %v4821 = vpack.c.b16 %v3269, %v3261
    %v4822 = vpack.c.b16 %v3270, %v3262
    %v4823 = vpack.c.b16 %v3271, %v3263
    %v4824 = vpack.c.b16 %v3272, %v3264
    %v4825 = vpack.c.b16 %v3281, %v3273
    %v4826 = vpack.c.b16 %v3282, %v3274
    %v4827 = vpack.c.b16 %v3283, %v3275
    %v4828 = vpack.c.b16 %v3284, %v3276
    %v4829 = vpack.c.b16 %v3285, %v3277
    %v4830 = vpack.c.b16 %v3286, %v3278
    %v4831 = vpack.c.b16 %v3287, %v3279
    %v4832 = vpack.c.b16 %v3288, %v3280
    %v4833 = vpack.c.b16 %v3297, %v3289
    %v4834 = vpack.c.b16 %v3298, %v3290
    %v4835 = vpack.c.b16 %v3299, %v3291
    %v4836 = vpack.c.b16 %v3300, %v3292
    %v4837 = vpack.c.b16 %v3301, %v3293
    %v4838 = vpack.c.b16 %v3302, %v3294
    %v4839 = vpack.c.b16 %v3303, %v3295
    %v4840 = vpack.c.b16 %v3304, %v3296
    %v4841 = vpack.c.b16 %v3313, %v3305
    %v4842 = vpack.c.b16 %v3314, %v3306
    %v4843 = vpack.c.b16 %v3315, %v3307
    %v4844 = vpack.c.b16 %v3316, %v3308
    %v4845 = vpack.c.b16 %v3317, %v3309
    %v4846 = vpack.c.b16 %v3318, %v3310
    %v4847 = vpack.c.b16 %v3319, %v3311
    %v4848 = vpack.c.b16 %v3320, %v3312
    %v4849 = vpack.c.b16 %v3329, %v3321
    %v4850 = vpack.c.b16 %v3330, %v3322
    %v4851 = vpack.c.b16 %v3331, %v3323
    %v4852 = vpack.c.b16 %v3332, %v3324
    %v4853 = vpack.c.b16 %v3333, %v3325
    %v4854 = vpack.c.b16 %v3334, %v3326
    %v4855 = vpack.c.b16 %v3335, %v3327
    %v4856 = vpack.c.b16 %v3336, %v3328
    %v4857 = vpack.c.b16 %v3345, %v3337
    %v4858 = vpack.c.b16 %v3346, %v3338
    %v4859 = vpack.c.b16 %v3347, %v3339
    %v4860 = vpack.c.b16 %v3348, %v3340
    %v4861 = vpack.c.b16 %v3349, %v3341
    %v4862 = vpack.c.b16 %v3350, %v3342
    %v4863 = vpack.c.b16 %v3351, %v3343
    %v4864 = vpack.c.b16 %v3352, %v3344
    %v4865 = vpack.c.b16 %v3361, %v3353
    %v4866 = vpack.c.b16 %v3362, %v3354
    %v4867 = vpack.c.b16 %v3363, %v3355
    %v4868 = vpack.c.b16 %v3364, %v3356
    %v4869 = vpack.c.b16 %v3365, %v3357
    %v4870 = vpack.c.b16 %v3366, %v3358
    %v4871 = vpack.c.b16 %v3367, %v3359
    %v4872 = vpack.c.b16 %v3368, %v3360
    %v4873 = vpack.c.b16 %v3377, %v3369
    %v4874 = vpack.c.b16 %v3378, %v3370
    %v4875 = vpack.c.b16 %v3379, %v3371
    %v4876 = vpack.c.b16 %v3380, %v3372
    %v4877 = vpack.c.b16 %v3381, %v3373
    %v4878 = vpack.c.b16 %v3382, %v3374
    %v4879 = vpack.c.b16 %v3383, %v3375
    %v4880 = vpack.c.b16 %v3384, %v3376
    %v4881 = vpack.c.b16 %v3393, %v3385
    %v4882 = vpack.c.b16 %v3394, %v3386
    %v4883 = vpack.c.b16 %v3395, %v3387
    %v4884 = vpack.c.b16 %v3396, %v3388
    %v4885 = vpack.c.b16 %v3397, %v3389
    %v4886 = vpack.c.b16 %v3398, %v3390
    %v4887 = vpack.c.b16 %v3399, %v3391
    %v4888 = vpack.c.b16 %v3400, %v3392
    %v4889 = vpack.c.b16 %v3409, %v3401
    %v4890 = vpack.c.b16 %v3410, %v3402
    %v4891 = vpack.c.b16 %v3411, %v3403
    %v4892 = vpack.c.b16 %v3412, %v3404
    %v4893 = vpack.c.b16 %v3413, %v3405
    %v4894 = vpack.c.b16 %v3414, %v3406
    %v4895 = vpack.c.b16 %v3415, %v3407
    %v4896 = vpack.c.b16 %v3416, %v3408
    %v4897 = vpack.c.b16 %v3425, %v3417
    %v4898 = vpack.c.b16 %v3426, %v3418
    %v4899 = vpack.c.b16 %v3427, %v3419
    %v4900 = vpack.c.b16 %v3428, %v3420
    %v4901 = vpack.c.b16 %v3429, %v3421
    %v4902 = vpack.c.b16 %v3430, %v3422
    %v4903 = vpack.c.b16 %v3431, %v3423
    %v4904 = vpack.c.b16 %v3432, %v3424
    %v4905 = vpack.c.b16 %v3441, %v3433
    %v4906 = vpack.c.b16 %v3442, %v3434
    %v4907 = vpack.c.b16 %v3443, %v3435
    %v4908 = vpack.c.b16 %v3444, %v3436
    %v4909 = vpack.c.b16 %v3445, %v3437
    %v4910 = vpack.c.b16 %v3446, %v3438
    %v4911 = vpack.c.b16 %v3447, %v3439
    %v4912 = vpack.c.b16 %v3448, %v3440
    %v4913 = vpack.c.b16 %v3457, %v3449
    %v4914 = vpack.c.b16 %v3458, %v3450
    %v4915 = vpack.c.b16 %v3459, %v3451
    %v4916 = vpack.c.b16 %v3460, %v3452
    %v4917 = vpack.c.b16 %v3461, %v3453
    %v4918 = vpack.c.b16 %v3462, %v3454
    %v4919 = vpack.c.b16 %v3463, %v3455
    %v4920 = vpack.c.b16 %v3464, %v3456
    %v4921 = vpack.c.b16 %v3473, %v3465
    %v4922 = vpack.c.b16 %v3474, %v3466
    %v4923 = vpack.c.b16 %v3475, %v3467
    %v4924 = vpack.c.b16 %v3476, %v3468
    %v4925 = vpack.c.b16 %v3477, %v3469
    %v4926 = vpack.c.b16 %v3478, %v3470
    %v4927 = vpack.c.b16 %v3479, %v3471
    %v4928 = vpack.c.b16 %v3480, %v3472
    %v4929 = vpack.c.b16 %v3489, %v3481
    %v4930 = vpack.c.b16 %v3490, %v3482
    %v4931 = vpack.c.b16 %v3491, %v3483
    %v4932 = vpack.c.b16 %v3492, %v3484
    %v4933 = vpack.c.b16 %v3493, %v3485
    %v4934 = vpack.c.b16 %v3494, %v3486
    %v4935 = vpack.c.b16 %v3495, %v3487
    %v4936 = vpack.c.b16 %v3496, %v3488
    %v4937 = vpack.c.b16 %v3505, %v3497
    %v4938 = vpack.c.b16 %v3506, %v3498
    %v4939 = vpack.c.b16 %v3507, %v3499
    %v4940 = vpack.c.b16 %v3508, %v3500
    %v4941 = vpack.c.b16 %v3509, %v3501
    %v4942 = vpack.c.b16 %v3510, %v3502
    %v4943 = vpack.c.b16 %v3511, %v3503
    %v4944 = vpack.c.b16 %v3512, %v3504
    %v4945 = vpack.c.b16 %v3521, %v3513
    %v4946 = vpack.c.b16 %v3522, %v3514
    %v4947 = vpack.c.b16 %v3523, %v3515
    %v4948 = vpack.c.b16 %v3524, %v3516
    %v4949 = vpack.c.b16 %v3525, %v3517
    %v4950 = vpack.c.b16 %v3526, %v3518
    %v4951 = vpack.c.b16 %v3527, %v3519
    %v4952 = vpack.c.b16 %v3528, %v3520
    %v4953 = vpack.c.b16 %v3537, %v3529
    %v4954 = vpack.c.b16 %v3538, %v3530
    %v4955 = vpack.c.b16 %v3539, %v3531
    %v4956 = vpack.c.b16 %v3540, %v3532
    %v4957 = vpack.c.b16 %v3541, %v3533
    %v4958 = vpack.c.b16 %v3542, %v3534
    %v4959 = vpack.c.b16 %v3543, %v3535
    %v4960 = vpack.c.b16 %v3544, %v3536
    %v4961 = vpack.c.b16 %v3553, %v3545
    %v4962 = vpack.c.b16 %v3554, %v3546
    %v4963 = vpack.c.b16 %v3555, %v3547
    %v4964 = vpack.c.b16 %v3556, %v3548
    %v4965 = vpack.c.b16 %v3557, %v3549
    %v4966 = vpack.c.b16 %v3558, %v3550
    %v4967 = vpack.c.b16 %v3559, %v3551
    %v4968 = vpack.c.b16 %v3560, %v3552
    %v4969 = vpack.c.b16 %v3569, %v3561
    %v4970 = vpack.c.b16 %v3570, %v3562
    %v4971 = vpack.c.b16 %v3571, %v3563
    %v4972 = vpack.c.b16 %v3572, %v3564
    %v4973 = vpack.c.b16 %v3573, %v3565
    %v4974 = vpack.c.b16 %v3574, %v3566
    %v4975 = vpack.c.b16 %v3575, %v3567
    %v4976 = vpack.c.b16 %v3576, %v3568
    %v4977 = vpack.c.b16 %v3585, %v3577
    %v4978 = vpack.c.b16 %v3586, %v3578
    %v4979 = vpack.c.b16 %v3587, %v3579
    %v4980 = vpack.c.b16 %v3588, %v3580
    %v4981 = vpack.c.b16 %v3589, %v3581
    %v4982 = vpack.c.b16 %v3590, %v3582
    %v4983 = vpack.c.b16 %v3591, %v3583
    %v4984 = vpack.c.b16 %v3592, %v3584
    %v4985 = vpack.c.b16 %v3601, %v3593
    %v4986 = vpack.c.b16 %v3602, %v3594
    %v4987 = vpack.c.b16 %v3603, %v3595
    %v4988 = vpack.c.b16 %v3604, %v3596
    %v4989 = vpack.c.b16 %v3605, %v3597
    %v4990 = vpack.c.b16 %v3606, %v3598
    %v4991 = vpack.c.b16 %v3607, %v3599
    %v4992 = vpack.c.b16 %v3608, %v3600
    %v4993 = vpack.c.b16 %v3617, %v3609
    %v4994 = vpack.c.b16 %v3618, %v3610
    %v4995 = vpack.c.b16 %v3619, %v3611
    %v4996 = vpack.c.b16 %v3620, %v3612
    %v4997 = vpack.c.b16 %v3621, %v3613
    %v4998 = vpack.c.b16 %v3622, %v3614
    %v4999 = vpack.c.b16 %v3623, %v3615
    %v5000 = vpack.c.b16 %v3624, %v3616
    %v5001 = vpack.c.b16 %v3633, %v3625
    %v5002 = vpack.c.b16 %v3634, %v3626
    %v5003 = vpack.c.b16 %v3635, %v3627
    %v5004 = vpack.c.b16 %v3636, %v3628
    %v5005 = vpack.c.b16 %v3637, %v3629
    %v5006 = vpack.c.b16 %v3638, %v3630
    %v5007 = vpack.c.b16 %v3639, %v3631
    %v5008 = vpack.c.b16 %v3640, %v3632
    %v5009 = vpack.c.b16 %v3649, %v3641
    %v5010 = vpack.c.b16 %v3650, %v3642
    %v5011 = vpack.c.b16 %v3651, %v3643
    %v5012 = vpack.c.b16 %v3652, %v3644
    %v5013 = vpack.c.b16 %v3653, %v3645
    %v5014 = vpack.c.b16 %v3654, %v3646
    %v5015 = vpack.c.b16 %v3655, %v3647
    %v5016 = vpack.c.b16 %v3656, %v3648
    %v5017 = vpack.c.b16 %v3665, %v3657
    %v5018 = vpack.c.b16 %v3666, %v3658
    %v5019 = vpack.c.b16 %v3667, %v3659
    %v5020 = vpack.c.b16 %v3668, %v3660
    %v5021 = vpack.c.b16 %v3669, %v3661
    %v5022 = vpack.c.b16 %v3670, %v3662
    %v5023 = vpack.c.b16 %v3671, %v3663
    %v5024 = vpack.c.b16 %v3672, %v3664
    %v5025 = vpack.c.b16 %v3681, %v3673
    %v5026 = vpack.c.b16 %v3682, %v3674
    %v5027 = vpack.c.b16 %v3683, %v3675
    %v5028 = vpack.c.b16 %v3684, %v3676
    %v5029 = vpack.c.b16 %v3685, %v3677
    %v5030 = vpack.c.b16 %v3686, %v3678
    %v5031 = vpack.c.b16 %v3687, %v3679
    %v5032 = vpack.c.b16 %v3688, %v3680
    %v5033 = vpack.c.b16 %v3697, %v3689
    %v5034 = vpack.c.b16 %v3698, %v3690
    %v5035 = vpack.c.b16 %v3699, %v3691
    %v5036 = vpack.c.b16 %v3700, %v3692
    %v5037 = vpack.c.b16 %v3701, %v3693
    %v5038 = vpack.c.b16 %v3702, %v3694
    %v5039 = vpack.c.b16 %v3703, %v3695
    %v5040 = vpack.c.b16 %v3704, %v3696
    %v5041 = vpack.c.b16 %v3713, %v3705
    %v5042 = vpack.c.b16 %v3714, %v3706
    %v5043 = vpack.c.b16 %v3715, %v3707
    %v5044 = vpack.c.b16 %v3716, %v3708
    %v5045 = vpack.c.b16 %v3717, %v3709
    %v5046 = vpack.c.b16 %v3718, %v3710
    %v5047 = vpack.c.b16 %v3719, %v3711
    %v5048 = vpack.c.b16 %v3720, %v3712
    %v5049 = vpack.c.b16 %v3729, %v3721
    %v5050 = vpack.c.b16 %v3730, %v3722
    %v5051 = vpack.c.b16 %v3731, %v3723
    %v5052 = vpack.c.b16 %v3732, %v3724
    %v5053 = vpack.c.b16 %v3733, %v3725
    %v5054 = vpack.c.b16 %v3734, %v3726
    %v5055 = vpack.c.b16 %v3735, %v3727
    %v5056 = vpack.c.b16 %v3736, %v3728
    %v5057 = vpack.c.b16 %v3745, %v3737
    %v5058 = vpack.c.b16 %v3746, %v3738
    %v5059 = vpack.c.b16 %v3747, %v3739
    %v5060 = vpack.c.b16 %v3748, %v3740
    %v5061 = vpack.c.b16 %v3749, %v3741
    %v5062 = vpack.c.b16 %v3750, %v3742
    %v5063 = vpack.c.b16 %v3751, %v3743
    %v5064 = vpack.c.b16 %v3752, %v3744
    %v5065 = vpack.c.b16 %v3761, %v3753
    %v5066 = vpack.c.b16 %v3762, %v3754
    %v5067 = vpack.c.b16 %v3763, %v3755
    %v5068 = vpack.c.b16 %v3764, %v3756
    %v5069 = vpack.c.b16 %v3765, %v3757
    %v5070 = vpack.c.b16 %v3766, %v3758
    %v5071 = vpack.c.b16 %v3767, %v3759
    %v5072 = vpack.c.b16 %v3768, %v3760
    %v5073 = vpack.c.b16 %v3777, %v3769
    %v5074 = vpack.c.b16 %v3778, %v3770
    %v5075 = vpack.c.b16 %v3779, %v3771
    %v5076 = vpack.c.b16 %v3780, %v3772
    %v5077 = vpack.c.b16 %v3781, %v3773
    %v5078 = vpack.c.b16 %v3782, %v3774
    %v5079 = vpack.c.b16 %v3783, %v3775
    %v5080 = vpack.c.b16 %v3784, %v3776
    %v5081 = vpack.c.b16 %v3793, %v3785
    %v5082 = vpack.c.b16 %v3794, %v3786
    %v5083 = vpack.c.b16 %v3795, %v3787
    %v5084 = vpack.c.b16 %v3796, %v3788
    %v5085 = vpack.c.b16 %v3797, %v3789
    %v5086 = vpack.c.b16 %v3798, %v3790
    %v5087 = vpack.c.b16 %v3799, %v3791
    %v5088 = vpack.c.b16 %v3800, %v3792
    %v5089 = vpack.c.b16 %v3809, %v3801
    %v5090 = vpack.c.b16 %v3810, %v3802
    %v5091 = vpack.c.b16 %v3811, %v3803
    %v5092 = vpack.c.b16 %v3812, %v3804
    %v5093 = vpack.c.b16 %v3813, %v3805
    %v5094 = vpack.c.b16 %v3814, %v3806
    %v5095 = vpack.c.b16 %v3815, %v3807
    %v5096 = vpack.c.b16 %v3816, %v3808
    %v5097 = vpack.c.b16 %v3825, %v3817
    %v5098 = vpack.c.b16 %v3826, %v3818
    %v5099 = vpack.c.b16 %v3827, %v3819
    %v5100 = vpack.c.b16 %v3828, %v3820
    %v5101 = vpack.c.b16 %v3829, %v3821
    %v5102 = vpack.c.b16 %v3830, %v3822
    %v5103 = vpack.c.b16 %v3831, %v3823
    %v5104 = vpack.c.b16 %v3832, %v3824
    %v5105 = vpack.c.b16 %v3841, %v3833
    %v5106 = vpack.c.b16 %v3842, %v3834
    %v5107 = vpack.c.b16 %v3843, %v3835
    %v5108 = vpack.c.b16 %v3844, %v3836
    %v5109 = vpack.c.b16 %v3845, %v3837
    %v5110 = vpack.c.b16 %v3846, %v3838
    %v5111 = vpack.c.b16 %v3847, %v3839
    %v5112 = vpack.c.b16 %v3848, %v3840
    %v5113 = vpack.c.b16 %v3857, %v3849
    %v5114 = vpack.c.b16 %v3858, %v3850
    %v5115 = vpack.c.b16 %v3859, %v3851
    %v5116 = vpack.c.b16 %v3860, %v3852
    %v5117 = vpack.c.b16 %v3861, %v3853
    %v5118 = vpack.c.b16 %v3862, %v3854
    %v5119 = vpack.c.b16 %v3863, %v3855
    %v5120 = vpack.c.b16 %v3864, %v3856
    %v5121 = vpack.c.b16 %v3873, %v3865
    %v5122 = vpack.c.b16 %v3874, %v3866
    %v5123 = vpack.c.b16 %v3875, %v3867
    %v5124 = vpack.c.b16 %v3876, %v3868
    %v5125 = vpack.c.b16 %v3877, %v3869
    %v5126 = vpack.c.b16 %v3878, %v3870
    %v5127 = vpack.c.b16 %v3879, %v3871
    %v5128 = vpack.c.b16 %v3880, %v3872
    %v5129 = vpack.c.b16 %v3889, %v3881
    %v5130 = vpack.c.b16 %v3890, %v3882
    %v5131 = vpack.c.b16 %v3891, %v3883
    %v5132 = vpack.c.b16 %v3892, %v3884
    %v5133 = vpack.c.b16 %v3893, %v3885
    %v5134 = vpack.c.b16 %v3894, %v3886
    %v5135 = vpack.c.b16 %v3895, %v3887
    %v5136 = vpack.c.b16 %v3896, %v3888
    %v5137 = vpack.c.b16 %v3905, %v3897
    %v5138 = vpack.c.b16 %v3906, %v3898
    %v5139 = vpack.c.b16 %v3907, %v3899
    %v5140 = vpack.c.b16 %v3908, %v3900
    %v5141 = vpack.c.b16 %v3909, %v3901
    %v5142 = vpack.c.b16 %v3910, %v3902
    %v5143 = vpack.c.b16 %v3911, %v3903
    %v5144 = vpack.c.b16 %v3912, %v3904
    %v5145 = vpack.c.b16 %v3921, %v3913
    %v5146 = vpack.c.b16 %v3922, %v3914
    %v5147 = vpack.c.b16 %v3923, %v3915
    %v5148 = vpack.c.b16 %v3924, %v3916
    %v5149 = vpack.c.b16 %v3925, %v3917
    %v5150 = vpack.c.b16 %v3926, %v3918
    %v5151 = vpack.c.b16 %v3927, %v3919
    %v5152 = vpack.c.b16 %v3928, %v3920
    %v5153 = vpack.c.b16 %v3937, %v3929
    %v5154 = vpack.c.b16 %v3938, %v3930
    %v5155 = vpack.c.b16 %v3939, %v3931
    %v5156 = vpack.c.b16 %v3940, %v3932
    %v5157 = vpack.c.b16 %v3941, %v3933
    %v5158 = vpack.c.b16 %v3942, %v3934
    %v5159 = vpack.c.b16 %v3943, %v3935
    %v5160 = vpack.c.b16 %v3944, %v3936
    %v5161 = vpack.c.b16 %v3953, %v3945
    %v5162 = vpack.c.b16 %v3954, %v3946
    %v5163 = vpack.c.b16 %v3955, %v3947
    %v5164 = vpack.c.b16 %v3956, %v3948
    %v5165 = vpack.c.b16 %v3957, %v3949
    %v5166 = vpack.c.b16 %v3958, %v3950
    %v5167 = vpack.c.b16 %v3959, %v3951
    %v5168 = vpack.c.b16 %v3960, %v3952
    %v5169 = vpack.c.b16 %v3969, %v3961
    %v5170 = vpack.c.b16 %v3970, %v3962
    %v5171 = vpack.c.b16 %v3971, %v3963
    %v5172 = vpack.c.b16 %v3972, %v3964
    %v5173 = vpack.c.b16 %v3973, %v3965
    %v5174 = vpack.c.b16 %v3974, %v3966
    %v5175 = vpack.c.b16 %v3975, %v3967
    %v5176 = vpack.c.b16 %v3976, %v3968
    %v5177 = vpack.c.b16 %v3985, %v3977
    %v5178 = vpack.c.b16 %v3986, %v3978
    %v5179 = vpack.c.b16 %v3987, %v3979
    %v5180 = vpack.c.b16 %v3988, %v3980
    %v5181 = vpack.c.b16 %v3989, %v3981
    %v5182 = vpack.c.b16 %v3990, %v3982
    %v5183 = vpack.c.b16 %v3991, %v3983
    %v5184 = vpack.c.b16 %v3992, %v3984
    %v5185 = vpack.c.b16 %v4001, %v3993
    %v5186 = vpack.c.b16 %v4002, %v3994
    %v5187 = vpack.c.b16 %v4003, %v3995
    %v5188 = vpack.c.b16 %v4004, %v3996
    %v5189 = vpack.c.b16 %v4005, %v3997
    %v5190 = vpack.c.b16 %v4006, %v3998
    %v5191 = vpack.c.b16 %v4007, %v3999
    %v5192 = vpack.c.b16 %v4008, %v4000
    %v5193 = vpack.c.b16 %v4017, %v4009
    %v5194 = vpack.c.b16 %v4018, %v4010
    %v5195 = vpack.c.b16 %v4019, %v4011
    %v5196 = vpack.c.b16 %v4020, %v4012
    %v5197 = vpack.c.b16 %v4021, %v4013
    %v5198 = vpack.c.b16 %v4022, %v4014
    %v5199 = vpack.c.b16 %v4023, %v4015
    %v5200 = vpack.c.b16 %v4024, %v4016
    %v5201 = vpack.c.b16 %v4033, %v4025
    %v5202 = vpack.c.b16 %v4034, %v4026
    %v5203 = vpack.c.b16 %v4035, %v4027
    %v5204 = vpack.c.b16 %v4036, %v4028
    %v5205 = vpack.c.b16 %v4037, %v4029
    %v5206 = vpack.c.b16 %v4038, %v4030
    %v5207 = vpack.c.b16 %v4039, %v4031
    %v5208 = vpack.c.b16 %v4040, %v4032
    %v5209 = vpack.c.b16 %v4049, %v4041
    %v5210 = vpack.c.b16 %v4050, %v4042
    %v5211 = vpack.c.b16 %v4051, %v4043
    %v5212 = vpack.c.b16 %v4052, %v4044
    %v5213 = vpack.c.b16 %v4053, %v4045
    %v5214 = vpack.c.b16 %v4054, %v4046
    %v5215 = vpack.c.b16 %v4055, %v4047
    %v5216 = vpack.c.b16 %v4056, %v4048
    %v5217 = vpack.c.b16 %v4065, %v4057
    %v5218 = vpack.c.b16 %v4066, %v4058
    %v5219 = vpack.c.b16 %v4067, %v4059
    %v5220 = vpack.c.b16 %v4068, %v4060
    %v5221 = vpack.c.b16 %v4069, %v4061
    %v5222 = vpack.c.b16 %v4070, %v4062
    %v5223 = vpack.c.b16 %v4071, %v4063
    %v5224 = vpack.c.b16 %v4072, %v4064
    %v5225 = vpack.c.b16 %v4081, %v4073
    %v5226 = vpack.c.b16 %v4082, %v4074
    %v5227 = vpack.c.b16 %v4083, %v4075
    %v5228 = vpack.c.b16 %v4084, %v4076
    %v5229 = vpack.c.b16 %v4085, %v4077
    %v5230 = vpack.c.b16 %v4086, %v4078
    %v5231 = vpack.c.b16 %v4087, %v4079
    %v5232 = vpack.c.b16 %v4088, %v4080
    %v5233 = vpack.c.b16 %v4097, %v4089
    %v5234 = vpack.c.b16 %v4098, %v4090
    %v5235 = vpack.c.b16 %v4099, %v4091
    %v5236 = vpack.c.b16 %v4100, %v4092
    %v5237 = vpack.c.b16 %v4101, %v4093
    %v5238 = vpack.c.b16 %v4102, %v4094
    %v5239 = vpack.c.b16 %v4103, %v4095
    %v5240 = vpack.c.b16 %v4104, %v4096
    %v5241 = vpack.c.b16 %v4113, %v4105
    %v5242 = vpack.c.b16 %v4114, %v4106
    %v5243 = vpack.c.b16 %v4115, %v4107
    %v5244 = vpack.c.b16 %v4116, %v4108
    %v5245 = vpack.c.b16 %v4117, %v4109
    %v5246 = vpack.c.b16 %v4118, %v4110
    %v5247 = vpack.c.b16 %v4119, %v4111
    %v5248 = vpack.c.b16 %v4120, %v4112
    %v5249 = vpack.c.b16 %v4129, %v4121
    %v5250 = vpack.c.b16 %v4130, %v4122
    %v5251 = vpack.c.b16 %v4131, %v4123
    %v5252 = vpack.c.b16 %v4132, %v4124
    %v5253 = vpack.c.b16 %v4133, %v4125
    %v5254 = vpack.c.b16 %v4134, %v4126
    %v5255 = vpack.c.b16 %v4135, %v4127
    %v5256 = vpack.c.b16 %v4136, %v4128
    %v5257 = vpack.c.b16 %v4145, %v4137
    %v5258 = vpack.c.b16 %v4146, %v4138
    %v5259 = vpack.c.b16 %v4147, %v4139
    %v5260 = vpack.c.b16 %v4148, %v4140
    %v5261 = vpack.c.b16 %v4149, %v4141
    %v5262 = vpack.c.b16 %v4150, %v4142
    %v5263 = vpack.c.b16 %v4151, %v4143
    %v5264 = vpack.c.b16 %v4152, %v4144
    %v5265 = vpack.c.b16 %v4161, %v4153
    %v5266 = vpack.c.b16 %v4162, %v4154
    %v5267 = vpack.c.b16 %v4163, %v4155
    %v5268 = vpack.c.b16 %v4164, %v4156
    %v5269 = vpack.c.b16 %v4165, %v4157
    %v5270 = vpack.c.b16 %v4166, %v4158
    %v5271 = vpack.c.b16 %v4167, %v4159
    %v5272 = vpack.c.b16 %v4168, %v4160
    %v5273 = vpack.c.b16 %v4177, %v4169
    %v5274 = vpack.c.b16 %v4178, %v4170
    %v5275 = vpack.c.b16 %v4179, %v4171
    %v5276 = vpack.c.b16 %v4180, %v4172
    %v5277 = vpack.c.b16 %v4181, %v4173
    %v5278 = vpack.c.b16 %v4182, %v4174
    %v5279 = vpack.c.b16 %v4183, %v4175
    %v5280 = vpack.c.b16 %v4184, %v4176
    %v5281 = vpack.c.b16 %v4193, %v4185
    %v5282 = vpack.c.b16 %v4194, %v4186
    %v5283 = vpack.c.b16 %v4195, %v4187
    %v5284 = vpack.c.b16 %v4196, %v4188
    %v5285 = vpack.c.b16 %v4197, %v4189
    %v5286 = vpack.c.b16 %v4198, %v4190
    %v5287 = vpack.c.b16 %v4199, %v4191
    %v5288 = vpack.c.b16 %v4200, %v4192
    %v5289 = vpack.c.b16 %v4209, %v4201
    %v5290 = vpack.c.b16 %v4210, %v4202
    %v5291 = vpack.c.b16 %v4211, %v4203
    %v5292 = vpack.c.b16 %v4212, %v4204
    %v5293 = vpack.c.b16 %v4213, %v4205
    %v5294 = vpack.c.b16 %v4214, %v4206
    %v5295 = vpack.c.b16 %v4215, %v4207
    %v5296 = vpack.c.b16 %v4216, %v4208
    %v5297 = vpack.c.b16 %v4225, %v4217
    %v5298 = vpack.c.b16 %v4226, %v4218
    %v5299 = vpack.c.b16 %v4227, %v4219
    %v5300 = vpack.c.b16 %v4228, %v4220
    %v5301 = vpack.c.b16 %v4229, %v4221
    %v5302 = vpack.c.b16 %v4230, %v4222
    %v5303 = vpack.c.b16 %v4231, %v4223
    %v5304 = vpack.c.b16 %v4232, %v4224
    %v5305 = vpack.c.b16 %v4241, %v4233
    %v5306 = vpack.c.b16 %v4242, %v4234
    %v5307 = vpack.c.b16 %v4243, %v4235
    %v5308 = vpack.c.b16 %v4244, %v4236
    %v5309 = vpack.c.b16 %v4245, %v4237
    %v5310 = vpack.c.b16 %v4246, %v4238
    %v5311 = vpack.c.b16 %v4247, %v4239
    %v5312 = vpack.c.b16 %v4248, %v4240
    %v5313 = vpack.c.b16 %v4257, %v4249
    %v5314 = vpack.c.b16 %v4258, %v4250
    %v5315 = vpack.c.b16 %v4259, %v4251
    %v5316 = vpack.c.b16 %v4260, %v4252
    %v5317 = vpack.c.b16 %v4261, %v4253
    %v5318 = vpack.c.b16 %v4262, %v4254
    %v5319 = vpack.c.b16 %v4263, %v4255
    %v5320 = vpack.c.b16 %v4264, %v4256
    %v5321 = vpack.c.b16 %v4273, %v4265
    %v5322 = vpack.c.b16 %v4274, %v4266
    %v5323 = vpack.c.b16 %v4275, %v4267
    %v5324 = vpack.c.b16 %v4276, %v4268
    %v5325 = vpack.c.b16 %v4277, %v4269
    %v5326 = vpack.c.b16 %v4278, %v4270
    %v5327 = vpack.c.b16 %v4279, %v4271
    %v5328 = vpack.c.b16 %v4280, %v4272
    %v5329 = vpack.c.b16 %v4289, %v4281
    %v5330 = vpack.c.b16 %v4290, %v4282
    %v5331 = vpack.c.b16 %v4291, %v4283
    %v5332 = vpack.c.b16 %v4292, %v4284
    %v5333 = vpack.c.b16 %v4293, %v4285
    %v5334 = vpack.c.b16 %v4294, %v4286
    %v5335 = vpack.c.b16 %v4295, %v4287
    %v5336 = vpack.c.b16 %v4296, %v4288
    %v5337 = vpack.c.b16 %v4305, %v4297
    %v5338 = vpack.c.b16 %v4306, %v4298
    %v5339 = vpack.c.b16 %v4307, %v4299
    %v5340 = vpack.c.b16 %v4308, %v4300
    %v5341 = vpack.c.b16 %v4309, %v4301
    %v5342 = vpack.c.b16 %v4310, %v4302
    %v5343 = vpack.c.b16 %v4311, %v4303
    %v5344 = vpack.c.b16 %v4312, %v4304
    %v5345 = vpack.c.b16 %v4321, %v4313
    %v5346 = vpack.c.b16 %v4322, %v4314
    %v5347 = vpack.c.b16 %v4323, %v4315
    %v5348 = vpack.c.b16 %v4324, %v4316
    %v5349 = vpack.c.b16 %v4325, %v4317
    %v5350 = vpack.c.b16 %v4326, %v4318
    %v5351 = vpack.c.b16 %v4327, %v4319
    %v5352 = vpack.c.b16 %v4328, %v4320
    %6377 = vmatprep.subr.bf16.mxu0 %v4330
    %6378 = vmatpush1.bf16.msra.mxu0 %v4329
    %6379 = vmatprep.subr.bf16.mxu0 %v4338
    %6380 = vmatpush1.bf16.msra.mxu0 %v4337
    %6381 = vmatprep.subr.bf16.mxu0 %v4346
    %6382 = vmatpush1.bf16.msra.mxu0 %v4345
    %6383 = vmatprep.subr.bf16.mxu0 %v4354
    %6384 = vmatpush1.bf16.msra.mxu0 %v4353
    %6385 = vmatprep.subr.bf16.mxu0 %v4362
    %6386 = vmatpush1.bf16.msra.mxu0 %v4361
    %6387 = vmatprep.subr.bf16.mxu0 %v4370
    %6388 = vmatpush1.bf16.msra.mxu0 %v4369
    %6389 = vmatprep.subr.bf16.mxu0 %v4378
    %6390 = vmatpush1.bf16.msra.mxu0 %v4377
    %6391 = vmatprep.subr.bf16.mxu0 %v4386
    %6392 = vmatpush1.bf16.msra.mxu0 %v4385
    %6393 = vmatprep.subr.bf16.mxu0 %v4394
    %6394 = vmatpush1.bf16.msra.mxu0 %v4393
    %6395 = vmatprep.subr.bf16.mxu0 %v4402
    %6396 = vmatpush1.bf16.msra.mxu0 %v4401
    %6397 = vmatprep.subr.bf16.mxu0 %v4410
    %6398 = vmatpush1.bf16.msra.mxu0 %v4409
    %6399 = vmatprep.subr.bf16.mxu0 %v4418
    %6400 = vmatpush1.bf16.msra.mxu0 %v4417
    %6401 = vmatprep.subr.bf16.mxu0 %v4426
    %6402 = vmatpush1.bf16.msra.mxu0 %v4425
    %6403 = vmatprep.subr.bf16.mxu0 %v4434
    %6404 = vmatpush1.bf16.msra.mxu0 %v4433
    %6405 = vmatprep.subr.bf16.mxu0 %v4442
    %6406 = vmatpush1.bf16.msra.mxu0 %v4441
    %6407 = vmatprep.subr.bf16.mxu0 %v4450
    %6408 = vmatpush1.bf16.msra.mxu0 %v4449
    %6409 = vmatprep.mubr.bf16.mxu0 %v1180
    %6410 = vmatmul.mubr.bf16.gmra.mrb[0].mxu0 %v1166
    %v6411 = vpop.f32.mrb[0].mxu0
    %v6412 = vadd.f32 %v1104, %v6411
    %v6413 = vpop.f32.mrb[0].mxu0
    %v6414 = vadd.f32 %v1108, %v6413
    %v6415 = vpop.f32.mrb[0].mxu0
    %v6416 = vpop.f32.mrb[0].mxu0
    %6417 = vdwg.mxu0
    %6418 = vmatprep.subr.bf16.mxu0 %v4458
    %6419 = vmatpush1.bf16.msra.mxu0 %v4457
    %6420 = vmatprep.subr.bf16.mxu0 %v4466
    %6421 = vmatpush1.bf16.msra.mxu0 %v4465
    %6422 = vmatprep.subr.bf16.mxu0 %v4474
    %6423 = vmatpush1.bf16.msra.mxu0 %v4473
    %6424 = vmatprep.subr.bf16.mxu0 %v4482
    %6425 = vmatpush1.bf16.msra.mxu0 %v4481
    %6426 = vmatprep.subr.bf16.mxu0 %v4490
    %6427 = vmatpush1.bf16.msra.mxu0 %v4489
    %6428 = vmatprep.subr.bf16.mxu0 %v4498
    %6429 = vmatpush1.bf16.msra.mxu0 %v4497
    %6430 = vmatprep.subr.bf16.mxu0 %v4506
    %6431 = vmatpush1.bf16.msra.mxu0 %v4505
    %6432 = vmatprep.subr.bf16.mxu0 %v4514
    %6433 = vmatpush1.bf16.msra.mxu0 %v4513
    %6434 = vmatprep.subr.bf16.mxu0 %v4522
    %6435 = vmatpush1.bf16.msra.mxu0 %v4521
    %6436 = vmatprep.subr.bf16.mxu0 %v4530
    %6437 = vmatpush1.bf16.msra.mxu0 %v4529
    %6438 = vmatprep.subr.bf16.mxu0 %v4538
    %6439 = vmatpush1.bf16.msra.mxu0 %v4537
    %6440 = vmatprep.subr.bf16.mxu0 %v4546
    %6441 = vmatpush1.bf16.msra.mxu0 %v4545
    %6442 = vmatprep.subr.bf16.mxu0 %v4554
    %6443 = vmatpush1.bf16.msra.mxu0 %v4553
    %6444 = vmatprep.subr.bf16.mxu0 %v4562
    %6445 = vmatpush1.bf16.msra.mxu0 %v4561
    %6446 = vmatprep.subr.bf16.mxu0 %v4570
    %6447 = vmatpush1.bf16.msra.mxu0 %v4569
    %6448 = vmatprep.subr.bf16.mxu0 %v4578
    %6449 = vmatpush1.bf16.msra.mxu0 %v4577
    %6450 = vmatprep.mubr.bf16.mxu0 %v1190
    %6451 = vmatmul.mubr.bf16.gmra.mrb[0].mxu0 %v1188
    %v6452 = vpop.f32.mrb[0].mxu0
    %v6453 = vadd.f32 %v6412, %v6452
    %v6454 = vpop.f32.mrb[0].mxu0
    %v6455 = vadd.f32 %v6414, %v6454
    %v6456 = vpop.f32.mrb[0].mxu0
    %v6457 = vpop.f32.mrb[0].mxu0
    %6458 = vdwg.mxu0
    %6459 = vmatprep.subr.bf16.mxu0 %v4586
    %6460 = vmatpush1.bf16.msra.mxu0 %v4585
    %6461 = vmatprep.subr.bf16.mxu0 %v4594
    %6462 = vmatpush1.bf16.msra.mxu0 %v4593
    %6463 = vmatprep.subr.bf16.mxu0 %v4602
    %6464 = vmatpush1.bf16.msra.mxu0 %v4601
    %6465 = vmatprep.subr.bf16.mxu0 %v4610
    %6466 = vmatpush1.bf16.msra.mxu0 %v4609
    %6467 = vmatprep.subr.bf16.mxu0 %v4618
    %6468 = vmatpush1.bf16.msra.mxu0 %v4617
    %6469 = vmatprep.subr.bf16.mxu0 %v4626
    %6470 = vmatpush1.bf16.msra.mxu0 %v4625
    %6471 = vmatprep.subr.bf16.mxu0 %v4634
    %6472 = vmatpush1.bf16.msra.mxu0 %v4633
    %6473 = vmatprep.subr.bf16.mxu0 %v4642
    %6474 = vmatpush1.bf16.msra.mxu0 %v4641
    %6475 = vmatprep.subr.bf16.mxu0 %v4650
    %6476 = vmatpush1.bf16.msra.mxu0 %v4649
    %6477 = vmatprep.subr.bf16.mxu0 %v4658
    %6478 = vmatpush1.bf16.msra.mxu0 %v4657
    %6479 = vmatprep.subr.bf16.mxu0 %v4666
    %6480 = vmatpush1.bf16.msra.mxu0 %v4665
    %6481 = vmatprep.subr.bf16.mxu0 %v4674
    %6482 = vmatpush1.bf16.msra.mxu0 %v4673
    %6483 = vmatprep.subr.bf16.mxu0 %v4682
    %6484 = vmatpush1.bf16.msra.mxu0 %v4681
    %6485 = vmatprep.subr.bf16.mxu0 %v4690
    %6486 = vmatpush1.bf16.msra.mxu0 %v4689
    %6487 = vmatprep.subr.bf16.mxu0 %v4698
    %6488 = vmatpush1.bf16.msra.mxu0 %v4697
    %6489 = vmatprep.subr.bf16.mxu0 %v4706
    %6490 = vmatpush1.bf16.msra.mxu0 %v4705
    %6491 = vmatprep.mubr.bf16.mxu0 %v1187
    %6492 = vmatmul.mubr.bf16.gmra.mrb[0].mxu0 %v1173
    %v6493 = vpop.f32.mrb[0].mxu0
    %v6494 = vadd.f32 %v6453, %v6493
    %v6495 = vpop.f32.mrb[0].mxu0
    %v6496 = vadd.f32 %v6455, %v6495
    %v6497 = vpop.f32.mrb[0].mxu0
    %v6498 = vpop.f32.mrb[0].mxu0
    %6499 = vdwg.mxu0
    %6500 = vmatprep.subr.bf16.mxu0 %v4714
    %6501 = vmatpush1.bf16.msra.mxu0 %v4713
    %6502 = vmatprep.subr.bf16.mxu0 %v4722
    %6503 = vmatpush1.bf16.msra.mxu0 %v4721
    %6504 = vmatprep.subr.bf16.mxu0 %v4730
    %6505 = vmatpush1.bf16.msra.mxu0 %v4729
    %6506 = vmatprep.subr.bf16.mxu0 %v4738
    %6507 = vmatpush1.bf16.msra.mxu0 %v4737
    %6508 = vmatprep.subr.bf16.mxu0 %v4746
    %6509 = vmatpush1.bf16.msra.mxu0 %v4745
    %6510 = vmatprep.subr.bf16.mxu0 %v4754
    %6511 = vmatpush1.bf16.msra.mxu0 %v4753
    %6512 = vmatprep.subr.bf16.mxu0 %v4762
    %6513 = vmatpush1.bf16.msra.mxu0 %v4761
    %6514 = vmatprep.subr.bf16.mxu0 %v4770
    %6515 = vmatpush1.bf16.msra.mxu0 %v4769
    %6516 = vmatprep.subr.bf16.mxu0 %v4778
    %6517 = vmatpush1.bf16.msra.mxu0 %v4777
    %6518 = vmatprep.subr.bf16.mxu0 %v4786
    %6519 = vmatpush1.bf16.msra.mxu0 %v4785
    %6520 = vmatprep.subr.bf16.mxu0 %v4794
    %6521 = vmatpush1.bf16.msra.mxu0 %v4793
    %6522 = vmatprep.subr.bf16.mxu0 %v4802
    %6523 = vmatpush1.bf16.msra.mxu0 %v4801
    %6524 = vmatprep.subr.bf16.mxu0 %v4810
    %6525 = vmatpush1.bf16.msra.mxu0 %v4809
    %6526 = vmatprep.subr.bf16.mxu0 %v4818
    %6527 = vmatpush1.bf16.msra.mxu0 %v4817
    %6528 = vmatprep.subr.bf16.mxu0 %v4826
    %6529 = vmatpush1.bf16.msra.mxu0 %v4825
    %6530 = vmatprep.subr.bf16.mxu0 %v4834
    %6531 = vmatpush1.bf16.msra.mxu0 %v4833
    %6532 = vmatprep.mubr.bf16.mxu0 %v1191
    %6533 = vmatmul.mubr.bf16.gmra.mrb[0].mxu0 %v1189
    %v6534 = vpop.f32.mrb[0].mxu0
    %v6535 = vadd.f32 %v6494, %v6534
    %v6536 = vpop.f32.mrb[0].mxu0
    %v6537 = vadd.f32 %v6496, %v6536
    %v6538 = vpop.f32.mrb[0].mxu0
    %v6539 = vpop.f32.mrb[0].mxu0
    %6540 = vdwg.mxu0
    %6541 = vmatprep.subr.bf16.mxu0 %v4842
    %6542 = vmatpush1.bf16.msra.mxu0 %v4841
    %6543 = vmatprep.subr.bf16.mxu0 %v4850
    %6544 = vmatpush1.bf16.msra.mxu0 %v4849
    %6545 = vmatprep.subr.bf16.mxu0 %v4858
    %6546 = vmatpush1.bf16.msra.mxu0 %v4857
    %6547 = vmatprep.subr.bf16.mxu0 %v4866
    %6548 = vmatpush1.bf16.msra.mxu0 %v4865
    %6549 = vmatprep.subr.bf16.mxu0 %v4874
    %6550 = vmatpush1.bf16.msra.mxu0 %v4873
    %6551 = vmatprep.subr.bf16.mxu0 %v4882
    %6552 = vmatpush1.bf16.msra.mxu0 %v4881
    %6553 = vmatprep.subr.bf16.mxu0 %v4890
    %6554 = vmatpush1.bf16.msra.mxu0 %v4889
    %6555 = vmatprep.subr.bf16.mxu0 %v4898
    %6556 = vmatpush1.bf16.msra.mxu0 %v4897
    %6557 = vmatprep.subr.bf16.mxu0 %v4906
    %6558 = vmatpush1.bf16.msra.mxu0 %v4905
    %6559 = vmatprep.subr.bf16.mxu0 %v4914
    %6560 = vmatpush1.bf16.msra.mxu0 %v4913
    %6561 = vmatprep.subr.bf16.mxu0 %v4922
    %6562 = vmatpush1.bf16.msra.mxu0 %v4921
    %6563 = vmatprep.subr.bf16.mxu0 %v4930
    %6564 = vmatpush1.bf16.msra.mxu0 %v4929
    %6565 = vmatprep.subr.bf16.mxu0 %v4938
    %6566 = vmatpush1.bf16.msra.mxu0 %v4937
    %6567 = vmatprep.subr.bf16.mxu0 %v4946
    %6568 = vmatpush1.bf16.msra.mxu0 %v4945
    %6569 = vmatprep.subr.bf16.mxu0 %v4954
    %6570 = vmatpush1.bf16.msra.mxu0 %v4953
    %6571 = vmatprep.subr.bf16.mxu0 %v4962
    %6572 = vmatpush1.bf16.msra.mxu0 %v4961
    %6573 = vmatprep.mubr.bf16.mxu0 %v1229
    %6574 = vmatmul.mubr.bf16.gmra.mrb[0].mxu0 %v1215
    %v6575 = vpop.f32.mrb[0].mxu0
    %v6576 = vadd.f32 %v6535, %v6575
    %v6577 = vpop.f32.mrb[0].mxu0
    %v6578 = vadd.f32 %v6537, %v6577
    %v6579 = vpop.f32.mrb[0].mxu0
    %v6580 = vpop.f32.mrb[0].mxu0
    %6581 = vdwg.mxu0
    %6582 = vmatprep.subr.bf16.mxu0 %v4970
    %6583 = vmatpush1.bf16.msra.mxu0 %v4969
    %6584 = vmatprep.subr.bf16.mxu0 %v4978
    %6585 = vmatpush1.bf16.msra.mxu0 %v4977
    %6586 = vmatprep.subr.bf16.mxu0 %v4986
    %6587 = vmatpush1.bf16.msra.mxu0 %v4985
    %6588 = vmatprep.subr.bf16.mxu0 %v4994
    %6589 = vmatpush1.bf16.msra.mxu0 %v4993
    %6590 = vmatprep.subr.bf16.mxu0 %v5002
    %6591 = vmatpush1.bf16.msra.mxu0 %v5001
    %6592 = vmatprep.subr.bf16.mxu0 %v5010
    %6593 = vmatpush1.bf16.msra.mxu0 %v5009
    %6594 = vmatprep.subr.bf16.mxu0 %v5018
    %6595 = vmatpush1.bf16.msra.mxu0 %v5017
    %6596 = vmatprep.subr.bf16.mxu0 %v5026
    %6597 = vmatpush1.bf16.msra.mxu0 %v5025
    %6598 = vmatprep.subr.bf16.mxu0 %v5034
    %6599 = vmatpush1.bf16.msra.mxu0 %v5033
    %6600 = vmatprep.subr.bf16.mxu0 %v5042
    %6601 = vmatpush1.bf16.msra.mxu0 %v5041
    %6602 = vmatprep.subr.bf16.mxu0 %v5050
    %6603 = vmatpush1.bf16.msra.mxu0 %v5049
    %6604 = vmatprep.subr.bf16.mxu0 %v5058
    %6605 = vmatpush1.bf16.msra.mxu0 %v5057
    %6606 = vmatprep.subr.bf16.mxu0 %v5066
    %6607 = vmatpush1.bf16.msra.mxu0 %v5065
    %6608 = vmatprep.subr.bf16.mxu0 %v5074
    %6609 = vmatpush1.bf16.msra.mxu0 %v5073
    %6610 = vmatprep.subr.bf16.mxu0 %v5082
    %6611 = vmatpush1.bf16.msra.mxu0 %v5081
    %6612 = vmatprep.subr.bf16.mxu0 %v5090
    %6613 = vmatpush1.bf16.msra.mxu0 %v5089
    %6614 = vmatprep.mubr.bf16.mxu0 %v1239
    %6615 = vmatmul.mubr.bf16.gmra.mrb[0].mxu0 %v1237
    %v6616 = vpop.f32.mrb[0].mxu0
    %v6617 = vadd.f32 %v6576, %v6616
    %v6618 = vpop.f32.mrb[0].mxu0
    %v6619 = vadd.f32 %v6578, %v6618
    %v6620 = vpop.f32.mrb[0].mxu0
    %v6621 = vpop.f32.mrb[0].mxu0
    %6622 = vdwg.mxu0
    %6623 = vmatprep.subr.bf16.mxu0 %v5098
    %6624 = vmatpush1.bf16.msra.mxu0 %v5097
    %6625 = vmatprep.subr.bf16.mxu0 %v5106
    %6626 = vmatpush1.bf16.msra.mxu0 %v5105
    %6627 = vmatprep.subr.bf16.mxu0 %v5114
    %6628 = vmatpush1.bf16.msra.mxu0 %v5113
    %6629 = vmatprep.subr.bf16.mxu0 %v5122
    %6630 = vmatpush1.bf16.msra.mxu0 %v5121
    %6631 = vmatprep.subr.bf16.mxu0 %v5130
    %6632 = vmatpush1.bf16.msra.mxu0 %v5129
    %6633 = vmatprep.subr.bf16.mxu0 %v5138
    %6634 = vmatpush1.bf16.msra.mxu0 %v5137
    %6635 = vmatprep.subr.bf16.mxu0 %v5146
    %6636 = vmatpush1.bf16.msra.mxu0 %v5145
    %6637 = vmatprep.subr.bf16.mxu0 %v5154
    %6638 = vmatpush1.bf16.msra.mxu0 %v5153
    %6639 = vmatprep.subr.bf16.mxu0 %v5162
    %6640 = vmatpush1.bf16.msra.mxu0 %v5161
    %6641 = vmatprep.subr.bf16.mxu0 %v5170
    %6642 = vmatpush1.bf16.msra.mxu0 %v5169
    %6643 = vmatprep.subr.bf16.mxu0 %v5178
    %6644 = vmatpush1.bf16.msra.mxu0 %v5177
    %6645 = vmatprep.subr.bf16.mxu0 %v5186
    %6646 = vmatpush1.bf16.msra.mxu0 %v5185
    %6647 = vmatprep.subr.bf16.mxu0 %v5194
    %6648 = vmatpush1.bf16.msra.mxu0 %v5193
    %6649 = vmatprep.subr.bf16.mxu0 %v5202
    %6650 = vmatpush1.bf16.msra.mxu0 %v5201
    %6651 = vmatprep.subr.bf16.mxu0 %v5210
    %6652 = vmatpush1.bf16.msra.mxu0 %v5209
    %6653 = vmatprep.subr.bf16.mxu0 %v5218
    %6654 = vmatpush1.bf16.msra.mxu0 %v5217
    %6655 = vmatprep.mubr.bf16.mxu0 %v1236
    %6656 = vmatmul.mubr.bf16.gmra.mrb[0].mxu0 %v1222
    %v6657 = vpop.f32.mrb[0].mxu0
    %v6658 = vadd.f32 %v6617, %v6657
    %v6659 = vpop.f32.mrb[0].mxu0
    %v6660 = vadd.f32 %v6619, %v6659
    %v6661 = vpop.f32.mrb[0].mxu0
    %v6662 = vpop.f32.mrb[0].mxu0
    %6663 = vdwg.mxu0
    %6664 = vmatprep.subr.bf16.mxu0 %v5226
    %6665 = vmatpush1.bf16.msra.mxu0 %v5225
    %6666 = vmatprep.subr.bf16.mxu0 %v5234
    %6667 = vmatpush1.bf16.msra.mxu0 %v5233
    %6668 = vmatprep.subr.bf16.mxu0 %v5242
    %6669 = vmatpush1.bf16.msra.mxu0 %v5241
    %6670 = vmatprep.subr.bf16.mxu0 %v5250
    %6671 = vmatpush1.bf16.msra.mxu0 %v5249
    %6672 = vmatprep.subr.bf16.mxu0 %v5258
    %6673 = vmatpush1.bf16.msra.mxu0 %v5257
    %6674 = vmatprep.subr.bf16.mxu0 %v5266
    %6675 = vmatpush1.bf16.msra.mxu0 %v5265
    %6676 = vmatprep.subr.bf16.mxu0 %v5274
    %6677 = vmatpush1.bf16.msra.mxu0 %v5273
    %6678 = vmatprep.subr.bf16.mxu0 %v5282
    %6679 = vmatpush1.bf16.msra.mxu0 %v5281
    %6680 = vmatprep.subr.bf16.mxu0 %v5290
    %6681 = vmatpush1.bf16.msra.mxu0 %v5289
    %6682 = vmatprep.subr.bf16.mxu0 %v5298
    %6683 = vmatpush1.bf16.msra.mxu0 %v5297
    %6684 = vmatprep.subr.bf16.mxu0 %v5306
    %6685 = vmatpush1.bf16.msra.mxu0 %v5305
    %6686 = vmatprep.subr.bf16.mxu0 %v5314
    %6687 = vmatpush1.bf16.msra.mxu0 %v5313
    %6688 = vmatprep.subr.bf16.mxu0 %v5322
    %6689 = vmatpush1.bf16.msra.mxu0 %v5321
    %6690 = vmatprep.subr.bf16.mxu0 %v5330
    %6691 = vmatpush1.bf16.msra.mxu0 %v5329
    %6692 = vmatprep.subr.bf16.mxu0 %v5338
    %6693 = vmatpush1.bf16.msra.mxu0 %v5337
    %6694 = vmatprep.subr.bf16.mxu0 %v5346
    %6695 = vmatpush1.bf16.msra.mxu0 %v5345
    %6696 = vmatprep.mubr.bf16.mxu0 %v1240
    %6697 = vmatmul.mubr.bf16.gmra.mrb[0].mxu0 %v1238
    %v6698 = vpop.f32.mrb[0].mxu0
    %v6699 = vadd.f32 %v6658, %v6698
    %v6700 = vpop.f32.mrb[0].mxu0
    %v6701 = vadd.f32 %v6660, %v6700
    %v6702 = vpop.f32.mrb[0].mxu0
    %v6703 = vpop.f32.mrb[0].mxu0
    %6704 = vdwg.mxu0
    %6705 = vmatprep.subr.bf16.mxu0 %v4332
    %6706 = vmatpush1.bf16.msra.mxu0 %v4331
    %6707 = vmatprep.subr.bf16.mxu0 %v4340
    %6708 = vmatpush1.bf16.msra.mxu0 %v4339
    %6709 = vmatprep.subr.bf16.mxu0 %v4348
    %6710 = vmatpush1.bf16.msra.mxu0 %v4347
    %6711 = vmatprep.subr.bf16.mxu0 %v4356
    %6712 = vmatpush1.bf16.msra.mxu0 %v4355
    %6713 = vmatprep.subr.bf16.mxu0 %v4364
    %6714 = vmatpush1.bf16.msra.mxu0 %v4363
    %6715 = vmatprep.subr.bf16.mxu0 %v4372
    %6716 = vmatpush1.bf16.msra.mxu0 %v4371
    %6717 = vmatprep.subr.bf16.mxu0 %v4380
    %6718 = vmatpush1.bf16.msra.mxu0 %v4379
    %6719 = vmatprep.subr.bf16.mxu0 %v4388
    %6720 = vmatpush1.bf16.msra.mxu0 %v4387
    %6721 = vmatprep.subr.bf16.mxu0 %v4396
    %6722 = vmatpush1.bf16.msra.mxu0 %v4395
    %6723 = vmatprep.subr.bf16.mxu0 %v4404
    %6724 = vmatpush1.bf16.msra.mxu0 %v4403
    %6725 = vmatprep.subr.bf16.mxu0 %v4412
    %6726 = vmatpush1.bf16.msra.mxu0 %v4411
    %6727 = vmatprep.subr.bf16.mxu0 %v4420
    %6728 = vmatpush1.bf16.msra.mxu0 %v4419
    %6729 = vmatprep.subr.bf16.mxu0 %v4428
    %6730 = vmatpush1.bf16.msra.mxu0 %v4427
    %6731 = vmatprep.subr.bf16.mxu0 %v4436
    %6732 = vmatpush1.bf16.msra.mxu0 %v4435
    %6733 = vmatprep.subr.bf16.mxu0 %v4444
    %6734 = vmatpush1.bf16.msra.mxu0 %v4443
    %6735 = vmatprep.subr.bf16.mxu0 %v4452
    %6736 = vmatpush1.bf16.msra.mxu0 %v4451
    %6737 = vmatprep.mubr.bf16.mxu0 %v1180
    %6738 = vmatmul.mubr.bf16.gmra.mrb[0].mxu0 %v1166
    %v6739 = vpop.f32.mrb[0].mxu0
    %v6740 = vadd.f32 %v1112, %v6739
    %v6741 = vpop.f32.mrb[0].mxu0
    %v6742 = vadd.f32 %v1116, %v6741
    %v6743 = vpop.f32.mrb[0].mxu0
    %v6744 = vpop.f32.mrb[0].mxu0
    %6745 = vdwg.mxu0
    %6746 = vmatprep.subr.bf16.mxu0 %v4460
    %6747 = vmatpush1.bf16.msra.mxu0 %v4459
    %6748 = vmatprep.subr.bf16.mxu0 %v4468
    %6749 = vmatpush1.bf16.msra.mxu0 %v4467
    %6750 = vmatprep.subr.bf16.mxu0 %v4476
    %6751 = vmatpush1.bf16.msra.mxu0 %v4475
    %6752 = vmatprep.subr.bf16.mxu0 %v4484
    %6753 = vmatpush1.bf16.msra.mxu0 %v4483
    %6754 = vmatprep.subr.bf16.mxu0 %v4492
    %6755 = vmatpush1.bf16.msra.mxu0 %v4491
    %6756 = vmatprep.subr.bf16.mxu0 %v4500
    %6757 = vmatpush1.bf16.msra.mxu0 %v4499
    %6758 = vmatprep.subr.bf16.mxu0 %v4508
    %6759 = vmatpush1.bf16.msra.mxu0 %v4507
    %6760 = vmatprep.subr.bf16.mxu0 %v4516
    %6761 = vmatpush1.bf16.msra.mxu0 %v4515
    %6762 = vmatprep.subr.bf16.mxu0 %v4524
    %6763 = vmatpush1.bf16.msra.mxu0 %v4523
    %6764 = vmatprep.subr.bf16.mxu0 %v4532
    %6765 = vmatpush1.bf16.msra.mxu0 %v4531
    %6766 = vmatprep.subr.bf16.mxu0 %v4540
    %6767 = vmatpush1.bf16.msra.mxu0 %v4539
    %6768 = vmatprep.subr.bf16.mxu0 %v4548
    %6769 = vmatpush1.bf16.msra.mxu0 %v4547
    %6770 = vmatprep.subr.bf16.mxu0 %v4556
    %6771 = vmatpush1.bf16.msra.mxu0 %v4555
    %6772 = vmatprep.subr.bf16.mxu0 %v4564
    %6773 = vmatpush1.bf16.msra.mxu0 %v4563
    %6774 = vmatprep.subr.bf16.mxu0 %v4572
    %6775 = vmatpush1.bf16.msra.mxu0 %v4571
    %6776 = vmatprep.subr.bf16.mxu0 %v4580
    %6777 = vmatpush1.bf16.msra.mxu0 %v4579
    %6778 = vmatprep.mubr.bf16.mxu0 %v1190
    %6779 = vmatmul.mubr.bf16.gmra.mrb[0].mxu0 %v1188
    %v6780 = vpop.f32.mrb[0].mxu0
    %v6781 = vadd.f32 %v6740, %v6780
    %v6782 = vpop.f32.mrb[0].mxu0
    %v6783 = vadd.f32 %v6742, %v6782
    %v6784 = vpop.f32.mrb[0].mxu0
    %v6785 = vpop.f32.mrb[0].mxu0
    %6786 = vdwg.mxu0
    %6787 = vmatprep.subr.bf16.mxu0 %v4588
    %6788 = vmatpush1.bf16.msra.mxu0 %v4587
    %6789 = vmatprep.subr.bf16.mxu0 %v4596
    %6790 = vmatpush1.bf16.msra.mxu0 %v4595
    %6791 = vmatprep.subr.bf16.mxu0 %v4604
    %6792 = vmatpush1.bf16.msra.mxu0 %v4603
    %6793 = vmatprep.subr.bf16.mxu0 %v4612
    %6794 = vmatpush1.bf16.msra.mxu0 %v4611
    %6795 = vmatprep.subr.bf16.mxu0 %v4620
    %6796 = vmatpush1.bf16.msra.mxu0 %v4619
    %6797 = vmatprep.subr.bf16.mxu0 %v4628
    %6798 = vmatpush1.bf16.msra.mxu0 %v4627
    %6799 = vmatprep.subr.bf16.mxu0 %v4636
    %6800 = vmatpush1.bf16.msra.mxu0 %v4635
    %6801 = vmatprep.subr.bf16.mxu0 %v4644
    %6802 = vmatpush1.bf16.msra.mxu0 %v4643
    %6803 = vmatprep.subr.bf16.mxu0 %v4652
    %6804 = vmatpush1.bf16.msra.mxu0 %v4651
    %6805 = vmatprep.subr.bf16.mxu0 %v4660
    %6806 = vmatpush1.bf16.msra.mxu0 %v4659
    %6807 = vmatprep.subr.bf16.mxu0 %v4668
    %6808 = vmatpush1.bf16.msra.mxu0 %v4667
    %6809 = vmatprep.subr.bf16.mxu0 %v4676
    %6810 = vmatpush1.bf16.msra.mxu0 %v4675
    %6811 = vmatprep.subr.bf16.mxu0 %v4684
    %6812 = vmatpush1.bf16.msra.mxu0 %v4683
    %6813 = vmatprep.subr.bf16.mxu0 %v4692
    %6814 = vmatpush1.bf16.msra.mxu0 %v4691
    %6815 = vmatprep.subr.bf16.mxu0 %v4700
    %6816 = vmatpush1.bf16.msra.mxu0 %v4699
    %6817 = vmatprep.subr.bf16.mxu0 %v4708
    %6818 = vmatpush1.bf16.msra.mxu0 %v4707
    %6819 = vmatprep.mubr.bf16.mxu0 %v1187
    %6820 = vmatmul.mubr.bf16.gmra.mrb[0].mxu0 %v1173
    %v6821 = vpop.f32.mrb[0].mxu0
    %v6822 = vadd.f32 %v6781, %v6821
    %v6823 = vpop.f32.mrb[0].mxu0
    %v6824 = vadd.f32 %v6783, %v6823
    %v6825 = vpop.f32.mrb[0].mxu0
    %v6826 = vpop.f32.mrb[0].mxu0
    %6827 = vdwg.mxu0
    %6828 = vmatprep.subr.bf16.mxu0 %v4716
    %6829 = vmatpush1.bf16.msra.mxu0 %v4715
    %6830 = vmatprep.subr.bf16.mxu0 %v4724
    %6831 = vmatpush1.bf16.msra.mxu0 %v4723
    %6832 = vmatprep.subr.bf16.mxu0 %v4732
    %6833 = vmatpush1.bf16.msra.mxu0 %v4731
    %6834 = vmatprep.subr.bf16.mxu0 %v4740
    %6835 = vmatpush1.bf16.msra.mxu0 %v4739
    %6836 = vmatprep.subr.bf16.mxu0 %v4748
    %6837 = vmatpush1.bf16.msra.mxu0 %v4747
    %6838 = vmatprep.subr.bf16.mxu0 %v4756
    %6839 = vmatpush1.bf16.msra.mxu0 %v4755
    %6840 = vmatprep.subr.bf16.mxu0 %v4764
    %6841 = vmatpush1.bf16.msra.mxu0 %v4763
    %6842 = vmatprep.subr.bf16.mxu0 %v4772
    %6843 = vmatpush1.bf16.msra.mxu0 %v4771
    %6844 = vmatprep.subr.bf16.mxu0 %v4780
    %6845 = vmatpush1.bf16.msra.mxu0 %v4779
    %6846 = vmatprep.subr.bf16.mxu0 %v4788
    %6847 = vmatpush1.bf16.msra.mxu0 %v4787
    %6848 = vmatprep.subr.bf16.mxu0 %v4796
    %6849 = vmatpush1.bf16.msra.mxu0 %v4795
    %6850 = vmatprep.subr.bf16.mxu0 %v4804
    %6851 = vmatpush1.bf16.msra.mxu0 %v4803
    %6852 = vmatprep.subr.bf16.mxu0 %v4812
    %6853 = vmatpush1.bf16.msra.mxu0 %v4811
    %6854 = vmatprep.subr.bf16.mxu0 %v4820
    %6855 = vmatpush1.bf16.msra.mxu0 %v4819
    %6856 = vmatprep.subr.bf16.mxu0 %v4828
    %6857 = vmatpush1.bf16.msra.mxu0 %v4827
    %6858 = vmatprep.subr.bf16.mxu0 %v4836
    %6859 = vmatpush1.bf16.msra.mxu0 %v4835
    %6860 = vmatprep.mubr.bf16.mxu0 %v1191
    %6861 = vmatmul.mubr.bf16.gmra.mrb[0].mxu0 %v1189
    %v6862 = vpop.f32.mrb[0].mxu0
    %v6863 = vadd.f32 %v6822, %v6862
    %v6864 = vpop.f32.mrb[0].mxu0
    %v6865 = vadd.f32 %v6824, %v6864
    %v6866 = vpop.f32.mrb[0].mxu0
    %v6867 = vpop.f32.mrb[0].mxu0
    %6868 = vdwg.mxu0
    %6869 = vmatprep.subr.bf16.mxu0 %v4844
    %6870 = vmatpush1.bf16.msra.mxu0 %v4843
    %6871 = vmatprep.subr.bf16.mxu0 %v4852
    %6872 = vmatpush1.bf16.msra.mxu0 %v4851
    %6873 = vmatprep.subr.bf16.mxu0 %v4860
    %6874 = vmatpush1.bf16.msra.mxu0 %v4859
    %6875 = vmatprep.subr.bf16.mxu0 %v4868
    %6876 = vmatpush1.bf16.msra.mxu0 %v4867
    %6877 = vmatprep.subr.bf16.mxu0 %v4876
    %6878 = vmatpush1.bf16.msra.mxu0 %v4875
    %6879 = vmatprep.subr.bf16.mxu0 %v4884
    %6880 = vmatpush1.bf16.msra.mxu0 %v4883
    %6881 = vmatprep.subr.bf16.mxu0 %v4892
    %6882 = vmatpush1.bf16.msra.mxu0 %v4891
    %6883 = vmatprep.subr.bf16.mxu0 %v4900
    %6884 = vmatpush1.bf16.msra.mxu0 %v4899
    %6885 = vmatprep.subr.bf16.mxu0 %v4908
    %6886 = vmatpush1.bf16.msra.mxu0 %v4907
    %6887 = vmatprep.subr.bf16.mxu0 %v4916
    %6888 = vmatpush1.bf16.msra.mxu0 %v4915
    %6889 = vmatprep.subr.bf16.mxu0 %v4924
    %6890 = vmatpush1.bf16.msra.mxu0 %v4923
    %6891 = vmatprep.subr.bf16.mxu0 %v4932
    %6892 = vmatpush1.bf16.msra.mxu0 %v4931
    %6893 = vmatprep.subr.bf16.mxu0 %v4940
    %6894 = vmatpush1.bf16.msra.mxu0 %v4939
    %6895 = vmatprep.subr.bf16.mxu0 %v4948
    %6896 = vmatpush1.bf16.msra.mxu0 %v4947
    %6897 = vmatprep.subr.bf16.mxu0 %v4956
    %6898 = vmatpush1.bf16.msra.mxu0 %v4955
    %6899 = vmatprep.subr.bf16.mxu0 %v4964
    %6900 = vmatpush1.bf16.msra.mxu0 %v4963
    %6901 = vmatprep.mubr.bf16.mxu0 %v1229
    %6902 = vmatmul.mubr.bf16.gmra.mrb[0].mxu0 %v1215
    %v6903 = vpop.f32.mrb[0].mxu0
    %v6904 = vadd.f32 %v6863, %v6903
    %v6905 = vpop.f32.mrb[0].mxu0
    %v6906 = vadd.f32 %v6865, %v6905
    %v6907 = vpop.f32.mrb[0].mxu0
    %v6908 = vpop.f32.mrb[0].mxu0
    %6909 = vdwg.mxu0
    %6910 = vmatprep.subr.bf16.mxu0 %v4972
    %6911 = vmatpush1.bf16.msra.mxu0 %v4971
    %6912 = vmatprep.subr.bf16.mxu0 %v4980
    %6913 = vmatpush1.bf16.msra.mxu0 %v4979
    %6914 = vmatprep.subr.bf16.mxu0 %v4988
    %6915 = vmatpush1.bf16.msra.mxu0 %v4987
    %6916 = vmatprep.subr.bf16.mxu0 %v4996
    %6917 = vmatpush1.bf16.msra.mxu0 %v4995
    %6918 = vmatprep.subr.bf16.mxu0 %v5004
    %6919 = vmatpush1.bf16.msra.mxu0 %v5003
    %6920 = vmatprep.subr.bf16.mxu0 %v5012
    %6921 = vmatpush1.bf16.msra.mxu0 %v5011
    %6922 = vmatprep.subr.bf16.mxu0 %v5020
    %6923 = vmatpush1.bf16.msra.mxu0 %v5019
    %6924 = vmatprep.subr.bf16.mxu0 %v5028
    %6925 = vmatpush1.bf16.msra.mxu0 %v5027
    %6926 = vmatprep.subr.bf16.mxu0 %v5036
    %6927 = vmatpush1.bf16.msra.mxu0 %v5035
    %6928 = vmatprep.subr.bf16.mxu0 %v5044
    %6929 = vmatpush1.bf16.msra.mxu0 %v5043
    %6930 = vmatprep.subr.bf16.mxu0 %v5052
    %6931 = vmatpush1.bf16.msra.mxu0 %v5051
    %6932 = vmatprep.subr.bf16.mxu0 %v5060
    %6933 = vmatpush1.bf16.msra.mxu0 %v5059
    %6934 = vmatprep.subr.bf16.mxu0 %v5068
    %6935 = vmatpush1.bf16.msra.mxu0 %v5067
    %6936 = vmatprep.subr.bf16.mxu0 %v5076
    %6937 = vmatpush1.bf16.msra.mxu0 %v5075
    %6938 = vmatprep.subr.bf16.mxu0 %v5084
    %6939 = vmatpush1.bf16.msra.mxu0 %v5083
    %6940 = vmatprep.subr.bf16.mxu0 %v5092
    %6941 = vmatpush1.bf16.msra.mxu0 %v5091
    %6942 = vmatprep.mubr.bf16.mxu0 %v1239
    %6943 = vmatmul.mubr.bf16.gmra.mrb[0].mxu0 %v1237
    %v6944 = vpop.f32.mrb[0].mxu0
    %v6945 = vadd.f32 %v6904, %v6944
    %v6946 = vpop.f32.mrb[0].mxu0
    %v6947 = vadd.f32 %v6906, %v6946
    %v6948 = vpop.f32.mrb[0].mxu0
    %v6949 = vpop.f32.mrb[0].mxu0
    %6950 = vdwg.mxu0
    %6951 = vmatprep.subr.bf16.mxu0 %v5100
    %6952 = vmatpush1.bf16.msra.mxu0 %v5099
    %6953 = vmatprep.subr.bf16.mxu0 %v5108
    %6954 = vmatpush1.bf16.msra.mxu0 %v5107
    %6955 = vmatprep.subr.bf16.mxu0 %v5116
    %6956 = vmatpush1.bf16.msra.mxu0 %v5115
    %6957 = vmatprep.subr.bf16.mxu0 %v5124
    %6958 = vmatpush1.bf16.msra.mxu0 %v5123
    %6959 = vmatprep.subr.bf16.mxu0 %v5132
    %6960 = vmatpush1.bf16.msra.mxu0 %v5131
    %6961 = vmatprep.subr.bf16.mxu0 %v5140
    %6962 = vmatpush1.bf16.msra.mxu0 %v5139
    %6963 = vmatprep.subr.bf16.mxu0 %v5148
    %6964 = vmatpush1.bf16.msra.mxu0 %v5147
    %6965 = vmatprep.subr.bf16.mxu0 %v5156
    %6966 = vmatpush1.bf16.msra.mxu0 %v5155
    %6967 = vmatprep.subr.bf16.mxu0 %v5164
    %6968 = vmatpush1.bf16.msra.mxu0 %v5163
    %6969 = vmatprep.subr.bf16.mxu0 %v5172
    %6970 = vmatpush1.bf16.msra.mxu0 %v5171
    %6971 = vmatprep.subr.bf16.mxu0 %v5180
    %6972 = vmatpush1.bf16.msra.mxu0 %v5179
    %6973 = vmatprep.subr.bf16.mxu0 %v5188
    %6974 = vmatpush1.bf16.msra.mxu0 %v5187
    %6975 = vmatprep.subr.bf16.mxu0 %v5196
    %6976 = vmatpush1.bf16.msra.mxu0 %v5195
    %6977 = vmatprep.subr.bf16.mxu0 %v5204
    %6978 = vmatpush1.bf16.msra.mxu0 %v5203
    %6979 = vmatprep.subr.bf16.mxu0 %v5212
    %6980 = vmatpush1.bf16.msra.mxu0 %v5211
    %6981 = vmatprep.subr.bf16.mxu0 %v5220
    %6982 = vmatpush1.bf16.msra.mxu0 %v5219
    %6983 = vmatprep.mubr.bf16.mxu0 %v1236
    %6984 = vmatmul.mubr.bf16.gmra.mrb[0].mxu0 %v1222
    %v6985 = vpop.f32.mrb[0].mxu0
    %v6986 = vadd.f32 %v6945, %v6985
    %v6987 = vpop.f32.mrb[0].mxu0
    %v6988 = vadd.f32 %v6947, %v6987
    %v6989 = vpop.f32.mrb[0].mxu0
    %v6990 = vpop.f32.mrb[0].mxu0
    %6991 = vdwg.mxu0
    %6992 = vmatprep.subr.bf16.mxu0 %v5228
    %6993 = vmatpush1.bf16.msra.mxu0 %v5227
    %6994 = vmatprep.subr.bf16.mxu0 %v5236
    %6995 = vmatpush1.bf16.msra.mxu0 %v5235
    %6996 = vmatprep.subr.bf16.mxu0 %v5244
    %6997 = vmatpush1.bf16.msra.mxu0 %v5243
    %6998 = vmatprep.subr.bf16.mxu0 %v5252
    %6999 = vmatpush1.bf16.msra.mxu0 %v5251
    %7000 = vmatprep.subr.bf16.mxu0 %v5260
    %7001 = vmatpush1.bf16.msra.mxu0 %v5259
    %7002 = vmatprep.subr.bf16.mxu0 %v5268
    %7003 = vmatpush1.bf16.msra.mxu0 %v5267
    %7004 = vmatprep.subr.bf16.mxu0 %v5276
    %7005 = vmatpush1.bf16.msra.mxu0 %v5275
    %7006 = vmatprep.subr.bf16.mxu0 %v5284
    %7007 = vmatpush1.bf16.msra.mxu0 %v5283
    %7008 = vmatprep.subr.bf16.mxu0 %v5292
    %7009 = vmatpush1.bf16.msra.mxu0 %v5291
    %7010 = vmatprep.subr.bf16.mxu0 %v5300
    %7011 = vmatpush1.bf16.msra.mxu0 %v5299
    %7012 = vmatprep.subr.bf16.mxu0 %v5308
    %7013 = vmatpush1.bf16.msra.mxu0 %v5307
    %7014 = vmatprep.subr.bf16.mxu0 %v5316
    %7015 = vmatpush1.bf16.msra.mxu0 %v5315
    %7016 = vmatprep.subr.bf16.mxu0 %v5324
    %7017 = vmatpush1.bf16.msra.mxu0 %v5323
    %7018 = vmatprep.subr.bf16.mxu0 %v5332
    %7019 = vmatpush1.bf16.msra.mxu0 %v5331
    %7020 = vmatprep.subr.bf16.mxu0 %v5340
    %7021 = vmatpush1.bf16.msra.mxu0 %v5339
    %7022 = vmatprep.subr.bf16.mxu0 %v5348
    %7023 = vmatpush1.bf16.msra.mxu0 %v5347
    %7024 = vmatprep.mubr.bf16.mxu0 %v1240
    %7025 = vmatmul.mubr.bf16.gmra.mrb[0].mxu0 %v1238
    %v7026 = vpop.f32.mrb[0].mxu0
    %v7027 = vadd.f32 %v6986, %v7026
    %v7028 = vpop.f32.mrb[0].mxu0
    %v7029 = vadd.f32 %v6988, %v7028
    %v7030 = vpop.f32.mrb[0].mxu0
    %v7031 = vpop.f32.mrb[0].mxu0
    %7032 = vdwg.mxu0
    %7033 = vmatprep.subr.bf16.mxu0 %v4334
    %7034 = vmatpush1.bf16.msra.mxu0 %v4333
    %7035 = vmatprep.subr.bf16.mxu0 %v4342
    %7036 = vmatpush1.bf16.msra.mxu0 %v4341
    %7037 = vmatprep.subr.bf16.mxu0 %v4350
    %7038 = vmatpush1.bf16.msra.mxu0 %v4349
    %7039 = vmatprep.subr.bf16.mxu0 %v4358
    %7040 = vmatpush1.bf16.msra.mxu0 %v4357
    %7041 = vmatprep.subr.bf16.mxu0 %v4366
    %7042 = vmatpush1.bf16.msra.mxu0 %v4365
    %7043 = vmatprep.subr.bf16.mxu0 %v4374
    %7044 = vmatpush1.bf16.msra.mxu0 %v4373
    %7045 = vmatprep.subr.bf16.mxu0 %v4382
    %7046 = vmatpush1.bf16.msra.mxu0 %v4381
    %7047 = vmatprep.subr.bf16.mxu0 %v4390
    %7048 = vmatpush1.bf16.msra.mxu0 %v4389
    %7049 = vmatprep.subr.bf16.mxu0 %v4398
    %7050 = vmatpush1.bf16.msra.mxu0 %v4397
    %7051 = vmatprep.subr.bf16.mxu0 %v4406
    %7052 = vmatpush1.bf16.msra.mxu0 %v4405
    %7053 = vmatprep.subr.bf16.mxu0 %v4414
    %7054 = vmatpush1.bf16.msra.mxu0 %v4413
    %7055 = vmatprep.subr.bf16.mxu0 %v4422
    %7056 = vmatpush1.bf16.msra.mxu0 %v4421
    %7057 = vmatprep.subr.bf16.mxu0 %v4430
    %7058 = vmatpush1.bf16.msra.mxu0 %v4429
    %7059 = vmatprep.subr.bf16.mxu0 %v4438
    %7060 = vmatpush1.bf16.msra.mxu0 %v4437
    %7061 = vmatprep.subr.bf16.mxu0 %v4446
    %7062 = vmatpush1.bf16.msra.mxu0 %v4445
    %7063 = vmatprep.subr.bf16.mxu0 %v4454
    %7064 = vmatpush1.bf16.msra.mxu0 %v4453
    %7065 = vmatprep.mubr.bf16.mxu0 %v1180
    %7066 = vmatmul.mubr.bf16.gmra.mrb[0].mxu0 %v1166
    %v7067 = vpop.f32.mrb[0].mxu0
    %v7068 = vadd.f32 %v1120, %v7067
    %v7069 = vpop.f32.mrb[0].mxu0
    %v7070 = vadd.f32 %v1124, %v7069
    %v7071 = vpop.f32.mrb[0].mxu0
    %v7072 = vpop.f32.mrb[0].mxu0
    %7073 = vdwg.mxu0
    %7074 = vmatprep.subr.bf16.mxu0 %v4462
    %7075 = vmatpush1.bf16.msra.mxu0 %v4461
    %7076 = vmatprep.subr.bf16.mxu0 %v4470
    %7077 = vmatpush1.bf16.msra.mxu0 %v4469
    %7078 = vmatprep.subr.bf16.mxu0 %v4478
    %7079 = vmatpush1.bf16.msra.mxu0 %v4477
    %7080 = vmatprep.subr.bf16.mxu0 %v4486
    %7081 = vmatpush1.bf16.msra.mxu0 %v4485
    %7082 = vmatprep.subr.bf16.mxu0 %v4494
    %7083 = vmatpush1.bf16.msra.mxu0 %v4493
    %7084 = vmatprep.subr.bf16.mxu0 %v4502
    %7085 = vmatpush1.bf16.msra.mxu0 %v4501
    %7086 = vmatprep.subr.bf16.mxu0 %v4510
    %7087 = vmatpush1.bf16.msra.mxu0 %v4509
    %7088 = vmatprep.subr.bf16.mxu0 %v4518
    %7089 = vmatpush1.bf16.msra.mxu0 %v4517
    %7090 = vmatprep.subr.bf16.mxu0 %v4526
    %7091 = vmatpush1.bf16.msra.mxu0 %v4525
    %7092 = vmatprep.subr.bf16.mxu0 %v4534
    %7093 = vmatpush1.bf16.msra.mxu0 %v4533
    %7094 = vmatprep.subr.bf16.mxu0 %v4542
    %7095 = vmatpush1.bf16.msra.mxu0 %v4541
    %7096 = vmatprep.subr.bf16.mxu0 %v4550
    %7097 = vmatpush1.bf16.msra.mxu0 %v4549
    %7098 = vmatprep.subr.bf16.mxu0 %v4558
    %7099 = vmatpush1.bf16.msra.mxu0 %v4557
    %7100 = vmatprep.subr.bf16.mxu0 %v4566
    %7101 = vmatpush1.bf16.msra.mxu0 %v4565
    %7102 = vmatprep.subr.bf16.mxu0 %v4574
    %7103 = vmatpush1.bf16.msra.mxu0 %v4573
    %7104 = vmatprep.subr.bf16.mxu0 %v4582
    %7105 = vmatpush1.bf16.msra.mxu0 %v4581
    %7106 = vmatprep.mubr.bf16.mxu0 %v1190
    %7107 = vmatmul.mubr.bf16.gmra.mrb[0].mxu0 %v1188
    %v7108 = vpop.f32.mrb[0].mxu0
    %v7109 = vadd.f32 %v7068, %v7108
    %v7110 = vpop.f32.mrb[0].mxu0
    %v7111 = vadd.f32 %v7070, %v7110
    %v7112 = vpop.f32.mrb[0].mxu0
    %v7113 = vpop.f32.mrb[0].mxu0
    %7114 = vdwg.mxu0
    %7115 = vmatprep.subr.bf16.mxu0 %v4590
    %7116 = vmatpush1.bf16.msra.mxu0 %v4589
    %7117 = vmatprep.subr.bf16.mxu0 %v4598
    %7118 = vmatpush1.bf16.msra.mxu0 %v4597
    %7119 = vmatprep.subr.bf16.mxu0 %v4606
    %7120 = vmatpush1.bf16.msra.mxu0 %v4605
    %7121 = vmatprep.subr.bf16.mxu0 %v4614
    %7122 = vmatpush1.bf16.msra.mxu0 %v4613
    %7123 = vmatprep.subr.bf16.mxu0 %v4622
    %7124 = vmatpush1.bf16.msra.mxu0 %v4621
    %7125 = vmatprep.subr.bf16.mxu0 %v4630
    %7126 = vmatpush1.bf16.msra.mxu0 %v4629
    %7127 = vmatprep.subr.bf16.mxu0 %v4638
    %7128 = vmatpush1.bf16.msra.mxu0 %v4637
    %7129 = vmatprep.subr.bf16.mxu0 %v4646
    %7130 = vmatpush1.bf16.msra.mxu0 %v4645
    %7131 = vmatprep.subr.bf16.mxu0 %v4654
    %7132 = vmatpush1.bf16.msra.mxu0 %v4653
    %7133 = vmatprep.subr.bf16.mxu0 %v4662
    %7134 = vmatpush1.bf16.msra.mxu0 %v4661
    %7135 = vmatprep.subr.bf16.mxu0 %v4670
    %7136 = vmatpush1.bf16.msra.mxu0 %v4669
    %7137 = vmatprep.subr.bf16.mxu0 %v4678
    %7138 = vmatpush1.bf16.msra.mxu0 %v4677
    %7139 = vmatprep.subr.bf16.mxu0 %v4686
    %7140 = vmatpush1.bf16.msra.mxu0 %v4685
    %7141 = vmatprep.subr.bf16.mxu0 %v4694
    %7142 = vmatpush1.bf16.msra.mxu0 %v4693
    %7143 = vmatprep.subr.bf16.mxu0 %v4702
    %7144 = vmatpush1.bf16.msra.mxu0 %v4701
    %7145 = vmatprep.subr.bf16.mxu0 %v4710
    %7146 = vmatpush1.bf16.msra.mxu0 %v4709
    %7147 = vmatprep.mubr.bf16.mxu0 %v1187
    %7148 = vmatmul.mubr.bf16.gmra.mrb[0].mxu0 %v1173
    %v7149 = vpop.f32.mrb[0].mxu0
    %v7150 = vadd.f32 %v7109, %v7149
    %v7151 = vpop.f32.mrb[0].mxu0
    %v7152 = vadd.f32 %v7111, %v7151
    %v7153 = vpop.f32.mrb[0].mxu0
    %v7154 = vpop.f32.mrb[0].mxu0
    %7155 = vdwg.mxu0
    %7156 = vmatprep.subr.bf16.mxu0 %v4718
    %7157 = vmatpush1.bf16.msra.mxu0 %v4717
    %7158 = vmatprep.subr.bf16.mxu0 %v4726
    %7159 = vmatpush1.bf16.msra.mxu0 %v4725
    %7160 = vmatprep.subr.bf16.mxu0 %v4734
    %7161 = vmatpush1.bf16.msra.mxu0 %v4733
    %7162 = vmatprep.subr.bf16.mxu0 %v4742
    %7163 = vmatpush1.bf16.msra.mxu0 %v4741
    %7164 = vmatprep.subr.bf16.mxu0 %v4750
    %7165 = vmatpush1.bf16.msra.mxu0 %v4749
    %7166 = vmatprep.subr.bf16.mxu0 %v4758
    %7167 = vmatpush1.bf16.msra.mxu0 %v4757
    %7168 = vmatprep.subr.bf16.mxu0 %v4766
    %7169 = vmatpush1.bf16.msra.mxu0 %v4765
    %7170 = vmatprep.subr.bf16.mxu0 %v4774
    %7171 = vmatpush1.bf16.msra.mxu0 %v4773
    %7172 = vmatprep.subr.bf16.mxu0 %v4782
    %7173 = vmatpush1.bf16.msra.mxu0 %v4781
    %7174 = vmatprep.subr.bf16.mxu0 %v4790
    %7175 = vmatpush1.bf16.msra.mxu0 %v4789
    %7176 = vmatprep.subr.bf16.mxu0 %v4798
    %7177 = vmatpush1.bf16.msra.mxu0 %v4797
    %7178 = vmatprep.subr.bf16.mxu0 %v4806
    %7179 = vmatpush1.bf16.msra.mxu0 %v4805
    %7180 = vmatprep.subr.bf16.mxu0 %v4814
    %7181 = vmatpush1.bf16.msra.mxu0 %v4813
    %7182 = vmatprep.subr.bf16.mxu0 %v4822
    %7183 = vmatpush1.bf16.msra.mxu0 %v4821
    %7184 = vmatprep.subr.bf16.mxu0 %v4830
    %7185 = vmatpush1.bf16.msra.mxu0 %v4829
    %7186 = vmatprep.subr.bf16.mxu0 %v4838
    %7187 = vmatpush1.bf16.msra.mxu0 %v4837
    %7188 = vmatprep.mubr.bf16.mxu0 %v1191
    %7189 = vmatmul.mubr.bf16.gmra.mrb[0].mxu0 %v1189
    %v7190 = vpop.f32.mrb[0].mxu0
    %v7191 = vadd.f32 %v7150, %v7190
    %v7192 = vpop.f32.mrb[0].mxu0
    %v7193 = vadd.f32 %v7152, %v7192
    %v7194 = vpop.f32.mrb[0].mxu0
    %v7195 = vpop.f32.mrb[0].mxu0
    %7196 = vdwg.mxu0
    %7197 = vmatprep.subr.bf16.mxu0 %v4846
    %7198 = vmatpush1.bf16.msra.mxu0 %v4845
    %7199 = vmatprep.subr.bf16.mxu0 %v4854
    %7200 = vmatpush1.bf16.msra.mxu0 %v4853
    %7201 = vmatprep.subr.bf16.mxu0 %v4862
    %7202 = vmatpush1.bf16.msra.mxu0 %v4861
    %7203 = vmatprep.subr.bf16.mxu0 %v4870
    %7204 = vmatpush1.bf16.msra.mxu0 %v4869
    %7205 = vmatprep.subr.bf16.mxu0 %v4878
    %7206 = vmatpush1.bf16.msra.mxu0 %v4877
    %7207 = vmatprep.subr.bf16.mxu0 %v4886
    %7208 = vmatpush1.bf16.msra.mxu0 %v4885
    %7209 = vmatprep.subr.bf16.mxu0 %v4894
    %7210 = vmatpush1.bf16.msra.mxu0 %v4893
    %7211 = vmatprep.subr.bf16.mxu0 %v4902
    %7212 = vmatpush1.bf16.msra.mxu0 %v4901
    %7213 = vmatprep.subr.bf16.mxu0 %v4910
    %7214 = vmatpush1.bf16.msra.mxu0 %v4909
    %7215 = vmatprep.subr.bf16.mxu0 %v4918
    %7216 = vmatpush1.bf16.msra.mxu0 %v4917
    %7217 = vmatprep.subr.bf16.mxu0 %v4926
    %7218 = vmatpush1.bf16.msra.mxu0 %v4925
    %7219 = vmatprep.subr.bf16.mxu0 %v4934
    %7220 = vmatpush1.bf16.msra.mxu0 %v4933
    %7221 = vmatprep.subr.bf16.mxu0 %v4942
    %7222 = vmatpush1.bf16.msra.mxu0 %v4941
    %7223 = vmatprep.subr.bf16.mxu0 %v4950
    %7224 = vmatpush1.bf16.msra.mxu0 %v4949
    %7225 = vmatprep.subr.bf16.mxu0 %v4958
    %7226 = vmatpush1.bf16.msra.mxu0 %v4957
    %7227 = vmatprep.subr.bf16.mxu0 %v4966
    %7228 = vmatpush1.bf16.msra.mxu0 %v4965
    %7229 = vmatprep.mubr.bf16.mxu0 %v1229
    %7230 = vmatmul.mubr.bf16.gmra.mrb[0].mxu0 %v1215
    %v7231 = vpop.f32.mrb[0].mxu0
    %v7232 = vadd.f32 %v7191, %v7231
    %v7233 = vpop.f32.mrb[0].mxu0
    %v7234 = vadd.f32 %v7193, %v7233
    %v7235 = vpop.f32.mrb[0].mxu0
    %v7236 = vpop.f32.mrb[0].mxu0
    %7237 = vdwg.mxu0
    %7238 = vmatprep.subr.bf16.mxu0 %v4974
    %7239 = vmatpush1.bf16.msra.mxu0 %v4973
    %7240 = vmatprep.subr.bf16.mxu0 %v4982
    %7241 = vmatpush1.bf16.msra.mxu0 %v4981
    %7242 = vmatprep.subr.bf16.mxu0 %v4990
    %7243 = vmatpush1.bf16.msra.mxu0 %v4989
    %7244 = vmatprep.subr.bf16.mxu0 %v4998
    %7245 = vmatpush1.bf16.msra.mxu0 %v4997
    %7246 = vmatprep.subr.bf16.mxu0 %v5006
    %7247 = vmatpush1.bf16.msra.mxu0 %v5005
    %7248 = vmatprep.subr.bf16.mxu0 %v5014
    %7249 = vmatpush1.bf16.msra.mxu0 %v5013
    %7250 = vmatprep.subr.bf16.mxu0 %v5022
    %7251 = vmatpush1.bf16.msra.mxu0 %v5021
    %7252 = vmatprep.subr.bf16.mxu0 %v5030
    %7253 = vmatpush1.bf16.msra.mxu0 %v5029
    %7254 = vmatprep.subr.bf16.mxu0 %v5038
    %7255 = vmatpush1.bf16.msra.mxu0 %v5037
    %7256 = vmatprep.subr.bf16.mxu0 %v5046
    %7257 = vmatpush1.bf16.msra.mxu0 %v5045
    %7258 = vmatprep.subr.bf16.mxu0 %v5054
    %7259 = vmatpush1.bf16.msra.mxu0 %v5053
    %7260 = vmatprep.subr.bf16.mxu0 %v5062
    %7261 = vmatpush1.bf16.msra.mxu0 %v5061
    %7262 = vmatprep.subr.bf16.mxu0 %v5070
    %7263 = vmatpush1.bf16.msra.mxu0 %v5069
    %7264 = vmatprep.subr.bf16.mxu0 %v5078
    %7265 = vmatpush1.bf16.msra.mxu0 %v5077
    %7266 = vmatprep.subr.bf16.mxu0 %v5086
    %7267 = vmatpush1.bf16.msra.mxu0 %v5085
    %7268 = vmatprep.subr.bf16.mxu0 %v5094
    %7269 = vmatpush1.bf16.msra.mxu0 %v5093
    %7270 = vmatprep.mubr.bf16.mxu0 %v1239
    %7271 = vmatmul.mubr.bf16.gmra.mrb[0].mxu0 %v1237
    %v7272 = vpop.f32.mrb[0].mxu0
    %v7273 = vadd.f32 %v7232, %v7272
    %v7274 = vpop.f32.mrb[0].mxu0
    %v7275 = vadd.f32 %v7234, %v7274
    %v7276 = vpop.f32.mrb[0].mxu0
    %v7277 = vpop.f32.mrb[0].mxu0
    %7278 = vdwg.mxu0
    %7279 = vmatprep.subr.bf16.mxu0 %v5102
    %7280 = vmatpush1.bf16.msra.mxu0 %v5101
    %7281 = vmatprep.subr.bf16.mxu0 %v5110
    %7282 = vmatpush1.bf16.msra.mxu0 %v5109
    %7283 = vmatprep.subr.bf16.mxu0 %v5118
    %7284 = vmatpush1.bf16.msra.mxu0 %v5117
    %7285 = vmatprep.subr.bf16.mxu0 %v5126
    %7286 = vmatpush1.bf16.msra.mxu0 %v5125
    %7287 = vmatprep.subr.bf16.mxu0 %v5134
    %7288 = vmatpush1.bf16.msra.mxu0 %v5133
    %7289 = vmatprep.subr.bf16.mxu0 %v5142
    %7290 = vmatpush1.bf16.msra.mxu0 %v5141
    %7291 = vmatprep.subr.bf16.mxu0 %v5150
    %7292 = vmatpush1.bf16.msra.mxu0 %v5149
    %7293 = vmatprep.subr.bf16.mxu0 %v5158
    %7294 = vmatpush1.bf16.msra.mxu0 %v5157
    %7295 = vmatprep.subr.bf16.mxu0 %v5166
    %7296 = vmatpush1.bf16.msra.mxu0 %v5165
    %7297 = vmatprep.subr.bf16.mxu0 %v5174
    %7298 = vmatpush1.bf16.msra.mxu0 %v5173
    %7299 = vmatprep.subr.bf16.mxu0 %v5182
    %7300 = vmatpush1.bf16.msra.mxu0 %v5181
    %7301 = vmatprep.subr.bf16.mxu0 %v5190
    %7302 = vmatpush1.bf16.msra.mxu0 %v5189
    %7303 = vmatprep.subr.bf16.mxu0 %v5198
    %7304 = vmatpush1.bf16.msra.mxu0 %v5197
    %7305 = vmatprep.subr.bf16.mxu0 %v5206
    %7306 = vmatpush1.bf16.msra.mxu0 %v5205
    %7307 = vmatprep.subr.bf16.mxu0 %v5214
    %7308 = vmatpush1.bf16.msra.mxu0 %v5213
    %7309 = vmatprep.subr.bf16.mxu0 %v5222
    %7310 = vmatpush1.bf16.msra.mxu0 %v5221
    %7311 = vmatprep.mubr.bf16.mxu0 %v1236
    %7312 = vmatmul.mubr.bf16.gmra.mrb[0].mxu0 %v1222
    %v7313 = vpop.f32.mrb[0].mxu0
    %v7314 = vadd.f32 %v7273, %v7313
    %v7315 = vpop.f32.mrb[0].mxu0
    %v7316 = vadd.f32 %v7275, %v7315
    %v7317 = vpop.f32.mrb[0].mxu0
    %v7318 = vpop.f32.mrb[0].mxu0
    %7319 = vdwg.mxu0
    %7320 = vmatprep.subr.bf16.mxu0 %v5230
    %7321 = vmatpush1.bf16.msra.mxu0 %v5229
    %7322 = vmatprep.subr.bf16.mxu0 %v5238
    %7323 = vmatpush1.bf16.msra.mxu0 %v5237
    %7324 = vmatprep.subr.bf16.mxu0 %v5246
    %7325 = vmatpush1.bf16.msra.mxu0 %v5245
    %7326 = vmatprep.subr.bf16.mxu0 %v5254
    %7327 = vmatpush1.bf16.msra.mxu0 %v5253
    %7328 = vmatprep.subr.bf16.mxu0 %v5262
    %7329 = vmatpush1.bf16.msra.mxu0 %v5261
    %7330 = vmatprep.subr.bf16.mxu0 %v5270
    %7331 = vmatpush1.bf16.msra.mxu0 %v5269
    %7332 = vmatprep.subr.bf16.mxu0 %v5278
    %7333 = vmatpush1.bf16.msra.mxu0 %v5277
    %7334 = vmatprep.subr.bf16.mxu0 %v5286
    %7335 = vmatpush1.bf16.msra.mxu0 %v5285
    %7336 = vmatprep.subr.bf16.mxu0 %v5294
    %7337 = vmatpush1.bf16.msra.mxu0 %v5293
    %7338 = vmatprep.subr.bf16.mxu0 %v5302
    %7339 = vmatpush1.bf16.msra.mxu0 %v5301
    %7340 = vmatprep.subr.bf16.mxu0 %v5310
    %7341 = vmatpush1.bf16.msra.mxu0 %v5309
    %7342 = vmatprep.subr.bf16.mxu0 %v5318
    %7343 = vmatpush1.bf16.msra.mxu0 %v5317
    %7344 = vmatprep.subr.bf16.mxu0 %v5326
    %7345 = vmatpush1.bf16.msra.mxu0 %v5325
    %7346 = vmatprep.subr.bf16.mxu0 %v5334
    %7347 = vmatpush1.bf16.msra.mxu0 %v5333
    %7348 = vmatprep.subr.bf16.mxu0 %v5342
    %7349 = vmatpush1.bf16.msra.mxu0 %v5341
    %7350 = vmatprep.subr.bf16.mxu0 %v5350
    %7351 = vmatpush1.bf16.msra.mxu0 %v5349
    %7352 = vmatprep.mubr.bf16.mxu0 %v1240
    %7353 = vmatmul.mubr.bf16.gmra.mrb[0].mxu0 %v1238
    %v7354 = vpop.f32.mrb[0].mxu0
    %v7355 = vadd.f32 %v7314, %v7354
    %v7356 = vpop.f32.mrb[0].mxu0
    %v7357 = vadd.f32 %v7316, %v7356
    %v7358 = vpop.f32.mrb[0].mxu0
    %v7359 = vpop.f32.mrb[0].mxu0
    %7360 = vdwg.mxu0
    %7361 = vmatprep.subr.bf16.mxu0 %v4336
    %7362 = vmatpush1.bf16.msra.mxu0 %v4335
    %7363 = vmatprep.subr.bf16.mxu0 %v4344
    %7364 = vmatpush1.bf16.msra.mxu0 %v4343
    %7365 = vmatprep.subr.bf16.mxu0 %v4352
    %7366 = vmatpush1.bf16.msra.mxu0 %v4351
    %7367 = vmatprep.subr.bf16.mxu0 %v4360
    %7368 = vmatpush1.bf16.msra.mxu0 %v4359
    %7369 = vmatprep.subr.bf16.mxu0 %v4368
    %7370 = vmatpush1.bf16.msra.mxu0 %v4367
    %7371 = vmatprep.subr.bf16.mxu0 %v4376
    %7372 = vmatpush1.bf16.msra.mxu0 %v4375
    %7373 = vmatprep.subr.bf16.mxu0 %v4384
    %7374 = vmatpush1.bf16.msra.mxu0 %v4383
    %7375 = vmatprep.subr.bf16.mxu0 %v4392
    %7376 = vmatpush1.bf16.msra.mxu0 %v4391
    %7377 = vmatprep.subr.bf16.mxu0 %v4400
    %7378 = vmatpush1.bf16.msra.mxu0 %v4399
    %7379 = vmatprep.subr.bf16.mxu0 %v4408
    %7380 = vmatpush1.bf16.msra.mxu0 %v4407
    %7381 = vmatprep.subr.bf16.mxu0 %v4416
    %7382 = vmatpush1.bf16.msra.mxu0 %v4415
    %7383 = vmatprep.subr.bf16.mxu0 %v4424
    %7384 = vmatpush1.bf16.msra.mxu0 %v4423
    %7385 = vmatprep.subr.bf16.mxu0 %v4432
    %7386 = vmatpush1.bf16.msra.mxu0 %v4431
    %7387 = vmatprep.subr.bf16.mxu0 %v4440
    %7388 = vmatpush1.bf16.msra.mxu0 %v4439
    %7389 = vmatprep.subr.bf16.mxu0 %v4448
    %7390 = vmatpush1.bf16.msra.mxu0 %v4447
    %7391 = vmatprep.subr.bf16.mxu0 %v4456
    %7392 = vmatpush1.bf16.msra.mxu0 %v4455
    %7393 = vmatprep.mubr.bf16.mxu0 %v1180
    %7394 = vmatmul.mubr.bf16.gmra.mrb[0].mxu0 %v1166
    %v7395 = vpop.f32.mrb[0].mxu0
    %v7396 = vadd.f32 %v1128, %v7395
    %v7397 = vpop.f32.mrb[0].mxu0
    %v7398 = vadd.f32 %v1132, %v7397
    %v7399 = vpop.f32.mrb[0].mxu0
    %v7400 = vpop.f32.mrb[0].mxu0
    %7401 = vdwg.mxu0
    %7402 = vmatprep.subr.bf16.mxu0 %v4464
    %7403 = vmatpush1.bf16.msra.mxu0 %v4463
    %7404 = vmatprep.subr.bf16.mxu0 %v4472
    %7405 = vmatpush1.bf16.msra.mxu0 %v4471
    %7406 = vmatprep.subr.bf16.mxu0 %v4480
    %7407 = vmatpush1.bf16.msra.mxu0 %v4479
    %7408 = vmatprep.subr.bf16.mxu0 %v4488
    %7409 = vmatpush1.bf16.msra.mxu0 %v4487
    %7410 = vmatprep.subr.bf16.mxu0 %v4496
    %7411 = vmatpush1.bf16.msra.mxu0 %v4495
    %7412 = vmatprep.subr.bf16.mxu0 %v4504
    %7413 = vmatpush1.bf16.msra.mxu0 %v4503
    %7414 = vmatprep.subr.bf16.mxu0 %v4512
    %7415 = vmatpush1.bf16.msra.mxu0 %v4511
    %7416 = vmatprep.subr.bf16.mxu0 %v4520
    %7417 = vmatpush1.bf16.msra.mxu0 %v4519
    %7418 = vmatprep.subr.bf16.mxu0 %v4528
    %7419 = vmatpush1.bf16.msra.mxu0 %v4527
    %7420 = vmatprep.subr.bf16.mxu0 %v4536
    %7421 = vmatpush1.bf16.msra.mxu0 %v4535
    %7422 = vmatprep.subr.bf16.mxu0 %v4544
    %7423 = vmatpush1.bf16.msra.mxu0 %v4543
    %7424 = vmatprep.subr.bf16.mxu0 %v4552
    %7425 = vmatpush1.bf16.msra.mxu0 %v4551
    %7426 = vmatprep.subr.bf16.mxu0 %v4560
    %7427 = vmatpush1.bf16.msra.mxu0 %v4559
    %7428 = vmatprep.subr.bf16.mxu0 %v4568
    %7429 = vmatpush1.bf16.msra.mxu0 %v4567
    %7430 = vmatprep.subr.bf16.mxu0 %v4576
    %7431 = vmatpush1.bf16.msra.mxu0 %v4575
    %7432 = vmatprep.subr.bf16.mxu0 %v4584
    %7433 = vmatpush1.bf16.msra.mxu0 %v4583
    %7434 = vmatprep.mubr.bf16.mxu0 %v1190
    %7435 = vmatmul.mubr.bf16.gmra.mrb[0].mxu0 %v1188
    %v7436 = vpop.f32.mrb[0].mxu0
    %v7437 = vadd.f32 %v7396, %v7436
    %v7438 = vpop.f32.mrb[0].mxu0
    %v7439 = vadd.f32 %v7398, %v7438
    %v7440 = vpop.f32.mrb[0].mxu0
    %v7441 = vpop.f32.mrb[0].mxu0
    %7442 = vdwg.mxu0
    %7443 = vmatprep.subr.bf16.mxu0 %v4592
    %7444 = vmatpush1.bf16.msra.mxu0 %v4591
    %7445 = vmatprep.subr.bf16.mxu0 %v4600
    %7446 = vmatpush1.bf16.msra.mxu0 %v4599
    %7447 = vmatprep.subr.bf16.mxu0 %v4608
    %7448 = vmatpush1.bf16.msra.mxu0 %v4607
    %7449 = vmatprep.subr.bf16.mxu0 %v4616
    %7450 = vmatpush1.bf16.msra.mxu0 %v4615
    %7451 = vmatprep.subr.bf16.mxu0 %v4624
    %7452 = vmatpush1.bf16.msra.mxu0 %v4623
    %7453 = vmatprep.subr.bf16.mxu0 %v4632
    %7454 = vmatpush1.bf16.msra.mxu0 %v4631
    %7455 = vmatprep.subr.bf16.mxu0 %v4640
    %7456 = vmatpush1.bf16.msra.mxu0 %v4639
    %7457 = vmatprep.subr.bf16.mxu0 %v4648
    %7458 = vmatpush1.bf16.msra.mxu0 %v4647
    %7459 = vmatprep.subr.bf16.mxu0 %v4656
    %7460 = vmatpush1.bf16.msra.mxu0 %v4655
    %7461 = vmatprep.subr.bf16.mxu0 %v4664
    %7462 = vmatpush1.bf16.msra.mxu0 %v4663
    %7463 = vmatprep.subr.bf16.mxu0 %v4672
    %7464 = vmatpush1.bf16.msra.mxu0 %v4671
    %7465 = vmatprep.subr.bf16.mxu0 %v4680
    %7466 = vmatpush1.bf16.msra.mxu0 %v4679
    %7467 = vmatprep.subr.bf16.mxu0 %v4688
    %7468 = vmatpush1.bf16.msra.mxu0 %v4687
    %7469 = vmatprep.subr.bf16.mxu0 %v4696
    %7470 = vmatpush1.bf16.msra.mxu0 %v4695
    %7471 = vmatprep.subr.bf16.mxu0 %v4704
    %7472 = vmatpush1.bf16.msra.mxu0 %v4703
    %7473 = vmatprep.subr.bf16.mxu0 %v4712
    %7474 = vmatpush1.bf16.msra.mxu0 %v4711
    %7475 = vmatprep.mubr.bf16.mxu0 %v1187
    %7476 = vmatmul.mubr.bf16.gmra.mrb[0].mxu0 %v1173
    %v7477 = vpop.f32.mrb[0].mxu0
    %v7478 = vadd.f32 %v7437, %v7477
    %v7479 = vpop.f32.mrb[0].mxu0
    %v7480 = vadd.f32 %v7439, %v7479
    %v7481 = vpop.f32.mrb[0].mxu0
    %v7482 = vpop.f32.mrb[0].mxu0
    %7483 = vdwg.mxu0
    %7484 = vmatprep.subr.bf16.mxu0 %v4720
    %7485 = vmatpush1.bf16.msra.mxu0 %v4719
    %7486 = vmatprep.subr.bf16.mxu0 %v4728
    %7487 = vmatpush1.bf16.msra.mxu0 %v4727
    %7488 = vmatprep.subr.bf16.mxu0 %v4736
    %7489 = vmatpush1.bf16.msra.mxu0 %v4735
    %7490 = vmatprep.subr.bf16.mxu0 %v4744
    %7491 = vmatpush1.bf16.msra.mxu0 %v4743
    %7492 = vmatprep.subr.bf16.mxu0 %v4752
    %7493 = vmatpush1.bf16.msra.mxu0 %v4751
    %7494 = vmatprep.subr.bf16.mxu0 %v4760
    %7495 = vmatpush1.bf16.msra.mxu0 %v4759
    %7496 = vmatprep.subr.bf16.mxu0 %v4768
    %7497 = vmatpush1.bf16.msra.mxu0 %v4767
    %7498 = vmatprep.subr.bf16.mxu0 %v4776
    %7499 = vmatpush1.bf16.msra.mxu0 %v4775
    %7500 = vmatprep.subr.bf16.mxu0 %v4784
    %7501 = vmatpush1.bf16.msra.mxu0 %v4783
    %7502 = vmatprep.subr.bf16.mxu0 %v4792
    %7503 = vmatpush1.bf16.msra.mxu0 %v4791
    %7504 = vmatprep.subr.bf16.mxu0 %v4800
    %7505 = vmatpush1.bf16.msra.mxu0 %v4799
    %7506 = vmatprep.subr.bf16.mxu0 %v4808
    %7507 = vmatpush1.bf16.msra.mxu0 %v4807
    %7508 = vmatprep.subr.bf16.mxu0 %v4816
    %7509 = vmatpush1.bf16.msra.mxu0 %v4815
    %7510 = vmatprep.subr.bf16.mxu0 %v4824
    %7511 = vmatpush1.bf16.msra.mxu0 %v4823
    %7512 = vmatprep.subr.bf16.mxu0 %v4832
    %7513 = vmatpush1.bf16.msra.mxu0 %v4831
    %7514 = vmatprep.subr.bf16.mxu0 %v4840
    %7515 = vmatpush1.bf16.msra.mxu0 %v4839
    %7516 = vmatprep.mubr.bf16.mxu0 %v1191
    %7517 = vmatmul.mubr.bf16.gmra.mrb[0].mxu0 %v1189
    %v7518 = vpop.f32.mrb[0].mxu0
    %v7519 = vadd.f32 %v7478, %v7518
    %v7520 = vpop.f32.mrb[0].mxu0
    %v7521 = vadd.f32 %v7480, %v7520
    %v7522 = vpop.f32.mrb[0].mxu0
    %v7523 = vpop.f32.mrb[0].mxu0
    %7524 = vdwg.mxu0
    %7525 = vmatprep.subr.bf16.mxu0 %v4848
    %7526 = vmatpush1.bf16.msra.mxu0 %v4847
    %7527 = vmatprep.subr.bf16.mxu0 %v4856
    %7528 = vmatpush1.bf16.msra.mxu0 %v4855
    %7529 = vmatprep.subr.bf16.mxu0 %v4864
    %7530 = vmatpush1.bf16.msra.mxu0 %v4863
    %7531 = vmatprep.subr.bf16.mxu0 %v4872
    %7532 = vmatpush1.bf16.msra.mxu0 %v4871
    %7533 = vmatprep.subr.bf16.mxu0 %v4880
    %7534 = vmatpush1.bf16.msra.mxu0 %v4879
    %7535 = vmatprep.subr.bf16.mxu0 %v4888
    %7536 = vmatpush1.bf16.msra.mxu0 %v4887
    %7537 = vmatprep.subr.bf16.mxu0 %v4896
    %7538 = vmatpush1.bf16.msra.mxu0 %v4895
    %7539 = vmatprep.subr.bf16.mxu0 %v4904
    %7540 = vmatpush1.bf16.msra.mxu0 %v4903
    %7541 = vmatprep.subr.bf16.mxu0 %v4912
    %7542 = vmatpush1.bf16.msra.mxu0 %v4911
    %7543 = vmatprep.subr.bf16.mxu0 %v4920
    %7544 = vmatpush1.bf16.msra.mxu0 %v4919
    %7545 = vmatprep.subr.bf16.mxu0 %v4928
    %7546 = vmatpush1.bf16.msra.mxu0 %v4927
    %7547 = vmatprep.subr.bf16.mxu0 %v4936
    %7548 = vmatpush1.bf16.msra.mxu0 %v4935
    %7549 = vmatprep.subr.bf16.mxu0 %v4944
    %7550 = vmatpush1.bf16.msra.mxu0 %v4943
    %7551 = vmatprep.subr.bf16.mxu0 %v4952
    %7552 = vmatpush1.bf16.msra.mxu0 %v4951
    %7553 = vmatprep.subr.bf16.mxu0 %v4960
    %7554 = vmatpush1.bf16.msra.mxu0 %v4959
    %7555 = vmatprep.subr.bf16.mxu0 %v4968
    %7556 = vmatpush1.bf16.msra.mxu0 %v4967
    %7557 = vmatprep.mubr.bf16.mxu0 %v1229
    %7558 = vmatmul.mubr.bf16.gmra.mrb[0].mxu0 %v1215
    %v7559 = vpop.f32.mrb[0].mxu0
    %v7560 = vadd.f32 %v7519, %v7559
    %v7561 = vpop.f32.mrb[0].mxu0
    %v7562 = vadd.f32 %v7521, %v7561
    %v7563 = vpop.f32.mrb[0].mxu0
    %v7564 = vpop.f32.mrb[0].mxu0
    %7565 = vdwg.mxu0
    %7566 = vmatprep.subr.bf16.mxu0 %v4976
    %7567 = vmatpush1.bf16.msra.mxu0 %v4975
    %7568 = vmatprep.subr.bf16.mxu0 %v4984
    %7569 = vmatpush1.bf16.msra.mxu0 %v4983
    %7570 = vmatprep.subr.bf16.mxu0 %v4992
    %7571 = vmatpush1.bf16.msra.mxu0 %v4991
    %7572 = vmatprep.subr.bf16.mxu0 %v5000
    %7573 = vmatpush1.bf16.msra.mxu0 %v4999
    %7574 = vmatprep.subr.bf16.mxu0 %v5008
    %7575 = vmatpush1.bf16.msra.mxu0 %v5007
    %7576 = vmatprep.subr.bf16.mxu0 %v5016
    %7577 = vmatpush1.bf16.msra.mxu0 %v5015
    %7578 = vmatprep.subr.bf16.mxu0 %v5024
    %7579 = vmatpush1.bf16.msra.mxu0 %v5023
    %7580 = vmatprep.subr.bf16.mxu0 %v5032
    %7581 = vmatpush1.bf16.msra.mxu0 %v5031
    %7582 = vmatprep.subr.bf16.mxu0 %v5040
    %7583 = vmatpush1.bf16.msra.mxu0 %v5039
    %7584 = vmatprep.subr.bf16.mxu0 %v5048
    %7585 = vmatpush1.bf16.msra.mxu0 %v5047
    %7586 = vmatprep.subr.bf16.mxu0 %v5056
    %7587 = vmatpush1.bf16.msra.mxu0 %v5055
    %7588 = vmatprep.subr.bf16.mxu0 %v5064
    %7589 = vmatpush1.bf16.msra.mxu0 %v5063
    %7590 = vmatprep.subr.bf16.mxu0 %v5072
    %7591 = vmatpush1.bf16.msra.mxu0 %v5071
    %7592 = vmatprep.subr.bf16.mxu0 %v5080
    %7593 = vmatpush1.bf16.msra.mxu0 %v5079
    %7594 = vmatprep.subr.bf16.mxu0 %v5088
    %7595 = vmatpush1.bf16.msra.mxu0 %v5087
    %7596 = vmatprep.subr.bf16.mxu0 %v5096
    %7597 = vmatpush1.bf16.msra.mxu0 %v5095
    %7598 = vmatprep.mubr.bf16.mxu0 %v1239
    %7599 = vmatmul.mubr.bf16.gmra.mrb[0].mxu0 %v1237
    %v7600 = vpop.f32.mrb[0].mxu0
    %v7601 = vadd.f32 %v7560, %v7600
    %v7602 = vpop.f32.mrb[0].mxu0
    %v7603 = vadd.f32 %v7562, %v7602
    %v7604 = vpop.f32.mrb[0].mxu0
    %v7605 = vpop.f32.mrb[0].mxu0
    %7606 = vdwg.mxu0
    %7607 = vmatprep.subr.bf16.mxu0 %v5104
    %7608 = vmatpush1.bf16.msra.mxu0 %v5103
    %7609 = vmatprep.subr.bf16.mxu0 %v5112
    %7610 = vmatpush1.bf16.msra.mxu0 %v5111
    %7611 = vmatprep.subr.bf16.mxu0 %v5120
    %7612 = vmatpush1.bf16.msra.mxu0 %v5119
    %7613 = vmatprep.subr.bf16.mxu0 %v5128
    %7614 = vmatpush1.bf16.msra.mxu0 %v5127
    %7615 = vmatprep.subr.bf16.mxu0 %v5136
    %7616 = vmatpush1.bf16.msra.mxu0 %v5135
    %7617 = vmatprep.subr.bf16.mxu0 %v5144
    %7618 = vmatpush1.bf16.msra.mxu0 %v5143
    %7619 = vmatprep.subr.bf16.mxu0 %v5152
    %7620 = vmatpush1.bf16.msra.mxu0 %v5151
    %7621 = vmatprep.subr.bf16.mxu0 %v5160
    %7622 = vmatpush1.bf16.msra.mxu0 %v5159
    %7623 = vmatprep.subr.bf16.mxu0 %v5168
    %7624 = vmatpush1.bf16.msra.mxu0 %v5167
    %7625 = vmatprep.subr.bf16.mxu0 %v5176
    %7626 = vmatpush1.bf16.msra.mxu0 %v5175
    %7627 = vmatprep.subr.bf16.mxu0 %v5184
    %7628 = vmatpush1.bf16.msra.mxu0 %v5183
    %7629 = vmatprep.subr.bf16.mxu0 %v5192
    %7630 = vmatpush1.bf16.msra.mxu0 %v5191
    %7631 = vmatprep.subr.bf16.mxu0 %v5200
    %7632 = vmatpush1.bf16.msra.mxu0 %v5199
    %7633 = vmatprep.subr.bf16.mxu0 %v5208
    %7634 = vmatpush1.bf16.msra.mxu0 %v5207
    %7635 = vmatprep.subr.bf16.mxu0 %v5216
    %7636 = vmatpush1.bf16.msra.mxu0 %v5215
    %7637 = vmatprep.subr.bf16.mxu0 %v5224
    %7638 = vmatpush1.bf16.msra.mxu0 %v5223
    %7639 = vmatprep.mubr.bf16.mxu0 %v1236
    %7640 = vmatmul.mubr.bf16.gmra.mrb[0].mxu0 %v1222
    %v7641 = vpop.f32.mrb[0].mxu0
    %v7642 = vadd.f32 %v7601, %v7641
    %v7643 = vpop.f32.mrb[0].mxu0
    %v7644 = vadd.f32 %v7603, %v7643
    %v7645 = vpop.f32.mrb[0].mxu0
    %v7646 = vpop.f32.mrb[0].mxu0
    %7647 = vdwg.mxu0
    %7648 = vmatprep.subr.bf16.mxu0 %v5232
    %7649 = vmatpush1.bf16.msra.mxu0 %v5231
    %7650 = vmatprep.subr.bf16.mxu0 %v5240
    %7651 = vmatpush1.bf16.msra.mxu0 %v5239
    %7652 = vmatprep.subr.bf16.mxu0 %v5248
    %7653 = vmatpush1.bf16.msra.mxu0 %v5247
    %7654 = vmatprep.subr.bf16.mxu0 %v5256
    %7655 = vmatpush1.bf16.msra.mxu0 %v5255
    %7656 = vmatprep.subr.bf16.mxu0 %v5264
    %7657 = vmatpush1.bf16.msra.mxu0 %v5263
    %7658 = vmatprep.subr.bf16.mxu0 %v5272
    %7659 = vmatpush1.bf16.msra.mxu0 %v5271
    %7660 = vmatprep.subr.bf16.mxu0 %v5280
    %7661 = vmatpush1.bf16.msra.mxu0 %v5279
    %7662 = vmatprep.subr.bf16.mxu0 %v5288
    %7663 = vmatpush1.bf16.msra.mxu0 %v5287
    %7664 = vmatprep.subr.bf16.mxu0 %v5296
    %7665 = vmatpush1.bf16.msra.mxu0 %v5295
    %7666 = vmatprep.subr.bf16.mxu0 %v5304
    %7667 = vmatpush1.bf16.msra.mxu0 %v5303
    %7668 = vmatprep.subr.bf16.mxu0 %v5312
    %7669 = vmatpush1.bf16.msra.mxu0 %v5311
    %7670 = vmatprep.subr.bf16.mxu0 %v5320
    %7671 = vmatpush1.bf16.msra.mxu0 %v5319
    %7672 = vmatprep.subr.bf16.mxu0 %v5328
    %7673 = vmatpush1.bf16.msra.mxu0 %v5327
    %7674 = vmatprep.subr.bf16.mxu0 %v5336
    %7675 = vmatpush1.bf16.msra.mxu0 %v5335
    %7676 = vmatprep.subr.bf16.mxu0 %v5344
    %7677 = vmatpush1.bf16.msra.mxu0 %v5343
    %7678 = vmatprep.subr.bf16.mxu0 %v5352
    %7679 = vmatpush1.bf16.msra.mxu0 %v5351
    %7680 = vmatprep.mubr.bf16.mxu0 %v1240
    %7681 = vmatmul.mubr.bf16.gmra.mrb[0].mxu0 %v1238
    %v7682 = vpop.f32.mrb[0].mxu0
    %v7683 = vadd.f32 %v7642, %v7682
    %v7684 = vpop.f32.mrb[0].mxu0
    %v7685 = vadd.f32 %v7644, %v7684
    %v7686 = vpop.f32.mrb[0].mxu0
    %v7687 = vpop.f32.mrb[0].mxu0
    %7688 = vdwg.mxu0
    %v7689 = vmax.f32 %v6699, 0.0
    %v7690 = vmax.f32 %v6701, 0.0
    %v7691 = vmax.f32 %v7027, 0.0
    %v7692 = vmax.f32 %v7029, 0.0
    %v7693 = vmax.f32 %v7355, 0.0
    %v7694 = vmax.f32 %v7357, 0.0
    %v7695 = vmax.f32 %v7683, 0.0
    %v7696 = vmax.f32 %v7685, 0.0
    %v7697 = vpack.c.bf16 %v7689, %v7689
    %v7698 = vpack.c.bf16 %v7690, %v7690
    %v7699 = vpack.c.bf16 %v7691, %v7691
    %v7700 = vpack.c.bf16 %v7692, %v7692
    %v7701 = vpack.c.bf16 %v7693, %v7693
    %v7702 = vpack.c.bf16 %v7694, %v7694
    %v7703 = vpack.c.bf16 %v7695, %v7695
    %v7704 = vpack.c.bf16 %v7696, %v7696
    %v7705 = vld [vmem:[#allocation7] sm:$0xf]
    %v7706 = vld [vmem:[#allocation7 + $0x4] sm:$0xf]
    %v7707 = vld [vmem:[#allocation7 + $0x8] sm:$0xf]
    %v7708 = vld [vmem:[#allocation7 + $0xc] sm:$0xf]
    %v7709 = vld [vmem:[#allocation7 + $0x10] sm:$0xf]
    %v7710 = vld [vmem:[#allocation7 + $0x14] sm:$0xf]
    %v7711 = vld [vmem:[#allocation7 + $0x18] sm:$0xf]
    %v7712 = vld [vmem:[#allocation7 + $0x1c] sm:$0xf]
    %v7713 = vld [vmem:[#allocation7 + $0x20] sm:$0xf]
    %v7714 = vld [vmem:[#allocation7 + $0x24] sm:$0xf]
    %v7715 = vld [vmem:[#allocation7 + $0x28] sm:$0xf]
    %v7716 = vld [vmem:[#allocation7 + $0x2c] sm:$0xf]
    %v7717 = vld [vmem:[#allocation7 + $0x30] sm:$0xf]
    %v7718 = vld [vmem:[#allocation7 + $0x34] sm:$0xf]
    %v7719 = vld [vmem:[#allocation7 + $0x38] sm:$0xf]
    %v7720 = vld [vmem:[#allocation7 + $0x3c] sm:$0xf]
    %v7721 = vld [vmem:[#allocation7 + $0x40] sm:$0xf]
    %v7722 = vld [vmem:[#allocation7 + $0x44] sm:$0xf]
    %v7723 = vld [vmem:[#allocation7 + $0x48] sm:$0xf]
    %v7724 = vld [vmem:[#allocation7 + $0x4c] sm:$0xf]
    %v7725 = vld [vmem:[#allocation7 + $0x50] sm:$0xf]
    %v7726 = vld [vmem:[#allocation7 + $0x54] sm:$0xf]
    %v7727 = vld [vmem:[#allocation7 + $0x58] sm:$0xf]
    %v7728 = vld [vmem:[#allocation7 + $0x5c] sm:$0xf]
    %v7729 = vld [vmem:[#allocation7 + $0x60] sm:$0xf]
    %v7730 = vld [vmem:[#allocation7 + $0x64] sm:$0xf]
    %v7731 = vld [vmem:[#allocation7 + $0x68] sm:$0xf]
    %v7732 = vld [vmem:[#allocation7 + $0x6c] sm:$0xf]
    %v7733 = vld [vmem:[#allocation7 + $0x70] sm:$0xf]
    %v7734 = vld [vmem:[#allocation7 + $0x74] sm:$0xf]
    %v7735 = vld [vmem:[#allocation7 + $0x78] sm:$0xf]
    %v7736 = vld [vmem:[#allocation7 + $0x7c] sm:$0xf]
    %v7737 = vld [vmem:[#allocation7 + $0x80] sm:$0xf]
    %v7738 = vld [vmem:[#allocation7 + $0x84] sm:$0xf]
    %v7739 = vld [vmem:[#allocation7 + $0x88] sm:$0xf]
    %v7740 = vld [vmem:[#allocation7 + $0x8c] sm:$0xf]
    %v7741 = vld [vmem:[#allocation7 + $0x90] sm:$0xf]
    %v7742 = vld [vmem:[#allocation7 + $0x94] sm:$0xf]
    %v7743 = vld [vmem:[#allocation7 + $0x98] sm:$0xf]
    %v7744 = vld [vmem:[#allocation7 + $0x9c] sm:$0xf]
    %v7745 = vld [vmem:[#allocation7 + $0xa0] sm:$0xf]
    %v7746 = vld [vmem:[#allocation7 + $0xa4] sm:$0xf]
    %v7747 = vld [vmem:[#allocation7 + $0xa8] sm:$0xf]
    %v7748 = vld [vmem:[#allocation7 + $0xac] sm:$0xf]
    %v7749 = vld [vmem:[#allocation7 + $0xb0] sm:$0xf]
    %v7750 = vld [vmem:[#allocation7 + $0xb4] sm:$0xf]
    %v7751 = vld [vmem:[#allocation7 + $0xb8] sm:$0xf]
    %v7752 = vld [vmem:[#allocation7 + $0xbc] sm:$0xf]
    %v7753 = vld [vmem:[#allocation7 + $0xc0] sm:$0xf]
    %v7754 = vld [vmem:[#allocation7 + $0xc4] sm:$0xf]
    %v7755 = vld [vmem:[#allocation7 + $0xc8] sm:$0xf]
    %v7756 = vld [vmem:[#allocation7 + $0xcc] sm:$0xf]
    %v7757 = vld [vmem:[#allocation7 + $0xd0] sm:$0xf]
    %v7758 = vld [vmem:[#allocation7 + $0xd4] sm:$0xf]
    %v7759 = vld [vmem:[#allocation7 + $0xd8] sm:$0xf]
    %v7760 = vld [vmem:[#allocation7 + $0xdc] sm:$0xf]
    %v7761 = vld [vmem:[#allocation7 + $0xe0] sm:$0xf]
    %v7762 = vld [vmem:[#allocation7 + $0xe4] sm:$0xf]
    %v7763 = vld [vmem:[#allocation7 + $0xe8] sm:$0xf]
    %v7764 = vld [vmem:[#allocation7 + $0xec] sm:$0xf]
    %v7765 = vld [vmem:[#allocation7 + $0xf0] sm:$0xf]
    %v7766 = vld [vmem:[#allocation7 + $0xf4] sm:$0xf]
    %v7767 = vld [vmem:[#allocation7 + $0xf8] sm:$0xf]
    %v7768 = vld [vmem:[#allocation7 + $0xfc] sm:$0xf]
    %v7769 = vld [vmem:[#allocation7 + $0x100] sm:$0xf]
    %v7770 = vld [vmem:[#allocation7 + $0x104] sm:$0xf]
    %v7771 = vld [vmem:[#allocation7 + $0x108] sm:$0xf]
    %v7772 = vld [vmem:[#allocation7 + $0x10c] sm:$0xf]
    %v7773 = vld [vmem:[#allocation7 + $0x110] sm:$0xf]
    %v7774 = vld [vmem:[#allocation7 + $0x114] sm:$0xf]
    %v7775 = vld [vmem:[#allocation7 + $0x118] sm:$0xf]
    %v7776 = vld [vmem:[#allocation7 + $0x11c] sm:$0xf]
    %v7777 = vld [vmem:[#allocation7 + $0x120] sm:$0xf]
    %v7778 = vld [vmem:[#allocation7 + $0x124] sm:$0xf]
    %v7779 = vld [vmem:[#allocation7 + $0x128] sm:$0xf]
    %v7780 = vld [vmem:[#allocation7 + $0x12c] sm:$0xf]
    %v7781 = vld [vmem:[#allocation7 + $0x130] sm:$0xf]
    %v7782 = vld [vmem:[#allocation7 + $0x134] sm:$0xf]
    %v7783 = vld [vmem:[#allocation7 + $0x138] sm:$0xf]
    %v7784 = vld [vmem:[#allocation7 + $0x13c] sm:$0xf]
    %v7785 = vld [vmem:[#allocation7 + $0x140] sm:$0xf]
    %v7786 = vld [vmem:[#allocation7 + $0x144] sm:$0xf]
    %v7787 = vld [vmem:[#allocation7 + $0x148] sm:$0xf]
    %v7788 = vld [vmem:[#allocation7 + $0x14c] sm:$0xf]
    %v7789 = vld [vmem:[#allocation7 + $0x150] sm:$0xf]
    %v7790 = vld [vmem:[#allocation7 + $0x154] sm:$0xf]
    %v7791 = vld [vmem:[#allocation7 + $0x158] sm:$0xf]
    %v7792 = vld [vmem:[#allocation7 + $0x15c] sm:$0xf]
    %v7793 = vld [vmem:[#allocation7 + $0x160] sm:$0xf]
    %v7794 = vld [vmem:[#allocation7 + $0x164] sm:$0xf]
    %v7795 = vld [vmem:[#allocation7 + $0x168] sm:$0xf]
    %v7796 = vld [vmem:[#allocation7 + $0x16c] sm:$0xf]
    %v7797 = vld [vmem:[#allocation7 + $0x170] sm:$0xf]
    %v7798 = vld [vmem:[#allocation7 + $0x174] sm:$0xf]
    %v7799 = vld [vmem:[#allocation7 + $0x178] sm:$0xf]
    %v7800 = vld [vmem:[#allocation7 + $0x17c] sm:$0xf]
    %v7801 = vld [vmem:[#allocation7 + $0x180] sm:$0xf]
    %v7802 = vld [vmem:[#allocation7 + $0x184] sm:$0xf]
    %v7803 = vld [vmem:[#allocation7 + $0x188] sm:$0xf]
    %v7804 = vld [vmem:[#allocation7 + $0x18c] sm:$0xf]
    %v7805 = vld [vmem:[#allocation7 + $0x190] sm:$0xf]
    %v7806 = vld [vmem:[#allocation7 + $0x194] sm:$0xf]
    %v7807 = vld [vmem:[#allocation7 + $0x198] sm:$0xf]
    %v7808 = vld [vmem:[#allocation7 + $0x19c] sm:$0xf]
    %v7809 = vld [vmem:[#allocation7 + $0x1a0] sm:$0xf]
    %v7810 = vld [vmem:[#allocation7 + $0x1a4] sm:$0xf]
    %v7811 = vld [vmem:[#allocation7 + $0x1a8] sm:$0xf]
    %v7812 = vld [vmem:[#allocation7 + $0x1ac] sm:$0xf]
    %v7813 = vld [vmem:[#allocation7 + $0x1b0] sm:$0xf]
    %v7814 = vld [vmem:[#allocation7 + $0x1b4] sm:$0xf]
    %v7815 = vld [vmem:[#allocation7 + $0x1b8] sm:$0xf]
    %v7816 = vld [vmem:[#allocation7 + $0x1bc] sm:$0xf]
    %v7817 = vld [vmem:[#allocation7 + $0x1c0] sm:$0xf]
    %v7818 = vld [vmem:[#allocation7 + $0x1c4] sm:$0xf]
    %v7819 = vld [vmem:[#allocation7 + $0x1c8] sm:$0xf]
    %v7820 = vld [vmem:[#allocation7 + $0x1cc] sm:$0xf]
    %v7821 = vld [vmem:[#allocation7 + $0x1d0] sm:$0xf]
    %v7822 = vld [vmem:[#allocation7 + $0x1d4] sm:$0xf]
    %v7823 = vld [vmem:[#allocation7 + $0x1d8] sm:$0xf]
    %v7824 = vld [vmem:[#allocation7 + $0x1dc] sm:$0xf]
    %v7825 = vld [vmem:[#allocation7 + $0x1e0] sm:$0xf]
    %v7826 = vld [vmem:[#allocation7 + $0x1e4] sm:$0xf]
    %v7827 = vld [vmem:[#allocation7 + $0x1e8] sm:$0xf]
    %v7828 = vld [vmem:[#allocation7 + $0x1ec] sm:$0xf]
    %v7829 = vld [vmem:[#allocation7 + $0x1f0] sm:$0xf]
    %v7830 = vld [vmem:[#allocation7 + $0x1f4] sm:$0xf]
    %v7831 = vld [vmem:[#allocation7 + $0x1f8] sm:$0xf]
    %v7832 = vld [vmem:[#allocation7 + $0x1fc] sm:$0xf]
    %v7833 = vld [vmem:[#allocation8] sm:$0x1]
    %v7835 = vlaneseq
    %v7836 = vshrl.u32 %v7835, 7
    %v7837 = vsub.s32 0, %v7836
    %v7838 = vrot.slane %v7833, %v7837
    %v7968 = vunpack.c.l.b16 %v7705
    %v7969 = vunpack.c.l.b16 %v7706
    %v7970 = vunpack.c.l.b16 %v7707
    %v7971 = vunpack.c.l.b16 %v7708
    %v7972 = vunpack.c.l.b16 %v7709
    %v7973 = vunpack.c.l.b16 %v7710
    %v7974 = vunpack.c.l.b16 %v7711
    %v7975 = vunpack.c.l.b16 %v7712
    %v7976 = vunpack.c.l.b16 %v7713
    %v7977 = vunpack.c.l.b16 %v7714
    %v7978 = vunpack.c.l.b16 %v7715
    %v7979 = vunpack.c.l.b16 %v7716
    %v7980 = vunpack.c.l.b16 %v7717
    %v7981 = vunpack.c.l.b16 %v7718
    %v7982 = vunpack.c.l.b16 %v7719
    %v7983 = vunpack.c.l.b16 %v7720
    %v7984 = vunpack.c.l.b16 %v7721
    %v7985 = vunpack.c.l.b16 %v7722
    %v7986 = vunpack.c.l.b16 %v7723
    %v7987 = vunpack.c.l.b16 %v7724
    %v7988 = vunpack.c.l.b16 %v7725
    %v7989 = vunpack.c.l.b16 %v7726
    %v7990 = vunpack.c.l.b16 %v7727
    %v7991 = vunpack.c.l.b16 %v7728
    %v7992 = vunpack.c.l.b16 %v7729
    %v7993 = vunpack.c.l.b16 %v7730
    %v7994 = vunpack.c.l.b16 %v7731
    %v7995 = vunpack.c.l.b16 %v7732
    %v7996 = vunpack.c.l.b16 %v7733
    %v7997 = vunpack.c.l.b16 %v7734
    %v7998 = vunpack.c.l.b16 %v7735
    %v7999 = vunpack.c.l.b16 %v7736
    %v8000 = vunpack.c.l.b16 %v7737
    %v8001 = vunpack.c.l.b16 %v7738
    %v8002 = vunpack.c.l.b16 %v7739
    %v8003 = vunpack.c.l.b16 %v7740
    %v8004 = vunpack.c.l.b16 %v7741
    %v8005 = vunpack.c.l.b16 %v7742
    %v8006 = vunpack.c.l.b16 %v7743
    %v8007 = vunpack.c.l.b16 %v7744
    %v8008 = vunpack.c.l.b16 %v7745
    %v8009 = vunpack.c.l.b16 %v7746
    %v8010 = vunpack.c.l.b16 %v7747
    %v8011 = vunpack.c.l.b16 %v7748
    %v8012 = vunpack.c.l.b16 %v7749
    %v8013 = vunpack.c.l.b16 %v7750
    %v8014 = vunpack.c.l.b16 %v7751
    %v8015 = vunpack.c.l.b16 %v7752
    %v8016 = vunpack.c.l.b16 %v7753
    %v8017 = vunpack.c.l.b16 %v7754
    %v8018 = vunpack.c.l.b16 %v7755
    %v8019 = vunpack.c.l.b16 %v7756
    %v8020 = vunpack.c.l.b16 %v7757
    %v8021 = vunpack.c.l.b16 %v7758
    %v8022 = vunpack.c.l.b16 %v7759
    %v8023 = vunpack.c.l.b16 %v7760
    %v8024 = vunpack.c.l.b16 %v7761
    %v8025 = vunpack.c.l.b16 %v7762
    %v8026 = vunpack.c.l.b16 %v7763
    %v8027 = vunpack.c.l.b16 %v7764
    %v8028 = vunpack.c.l.b16 %v7765
    %v8029 = vunpack.c.l.b16 %v7766
    %v8030 = vunpack.c.l.b16 %v7767
    %v8031 = vunpack.c.l.b16 %v7768
    %v8032 = vunpack.c.l.b16 %v7769
    %v8033 = vunpack.c.l.b16 %v7770
    %v8034 = vunpack.c.l.b16 %v7771
    %v8035 = vunpack.c.l.b16 %v7772
    %v8036 = vunpack.c.l.b16 %v7773
    %v8037 = vunpack.c.l.b16 %v7774
    %v8038 = vunpack.c.l.b16 %v7775
    %v8039 = vunpack.c.l.b16 %v7776
    %v8040 = vunpack.c.l.b16 %v7777
    %v8041 = vunpack.c.l.b16 %v7778
    %v8042 = vunpack.c.l.b16 %v7779
    %v8043 = vunpack.c.l.b16 %v7780
    %v8044 = vunpack.c.l.b16 %v7781
    %v8045 = vunpack.c.l.b16 %v7782
    %v8046 = vunpack.c.l.b16 %v7783
    %v8047 = vunpack.c.l.b16 %v7784
    %v8048 = vunpack.c.l.b16 %v7785
    %v8049 = vunpack.c.l.b16 %v7786
    %v8050 = vunpack.c.l.b16 %v7787
    %v8051 = vunpack.c.l.b16 %v7788
    %v8052 = vunpack.c.l.b16 %v7789
    %v8053 = vunpack.c.l.b16 %v7790
    %v8054 = vunpack.c.l.b16 %v7791
    %v8055 = vunpack.c.l.b16 %v7792
    %v8056 = vunpack.c.l.b16 %v7793
    %v8057 = vunpack.c.l.b16 %v7794
    %v8058 = vunpack.c.l.b16 %v7795
    %v8059 = vunpack.c.l.b16 %v7796
    %v8060 = vunpack.c.l.b16 %v7797
    %v8061 = vunpack.c.l.b16 %v7798
    %v8062 = vunpack.c.l.b16 %v7799
    %v8063 = vunpack.c.l.b16 %v7800
    %v8064 = vunpack.c.l.b16 %v7801
    %v8065 = vunpack.c.l.b16 %v7802
    %v8066 = vunpack.c.l.b16 %v7803
    %v8067 = vunpack.c.l.b16 %v7804
    %v8068 = vunpack.c.l.b16 %v7805
    %v8069 = vunpack.c.l.b16 %v7806
    %v8070 = vunpack.c.l.b16 %v7807
    %v8071 = vunpack.c.l.b16 %v7808
    %v8072 = vunpack.c.l.b16 %v7809
    %v8073 = vunpack.c.l.b16 %v7810
    %v8074 = vunpack.c.l.b16 %v7811
    %v8075 = vunpack.c.l.b16 %v7812
    %v8076 = vunpack.c.l.b16 %v7813
    %v8077 = vunpack.c.l.b16 %v7814
    %v8078 = vunpack.c.l.b16 %v7815
    %v8079 = vunpack.c.l.b16 %v7816
    %v8080 = vunpack.c.l.b16 %v7817
    %v8081 = vunpack.c.l.b16 %v7818
    %v8082 = vunpack.c.l.b16 %v7819
    %v8083 = vunpack.c.l.b16 %v7820
    %v8084 = vunpack.c.l.b16 %v7821
    %v8085 = vunpack.c.l.b16 %v7822
    %v8086 = vunpack.c.l.b16 %v7823
    %v8087 = vunpack.c.l.b16 %v7824
    %v8088 = vunpack.c.l.b16 %v7825
    %v8089 = vunpack.c.l.b16 %v7826
    %v8090 = vunpack.c.l.b16 %v7827
    %v8091 = vunpack.c.l.b16 %v7828
    %v8092 = vunpack.c.l.b16 %v7829
    %v8093 = vunpack.c.l.b16 %v7830
    %v8094 = vunpack.c.l.b16 %v7831
    %v8095 = vunpack.c.l.b16 %v7832
    %v8096 = vpack.c.b16 %v7969, %v7968
    %v8097 = vpack.c.b16 %v7971, %v7970
    %v8098 = vpack.c.b16 %v7973, %v7972
    %v8099 = vpack.c.b16 %v7975, %v7974
    %v8100 = vpack.c.b16 %v7977, %v7976
    %v8101 = vpack.c.b16 %v7979, %v7978
    %v8102 = vpack.c.b16 %v7981, %v7980
    %v8103 = vpack.c.b16 %v7983, %v7982
    %v8104 = vpack.c.b16 %v7985, %v7984
    %v8105 = vpack.c.b16 %v7987, %v7986
    %v8106 = vpack.c.b16 %v7989, %v7988
    %v8107 = vpack.c.b16 %v7991, %v7990
    %v8108 = vpack.c.b16 %v7993, %v7992
    %v8109 = vpack.c.b16 %v7995, %v7994
    %v8110 = vpack.c.b16 %v7997, %v7996
    %v8111 = vpack.c.b16 %v7999, %v7998
    %v8112 = vpack.c.b16 %v8001, %v8000
    %v8113 = vpack.c.b16 %v8003, %v8002
    %v8114 = vpack.c.b16 %v8005, %v8004
    %v8115 = vpack.c.b16 %v8007, %v8006
    %v8116 = vpack.c.b16 %v8009, %v8008
    %v8117 = vpack.c.b16 %v8011, %v8010
    %v8118 = vpack.c.b16 %v8013, %v8012
    %v8119 = vpack.c.b16 %v8015, %v8014
    %v8120 = vpack.c.b16 %v8017, %v8016
    %v8121 = vpack.c.b16 %v8019, %v8018
    %v8122 = vpack.c.b16 %v8021, %v8020
    %v8123 = vpack.c.b16 %v8023, %v8022
    %v8124 = vpack.c.b16 %v8025, %v8024
    %v8125 = vpack.c.b16 %v8027, %v8026
    %v8126 = vpack.c.b16 %v8029, %v8028
    %v8127 = vpack.c.b16 %v8031, %v8030
    %v8128 = vpack.c.b16 %v8033, %v8032
    %v8129 = vpack.c.b16 %v8035, %v8034
    %v8130 = vpack.c.b16 %v8037, %v8036
    %v8131 = vpack.c.b16 %v8039, %v8038
    %v8132 = vpack.c.b16 %v8041, %v8040
    %v8133 = vpack.c.b16 %v8043, %v8042
    %v8134 = vpack.c.b16 %v8045, %v8044
    %v8135 = vpack.c.b16 %v8047, %v8046
    %v8136 = vpack.c.b16 %v8049, %v8048
    %v8137 = vpack.c.b16 %v8051, %v8050
    %v8138 = vpack.c.b16 %v8053, %v8052
    %v8139 = vpack.c.b16 %v8055, %v8054
    %v8140 = vpack.c.b16 %v8057, %v8056
    %v8141 = vpack.c.b16 %v8059, %v8058
    %v8142 = vpack.c.b16 %v8061, %v8060
    %v8143 = vpack.c.b16 %v8063, %v8062
    %v8144 = vpack.c.b16 %v8065, %v8064
    %v8145 = vpack.c.b16 %v8067, %v8066
    %v8146 = vpack.c.b16 %v8069, %v8068
    %v8147 = vpack.c.b16 %v8071, %v8070
    %v8148 = vpack.c.b16 %v8073, %v8072
    %v8149 = vpack.c.b16 %v8075, %v8074
    %v8150 = vpack.c.b16 %v8077, %v8076
    %v8151 = vpack.c.b16 %v8079, %v8078
    %v8152 = vpack.c.b16 %v8081, %v8080
    %v8153 = vpack.c.b16 %v8083, %v8082
    %v8154 = vpack.c.b16 %v8085, %v8084
    %v8155 = vpack.c.b16 %v8087, %v8086
    %v8156 = vpack.c.b16 %v8089, %v8088
    %v8157 = vpack.c.b16 %v8091, %v8090
    %v8158 = vpack.c.b16 %v8093, %v8092
    %v8159 = vpack.c.b16 %v8095, %v8094
    %8224 = vmatprep.subr.bf16.mxu0 0
    %8225 = vmatpush1.bf16.msra.mxu0 %v8096
    %8226 = vmatprep.subr.bf16.mxu0 0
    %8227 = vmatpush1.bf16.msra.mxu0 %v8097
    %8228 = vmatprep.subr.bf16.mxu0 0
    %8229 = vmatpush1.bf16.msra.mxu0 %v8098
    %8230 = vmatprep.subr.bf16.mxu0 0
    %8231 = vmatpush1.bf16.msra.mxu0 %v8099
    %8232 = vmatprep.subr.bf16.mxu0 0
    %8233 = vmatpush1.bf16.msra.mxu0 %v8100
    %8234 = vmatprep.subr.bf16.mxu0 0
    %8235 = vmatpush1.bf16.msra.mxu0 %v8101
    %8236 = vmatprep.subr.bf16.mxu0 0
    %8237 = vmatpush1.bf16.msra.mxu0 %v8102
    %8238 = vmatprep.subr.bf16.mxu0 0
    %8239 = vmatpush1.bf16.msra.mxu0 %v8103
    %8240 = vmatprep.subr.bf16.mxu0 0
    %8241 = vmatpush1.bf16.msra.mxu0 %v8104
    %8242 = vmatprep.subr.bf16.mxu0 0
    %8243 = vmatpush1.bf16.msra.mxu0 %v8105
    %8244 = vmatprep.subr.bf16.mxu0 0
    %8245 = vmatpush1.bf16.msra.mxu0 %v8106
    %8246 = vmatprep.subr.bf16.mxu0 0
    %8247 = vmatpush1.bf16.msra.mxu0 %v8107
    %8248 = vmatprep.subr.bf16.mxu0 0
    %8249 = vmatpush1.bf16.msra.mxu0 %v8108
    %8250 = vmatprep.subr.bf16.mxu0 0
    %8251 = vmatpush1.bf16.msra.mxu0 %v8109
    %8252 = vmatprep.subr.bf16.mxu0 0
    %8253 = vmatpush1.bf16.msra.mxu0 %v8110
    %8254 = vmatprep.subr.bf16.mxu0 0
    %8255 = vmatpush1.bf16.msra.mxu0 %v8111
    %8256 = vmatprep.mubr.bf16.mxu0 %v7698
    %8257 = vmatmul.mubr.bf16.gmra.mrb[0].mxu0 %v7697
    %v8258 = vpop.f32.mrb[0].mxu0
    %v8259 = vadd.f32 %v7838, %v8258
    %v8260 = vpop.f32.mrb[0].mxu0
    %v8261 = vpop.f32.mrb[0].mxu0
    %v8262 = vpop.f32.mrb[0].mxu0
    %8263 = vdwg.mxu0
    %8264 = vmatprep.subr.bf16.mxu0 0
    %8265 = vmatpush1.bf16.msra.mxu0 %v8112
    %8266 = vmatprep.subr.bf16.mxu0 0
    %8267 = vmatpush1.bf16.msra.mxu0 %v8113
    %8268 = vmatprep.subr.bf16.mxu0 0
    %8269 = vmatpush1.bf16.msra.mxu0 %v8114
    %8270 = vmatprep.subr.bf16.mxu0 0
    %8271 = vmatpush1.bf16.msra.mxu0 %v8115
    %8272 = vmatprep.subr.bf16.mxu0 0
    %8273 = vmatpush1.bf16.msra.mxu0 %v8116
    %8274 = vmatprep.subr.bf16.mxu0 0
    %8275 = vmatpush1.bf16.msra.mxu0 %v8117
    %8276 = vmatprep.subr.bf16.mxu0 0
    %8277 = vmatpush1.bf16.msra.mxu0 %v8118
    %8278 = vmatprep.subr.bf16.mxu0 0
    %8279 = vmatpush1.bf16.msra.mxu0 %v8119
    %8280 = vmatprep.subr.bf16.mxu0 0
    %8281 = vmatpush1.bf16.msra.mxu0 %v8120
    %8282 = vmatprep.subr.bf16.mxu0 0
    %8283 = vmatpush1.bf16.msra.mxu0 %v8121
    %8284 = vmatprep.subr.bf16.mxu0 0
    %8285 = vmatpush1.bf16.msra.mxu0 %v8122
    %8286 = vmatprep.subr.bf16.mxu0 0
    %8287 = vmatpush1.bf16.msra.mxu0 %v8123
    %8288 = vmatprep.subr.bf16.mxu0 0
    %8289 = vmatpush1.bf16.msra.mxu0 %v8124
    %8290 = vmatprep.subr.bf16.mxu0 0
    %8291 = vmatpush1.bf16.msra.mxu0 %v8125
    %8292 = vmatprep.subr.bf16.mxu0 0
    %8293 = vmatpush1.bf16.msra.mxu0 %v8126
    %8294 = vmatprep.subr.bf16.mxu0 0
    %8295 = vmatpush1.bf16.msra.mxu0 %v8127
    %8296 = vmatprep.mubr.bf16.mxu0 %v7700
    %8297 = vmatmul.mubr.bf16.gmra.mrb[0].mxu0 %v7699
    %v8298 = vpop.f32.mrb[0].mxu0
    %v8299 = vadd.f32 %v8259, %v8298
    %v8300 = vpop.f32.mrb[0].mxu0
    %v8301 = vpop.f32.mrb[0].mxu0
    %v8302 = vpop.f32.mrb[0].mxu0
    %8303 = vdwg.mxu0
    %8304 = vmatprep.subr.bf16.mxu0 0
    %8305 = vmatpush1.bf16.msra.mxu0 %v8128
    %8306 = vmatprep.subr.bf16.mxu0 0
    %8307 = vmatpush1.bf16.msra.mxu0 %v8129
    %8308 = vmatprep.subr.bf16.mxu0 0
    %8309 = vmatpush1.bf16.msra.mxu0 %v8130
    %8310 = vmatprep.subr.bf16.mxu0 0
    %8311 = vmatpush1.bf16.msra.mxu0 %v8131
    %8312 = vmatprep.subr.bf16.mxu0 0
    %8313 = vmatpush1.bf16.msra.mxu0 %v8132
    %8314 = vmatprep.subr.bf16.mxu0 0
    %8315 = vmatpush1.bf16.msra.mxu0 %v8133
    %8316 = vmatprep.subr.bf16.mxu0 0
    %8317 = vmatpush1.bf16.msra.mxu0 %v8134
    %8318 = vmatprep.subr.bf16.mxu0 0
    %8319 = vmatpush1.bf16.msra.mxu0 %v8135
    %8320 = vmatprep.subr.bf16.mxu0 0
    %8321 = vmatpush1.bf16.msra.mxu0 %v8136
    %8322 = vmatprep.subr.bf16.mxu0 0
    %8323 = vmatpush1.bf16.msra.mxu0 %v8137
    %8324 = vmatprep.subr.bf16.mxu0 0
    %8325 = vmatpush1.bf16.msra.mxu0 %v8138
    %8326 = vmatprep.subr.bf16.mxu0 0
    %8327 = vmatpush1.bf16.msra.mxu0 %v8139
    %8328 = vmatprep.subr.bf16.mxu0 0
    %8329 = vmatpush1.bf16.msra.mxu0 %v8140
    %8330 = vmatprep.subr.bf16.mxu0 0
    %8331 = vmatpush1.bf16.msra.mxu0 %v8141
    %8332 = vmatprep.subr.bf16.mxu0 0
    %8333 = vmatpush1.bf16.msra.mxu0 %v8142
    %8334 = vmatprep.subr.bf16.mxu0 0
    %8335 = vmatpush1.bf16.msra.mxu0 %v8143
    %8336 = vmatprep.mubr.bf16.mxu0 %v7702
    %8337 = vmatmul.mubr.bf16.gmra.mrb[0].mxu0 %v7701
    %v8338 = vpop.f32.mrb[0].mxu0
    %v8339 = vadd.f32 %v8299, %v8338
    %v8340 = vpop.f32.mrb[0].mxu0
    %v8341 = vpop.f32.mrb[0].mxu0
    %v8342 = vpop.f32.mrb[0].mxu0
    %8343 = vdwg.mxu0
    %8344 = vmatprep.subr.bf16.mxu0 0
    %8345 = vmatpush1.bf16.msra.mxu0 %v8144
    %8346 = vmatprep.subr.bf16.mxu0 0
    %8347 = vmatpush1.bf16.msra.mxu0 %v8145
    %8348 = vmatprep.subr.bf16.mxu0 0
    %8349 = vmatpush1.bf16.msra.mxu0 %v8146
    %8350 = vmatprep.subr.bf16.mxu0 0
    %8351 = vmatpush1.bf16.msra.mxu0 %v8147
    %8352 = vmatprep.subr.bf16.mxu0 0
    %8353 = vmatpush1.bf16.msra.mxu0 %v8148
    %8354 = vmatprep.subr.bf16.mxu0 0
    %8355 = vmatpush1.bf16.msra.mxu0 %v8149
    %8356 = vmatprep.subr.bf16.mxu0 0
    %8357 = vmatpush1.bf16.msra.mxu0 %v8150
    %8358 = vmatprep.subr.bf16.mxu0 0
    %8359 = vmatpush1.bf16.msra.mxu0 %v8151
    %8360 = vmatprep.subr.bf16.mxu0 0
    %8361 = vmatpush1.bf16.msra.mxu0 %v8152
    %8362 = vmatprep.subr.bf16.mxu0 0
    %8363 = vmatpush1.bf16.msra.mxu0 %v8153
    %8364 = vmatprep.subr.bf16.mxu0 0
    %8365 = vmatpush1.bf16.msra.mxu0 %v8154
    %8366 = vmatprep.subr.bf16.mxu0 0
    %8367 = vmatpush1.bf16.msra.mxu0 %v8155
    %8368 = vmatprep.subr.bf16.mxu0 0
    %8369 = vmatpush1.bf16.msra.mxu0 %v8156
    %8370 = vmatprep.subr.bf16.mxu0 0
    %8371 = vmatpush1.bf16.msra.mxu0 %v8157
    %8372 = vmatprep.subr.bf16.mxu0 0
    %8373 = vmatpush1.bf16.msra.mxu0 %v8158
    %8374 = vmatprep.subr.bf16.mxu0 0
    %8375 = vmatpush1.bf16.msra.mxu0 %v8159
    %8376 = vmatprep.mubr.bf16.mxu0 %v7704
    %8377 = vmatmul.mubr.bf16.gmra.mrb[0].mxu0 %v7703
    %v8378 = vpop.f32.mrb[0].mxu0
    %v8379 = vadd.f32 %v8339, %v8378
    %v8380 = vpop.f32.mrb[0].mxu0
    %v8381 = vpop.f32.mrb[0].mxu0
    %v8382 = vpop.f32.mrb[0].mxu0
    %8383 = vdwg.mxu0
    %8384 = vst [vmem:[#allocation10] sm:$0x3] %v8379
    // Predicated region
    $region38: #{inception_aux_forward.3} parent=1 // pred_check
      _
    $region39: #{inception_aux_forward.3} parent=1 // pred_check_branch
      %8386 = sbr.rel (0) target = $region41
    $region40: #{inception_aux_forward.3} parent=1 // pred_region
      %s8388 = ssub.s32 32, 32
      %8389 = vsyncadd [#allocation4], %s8388
      %s8391 = sshll.u32 [#allocation10], 4
      %s8392 = int_to_ptr.vmem [resolvable:$true] %s8391
      %8394 = dma.vmem_to_hbm [thread:$0]  %s8392, 32, %s5, [#allocation4]
    $region41: #{inception_aux_forward.3} parent=1 // pred_fallthru
      _
    // Predicated region
    $region42: #{inception_aux_forward.3} parent=1 // pred_check
      _
    $region43: #{inception_aux_forward.3} parent=1 // pred_check_branch
      %8396 = sbr.rel (0) target = $region45
    $region44: #{inception_aux_forward.3} parent=1 // pred_region
      %8397 = dma.done [#allocation4], 32
    $region45: #{inception_aux_forward.3} parent=1 // pred_fallthru
      _
    %8398 = vsyncpa [#allocation3], 1
    %8399 = vsyncpa [#allocation6], 1
    %8400 = vsyncpa [#allocation9], 1
    %8401 = vsyncpa [#allocation4], 1

</llo_original>
